<compile_context>
chip_gen: v6e
topology: v6e:2x2x1
jax: 0.10.0
libtpu: 0.0.40
codegen_flags: <defaults>
</compile_context>

<pallas_src>
import functools

import jax
import jax.numpy as jnp
from jax.experimental import pallas as pl
from jax.experimental.pallas import tpu as pltpu

F_DIM = 768   # per-stream feature dim implied by nn.Linear(768 * 2, num_classes)
LANES = 128


def _dual_pool_kernel(xr_ref, xo_ref, sr_ref, so_ref):
    """Streaming global-sum pooling for both video streams.

    Grid = (split, steps). Axis 0 ("parallel") = independent reduction chunks
    (v7x megacore); axis 1 ("arbitrary") streams dense (N*C, rows_tile, SUB, 128)
    tiles. Each chunk accumulates into its own fixed-size (N*C, SUB, 128) f32
    output block (output-as-accumulator), so VMEM stays flat however large the
    streaming tile is.
    """
    s = pl.program_id(1)

    @pl.when(s == 0)
    def _init():
        sr_ref[...] = jnp.zeros_like(sr_ref)
        so_ref[...] = jnp.zeros_like(so_ref)

    # Steady state: one f32 add per streamed element on dense vregs; the multi-MiB
    # DMA of the next tile overlaps via BlockSpec double-buffering.
    sr_ref[...] += jnp.sum(xr_ref[...].astype(jnp.float32), axis=1)
    so_ref[...] += jnp.sum(xo_ref[...].astype(jnp.float32), axis=1)


def _head_kernel(pr_ref, po_ref, rw_ref, rb_ref, ow_ref, ob_ref, cw_ref, cb_ref,
                 o_ref, *, f_dim):
    """Un-fused micro head: per-stream feature Linear + concat-free classifier."""
    hi = jax.lax.Precision.HIGHEST
    h = jnp.dot(pr_ref[...], rw_ref[...], precision=hi,
                preferred_element_type=jnp.float32) + rb_ref[...]
    m = jnp.dot(po_ref[...], ow_ref[...], precision=hi,
                preferred_element_type=jnp.float32) + ob_ref[...]
    # classifier(torch.cat([h, m], 1)) without materializing the concat.
    logits = jnp.dot(h, cw_ref[0:f_dim, :], precision=hi,
                     preferred_element_type=jnp.float32)
    logits = logits + jnp.dot(m, cw_ref[f_dim:2 * f_dim, :], precision=hi,
                              preferred_element_type=jnp.float32)
    o_ref[...] = logits + cb_ref[...]


def ds_net_forward(params, x, x_o, *, target_block_bytes=4 * 1024 * 1024):
    """DS_NET.forward(x, x_o) -> logits (N, num_classes).  x, x_o: NCDHW video."""
    assert x.shape == x_o.shape and x.dtype == x_o.dtype
    n, c, t, hgt, wid = x.shape
    s_total = t * hgt * wid
    nc = n * c
    num_classes = params["cls_w"].shape[1]

    # Dense (sublane, lane) streaming layout: SUB=8 for f32, 16 for bf16 producers
    # (v5e benefits most from genuine bf16 at source -- never cast here).
    sub = 16 if x.dtype == jnp.bfloat16 else 8
    chunk = sub * LANES
    dbytes = x.dtype.itemsize

    def prep(v):
        v = v.reshape(nc, s_total)
        rem = s_total % chunk
        if rem:
            # TODO(synk): non-(SUB*128)-divisible S pays one extra HBM pad pass;
            # standard MFNET_3D clip sizes take the free contiguous-reshape path.
            v = jnp.pad(v, ((0, 0), (0, chunk - rem)))
        return v.reshape(nc, -1, sub, LANES)

    xr, xo = prep(x), prep(x_o)
    num_rows = xr.shape[1]

    # Megacore: split the S reduction into two independent chunks (one per v7x TC).
    # On 1-TC chips (v5e/v6e) the extra grid axis is just a short sequential loop.
    split = 2 if num_rows % 2 == 0 else 1
    rows_per_chunk = num_rows // split

    # Per-step DMA volume ~= target_block_bytes per stream (largest divisor of the
    # chunk length <= target) -> HBM-roofline-bound instead of step-overhead-bound.
    rows_tile = max(1, min(rows_per_chunk,
                           target_block_bytes // (nc * chunk * dbytes)))
    while rows_per_chunk % rows_tile:
        rows_tile -= 1
    steps = rows_per_chunk // rows_tile

    stream_spec = pl.BlockSpec((nc, rows_tile, sub, LANES),
                               lambda p, s: (0, p * steps + s, 0, 0))
    acc_spec = pl.BlockSpec((None, nc, sub, LANES), lambda p, s: (p, 0, 0, 0))
    acc_shape = jax.ShapeDtypeStruct((split, nc, sub, LANES), jnp.float32)

    # TODO(synk): the two streams stay as two input pipelines because DS_NET's
    # forward takes two separate tensors; merging them would need a wrapper-side
    # concatenate (an extra full HBM pass), which the perf review forbids.
    sum_r, sum_o = pl.pallas_call(
        _dual_pool_kernel,
        grid=(split, steps),
        in_specs=[stream_spec, stream_spec],
        out_specs=[acc_spec, acc_spec],
        out_shape=[acc_shape, acc_shape],
        compiler_params=pltpu.CompilerParams(
            dimension_semantics=("parallel", "arbitrary"),
            vmem_limit_bytes=48 * 1024 * 1024,
        ),
    )(xr, xo)

    # Tiny cross-lane / cross-chunk reduction + mean scale (<=96 KiB of glue).
    inv_s = 1.0 / float(s_total)
    pooled_r = (jnp.sum(sum_r, axis=(0, 2, 3)) * inv_s).reshape(n, c)
    pooled_o = (jnp.sum(sum_o, axis=(0, 2, 3)) * inv_s).reshape(n, c)

    # Lane-dense classifier output: pad num_classes up to a multiple of 128.
    nc_pad = -(-num_classes // LANES) * LANES
    cls_w = jnp.pad(params["cls_w"], ((0, 0), (0, nc_pad - num_classes)))
    cls_b = jnp.pad(params["cls_b"], (0, nc_pad - num_classes)).reshape(1, nc_pad)

    logits_pad = pl.pallas_call(
        functools.partial(_head_kernel, f_dim=F_DIM),
        out_shape=jax.ShapeDtypeStruct((n, nc_pad), jnp.float32),
    )(pooled_r, pooled_o,
      params["rgb_w"], params["rgb_b"].reshape(1, F_DIM),
      params["of_w"], params["of_b"].reshape(1, F_DIM),
      cls_w, cls_b)

    return logits_pad[:, :num_classes]


def ds_net_reference(params, x, x_o):
    """Pure-JAX f32 reference matching the PyTorch forward semantics."""
    def feat(v, wt, b):
        nb, cb = v.shape[:2]
        pooled = jnp.mean(v.reshape(nb, cb, -1), axis=-1)
        return jnp.dot(pooled, wt, precision="highest") + b

    h = feat(x, params["rgb_w"], params["rgb_b"])
    m = feat(x_o, params["of_w"], params["of_b"])
    hm = jnp.concatenate([h, m], axis=1)
    return jnp.dot(hm, params["cls_w"], precision="highest") + params["cls_b"]


def init_params(key, in_channels, num_classes):
    k = jax.random.split(key, 6)
    s_bb = 1.0 / jnp.sqrt(jnp.float32(in_channels))
    s_cls = 1.0 / jnp.sqrt(jnp.float32(2 * F_DIM))
    return {
        "rgb_w": jax.random.uniform(k[0], (in_channels, F_DIM), jnp.float32, -s_bb, s_bb),
        "rgb_b": jax.random.uniform(k[1], (F_DIM,), jnp.float32, -s_bb, s_bb),
        "of_w":  jax.random.uniform(k[2], (in_channels, F_DIM), jnp.float32, -s_bb, s_bb),
        "of_b":  jax.random.uniform(k[3], (F_DIM,), jnp.float32, -s_bb, s_bb),
        # nn.Linear(768*2, num_classes): weight stored transposed as (1536, nc)
        "cls_w": jax.random.uniform(k[4], (2 * F_DIM, num_classes), jnp.float32, -s_cls, s_cls),
        "cls_b": jax.random.uniform(k[5], (num_classes,), jnp.float32, -s_cls, s_cls),
    }


if __name__ == "__main__":
    key = jax.random.PRNGKey(0)
    kx, ko, kp = jax.random.split(key, 3)

    batch, chan, t, hgt, wid = 2, 3, 8, 16, 16   # NCDHW clips; S = 2048 (dense path)
    num_classes = 16

    x = jax.random.normal(kx, (batch, chan, t, hgt, wid), jnp.float32)     # rgb stream
    x_o = jax.random.normal(ko, (batch, chan, t, hgt, wid), jnp.float32)   # optical flow
    params = init_params(kp, chan, num_classes)

    out = jax.jit(ds_net_forward)(params, x, x_o)
    out = jax.block_until_ready(out)
    assert out.shape == (batch, num_classes)
    assert out.dtype == jnp.float32

    ref = ds_net_reference(params, x, x_o)
    assert jnp.allclose(out, ref, atol=2e-3, rtol=2e-3), (
        f"max abs err {jnp.max(jnp.abs(out - ref))}")

    print("KERNEL_OK")
</pallas_src>

<mosaic_0001>
module attributes {stable_mosaic.version = 11 : i64} {
  func.func @_dual_pool_kernel(%arg0: i32, %arg1: i32, %arg2: memref<6x1x8x128xf32, #tpu.memory_space<vmem>>, %arg3: memref<6x1x8x128xf32, #tpu.memory_space<vmem>>, %arg4: memref<1x6x8x128xf32, #tpu.memory_space<vmem>>, %arg5: memref<1x6x8x128xf32, #tpu.memory_space<vmem>>) attributes {dimension_semantics = [#tpu.dimension_semantics<parallel>, #tpu.dimension_semantics<arbitrary>], iteration_bounds = array<i64: 2, 1>, scalar_prefetch = 0 : i64, scratch_operands = 0 : i64, tpu.core_type = #tpu.core_type<tc>, window_params = [{transform_indices = @transform_0, window_bounds = array<i64: 6, 1, 8, 128>}, {transform_indices = @transform_1, window_bounds = array<i64: 6, 1, 8, 128>}, {transform_indices = @transform_2, window_bounds = array<i64: 1, 6, 8, 128>}, {transform_indices = @transform_3, window_bounds = array<i64: 1, 6, 8, 128>}]} {
    %c0_i32 = arith.constant 0 : i32
    %0 = arith.cmpi eq, %arg1, %c0_i32 : i32
    %1 = arith.extui %0 : i1 to i32
    %c0_i32_0 = arith.constant 0 : i32
    %2 = arith.cmpi ne, %1, %c0_i32_0 : i32
    scf.if %2 {
      %cst_25 = arith.constant 0.000000e+00 : f32
      %19 = vector.broadcast %cst_25 : f32 to vector<6x8x128xf32>
      %c0_26 = arith.constant 0 : index
      %c0_27 = arith.constant 0 : index
      %c0_28 = arith.constant 0 : index
      %c0_29 = arith.constant 0 : index
      %20 = vector.load %arg4[%c0_26, %c0_27, %c0_28, %c0_29] : memref<1x6x8x128xf32, #tpu.memory_space<vmem>>, vector<1x6x8x128xf32>
      %21 = vector.shape_cast %20 : vector<1x6x8x128xf32> to vector<6x8x128xf32>
      %22 = vector.shape_cast %19 : vector<6x8x128xf32> to vector<1x6x8x128xf32>
      tpu.vector_store %arg4[%c0_26, %c0_27, %c0_28, %c0_29], %22 {strides = array<i32>} : memref<1x6x8x128xf32, #tpu.memory_space<vmem>>, vector<1x6x8x128xf32>,
      %cst_30 = arith.constant 0.000000e+00 : f32
      %23 = vector.broadcast %cst_30 : f32 to vector<6x8x128xf32>
      %c0_31 = arith.constant 0 : index
      %c0_32 = arith.constant 0 : index
      %c0_33 = arith.constant 0 : index
      %c0_34 = arith.constant 0 : index
      %24 = vector.load %arg5[%c0_31, %c0_32, %c0_33, %c0_34] : memref<1x6x8x128xf32, #tpu.memory_space<vmem>>, vector<1x6x8x128xf32>
      %25 = vector.shape_cast %24 : vector<1x6x8x128xf32> to vector<6x8x128xf32>
      %26 = vector.shape_cast %23 : vector<6x8x128xf32> to vector<1x6x8x128xf32>
      tpu.vector_store %arg5[%c0_31, %c0_32, %c0_33, %c0_34], %26 {strides = array<i32>} : memref<1x6x8x128xf32, #tpu.memory_space<vmem>>, vector<1x6x8x128xf32>,
    } else {
    }
    %c0 = arith.constant 0 : index
    %c0_1 = arith.constant 0 : index
    %c0_2 = arith.constant 0 : index
    %c0_3 = arith.constant 0 : index
    %3 = vector.load %arg4[%c0, %c0_1, %c0_2, %c0_3] : memref<1x6x8x128xf32, #tpu.memory_space<vmem>>, vector<1x6x8x128xf32>
    %4 = vector.shape_cast %3 : vector<1x6x8x128xf32> to vector<6x8x128xf32>
    %c0_4 = arith.constant 0 : index
    %c0_5 = arith.constant 0 : index
    %c0_6 = arith.constant 0 : index
    %c0_7 = arith.constant 0 : index
    %5 = vector.load %arg2[%c0_4, %c0_5, %c0_6, %c0_7] : memref<6x1x8x128xf32, #tpu.memory_space<vmem>>, vector<6x1x8x128xf32>
    %cst = arith.constant dense<0.000000e+00> : vector<6x8x128xf32>
    %6 = vector.multi_reduction <add>, %5, %cst [1] : vector<6x1x8x128xf32> to vector<6x8x128xf32>
    %7 = arith.addf %4, %6 : vector<6x8x128xf32>
    %c0_8 = arith.constant 0 : index
    %c0_9 = arith.constant 0 : index
    %c0_10 = arith.constant 0 : index
    %c0_11 = arith.constant 0 : index
    %8 = vector.load %arg4[%c0_8, %c0_9, %c0_10, %c0_11] : memref<1x6x8x128xf32, #tpu.memory_space<vmem>>, vector<1x6x8x128xf32>
    %9 = vector.shape_cast %8 : vector<1x6x8x128xf32> to vector<6x8x128xf32>
    %10 = vector.shape_cast %7 : vector<6x8x128xf32> to vector<1x6x8x128xf32>
    tpu.vector_store %arg4[%c0_8, %c0_9, %c0_10, %c0_11], %10 {strides = array<i32>} : memref<1x6x8x128xf32, #tpu.memory_space<vmem>>, vector<1x6x8x128xf32>,
    %c0_12 = arith.constant 0 : index
    %c0_13 = arith.constant 0 : index
    %c0_14 = arith.constant 0 : index
    %c0_15 = arith.constant 0 : index
    %11 = vector.load %arg5[%c0_12, %c0_13, %c0_14, %c0_15] : memref<1x6x8x128xf32, #tpu.memory_space<vmem>>, vector<1x6x8x128xf32>
    %12 = vector.shape_cast %11 : vector<1x6x8x128xf32> to vector<6x8x128xf32>
    %c0_16 = arith.constant 0 : index
    %c0_17 = arith.constant 0 : index
    %c0_18 = arith.constant 0 : index
    %c0_19 = arith.constant 0 : index
    %13 = vector.load %arg3[%c0_16, %c0_17, %c0_18, %c0_19] : memref<6x1x8x128xf32, #tpu.memory_space<vmem>>, vector<6x1x8x128xf32>
    %cst_20 = arith.constant dense<0.000000e+00> : vector<6x8x128xf32>
    %14 = vector.multi_reduction <add>, %13, %cst_20 [1] : vector<6x1x8x128xf32> to vector<6x8x128xf32>
    %15 = arith.addf %12, %14 : vector<6x8x128xf32>
    %c0_21 = arith.constant 0 : index
    %c0_22 = arith.constant 0 : index
    %c0_23 = arith.constant 0 : index
    %c0_24 = arith.constant 0 : index
    %16 = vector.load %arg5[%c0_21, %c0_22, %c0_23, %c0_24] : memref<1x6x8x128xf32, #tpu.memory_space<vmem>>, vector<1x6x8x128xf32>
    %17 = vector.shape_cast %16 : vector<1x6x8x128xf32> to vector<6x8x128xf32>
    %18 = vector.shape_cast %15 : vector<6x8x128xf32> to vector<1x6x8x128xf32>
    tpu.vector_store %arg5[%c0_21, %c0_22, %c0_23, %c0_24], %18 {strides = array<i32>} : memref<1x6x8x128xf32, #tpu.memory_space<vmem>>, vector<1x6x8x128xf32>,
    return
  }
  func.func @transform_0(%arg0: i32, %arg1: i32) -> (i32, i32, i32, i32) {
    %c1_i32 = arith.constant 1 : i32
    %0 = arith.muli %arg0, %c1_i32 : i32
    %1 = arith.addi %0, %arg1 : i32
    %c0_i32 = arith.constant 0 : i32
    %c0_i32_0 = arith.constant 0 : i32
    %c0_i32_1 = arith.constant 0 : i32
    %c0_i32_2 = arith.constant 0 : i32
    return %c0_i32, %1, %c0_i32_0, %c0_i32_1 : i32, i32, i32, i32
  }
  func.func @transform_1(%arg0: i32, %arg1: i32) -> (i32, i32, i32, i32) {
    %c1_i32 = arith.constant 1 : i32
    %0 = arith.muli %arg0, %c1_i32 : i32
    %1 = arith.addi %0, %arg1 : i32
    %c0_i32 = arith.constant 0 : i32
    %c0_i32_0 = arith.constant 0 : i32
    %c0_i32_1 = arith.constant 0 : i32
    %c0_i32_2 = arith.constant 0 : i32
    return %c0_i32, %1, %c0_i32_0, %c0_i32_1 : i32, i32, i32, i32
  }
  func.func @transform_2(%arg0: i32, %arg1: i32) -> (i32, i32, i32, i32) {
    %c0_i32 = arith.constant 0 : i32
    %c0_i32_0 = arith.constant 0 : i32
    %c0_i32_1 = arith.constant 0 : i32
    %c0_i32_2 = arith.constant 0 : i32
    return %arg0, %c0_i32, %c0_i32_0, %c0_i32_1 : i32, i32, i32, i32
  }
  func.func @transform_3(%arg0: i32, %arg1: i32) -> (i32, i32, i32, i32) {
    %c0_i32 = arith.constant 0 : i32
    %c0_i32_0 = arith.constant 0 : i32
    %c0_i32_1 = arith.constant 0 : i32
    %c0_i32_2 = arith.constant 0 : i32
    return %arg0, %c0_i32, %c0_i32_0, %c0_i32_1 : i32, i32, i32, i32
  }
}

module attributes {stable_mosaic.version = 11 : i64} {
  func.func @_head_kernel(%arg0: memref<2x3xf32, #tpu.memory_space<vmem>>, %arg1: memref<2x3xf32, #tpu.memory_space<vmem>>, %arg2: memref<3x768xf32, #tpu.memory_space<vmem>>, %arg3: memref<1x768xf32, #tpu.memory_space<vmem>>, %arg4: memref<3x768xf32, #tpu.memory_space<vmem>>, %arg5: memref<1x768xf32, #tpu.memory_space<vmem>>, %arg6: memref<1536x128xf32, #tpu.memory_space<vmem>>, %arg7: memref<1x128xf32, #tpu.memory_space<vmem>>, %arg8: memref<2x128xf32, #tpu.memory_space<vmem>>) attributes {dimension_semantics = [], scalar_prefetch = 0 : i64, scratch_operands = 0 : i64, tpu.core_type = #tpu.core_type<tc>} {
    %c0 = arith.constant 0 : index
    %c0_0 = arith.constant 0 : index
    %0 = vector.load %arg0[%c0, %c0_0] : memref<2x3xf32, #tpu.memory_space<vmem>>, vector<2x3xf32>
    %c0_1 = arith.constant 0 : index
    %c0_2 = arith.constant 0 : index
    %1 = vector.load %arg2[%c0_1, %c0_2] : memref<3x768xf32, #tpu.memory_space<vmem>>, vector<3x768xf32>
    %cst = arith.constant dense<0.000000e+00> : vector<2x768xf32>
    %2 = tpu.matmul %0, %1, %cst {dimension_numbers = #tpu.dot_dimension_numbers<[1], [0], [0], [1], [0, 0, 1, 1], [], []>, precision = #tpu.contract_precision<fp32>} : vector<2x3xf32>, vector<3x768xf32>, vector<2x768xf32> -> vector<2x768xf32>
    %c0_3 = arith.constant 0 : index
    %c0_4 = arith.constant 0 : index
    %3 = vector.load %arg3[%c0_3, %c0_4] : memref<1x768xf32, #tpu.memory_space<vmem>>, vector<1x768xf32>
    %4 = vector.broadcast %3 : vector<1x768xf32> to vector<2x768xf32>
    %5 = arith.addf %2, %4 : vector<2x768xf32>
    %c0_5 = arith.constant 0 : index
    %c0_6 = arith.constant 0 : index
    %6 = vector.load %arg1[%c0_5, %c0_6] : memref<2x3xf32, #tpu.memory_space<vmem>>, vector<2x3xf32>
    %c0_7 = arith.constant 0 : index
    %c0_8 = arith.constant 0 : index
    %7 = vector.load %arg4[%c0_7, %c0_8] : memref<3x768xf32, #tpu.memory_space<vmem>>, vector<3x768xf32>
    %cst_9 = arith.constant dense<0.000000e+00> : vector<2x768xf32>
    %8 = tpu.matmul %6, %7, %cst_9 {dimension_numbers = #tpu.dot_dimension_numbers<[1], [0], [0], [1], [0, 0, 1, 1], [], []>, precision = #tpu.contract_precision<fp32>} : vector<2x3xf32>, vector<3x768xf32>, vector<2x768xf32> -> vector<2x768xf32>
    %c0_10 = arith.constant 0 : index
    %c0_11 = arith.constant 0 : index
    %9 = vector.load %arg5[%c0_10, %c0_11] : memref<1x768xf32, #tpu.memory_space<vmem>>, vector<1x768xf32>
    %10 = vector.broadcast %9 : vector<1x768xf32> to vector<2x768xf32>
    %11 = arith.addf %8, %10 : vector<2x768xf32>
    %c0_12 = arith.constant 0 : index
    %c0_13 = arith.constant 0 : index
    %12 = vector.load %arg6[%c0_12, %c0_13] : memref<1536x128xf32, #tpu.memory_space<vmem>>, vector<768x128xf32>
    %cst_14 = arith.constant dense<0.000000e+00> : vector<2x128xf32>
    %13 = tpu.matmul %5, %12, %cst_14 {dimension_numbers = #tpu.dot_dimension_numbers<[1], [0], [0], [1], [0, 0, 1, 1], [], []>, precision = #tpu.contract_precision<fp32>} : vector<2x768xf32>, vector<768x128xf32>, vector<2x128xf32> -> vector<2x128xf32>
    %c768 = arith.constant 768 : index
    %c0_15 = arith.constant 0 : index
    %14 = vector.load %arg6[%c768, %c0_15] : memref<1536x128xf32, #tpu.memory_space<vmem>>, vector<768x128xf32>
    %cst_16 = arith.constant dense<0.000000e+00> : vector<2x128xf32>
    %15 = tpu.matmul %11, %14, %cst_16 {dimension_numbers = #tpu.dot_dimension_numbers<[1], [0], [0], [1], [0, 0, 1, 1], [], []>, precision = #tpu.contract_precision<fp32>} : vector<2x768xf32>, vector<768x128xf32>, vector<2x128xf32> -> vector<2x128xf32>
    %16 = arith.addf %13, %15 : vector<2x128xf32>
    %c0_17 = arith.constant 0 : index
    %c0_18 = arith.constant 0 : index
    %17 = vector.load %arg7[%c0_17, %c0_18] : memref<1x128xf32, #tpu.memory_space<vmem>>, vector<1x128xf32>
    %18 = vector.broadcast %17 : vector<1x128xf32> to vector<2x128xf32>
    %19 = arith.addf %16, %18 : vector<2x128xf32>
    %c0_19 = arith.constant 0 : index
    %c0_20 = arith.constant 0 : index
    %20 = vector.load %arg8[%c0_19, %c0_20] : memref<2x128xf32, #tpu.memory_space<vmem>>, vector<2x128xf32>
    tpu.vector_store %arg8[%c0_19, %c0_20], %19 {strides = array<i32>} : memref<2x128xf32, #tpu.memory_space<vmem>>, vector<2x128xf32>,
    return
  }
}

</mosaic_0001>

<llo_original>
// kernel: ds_net_forward.2
$region0: #{ds_net_forward.2}
  #allocation0 [shape = 'u32[]', space=smem, size = 0x4, offset = 0x4, fixed_abs, tag = 'smem constant byte address 0x4 - core index']
  #allocation1 [shape = 'u32[144,128]{1,0:T(1,128)}', space=vmem, size = 0x12000, scoped, tag = 'internal scratch']
  %s0 = inlined_call_operand.vmem [shape: f32[6,2,8,128], index: 0, kind: input, shape index: {}]
  %s1 = inlined_call_operand.vmem [shape: f32[6,2,8,128], index: 1, kind: input, shape index: {}]
  %s2 = inlined_call_operand.vmem [shape: f32[2,6,8,128], index: 2, kind: output, shape index: {0}]
  %s3 = inlined_call_operand.vmem [shape: f32[2,6,8,128], index: 3, kind: output, shape index: {1}]
  %4 = xla_tuple %s2, %s3
  %s5 = sld [smem:[#allocation0]]
  $region129: #{ds_net_forward.2} parent=0
    _
  %s7 = ssub.s32 1, %s5
  %s8 = scalar_select 0, %s7, %s5
  $region1: #{ds_net_forward.2} parent=0
    #allocation2 [shape = 'u8[49152]{0}', space=vmem, size = 0xc000, scoped, tag = 'input window, operand 0']
    #allocation3 [shape = 'u8[49152]{0}', space=vmem, size = 0xc000, scoped, tag = 'input window, operand 1']
    loop: start=0, step=1, limit=4
    $region2: #{ds_net_forward.2} parent=1 // loop_pre_header
      _
    $region3: #{ds_net_forward.2} parent=1 // loop_header
      %s10 = sphi 0, %s14
      %p11 = scmp.ge.s32.totalorder %s10, 4
      %s17 = sphi 0, %s29
      %s18 = sphi 0, %s25
      %s19 = sphi 0, %s17
      %s20 = sphi 0, %s18
      %s21 = sphi 0, %s19
      %s22 = sphi 0, %s20
      %s34 = sphi 0, %s36
      %s37 = sphi 0, %s34
      %s38 = sphi 0, %s37
      %s54 = sphi 0, %s38
      %s62 = sphi 0, %s64
      %s65 = sphi 0, %s62
      %s66 = sphi 0, %s65
      %s82 = sphi 0, %s66
      %s88 = sphi 0, %s90
      %s91 = sphi 0, %s88
      %s92 = sphi 0, %s91
      %s108 = sphi 0, %s92
      %s114 = sphi 0, %s116
      %s117 = sphi 0, %s114
      %s118 = sphi 0, %s117
      %s134 = sphi 0, %s118
    $region4: #{ds_net_forward.2} parent=1 // loop_header_branch
      %13 = sbr.rel (%p11) target = $region8
    $region5: #{ds_net_forward.2} parent=1 // loop_body
      %s15 = ssub.s32 %s10, 1
      %s16 = ssub.s32 %s10, 2
      %s23 = sadd.s32 1, %s18
      %p24 = scmp.ge.s32.totalorder %s23, 1
      %s25 = scalar_select %p24, 0, %s23
      %s26 = sadd.s32 1, %s17
      %s27 = scalar_select %p24, %s26, %s17
      %p28 = scmp.ge.s32.totalorder %s27, 2
      %s29 = scalar_select %p28, 0, %s27
      %s30 = sadd.s32 %s17, %s18
      %s31 = sadd.s32 %s29, %s25
      %s32 = ssub.s32 %s30, %s31
      %p33 = scmp.eq.s32.totalorder %s32, 0
      %s35 = sadd.s32 %s34, 1
      %s36 = scalar_select %p33, %s34, %s35
      %p39 = pneg %p33
      %p40 = scmp.eq.s32.totalorder %s10, 1
      %p41 = por %p39, %p40
      %p42 = scmp.ne.s32.totalorder %s34, %s37
      %p43 = scmp.eq.s32.totalorder %s10, 0
      %p44 = por %p42, %p43
      %p45 = scmp.ne.s32.totalorder %s34, %s37
      %p46 = scmp.eq.s32.totalorder %s15, 1
      %p47 = por %p45, %p46
      %p48 = scmp.ne.s32.totalorder %s37, %s38
      %p49 = scmp.eq.s32.totalorder %s15, 0
      %p50 = por %p48, %p49
      %p51 = scmp.ne.s32.totalorder %s37, %s38
      %p52 = scmp.eq.s32.totalorder %s16, 1
      %p53 = por %p51, %p52
      %p55 = scmp.ne.s32.totalorder %s38, %s54
      %p56 = scmp.eq.s32.totalorder %s16, 0
      %p57 = por %p55, %p56
      %s58 = sadd.s32 %s17, %s18
      %s59 = sadd.s32 %s29, %s25
      %s60 = ssub.s32 %s58, %s59
      %p61 = scmp.eq.s32.totalorder %s60, 0
      %s63 = sadd.s32 %s62, 1
      %s64 = scalar_select %p61, %s62, %s63
      %p67 = pneg %p61
      %p68 = scmp.eq.s32.totalorder %s10, 1
      %p69 = por %p67, %p68
      %p70 = scmp.ne.s32.totalorder %s62, %s65
      %p71 = scmp.eq.s32.totalorder %s10, 0
      %p72 = por %p70, %p71
      %p73 = scmp.ne.s32.totalorder %s62, %s65
      %p74 = scmp.eq.s32.totalorder %s15, 1
      %p75 = por %p73, %p74
      %p76 = scmp.ne.s32.totalorder %s65, %s66
      %p77 = scmp.eq.s32.totalorder %s15, 0
      %p78 = por %p76, %p77
      %p79 = scmp.ne.s32.totalorder %s65, %s66
      %p80 = scmp.eq.s32.totalorder %s16, 1
      %p81 = por %p79, %p80
      %p83 = scmp.ne.s32.totalorder %s66, %s82
      %p84 = scmp.eq.s32.totalorder %s16, 0
      %p85 = por %p83, %p84
      %s86 = ssub.s32 %s17, %s29
      %p87 = scmp.eq.s32.totalorder %s86, 0
      %s89 = sadd.s32 %s88, 1
      %s90 = scalar_select %p87, %s88, %s89
      %p93 = pneg %p87
      %p94 = scmp.eq.s32.totalorder %s10, 1
      %p95 = por %p93, %p94
      %p96 = scmp.ne.s32.totalorder %s88, %s91
      %p97 = scmp.eq.s32.totalorder %s10, 0
      %p98 = por %p96, %p97
      %p99 = scmp.ne.s32.totalorder %s88, %s91
      %p100 = scmp.eq.s32.totalorder %s15, 1
      %p101 = por %p99, %p100
      %p102 = scmp.ne.s32.totalorder %s91, %s92
      %p103 = scmp.eq.s32.totalorder %s15, 0
      %p104 = por %p102, %p103
      %p105 = scmp.ne.s32.totalorder %s91, %s92
      %p106 = scmp.eq.s32.totalorder %s16, 1
      %p107 = por %p105, %p106
      %p109 = scmp.ne.s32.totalorder %s92, %s108
      %p110 = scmp.eq.s32.totalorder %s16, 0
      %p111 = por %p109, %p110
      %s112 = ssub.s32 %s17, %s29
      %p113 = scmp.eq.s32.totalorder %s112, 0
      %s115 = sadd.s32 %s114, 1
      %s116 = scalar_select %p113, %s114, %s115
      %p119 = pneg %p113
      %p120 = scmp.eq.s32.totalorder %s10, 1
      %p121 = por %p119, %p120
      %p122 = scmp.ne.s32.totalorder %s114, %s117
      %p123 = scmp.eq.s32.totalorder %s10, 0
      %p124 = por %p122, %p123
      %p125 = scmp.ne.s32.totalorder %s114, %s117
      %p126 = scmp.eq.s32.totalorder %s15, 1
      %p127 = por %p125, %p126
      %p128 = scmp.ne.s32.totalorder %s117, %s118
      %p129 = scmp.eq.s32.totalorder %s15, 0
      %p130 = por %p128, %p129
      %p131 = scmp.ne.s32.totalorder %s117, %s118
      %p132 = scmp.eq.s32.totalorder %s16, 1
      %p133 = por %p131, %p132
      %p135 = scmp.ne.s32.totalorder %s118, %s134
      %p136 = scmp.eq.s32.totalorder %s16, 0
      %p137 = por %p135, %p136
      %p138 = scmp.le.s32.totalorder 1, %s10
      %p139 = scmp.lt.s32.totalorder %s10, 3
      %p140 = pnand %p138, %p139
      %p141 = pneg %p140
      // Predicated region
      $region9: #{ds_net_forward.2} parent=5 // pred_check
        _
      $region10: #{ds_net_forward.2} parent=5 // pred_check_branch
        %143 = sbr.rel (%p140) target = $region12
      $region11: #{ds_net_forward.2} parent=5 // pred_region
        %s144 = ssub.s32 %s10, 1
      $region12: #{ds_net_forward.2} parent=5 // pred_fallthru
        _
      %p145 = scmp.lt.s32.totalorder %s10, 2
      // Predicated region
      $region13: #{ds_net_forward.2} parent=5 // pred_check
        %p146 = pneg %p145
      $region14: #{ds_net_forward.2} parent=5 // pred_check_branch
        %148 = sbr.rel (%p146) target = $region16
      $region15: #{ds_net_forward.2} parent=5 // pred_region
        // Predicated region
        $region17: #{ds_net_forward.2} parent=15 // pred_check
          %p149 = pneg %p44
        $region18: #{ds_net_forward.2} parent=15 // pred_check_branch
          %151 = sbr.rel (%p149) target = $region20
        $region19: #{ds_net_forward.2} parent=15 // pred_region
          %s152 = sand.u32 %s34, 1
          %s153 = sand.u32 %s34, 1
          %s154 = smul.addr %s153, 48
          %s155 = scalar_lea.vmem [#allocation2], %s154
          %s156 = sadd.s32 %s17, %s18
          %s157 = smul.addr %s156, 8
          %s158 = scalar_lea.vmem %s0, %s157
          // Predicated region
          $region21: #{ds_net_forward.2} parent=19 // pred_check
            _
          $region22: #{ds_net_forward.2} parent=19 // pred_check_branch
            %160 = sbr.rel (0) target = $region24
          $region23: #{ds_net_forward.2} parent=19 // pred_region
            // Predicated region
            $region25: #{ds_net_forward.2} parent=23 // pred_check
              _
            $region26: #{ds_net_forward.2} parent=23 // pred_check_branch
              %162 = sbr.rel (0) target = $region28
            $region27: #{ds_net_forward.2} parent=23 // pred_region
              // Predicated region
              $region40: #{ds_net_forward.2} parent=27 // pred_check
                _
              $region41: #{ds_net_forward.2} parent=27 // pred_check_branch
                %188 = sbr.rel (0) target = $region43
              $region42: #{ds_net_forward.2} parent=27 // pred_region
                loop: start=0, step=1, limit=1
                $region44: #{ds_net_forward.2} parent=42 // loop_pre_header
                  _
                $region45: #{ds_net_forward.2} parent=42 // loop_header
                  %s190 = sphi 0, %s194
                  %p191 = scmp.ge.s32.totalorder %s190, 1
                  %s195 = sphi %s158, %s158
                  %s196 = sphi %s155, %s155
                $region46: #{ds_net_forward.2} parent=42 // loop_header_branch
                  %193 = sbr.rel (%p191) target = $region50
                $region47: #{ds_net_forward.2} parent=42 // loop_body
                  %v197 = vld [vmem:[%s195] sm:$0xff]
                  %198 = vst [vmem:[%s196] sm:$0xff] %v197
                  %v199 = vld [vmem:[%s195 + $0x10] sm:$0xff]
                  %200 = vst [vmem:[%s196 + $0x8] sm:$0xff] %v199
                  %v201 = vld [vmem:[%s195 + $0x20] sm:$0xff]
                  %202 = vst [vmem:[%s196 + $0x10] sm:$0xff] %v201
                  %v203 = vld [vmem:[%s195 + $0x30] sm:$0xff]
                  %204 = vst [vmem:[%s196 + $0x18] sm:$0xff] %v203
                  %v205 = vld [vmem:[%s195 + $0x40] sm:$0xff]
                  %206 = vst [vmem:[%s196 + $0x20] sm:$0xff] %v205
                  %v207 = vld [vmem:[%s195 + $0x50] sm:$0xff]
                  %208 = vst [vmem:[%s196 + $0x28] sm:$0xff] %v207
                $region48: #{ds_net_forward.2} parent=42 // loop_footer
                  %s194 = sadd.s32 1, %s190
                $region49: #{ds_net_forward.2} parent=42 // loop_footer_branch
                  %189 = sbr.rel target = $region45
                $region50: #{ds_net_forward.2} parent=42 // loop_exit
                  _
              $region43: #{ds_net_forward.2} parent=27 // pred_fallthru
                _
              // Predicated region
              $region51: #{ds_net_forward.2} parent=27 // pred_check
                _
              $region52: #{ds_net_forward.2} parent=27 // pred_check_branch
                %210 = sbr.rel target = $region54
              $region53: #{ds_net_forward.2} parent=27 // pred_region
                _
              $region54: #{ds_net_forward.2} parent=27 // pred_fallthru
                _
            $region28: #{ds_net_forward.2} parent=23 // pred_fallthru
              _
            // Predicated region
            $region29: #{ds_net_forward.2} parent=23 // pred_check
              _
            $region30: #{ds_net_forward.2} parent=23 // pred_check_branch
              %164 = sbr.rel target = $region32
            $region31: #{ds_net_forward.2} parent=23 // pred_region
              %s166 = ssub.s32 256, 1
              loop: start=0, step=1, limit=1
              $region33: #{ds_net_forward.2} parent=31 // loop_pre_header
                _
              $region34: #{ds_net_forward.2} parent=31 // loop_header
                %s168 = sphi 0, %s172
                %p169 = scmp.ge.s32.totalorder %s168, 1
                %s173 = sphi %s158, %s158
                %s174 = sphi %s155, %s155
              $region35: #{ds_net_forward.2} parent=31 // loop_header_branch
                %171 = sbr.rel (%p169) target = $region39
              $region36: #{ds_net_forward.2} parent=31 // loop_body
                %v175 = vld [vmem:[%s173] sm:%s166]
                %176 = vst [vmem:[%s174] sm:%s166] %v175
                %v177 = vld [vmem:[%s173 + $0x10] sm:%s166]
                %178 = vst [vmem:[%s174 + $0x8] sm:%s166] %v177
                %v179 = vld [vmem:[%s173 + $0x20] sm:%s166]
                %180 = vst [vmem:[%s174 + $0x10] sm:%s166] %v179
                %v181 = vld [vmem:[%s173 + $0x30] sm:%s166]
                %182 = vst [vmem:[%s174 + $0x18] sm:%s166] %v181
                %v183 = vld [vmem:[%s173 + $0x40] sm:%s166]
                %184 = vst [vmem:[%s174 + $0x20] sm:%s166] %v183
                %v185 = vld [vmem:[%s173 + $0x50] sm:%s166]
                %186 = vst [vmem:[%s174 + $0x28] sm:%s166] %v185
              $region37: #{ds_net_forward.2} parent=31 // loop_footer
                %s172 = sadd.s32 1, %s168
              $region38: #{ds_net_forward.2} parent=31 // loop_footer_branch
                %167 = sbr.rel target = $region34
              $region39: #{ds_net_forward.2} parent=31 // loop_exit
                _
            $region32: #{ds_net_forward.2} parent=23 // pred_fallthru
              _
          $region24: #{ds_net_forward.2} parent=19 // pred_fallthru
            _
          %211 = vnop
        $region20: #{ds_net_forward.2} parent=15 // pred_fallthru
          _
        // Predicated region
        $region55: #{ds_net_forward.2} parent=15 // pred_check
          %p212 = pneg %p72
        $region56: #{ds_net_forward.2} parent=15 // pred_check_branch
          %214 = sbr.rel (%p212) target = $region58
        $region57: #{ds_net_forward.2} parent=15 // pred_region
          %s215 = sand.u32 %s62, 1
          %s216 = sand.u32 %s62, 1
          %s217 = smul.addr %s216, 48
          %s218 = scalar_lea.vmem [#allocation3], %s217
          %s219 = sadd.s32 %s17, %s18
          %s220 = smul.addr %s219, 8
          %s221 = scalar_lea.vmem %s1, %s220
          // Predicated region
          $region59: #{ds_net_forward.2} parent=57 // pred_check
            _
          $region60: #{ds_net_forward.2} parent=57 // pred_check_branch
            %223 = sbr.rel (0) target = $region62
          $region61: #{ds_net_forward.2} parent=57 // pred_region
            // Predicated region
            $region63: #{ds_net_forward.2} parent=61 // pred_check
              _
            $region64: #{ds_net_forward.2} parent=61 // pred_check_branch
              %225 = sbr.rel (0) target = $region66
            $region65: #{ds_net_forward.2} parent=61 // pred_region
              // Predicated region
              $region78: #{ds_net_forward.2} parent=65 // pred_check
                _
              $region79: #{ds_net_forward.2} parent=65 // pred_check_branch
                %251 = sbr.rel (0) target = $region81
              $region80: #{ds_net_forward.2} parent=65 // pred_region
                loop: start=0, step=1, limit=1
                $region82: #{ds_net_forward.2} parent=80 // loop_pre_header
                  _
                $region83: #{ds_net_forward.2} parent=80 // loop_header
                  %s253 = sphi 0, %s257
                  %p254 = scmp.ge.s32.totalorder %s253, 1
                  %s258 = sphi %s221, %s221
                  %s259 = sphi %s218, %s218
                $region84: #{ds_net_forward.2} parent=80 // loop_header_branch
                  %256 = sbr.rel (%p254) target = $region88
                $region85: #{ds_net_forward.2} parent=80 // loop_body
                  %v260 = vld [vmem:[%s258] sm:$0xff]
                  %261 = vst [vmem:[%s259] sm:$0xff] %v260
                  %v262 = vld [vmem:[%s258 + $0x10] sm:$0xff]
                  %263 = vst [vmem:[%s259 + $0x8] sm:$0xff] %v262
                  %v264 = vld [vmem:[%s258 + $0x20] sm:$0xff]
                  %265 = vst [vmem:[%s259 + $0x10] sm:$0xff] %v264
                  %v266 = vld [vmem:[%s258 + $0x30] sm:$0xff]
                  %267 = vst [vmem:[%s259 + $0x18] sm:$0xff] %v266
                  %v268 = vld [vmem:[%s258 + $0x40] sm:$0xff]
                  %269 = vst [vmem:[%s259 + $0x20] sm:$0xff] %v268
                  %v270 = vld [vmem:[%s258 + $0x50] sm:$0xff]
                  %271 = vst [vmem:[%s259 + $0x28] sm:$0xff] %v270
                $region86: #{ds_net_forward.2} parent=80 // loop_footer
                  %s257 = sadd.s32 1, %s253
                $region87: #{ds_net_forward.2} parent=80 // loop_footer_branch
                  %252 = sbr.rel target = $region83
                $region88: #{ds_net_forward.2} parent=80 // loop_exit
                  _
              $region81: #{ds_net_forward.2} parent=65 // pred_fallthru
                _
              // Predicated region
              $region89: #{ds_net_forward.2} parent=65 // pred_check
                _
              $region90: #{ds_net_forward.2} parent=65 // pred_check_branch
                %273 = sbr.rel target = $region92
              $region91: #{ds_net_forward.2} parent=65 // pred_region
                _
              $region92: #{ds_net_forward.2} parent=65 // pred_fallthru
                _
            $region66: #{ds_net_forward.2} parent=61 // pred_fallthru
              _
            // Predicated region
            $region67: #{ds_net_forward.2} parent=61 // pred_check
              _
            $region68: #{ds_net_forward.2} parent=61 // pred_check_branch
              %227 = sbr.rel target = $region70
            $region69: #{ds_net_forward.2} parent=61 // pred_region
              %s229 = ssub.s32 256, 1
              loop: start=0, step=1, limit=1
              $region71: #{ds_net_forward.2} parent=69 // loop_pre_header
                _
              $region72: #{ds_net_forward.2} parent=69 // loop_header
                %s231 = sphi 0, %s235
                %p232 = scmp.ge.s32.totalorder %s231, 1
                %s236 = sphi %s221, %s221
                %s237 = sphi %s218, %s218
              $region73: #{ds_net_forward.2} parent=69 // loop_header_branch
                %234 = sbr.rel (%p232) target = $region77
              $region74: #{ds_net_forward.2} parent=69 // loop_body
                %v238 = vld [vmem:[%s236] sm:%s229]
                %239 = vst [vmem:[%s237] sm:%s229] %v238
                %v240 = vld [vmem:[%s236 + $0x10] sm:%s229]
                %241 = vst [vmem:[%s237 + $0x8] sm:%s229] %v240
                %v242 = vld [vmem:[%s236 + $0x20] sm:%s229]
                %243 = vst [vmem:[%s237 + $0x10] sm:%s229] %v242
                %v244 = vld [vmem:[%s236 + $0x30] sm:%s229]
                %245 = vst [vmem:[%s237 + $0x18] sm:%s229] %v244
                %v246 = vld [vmem:[%s236 + $0x40] sm:%s229]
                %247 = vst [vmem:[%s237 + $0x20] sm:%s229] %v246
                %v248 = vld [vmem:[%s236 + $0x50] sm:%s229]
                %249 = vst [vmem:[%s237 + $0x28] sm:%s229] %v248
              $region75: #{ds_net_forward.2} parent=69 // loop_footer
                %s235 = sadd.s32 1, %s231
              $region76: #{ds_net_forward.2} parent=69 // loop_footer_branch
                %230 = sbr.rel target = $region72
              $region77: #{ds_net_forward.2} parent=69 // loop_exit
                _
            $region70: #{ds_net_forward.2} parent=61 // pred_fallthru
              _
          $region62: #{ds_net_forward.2} parent=57 // pred_fallthru
            _
          %274 = vnop
        $region58: #{ds_net_forward.2} parent=15 // pred_fallthru
          _
      $region16: #{ds_net_forward.2} parent=5 // pred_fallthru
        _
      %p275 = scmp.le.s32.totalorder 1, %s10
      %p276 = scmp.lt.s32.totalorder %s10, 3
      %p277 = pnand %p275, %p276
      %p278 = pneg %p277
      // Predicated region
      $region93: #{ds_net_forward.2} parent=5 // pred_check
        _
      $region94: #{ds_net_forward.2} parent=5 // pred_check_branch
        %280 = sbr.rel (%p277) target = $region96
      $region95: #{ds_net_forward.2} parent=5 // pred_region
        %s281 = ssub.s32 %s10, 1
        %s282 = sand.u32 %s37, 1
        %s283 = sand.u32 %s37, 1
        %s284 = smul.addr %s283, 48
        %s285 = scalar_lea.vmem [#allocation2], %s284
        // Predicated region
        $region97: #{ds_net_forward.2} parent=95 // pred_check
          %p286 = pneg %p50
        $region98: #{ds_net_forward.2} parent=95 // pred_check_branch
          %288 = sbr.rel (%p286) target = $region100
        $region99: #{ds_net_forward.2} parent=95 // pred_region
          _
        $region100: #{ds_net_forward.2} parent=95 // pred_fallthru
          _
        %s289 = sand.u32 %s65, 1
        %s290 = sand.u32 %s65, 1
        %s291 = smul.addr %s290, 48
        %s292 = scalar_lea.vmem [#allocation3], %s291
        // Predicated region
        $region101: #{ds_net_forward.2} parent=95 // pred_check
          %p293 = pneg %p78
        $region102: #{ds_net_forward.2} parent=95 // pred_check_branch
          %295 = sbr.rel (%p293) target = $region104
        $region103: #{ds_net_forward.2} parent=95 // pred_region
          _
        $region104: #{ds_net_forward.2} parent=95 // pred_fallthru
          _
        %s296 = sand.u32 %s37, 1
        %s297 = sand.u32 %s37, 1
        %s298 = smul.addr %s297, 48
        %s299 = scalar_lea.vmem [#allocation2], %s298
        %p300 = pneg %p50
        %p301 = pneg %p47
        %s302 = sand.u32 %s65, 1
        %s303 = sand.u32 %s65, 1
        %s304 = smul.addr %s303, 48
        %s305 = scalar_lea.vmem [#allocation3], %s304
        %p306 = pneg %p78
        %p307 = pneg %p75
        %p308 = pneg %p104
        %p309 = pneg %p101
        %p310 = scmp.lt.s32.totalorder %s19, 1
        %s311 = scalar_select %p310, %s19, 1
        %s312 = smul.addr %s311, 6
        %s313 = smul.addr %s312, 8
        %s314 = scalar_lea.vmem %s2, %s313
        %p315 = pneg %p130
        %p316 = pneg %p127
        %p317 = scmp.lt.s32.totalorder %s19, 1
        %s318 = scalar_select %p317, %s19, 1
        %s319 = smul.addr %s318, 6
        %s320 = smul.addr %s319, 8
        %s321 = scalar_lea.vmem %s3, %s320
        %s322 = sadd.s32 %s19, %s20
        %s323 = sadd.s32 %s19, %s20
        %p324 = scmp.lt.s32.totalorder %s19, 1
        %s325 = scalar_select %p324, %s19, 1
        %s326 = smul.addr %s325, 6
        %s327 = smul.addr %s326, 8
        %s328 = scalar_lea.vmem %s2, %s327
        %p329 = scmp.lt.s32.totalorder %s19, 1
        %s330 = scalar_select %p329, %s19, 1
        %s331 = smul.addr %s330, 6
        %s332 = smul.addr %s331, 8
        %s333 = scalar_lea.vmem %s3, %s332
        %p334 = scmp.eq.s32.totalorder %s20, 0
        // Predicated region
        $region105: #{ds_net_forward.2} parent=95 // pred_check
          %p335 = pneg %p334
        $region106: #{ds_net_forward.2} parent=95 // pred_check_branch
          %337 = sbr.rel (%p335) target = $region108
        $region107: #{ds_net_forward.2} parent=95 // pred_region
          %338 = vst [vmem:[%s328] sm:$0xff] 0.0
          %339 = vst [vmem:[%s328 + $0x8] sm:$0xff] 0.0
          %340 = vst [vmem:[%s328 + $0x10] sm:$0xff] 0.0
          %341 = vst [vmem:[%s328 + $0x18] sm:$0xff] 0.0
          %342 = vst [vmem:[%s328 + $0x20] sm:$0xff] 0.0
          %343 = vst [vmem:[%s328 + $0x28] sm:$0xff] 0.0
          %344 = vst [vmem:[%s333] sm:$0xff] 0.0
          %345 = vst [vmem:[%s333 + $0x8] sm:$0xff] 0.0
          %346 = vst [vmem:[%s333 + $0x10] sm:$0xff] 0.0
          %347 = vst [vmem:[%s333 + $0x18] sm:$0xff] 0.0
          %348 = vst [vmem:[%s333 + $0x20] sm:$0xff] 0.0
          %349 = vst [vmem:[%s333 + $0x28] sm:$0xff] 0.0
        $region108: #{ds_net_forward.2} parent=95 // pred_fallthru
          _
        %v350 = vld [vmem:[%s328] sm:$0xff]
        %v351 = vld [vmem:[%s328 + $0x8] sm:$0xff]
        %v352 = vld [vmem:[%s328 + $0x10] sm:$0xff]
        %v353 = vld [vmem:[%s328 + $0x18] sm:$0xff]
        %v354 = vld [vmem:[%s328 + $0x20] sm:$0xff]
        %v355 = vld [vmem:[%s328 + $0x28] sm:$0xff]
        %v356 = vld [vmem:[%s285] sm:$0xff]
        %v357 = vld [vmem:[%s285 + $0x8] sm:$0xff]
        %v358 = vld [vmem:[%s285 + $0x10] sm:$0xff]
        %v359 = vld [vmem:[%s285 + $0x18] sm:$0xff]
        %v360 = vld [vmem:[%s285 + $0x20] sm:$0xff]
        %v361 = vld [vmem:[%s285 + $0x28] sm:$0xff]
        %v362 = vadd.f32 %v356, 0.0
        %v363 = vadd.f32 %v357, 0.0
        %v364 = vadd.f32 %v358, 0.0
        %v365 = vadd.f32 %v359, 0.0
        %v366 = vadd.f32 %v360, 0.0
        %v367 = vadd.f32 %v361, 0.0
        %v368 = vadd.f32 %v350, %v362
        %v369 = vadd.f32 %v351, %v363
        %v370 = vadd.f32 %v352, %v364
        %v371 = vadd.f32 %v353, %v365
        %v372 = vadd.f32 %v354, %v366
        %v373 = vadd.f32 %v355, %v367
        %374 = vst [vmem:[%s328] sm:$0xff] %v368
        %375 = vst [vmem:[%s328 + $0x8] sm:$0xff] %v369
        %376 = vst [vmem:[%s328 + $0x10] sm:$0xff] %v370
        %377 = vst [vmem:[%s328 + $0x18] sm:$0xff] %v371
        %378 = vst [vmem:[%s328 + $0x20] sm:$0xff] %v372
        %379 = vst [vmem:[%s328 + $0x28] sm:$0xff] %v373
        %v380 = vld [vmem:[%s333] sm:$0xff]
        %v381 = vld [vmem:[%s333 + $0x8] sm:$0xff]
        %v382 = vld [vmem:[%s333 + $0x10] sm:$0xff]
        %v383 = vld [vmem:[%s333 + $0x18] sm:$0xff]
        %v384 = vld [vmem:[%s333 + $0x20] sm:$0xff]
        %v385 = vld [vmem:[%s333 + $0x28] sm:$0xff]
        %v386 = vld [vmem:[%s292] sm:$0xff]
        %v387 = vld [vmem:[%s292 + $0x8] sm:$0xff]
        %v388 = vld [vmem:[%s292 + $0x10] sm:$0xff]
        %v389 = vld [vmem:[%s292 + $0x18] sm:$0xff]
        %v390 = vld [vmem:[%s292 + $0x20] sm:$0xff]
        %v391 = vld [vmem:[%s292 + $0x28] sm:$0xff]
        %v392 = vadd.f32 %v386, 0.0
        %v393 = vadd.f32 %v387, 0.0
        %v394 = vadd.f32 %v388, 0.0
        %v395 = vadd.f32 %v389, 0.0
        %v396 = vadd.f32 %v390, 0.0
        %v397 = vadd.f32 %v391, 0.0
        %v398 = vadd.f32 %v380, %v392
        %v399 = vadd.f32 %v381, %v393
        %v400 = vadd.f32 %v382, %v394
        %v401 = vadd.f32 %v383, %v395
        %v402 = vadd.f32 %v384, %v396
        %v403 = vadd.f32 %v385, %v397
        %404 = vst [vmem:[%s333] sm:$0xff] %v398
        %405 = vst [vmem:[%s333 + $0x8] sm:$0xff] %v399
        %406 = vst [vmem:[%s333 + $0x10] sm:$0xff] %v400
        %407 = vst [vmem:[%s333 + $0x18] sm:$0xff] %v401
        %408 = vst [vmem:[%s333 + $0x20] sm:$0xff] %v402
        %409 = vst [vmem:[%s333 + $0x28] sm:$0xff] %v403
        %p410 = scmp.lt.s32.totalorder %s19, 1
        %s411 = scalar_select %p410, %s19, 1
        %s412 = smul.addr %s411, 6
        %s413 = smul.addr %s412, 8
        %s414 = scalar_lea.vmem %s2, %s413
        %p415 = scmp.lt.s32.totalorder %s19, 1
        %s416 = scalar_select %p415, %s19, 1
        %s417 = smul.addr %s416, 6
        %s418 = smul.addr %s417, 8
        %s419 = scalar_lea.vmem %s3, %s418
        // Predicated region
        $region109: #{ds_net_forward.2} parent=95 // pred_check
          %p420 = pneg %p101
        $region110: #{ds_net_forward.2} parent=95 // pred_check_branch
          %422 = sbr.rel (%p420) target = $region112
        $region111: #{ds_net_forward.2} parent=95 // pred_region
          _
        $region112: #{ds_net_forward.2} parent=95 // pred_fallthru
          _
        // Predicated region
        $region113: #{ds_net_forward.2} parent=95 // pred_check
          %p423 = pneg %p127
        $region114: #{ds_net_forward.2} parent=95 // pred_check_branch
          %425 = sbr.rel (%p423) target = $region116
        $region115: #{ds_net_forward.2} parent=95 // pred_region
          _
        $region116: #{ds_net_forward.2} parent=95 // pred_fallthru
          _
      $region96: #{ds_net_forward.2} parent=5 // pred_fallthru
        _
      %p426 = scmp.le.s32.totalorder 2, %s10
      // Predicated region
      $region117: #{ds_net_forward.2} parent=5 // pred_check
        %p427 = pneg %p426
      $region118: #{ds_net_forward.2} parent=5 // pred_check_branch
        %429 = sbr.rel (%p427) target = $region120
      $region119: #{ds_net_forward.2} parent=5 // pred_region
        %s430 = ssub.s32 %s10, 2
        // Predicated region
        $region121: #{ds_net_forward.2} parent=119 // pred_check
          %p431 = pneg %p107
        $region122: #{ds_net_forward.2} parent=119 // pred_check_branch
          %433 = sbr.rel (%p431) target = $region124
        $region123: #{ds_net_forward.2} parent=119 // pred_region
          %p434 = scmp.lt.s32.totalorder %s21, 1
          %s435 = scalar_select %p434, %s21, 1
          %s436 = smul.addr %s435, 6
          %s437 = smul.addr %s436, 8
          %s438 = scalar_lea.vmem %s2, %s437
        $region124: #{ds_net_forward.2} parent=119 // pred_fallthru
          _
        // Predicated region
        $region125: #{ds_net_forward.2} parent=119 // pred_check
          %p439 = pneg %p133
        $region126: #{ds_net_forward.2} parent=119 // pred_check_branch
          %441 = sbr.rel (%p439) target = $region128
        $region127: #{ds_net_forward.2} parent=119 // pred_region
          %p442 = scmp.lt.s32.totalorder %s21, 1
          %s443 = scalar_select %p442, %s21, 1
          %s444 = smul.addr %s443, 6
          %s445 = smul.addr %s444, 8
          %s446 = scalar_lea.vmem %s3, %s445
        $region128: #{ds_net_forward.2} parent=119 // pred_fallthru
          _
      $region120: #{ds_net_forward.2} parent=5 // pred_fallthru
        _
    $region6: #{ds_net_forward.2} parent=1 // loop_footer
      %s14 = sadd.s32 1, %s10
    $region7: #{ds_net_forward.2} parent=1 // loop_footer_branch
      %9 = sbr.rel target = $region3
    $region8: #{ds_net_forward.2} parent=1 // loop_exit
      _

// kernel: ds_net_forward.3
$region0: #{ds_net_forward.3}
  #allocation0 [shape = 'u32[]', space=smem, size = 0x4, offset = 0x4, fixed_abs, tag = 'smem constant byte address 0x4 - core index']
  #allocation1 [shape = 'u32[144,128]{1,0:T(1,128)}', space=vmem, size = 0x12000, scoped, tag = 'internal scratch']
  %s0 = inlined_call_operand.vmem [shape: f32[2,3], index: 0, kind: input, shape index: {}]
  %s1 = inlined_call_operand.vmem [shape: f32[2,3], index: 1, kind: input, shape index: {}]
  %s2 = inlined_call_operand.vmem [shape: f32[3,768], index: 2, kind: input, shape index: {}]
  %s3 = inlined_call_operand.vmem [shape: f32[1,768], index: 3, kind: input, shape index: {}]
  %s4 = inlined_call_operand.vmem [shape: f32[3,768], index: 4, kind: input, shape index: {}]
  %s5 = inlined_call_operand.vmem [shape: f32[1,768], index: 5, kind: input, shape index: {}]
  %s6 = inlined_call_operand.vmem [shape: f32[1536,128], index: 6, kind: input, shape index: {}]
  %s7 = inlined_call_operand.vmem [shape: f32[1,128], index: 7, kind: input, shape index: {}]
  %s8 = inlined_call_operand.hbm [shape: f32[2,128], index: 8, kind: output, shape index: {}]
  %s9 = sld [smem:[#allocation0]]
  $region42: #{ds_net_forward.3} parent=0
    _
  %s11 = ssub.s32 1, %s9
  %s12 = scalar_select 0, %s11, %s9
  $region1: #{ds_net_forward.3} parent=0
    #allocation2 [shape = 'u8[1024]{0}', space=vmem, size = 0x400, scoped, tag = 'output window, operand 0, single buffered']
    #allocation3 [shape = 's32[1]{0}', space=sflag, size = 0x4, scoped, tag = 'scoped memory for ds_net_forward.3']
    %13 = vsyncpa [#allocation3], 0
    // Predicated region
    $region2: #{ds_net_forward.3} parent=1 // pred_check
      _
    $region3: #{ds_net_forward.3} parent=1 // pred_check_branch
      %15 = sbr.rel (0) target = $region5
    $region4: #{ds_net_forward.3} parent=1 // pred_region
      _
    $region5: #{ds_net_forward.3} parent=1 // pred_fallthru
      _
    // Predicated region
    $region6: #{ds_net_forward.3} parent=1 // pred_check
      _
    $region7: #{ds_net_forward.3} parent=1 // pred_check_branch
      %17 = sbr.rel (0) target = $region9
    $region8: #{ds_net_forward.3} parent=1 // pred_region
      _
    $region9: #{ds_net_forward.3} parent=1 // pred_fallthru
      _
    // Predicated region
    $region10: #{ds_net_forward.3} parent=1 // pred_check
      _
    $region11: #{ds_net_forward.3} parent=1 // pred_check_branch
      %19 = sbr.rel (0) target = $region13
    $region12: #{ds_net_forward.3} parent=1 // pred_region
      _
    $region13: #{ds_net_forward.3} parent=1 // pred_fallthru
      _
    // Predicated region
    $region14: #{ds_net_forward.3} parent=1 // pred_check
      _
    $region15: #{ds_net_forward.3} parent=1 // pred_check_branch
      %21 = sbr.rel (0) target = $region17
    $region16: #{ds_net_forward.3} parent=1 // pred_region
      _
    $region17: #{ds_net_forward.3} parent=1 // pred_fallthru
      _
    // Predicated region
    $region18: #{ds_net_forward.3} parent=1 // pred_check
      _
    $region19: #{ds_net_forward.3} parent=1 // pred_check_branch
      %23 = sbr.rel (0) target = $region21
    $region20: #{ds_net_forward.3} parent=1 // pred_region
      _
    $region21: #{ds_net_forward.3} parent=1 // pred_fallthru
      _
    // Predicated region
    $region22: #{ds_net_forward.3} parent=1 // pred_check
      _
    $region23: #{ds_net_forward.3} parent=1 // pred_check_branch
      %25 = sbr.rel (0) target = $region25
    $region24: #{ds_net_forward.3} parent=1 // pred_region
      _
    $region25: #{ds_net_forward.3} parent=1 // pred_fallthru
      _
    // Predicated region
    $region26: #{ds_net_forward.3} parent=1 // pred_check
      _
    $region27: #{ds_net_forward.3} parent=1 // pred_check_branch
      %27 = sbr.rel (0) target = $region29
    $region28: #{ds_net_forward.3} parent=1 // pred_region
      _
    $region29: #{ds_net_forward.3} parent=1 // pred_fallthru
      _
    // Predicated region
    $region30: #{ds_net_forward.3} parent=1 // pred_check
      _
    $region31: #{ds_net_forward.3} parent=1 // pred_check_branch
      %29 = sbr.rel (0) target = $region33
    $region32: #{ds_net_forward.3} parent=1 // pred_region
      _
    $region33: #{ds_net_forward.3} parent=1 // pred_fallthru
      _
    %v30 = vld [vmem:[%s0] sm:$0x3]
    %v31 = vld [vmem:[%s2] sm:$0x77]
    %v32 = vld [vmem:[%s2 + $0x8] sm:$0x77]
    %v33 = vld [vmem:[%s2 + $0x10] sm:$0x77]
    %v34 = vld [vmem:[%s3] sm:$0x3f]
    %v36 = vlaneseq
    %v37 = vshrl.u32 %v36, 7
    %v38 = vsub.s32 0, %v37
    %v39 = vrot.slane %v34, %v38
    %v40 = vlaneseq
    %v41 = vshrl.u32 %v40, 7
    %v42 = vsub.s32 1, %v41
    %v43 = vrot.slane %v34, %v42
    %v44 = vlaneseq
    %v45 = vshrl.u32 %v44, 7
    %v46 = vsub.s32 2, %v45
    %v47 = vrot.slane %v34, %v46
    %v48 = vlaneseq
    %v49 = vshrl.u32 %v48, 7
    %v50 = vsub.s32 3, %v49
    %v51 = vrot.slane %v34, %v50
    %v52 = vlaneseq
    %v53 = vshrl.u32 %v52, 7
    %v54 = vsub.s32 4, %v53
    %v55 = vrot.slane %v34, %v54
    %v56 = vlaneseq
    %v57 = vshrl.u32 %v56, 7
    %v58 = vsub.s32 5, %v57
    %v59 = vrot.slane %v34, %v58
    %v69 = vcombine.high %v31, %v31
    %v70 = vcombine.high %v32, %v32
    %v71 = vcombine.high %v33, %v33
    %vm72 = vcmask 23552
    %v74 = vsel %vm72, %v30, 0
    %vm76 = vcmask 1042432
    %v77 = vsel %vm76, %v31, 0
    %v79 = vsel %vm76, %v69, 0
    %v81 = vsel %vm76, %v32, 0
    %v83 = vsel %vm76, %v70, 0
    %v85 = vsel %vm76, %v33, 0
    %v87 = vsel %vm76, %v71, 0
    %89 = vmatprep.subr.mxu0 0.0
    %90 = vmatpush1.msra.mxu0 0.0
    %91 = vmatprep.subr.mxu0 0.0
    %92 = vmatpush1.msra.mxu0 0.0
    %93 = vmatprep.subr.mxu0 0.0
    %94 = vmatpush1.msra.mxu0 0.0
    %95 = vmatprep.subr.mxu0 0.0
    %96 = vmatpush1.msra.mxu0 0.0
    %97 = vmatprep.subr.mxu0 0.0
    %98 = vmatpush1.msra.mxu0 0.0
    %99 = vmatprep.subr.mxu0 0.0
    %100 = vmatpush1.msra.mxu0 0.0
    %101 = vmatprep.subr.mxu0 0.0
    %102 = vmatpush1.msra.mxu0 0.0
    %103 = vmatprep.subr.mxu0 0.0
    %104 = vmatpush1.msra.mxu0 0.0
    %105 = vmatprep.subr.mxu0 0.0
    %106 = vmatpush1.msra.mxu0 0.0
    %107 = vmatprep.subr.mxu0 0.0
    %108 = vmatpush1.msra.mxu0 0.0
    %109 = vmatprep.subr.mxu0 0.0
    %110 = vmatpush1.msra.mxu0 0.0
    %111 = vmatprep.subr.mxu0 0.0
    %112 = vmatpush1.msra.mxu0 0.0
    %113 = vmatprep.subr.mxu0 0.0
    %114 = vmatpush1.msra.mxu0 0.0
    %115 = vmatprep.subr.mxu0 0.0
    %116 = vmatpush1.msra.mxu0 0.0
    %117 = vmatprep.subr.mxu0 0.0
    %118 = vmatpush1.msra.mxu0 0.0
    %v119 = vand.u32 %v79, 4294901760
    %120 = vmatprep.subr.mxu0 %v119
    %v121 = vand.u32 %v77, 4294901760
    %122 = vmatpush1.msra.mxu0 %v121
    %123 = vmatprep.subr.mxu0 0.0
    %124 = vmatpush2.msra.mxu0 0.0
    %125 = vmatprep.subr.mxu0 0.0
    %126 = vmatpush2.msra.mxu0 0.0
    %127 = vmatprep.subr.mxu0 0.0
    %128 = vmatpush2.msra.mxu0 0.0
    %129 = vmatprep.subr.mxu0 0.0
    %130 = vmatpush2.msra.mxu0 0.0
    %131 = vmatprep.subr.mxu0 0.0
    %132 = vmatpush2.msra.mxu0 0.0
    %133 = vmatprep.subr.mxu0 0.0
    %134 = vmatpush2.msra.mxu0 0.0
    %135 = vmatprep.subr.mxu0 0.0
    %136 = vmatpush2.msra.mxu0 0.0
    %137 = vmatprep.subr.mxu0 0.0
    %138 = vmatpush2.msra.mxu0 0.0
    %139 = vmatprep.subr.mxu0 0.0
    %140 = vmatpush2.msra.mxu0 0.0
    %141 = vmatprep.subr.mxu0 0.0
    %142 = vmatpush2.msra.mxu0 0.0
    %143 = vmatprep.subr.mxu0 0.0
    %144 = vmatpush2.msra.mxu0 0.0
    %145 = vmatprep.subr.mxu0 0.0
    %146 = vmatpush2.msra.mxu0 0.0
    %147 = vmatprep.subr.mxu0 0.0
    %148 = vmatpush2.msra.mxu0 0.0
    %149 = vmatprep.subr.mxu0 0.0
    %150 = vmatpush2.msra.mxu0 0.0
    %151 = vmatprep.subr.mxu0 0.0
    %152 = vmatpush2.msra.mxu0 0.0
    %153 = vmatprep.subr.mxu0 0.0
    %154 = vmatpush2.msra.mxu0 0.0
    %155 = vmatprep.mubr.f32.mxu0 0.0
    %v156 = vand.u32 %v74, 4294901760
    %v157 = vsub.f32 %v74, %v156
    %v158 = vand.u32 %v157, 4294901760
    %v159 = vsub.f32 %v157, %v158
    %v160 = vand.u32 %v159, 4294901760
    %161 = vmatmul.mubr.f32.gmra.mxu0 %v160
    %v162 = vpop.f32.mrf.mxu0
    %v163 = vadd.f32 %v39, %v162
    %v164 = vpop.f32.mrf.mxu0
    %v165 = vadd.f32 %v43, %v164
    %166 = vdwg.mxu0
    %167 = vmatprep.subr.mxu0 0.0
    %168 = vmatpush1.msra.mxu0 0.0
    %169 = vmatprep.subr.mxu0 0.0
    %170 = vmatpush1.msra.mxu0 0.0
    %171 = vmatprep.subr.mxu0 0.0
    %172 = vmatpush1.msra.mxu0 0.0
    %173 = vmatprep.subr.mxu0 0.0
    %174 = vmatpush1.msra.mxu0 0.0
    %175 = vmatprep.subr.mxu0 0.0
    %176 = vmatpush1.msra.mxu0 0.0
    %177 = vmatprep.subr.mxu0 0.0
    %178 = vmatpush1.msra.mxu0 0.0
    %179 = vmatprep.subr.mxu0 0.0
    %180 = vmatpush1.msra.mxu0 0.0
    %181 = vmatprep.subr.mxu0 0.0
    %182 = vmatpush1.msra.mxu0 0.0
    %183 = vmatprep.subr.mxu0 0.0
    %184 = vmatpush1.msra.mxu0 0.0
    %185 = vmatprep.subr.mxu0 0.0
    %186 = vmatpush1.msra.mxu0 0.0
    %187 = vmatprep.subr.mxu0 0.0
    %188 = vmatpush1.msra.mxu0 0.0
    %189 = vmatprep.subr.mxu0 0.0
    %190 = vmatpush1.msra.mxu0 0.0
    %191 = vmatprep.subr.mxu0 0.0
    %192 = vmatpush1.msra.mxu0 0.0
    %193 = vmatprep.subr.mxu0 0.0
    %194 = vmatpush1.msra.mxu0 0.0
    %195 = vmatprep.subr.mxu0 0.0
    %196 = vmatpush1.msra.mxu0 0.0
    %v197 = vand.u32 %v79, 4294901760
    %v198 = vsub.f32 %v79, %v197
    %v199 = vand.u32 %v198, 4294901760
    %v200 = vsub.f32 %v198, %v199
    %v201 = vand.u32 %v200, 4294901760
    %202 = vmatprep.subr.mxu0 %v201
    %v203 = vand.u32 %v77, 4294901760
    %v204 = vsub.f32 %v77, %v203
    %v205 = vand.u32 %v204, 4294901760
    %v206 = vsub.f32 %v204, %v205
    %v207 = vand.u32 %v206, 4294901760
    %208 = vmatpush1.msra.mxu0 %v207
    %209 = vmatprep.subr.mxu0 0.0
    %210 = vmatpush2.msra.mxu0 0.0
    %211 = vmatprep.subr.mxu0 0.0
    %212 = vmatpush2.msra.mxu0 0.0
    %213 = vmatprep.subr.mxu0 0.0
    %214 = vmatpush2.msra.mxu0 0.0
    %215 = vmatprep.subr.mxu0 0.0
    %216 = vmatpush2.msra.mxu0 0.0
    %217 = vmatprep.subr.mxu0 0.0
    %218 = vmatpush2.msra.mxu0 0.0
    %219 = vmatprep.subr.mxu0 0.0
    %220 = vmatpush2.msra.mxu0 0.0
    %221 = vmatprep.subr.mxu0 0.0
    %222 = vmatpush2.msra.mxu0 0.0
    %223 = vmatprep.subr.mxu0 0.0
    %224 = vmatpush2.msra.mxu0 0.0
    %225 = vmatprep.subr.mxu0 0.0
    %226 = vmatpush2.msra.mxu0 0.0
    %227 = vmatprep.subr.mxu0 0.0
    %228 = vmatpush2.msra.mxu0 0.0
    %229 = vmatprep.subr.mxu0 0.0
    %230 = vmatpush2.msra.mxu0 0.0
    %231 = vmatprep.subr.mxu0 0.0
    %232 = vmatpush2.msra.mxu0 0.0
    %233 = vmatprep.subr.mxu0 0.0
    %234 = vmatpush2.msra.mxu0 0.0
    %235 = vmatprep.subr.mxu0 0.0
    %236 = vmatpush2.msra.mxu0 0.0
    %237 = vmatprep.subr.mxu0 0.0
    %238 = vmatpush2.msra.mxu0 0.0
    %239 = vmatprep.subr.mxu0 0.0
    %240 = vmatpush2.msra.mxu0 0.0
    %241 = vmatprep.mubr.f32.mxu0 0.0
    %v242 = vand.u32 %v74, 4294901760
    %243 = vmatmul.mubr.f32.gmra.mxu0 %v242
    %v244 = vpop.f32.mrf.mxu0
    %v245 = vadd.f32 %v163, %v244
    %v246 = vpop.f32.mrf.mxu0
    %v247 = vadd.f32 %v165, %v246
    %248 = vdwg.mxu0
    %249 = vmatprep.subr.mxu0 0.0
    %250 = vmatpush1.msra.mxu0 0.0
    %251 = vmatprep.subr.mxu0 0.0
    %252 = vmatpush1.msra.mxu0 0.0
    %253 = vmatprep.subr.mxu0 0.0
    %254 = vmatpush1.msra.mxu0 0.0
    %255 = vmatprep.subr.mxu0 0.0
    %256 = vmatpush1.msra.mxu0 0.0
    %257 = vmatprep.subr.mxu0 0.0
    %258 = vmatpush1.msra.mxu0 0.0
    %259 = vmatprep.subr.mxu0 0.0
    %260 = vmatpush1.msra.mxu0 0.0
    %261 = vmatprep.subr.mxu0 0.0
    %262 = vmatpush1.msra.mxu0 0.0
    %263 = vmatprep.subr.mxu0 0.0
    %264 = vmatpush1.msra.mxu0 0.0
    %265 = vmatprep.subr.mxu0 0.0
    %266 = vmatpush1.msra.mxu0 0.0
    %267 = vmatprep.subr.mxu0 0.0
    %268 = vmatpush1.msra.mxu0 0.0
    %269 = vmatprep.subr.mxu0 0.0
    %270 = vmatpush1.msra.mxu0 0.0
    %271 = vmatprep.subr.mxu0 0.0
    %272 = vmatpush1.msra.mxu0 0.0
    %273 = vmatprep.subr.mxu0 0.0
    %274 = vmatpush1.msra.mxu0 0.0
    %275 = vmatprep.subr.mxu0 0.0
    %276 = vmatpush1.msra.mxu0 0.0
    %277 = vmatprep.subr.mxu0 0.0
    %278 = vmatpush1.msra.mxu0 0.0
    %v279 = vand.u32 %v79, 4294901760
    %v280 = vsub.f32 %v79, %v279
    %281 = vmatprep.subr.mxu0 %v280
    %v282 = vand.u32 %v77, 4294901760
    %v283 = vsub.f32 %v77, %v282
    %284 = vmatpush1.msra.mxu0 %v283
    %285 = vmatprep.subr.mxu0 0.0
    %286 = vmatpush2.msra.mxu0 0.0
    %287 = vmatprep.subr.mxu0 0.0
    %288 = vmatpush2.msra.mxu0 0.0
    %289 = vmatprep.subr.mxu0 0.0
    %290 = vmatpush2.msra.mxu0 0.0
    %291 = vmatprep.subr.mxu0 0.0
    %292 = vmatpush2.msra.mxu0 0.0
    %293 = vmatprep.subr.mxu0 0.0
    %294 = vmatpush2.msra.mxu0 0.0
    %295 = vmatprep.subr.mxu0 0.0
    %296 = vmatpush2.msra.mxu0 0.0
    %297 = vmatprep.subr.mxu0 0.0
    %298 = vmatpush2.msra.mxu0 0.0
    %299 = vmatprep.subr.mxu0 0.0
    %300 = vmatpush2.msra.mxu0 0.0
    %301 = vmatprep.subr.mxu0 0.0
    %302 = vmatpush2.msra.mxu0 0.0
    %303 = vmatprep.subr.mxu0 0.0
    %304 = vmatpush2.msra.mxu0 0.0
    %305 = vmatprep.subr.mxu0 0.0
    %306 = vmatpush2.msra.mxu0 0.0
    %307 = vmatprep.subr.mxu0 0.0
    %308 = vmatpush2.msra.mxu0 0.0
    %309 = vmatprep.subr.mxu0 0.0
    %310 = vmatpush2.msra.mxu0 0.0
    %311 = vmatprep.subr.mxu0 0.0
    %312 = vmatpush2.msra.mxu0 0.0
    %313 = vmatprep.subr.mxu0 0.0
    %314 = vmatpush2.msra.mxu0 0.0
    %315 = vmatprep.subr.mxu0 0.0
    %316 = vmatpush2.msra.mxu0 0.0
    %317 = vmatprep.mubr.f32.mxu0 0.0
    %v318 = vand.u32 %v74, 4294901760
    %v319 = vsub.f32 %v74, %v318
    %320 = vmatmul.mubr.f32.gmra.mxu0 %v319
    %v321 = vpop.f32.mrf.mxu0
    %v322 = vadd.f32 %v245, %v321
    %v323 = vpop.f32.mrf.mxu0
    %v324 = vadd.f32 %v247, %v323
    %325 = vdwg.mxu0
    %326 = vmatprep.subr.mxu0 0.0
    %327 = vmatpush1.msra.mxu0 0.0
    %328 = vmatprep.subr.mxu0 0.0
    %329 = vmatpush1.msra.mxu0 0.0
    %330 = vmatprep.subr.mxu0 0.0
    %331 = vmatpush1.msra.mxu0 0.0
    %332 = vmatprep.subr.mxu0 0.0
    %333 = vmatpush1.msra.mxu0 0.0
    %334 = vmatprep.subr.mxu0 0.0
    %335 = vmatpush1.msra.mxu0 0.0
    %336 = vmatprep.subr.mxu0 0.0
    %337 = vmatpush1.msra.mxu0 0.0
    %338 = vmatprep.subr.mxu0 0.0
    %339 = vmatpush1.msra.mxu0 0.0
    %340 = vmatprep.subr.mxu0 0.0
    %341 = vmatpush1.msra.mxu0 0.0
    %342 = vmatprep.subr.mxu0 0.0
    %343 = vmatpush1.msra.mxu0 0.0
    %344 = vmatprep.subr.mxu0 0.0
    %345 = vmatpush1.msra.mxu0 0.0
    %346 = vmatprep.subr.mxu0 0.0
    %347 = vmatpush1.msra.mxu0 0.0
    %348 = vmatprep.subr.mxu0 0.0
    %349 = vmatpush1.msra.mxu0 0.0
    %350 = vmatprep.subr.mxu0 0.0
    %351 = vmatpush1.msra.mxu0 0.0
    %352 = vmatprep.subr.mxu0 0.0
    %353 = vmatpush1.msra.mxu0 0.0
    %354 = vmatprep.subr.mxu0 0.0
    %355 = vmatpush1.msra.mxu0 0.0
    %v356 = vand.u32 %v79, 4294901760
    %357 = vmatprep.subr.mxu0 %v356
    %v358 = vand.u32 %v77, 4294901760
    %359 = vmatpush1.msra.mxu0 %v358
    %360 = vmatprep.subr.mxu0 0.0
    %361 = vmatpush2.msra.mxu0 0.0
    %362 = vmatprep.subr.mxu0 0.0
    %363 = vmatpush2.msra.mxu0 0.0
    %364 = vmatprep.subr.mxu0 0.0
    %365 = vmatpush2.msra.mxu0 0.0
    %366 = vmatprep.subr.mxu0 0.0
    %367 = vmatpush2.msra.mxu0 0.0
    %368 = vmatprep.subr.mxu0 0.0
    %369 = vmatpush2.msra.mxu0 0.0
    %370 = vmatprep.subr.mxu0 0.0
    %371 = vmatpush2.msra.mxu0 0.0
    %372 = vmatprep.subr.mxu0 0.0
    %373 = vmatpush2.msra.mxu0 0.0
    %374 = vmatprep.subr.mxu0 0.0
    %375 = vmatpush2.msra.mxu0 0.0
    %376 = vmatprep.subr.mxu0 0.0
    %377 = vmatpush2.msra.mxu0 0.0
    %378 = vmatprep.subr.mxu0 0.0
    %379 = vmatpush2.msra.mxu0 0.0
    %380 = vmatprep.subr.mxu0 0.0
    %381 = vmatpush2.msra.mxu0 0.0
    %382 = vmatprep.subr.mxu0 0.0
    %383 = vmatpush2.msra.mxu0 0.0
    %384 = vmatprep.subr.mxu0 0.0
    %385 = vmatpush2.msra.mxu0 0.0
    %386 = vmatprep.subr.mxu0 0.0
    %387 = vmatpush2.msra.mxu0 0.0
    %388 = vmatprep.subr.mxu0 0.0
    %389 = vmatpush2.msra.mxu0 0.0
    %390 = vmatprep.subr.mxu0 0.0
    %391 = vmatpush2.msra.mxu0 0.0
    %392 = vmatprep.mubr.f32.mxu0 0.0
    %v393 = vand.u32 %v74, 4294901760
    %v394 = vsub.f32 %v74, %v393
    %v395 = vand.u32 %v394, 4294901760
    %396 = vmatmul.mubr.f32.gmra.mxu0 %v395
    %v397 = vpop.f32.mrf.mxu0
    %v398 = vadd.f32 %v322, %v397
    %v399 = vpop.f32.mrf.mxu0
    %v400 = vadd.f32 %v324, %v399
    %401 = vdwg.mxu0
    %402 = vmatprep.subr.mxu0 0.0
    %403 = vmatpush1.msra.mxu0 0.0
    %404 = vmatprep.subr.mxu0 0.0
    %405 = vmatpush1.msra.mxu0 0.0
    %406 = vmatprep.subr.mxu0 0.0
    %407 = vmatpush1.msra.mxu0 0.0
    %408 = vmatprep.subr.mxu0 0.0
    %409 = vmatpush1.msra.mxu0 0.0
    %410 = vmatprep.subr.mxu0 0.0
    %411 = vmatpush1.msra.mxu0 0.0
    %412 = vmatprep.subr.mxu0 0.0
    %413 = vmatpush1.msra.mxu0 0.0
    %414 = vmatprep.subr.mxu0 0.0
    %415 = vmatpush1.msra.mxu0 0.0
    %416 = vmatprep.subr.mxu0 0.0
    %417 = vmatpush1.msra.mxu0 0.0
    %418 = vmatprep.subr.mxu0 0.0
    %419 = vmatpush1.msra.mxu0 0.0
    %420 = vmatprep.subr.mxu0 0.0
    %421 = vmatpush1.msra.mxu0 0.0
    %422 = vmatprep.subr.mxu0 0.0
    %423 = vmatpush1.msra.mxu0 0.0
    %424 = vmatprep.subr.mxu0 0.0
    %425 = vmatpush1.msra.mxu0 0.0
    %426 = vmatprep.subr.mxu0 0.0
    %427 = vmatpush1.msra.mxu0 0.0
    %428 = vmatprep.subr.mxu0 0.0
    %429 = vmatpush1.msra.mxu0 0.0
    %430 = vmatprep.subr.mxu0 0.0
    %431 = vmatpush1.msra.mxu0 0.0
    %v432 = vand.u32 %v79, 4294901760
    %v433 = vsub.f32 %v79, %v432
    %v434 = vand.u32 %v433, 4294901760
    %435 = vmatprep.subr.mxu0 %v434
    %v436 = vand.u32 %v77, 4294901760
    %v437 = vsub.f32 %v77, %v436
    %v438 = vand.u32 %v437, 4294901760
    %439 = vmatpush1.msra.mxu0 %v438
    %440 = vmatprep.subr.mxu0 0.0
    %441 = vmatpush2.msra.mxu0 0.0
    %442 = vmatprep.subr.mxu0 0.0
    %443 = vmatpush2.msra.mxu0 0.0
    %444 = vmatprep.subr.mxu0 0.0
    %445 = vmatpush2.msra.mxu0 0.0
    %446 = vmatprep.subr.mxu0 0.0
    %447 = vmatpush2.msra.mxu0 0.0
    %448 = vmatprep.subr.mxu0 0.0
    %449 = vmatpush2.msra.mxu0 0.0
    %450 = vmatprep.subr.mxu0 0.0
    %451 = vmatpush2.msra.mxu0 0.0
    %452 = vmatprep.subr.mxu0 0.0
    %453 = vmatpush2.msra.mxu0 0.0
    %454 = vmatprep.subr.mxu0 0.0
    %455 = vmatpush2.msra.mxu0 0.0
    %456 = vmatprep.subr.mxu0 0.0
    %457 = vmatpush2.msra.mxu0 0.0
    %458 = vmatprep.subr.mxu0 0.0
    %459 = vmatpush2.msra.mxu0 0.0
    %460 = vmatprep.subr.mxu0 0.0
    %461 = vmatpush2.msra.mxu0 0.0
    %462 = vmatprep.subr.mxu0 0.0
    %463 = vmatpush2.msra.mxu0 0.0
    %464 = vmatprep.subr.mxu0 0.0
    %465 = vmatpush2.msra.mxu0 0.0
    %466 = vmatprep.subr.mxu0 0.0
    %467 = vmatpush2.msra.mxu0 0.0
    %468 = vmatprep.subr.mxu0 0.0
    %469 = vmatpush2.msra.mxu0 0.0
    %470 = vmatprep.subr.mxu0 0.0
    %471 = vmatpush2.msra.mxu0 0.0
    %472 = vmatprep.mubr.f32.mxu0 0.0
    %v473 = vand.u32 %v74, 4294901760
    %474 = vmatmul.mubr.f32.gmra.mxu0 %v473
    %v475 = vpop.f32.mrf.mxu0
    %v476 = vadd.f32 %v398, %v475
    %v477 = vpop.f32.mrf.mxu0
    %v478 = vadd.f32 %v400, %v477
    %479 = vdwg.mxu0
    %480 = vmatprep.subr.mxu0 0.0
    %481 = vmatpush1.msra.mxu0 0.0
    %482 = vmatprep.subr.mxu0 0.0
    %483 = vmatpush1.msra.mxu0 0.0
    %484 = vmatprep.subr.mxu0 0.0
    %485 = vmatpush1.msra.mxu0 0.0
    %486 = vmatprep.subr.mxu0 0.0
    %487 = vmatpush1.msra.mxu0 0.0
    %488 = vmatprep.subr.mxu0 0.0
    %489 = vmatpush1.msra.mxu0 0.0
    %490 = vmatprep.subr.mxu0 0.0
    %491 = vmatpush1.msra.mxu0 0.0
    %492 = vmatprep.subr.mxu0 0.0
    %493 = vmatpush1.msra.mxu0 0.0
    %494 = vmatprep.subr.mxu0 0.0
    %495 = vmatpush1.msra.mxu0 0.0
    %496 = vmatprep.subr.mxu0 0.0
    %497 = vmatpush1.msra.mxu0 0.0
    %498 = vmatprep.subr.mxu0 0.0
    %499 = vmatpush1.msra.mxu0 0.0
    %500 = vmatprep.subr.mxu0 0.0
    %501 = vmatpush1.msra.mxu0 0.0
    %502 = vmatprep.subr.mxu0 0.0
    %503 = vmatpush1.msra.mxu0 0.0
    %504 = vmatprep.subr.mxu0 0.0
    %505 = vmatpush1.msra.mxu0 0.0
    %506 = vmatprep.subr.mxu0 0.0
    %507 = vmatpush1.msra.mxu0 0.0
    %508 = vmatprep.subr.mxu0 0.0
    %509 = vmatpush1.msra.mxu0 0.0
    %v510 = vand.u32 %v79, 4294901760
    %511 = vmatprep.subr.mxu0 %v510
    %v512 = vand.u32 %v77, 4294901760
    %513 = vmatpush1.msra.mxu0 %v512
    %514 = vmatprep.subr.mxu0 0.0
    %515 = vmatpush2.msra.mxu0 0.0
    %516 = vmatprep.subr.mxu0 0.0
    %517 = vmatpush2.msra.mxu0 0.0
    %518 = vmatprep.subr.mxu0 0.0
    %519 = vmatpush2.msra.mxu0 0.0
    %520 = vmatprep.subr.mxu0 0.0
    %521 = vmatpush2.msra.mxu0 0.0
    %522 = vmatprep.subr.mxu0 0.0
    %523 = vmatpush2.msra.mxu0 0.0
    %524 = vmatprep.subr.mxu0 0.0
    %525 = vmatpush2.msra.mxu0 0.0
    %526 = vmatprep.subr.mxu0 0.0
    %527 = vmatpush2.msra.mxu0 0.0
    %528 = vmatprep.subr.mxu0 0.0
    %529 = vmatpush2.msra.mxu0 0.0
    %530 = vmatprep.subr.mxu0 0.0
    %531 = vmatpush2.msra.mxu0 0.0
    %532 = vmatprep.subr.mxu0 0.0
    %533 = vmatpush2.msra.mxu0 0.0
    %534 = vmatprep.subr.mxu0 0.0
    %535 = vmatpush2.msra.mxu0 0.0
    %536 = vmatprep.subr.mxu0 0.0
    %537 = vmatpush2.msra.mxu0 0.0
    %538 = vmatprep.subr.mxu0 0.0
    %539 = vmatpush2.msra.mxu0 0.0
    %540 = vmatprep.subr.mxu0 0.0
    %541 = vmatpush2.msra.mxu0 0.0
    %542 = vmatprep.subr.mxu0 0.0
    %543 = vmatpush2.msra.mxu0 0.0
    %544 = vmatprep.subr.mxu0 0.0
    %545 = vmatpush2.msra.mxu0 0.0
    %546 = vmatprep.mubr.f32.mxu0 0.0
    %v547 = vand.u32 %v74, 4294901760
    %548 = vmatmul.mubr.f32.gmra.mxu0 %v547
    %v549 = vpop.f32.mrf.mxu0
    %v550 = vadd.f32 %v476, %v549
    %v551 = vpop.f32.mrf.mxu0
    %v552 = vadd.f32 %v478, %v551
    %553 = vdwg.mxu0
    %554 = vmatprep.subr.mxu0 0.0
    %555 = vmatpush1.msra.mxu0 0.0
    %556 = vmatprep.subr.mxu0 0.0
    %557 = vmatpush1.msra.mxu0 0.0
    %558 = vmatprep.subr.mxu0 0.0
    %559 = vmatpush1.msra.mxu0 0.0
    %560 = vmatprep.subr.mxu0 0.0
    %561 = vmatpush1.msra.mxu0 0.0
    %562 = vmatprep.subr.mxu0 0.0
    %563 = vmatpush1.msra.mxu0 0.0
    %564 = vmatprep.subr.mxu0 0.0
    %565 = vmatpush1.msra.mxu0 0.0
    %566 = vmatprep.subr.mxu0 0.0
    %567 = vmatpush1.msra.mxu0 0.0
    %568 = vmatprep.subr.mxu0 0.0
    %569 = vmatpush1.msra.mxu0 0.0
    %570 = vmatprep.subr.mxu0 0.0
    %571 = vmatpush1.msra.mxu0 0.0
    %572 = vmatprep.subr.mxu0 0.0
    %573 = vmatpush1.msra.mxu0 0.0
    %574 = vmatprep.subr.mxu0 0.0
    %575 = vmatpush1.msra.mxu0 0.0
    %576 = vmatprep.subr.mxu0 0.0
    %577 = vmatpush1.msra.mxu0 0.0
    %578 = vmatprep.subr.mxu0 0.0
    %579 = vmatpush1.msra.mxu0 0.0
    %580 = vmatprep.subr.mxu0 0.0
    %581 = vmatpush1.msra.mxu0 0.0
    %582 = vmatprep.subr.mxu0 0.0
    %583 = vmatpush1.msra.mxu0 0.0
    %v584 = vand.u32 %v83, 4294901760
    %585 = vmatprep.subr.mxu0 %v584
    %v586 = vand.u32 %v81, 4294901760
    %587 = vmatpush1.msra.mxu0 %v586
    %588 = vmatprep.subr.mxu0 0.0
    %589 = vmatpush2.msra.mxu0 0.0
    %590 = vmatprep.subr.mxu0 0.0
    %591 = vmatpush2.msra.mxu0 0.0
    %592 = vmatprep.subr.mxu0 0.0
    %593 = vmatpush2.msra.mxu0 0.0
    %594 = vmatprep.subr.mxu0 0.0
    %595 = vmatpush2.msra.mxu0 0.0
    %596 = vmatprep.subr.mxu0 0.0
    %597 = vmatpush2.msra.mxu0 0.0
    %598 = vmatprep.subr.mxu0 0.0
    %599 = vmatpush2.msra.mxu0 0.0
    %600 = vmatprep.subr.mxu0 0.0
    %601 = vmatpush2.msra.mxu0 0.0
    %602 = vmatprep.subr.mxu0 0.0
    %603 = vmatpush2.msra.mxu0 0.0
    %604 = vmatprep.subr.mxu0 0.0
    %605 = vmatpush2.msra.mxu0 0.0
    %606 = vmatprep.subr.mxu0 0.0
    %607 = vmatpush2.msra.mxu0 0.0
    %608 = vmatprep.subr.mxu0 0.0
    %609 = vmatpush2.msra.mxu0 0.0
    %610 = vmatprep.subr.mxu0 0.0
    %611 = vmatpush2.msra.mxu0 0.0
    %612 = vmatprep.subr.mxu0 0.0
    %613 = vmatpush2.msra.mxu0 0.0
    %614 = vmatprep.subr.mxu0 0.0
    %615 = vmatpush2.msra.mxu0 0.0
    %616 = vmatprep.subr.mxu0 0.0
    %617 = vmatpush2.msra.mxu0 0.0
    %618 = vmatprep.subr.mxu0 0.0
    %619 = vmatpush2.msra.mxu0 0.0
    %620 = vmatprep.mubr.f32.mxu0 0.0
    %v621 = vand.u32 %v74, 4294901760
    %v622 = vsub.f32 %v74, %v621
    %v623 = vand.u32 %v622, 4294901760
    %v624 = vsub.f32 %v622, %v623
    %v625 = vand.u32 %v624, 4294901760
    %626 = vmatmul.mubr.f32.gmra.mxu0 %v625
    %v627 = vpop.f32.mrf.mxu0
    %v628 = vadd.f32 %v47, %v627
    %v629 = vpop.f32.mrf.mxu0
    %v630 = vadd.f32 %v51, %v629
    %631 = vdwg.mxu0
    %632 = vmatprep.subr.mxu0 0.0
    %633 = vmatpush1.msra.mxu0 0.0
    %634 = vmatprep.subr.mxu0 0.0
    %635 = vmatpush1.msra.mxu0 0.0
    %636 = vmatprep.subr.mxu0 0.0
    %637 = vmatpush1.msra.mxu0 0.0
    %638 = vmatprep.subr.mxu0 0.0
    %639 = vmatpush1.msra.mxu0 0.0
    %640 = vmatprep.subr.mxu0 0.0
    %641 = vmatpush1.msra.mxu0 0.0
    %642 = vmatprep.subr.mxu0 0.0
    %643 = vmatpush1.msra.mxu0 0.0
    %644 = vmatprep.subr.mxu0 0.0
    %645 = vmatpush1.msra.mxu0 0.0
    %646 = vmatprep.subr.mxu0 0.0
    %647 = vmatpush1.msra.mxu0 0.0
    %648 = vmatprep.subr.mxu0 0.0
    %649 = vmatpush1.msra.mxu0 0.0
    %650 = vmatprep.subr.mxu0 0.0
    %651 = vmatpush1.msra.mxu0 0.0
    %652 = vmatprep.subr.mxu0 0.0
    %653 = vmatpush1.msra.mxu0 0.0
    %654 = vmatprep.subr.mxu0 0.0
    %655 = vmatpush1.msra.mxu0 0.0
    %656 = vmatprep.subr.mxu0 0.0
    %657 = vmatpush1.msra.mxu0 0.0
    %658 = vmatprep.subr.mxu0 0.0
    %659 = vmatpush1.msra.mxu0 0.0
    %660 = vmatprep.subr.mxu0 0.0
    %661 = vmatpush1.msra.mxu0 0.0
    %v662 = vand.u32 %v83, 4294901760
    %v663 = vsub.f32 %v83, %v662
    %v664 = vand.u32 %v663, 4294901760
    %v665 = vsub.f32 %v663, %v664
    %v666 = vand.u32 %v665, 4294901760
    %667 = vmatprep.subr.mxu0 %v666
    %v668 = vand.u32 %v81, 4294901760
    %v669 = vsub.f32 %v81, %v668
    %v670 = vand.u32 %v669, 4294901760
    %v671 = vsub.f32 %v669, %v670
    %v672 = vand.u32 %v671, 4294901760
    %673 = vmatpush1.msra.mxu0 %v672
    %674 = vmatprep.subr.mxu0 0.0
    %675 = vmatpush2.msra.mxu0 0.0
    %676 = vmatprep.subr.mxu0 0.0
    %677 = vmatpush2.msra.mxu0 0.0
    %678 = vmatprep.subr.mxu0 0.0
    %679 = vmatpush2.msra.mxu0 0.0
    %680 = vmatprep.subr.mxu0 0.0
    %681 = vmatpush2.msra.mxu0 0.0
    %682 = vmatprep.subr.mxu0 0.0
    %683 = vmatpush2.msra.mxu0 0.0
    %684 = vmatprep.subr.mxu0 0.0
    %685 = vmatpush2.msra.mxu0 0.0
    %686 = vmatprep.subr.mxu0 0.0
    %687 = vmatpush2.msra.mxu0 0.0
    %688 = vmatprep.subr.mxu0 0.0
    %689 = vmatpush2.msra.mxu0 0.0
    %690 = vmatprep.subr.mxu0 0.0
    %691 = vmatpush2.msra.mxu0 0.0
    %692 = vmatprep.subr.mxu0 0.0
    %693 = vmatpush2.msra.mxu0 0.0
    %694 = vmatprep.subr.mxu0 0.0
    %695 = vmatpush2.msra.mxu0 0.0
    %696 = vmatprep.subr.mxu0 0.0
    %697 = vmatpush2.msra.mxu0 0.0
    %698 = vmatprep.subr.mxu0 0.0
    %699 = vmatpush2.msra.mxu0 0.0
    %700 = vmatprep.subr.mxu0 0.0
    %701 = vmatpush2.msra.mxu0 0.0
    %702 = vmatprep.subr.mxu0 0.0
    %703 = vmatpush2.msra.mxu0 0.0
    %704 = vmatprep.subr.mxu0 0.0
    %705 = vmatpush2.msra.mxu0 0.0
    %706 = vmatprep.mubr.f32.mxu0 0.0
    %v707 = vand.u32 %v74, 4294901760
    %708 = vmatmul.mubr.f32.gmra.mxu0 %v707
    %v709 = vpop.f32.mrf.mxu0
    %v710 = vadd.f32 %v628, %v709
    %v711 = vpop.f32.mrf.mxu0
    %v712 = vadd.f32 %v630, %v711
    %713 = vdwg.mxu0
    %714 = vmatprep.subr.mxu0 0.0
    %715 = vmatpush1.msra.mxu0 0.0
    %716 = vmatprep.subr.mxu0 0.0
    %717 = vmatpush1.msra.mxu0 0.0
    %718 = vmatprep.subr.mxu0 0.0
    %719 = vmatpush1.msra.mxu0 0.0
    %720 = vmatprep.subr.mxu0 0.0
    %721 = vmatpush1.msra.mxu0 0.0
    %722 = vmatprep.subr.mxu0 0.0
    %723 = vmatpush1.msra.mxu0 0.0
    %724 = vmatprep.subr.mxu0 0.0
    %725 = vmatpush1.msra.mxu0 0.0
    %726 = vmatprep.subr.mxu0 0.0
    %727 = vmatpush1.msra.mxu0 0.0
    %728 = vmatprep.subr.mxu0 0.0
    %729 = vmatpush1.msra.mxu0 0.0
    %730 = vmatprep.subr.mxu0 0.0
    %731 = vmatpush1.msra.mxu0 0.0
    %732 = vmatprep.subr.mxu0 0.0
    %733 = vmatpush1.msra.mxu0 0.0
    %734 = vmatprep.subr.mxu0 0.0
    %735 = vmatpush1.msra.mxu0 0.0
    %736 = vmatprep.subr.mxu0 0.0
    %737 = vmatpush1.msra.mxu0 0.0
    %738 = vmatprep.subr.mxu0 0.0
    %739 = vmatpush1.msra.mxu0 0.0
    %740 = vmatprep.subr.mxu0 0.0
    %741 = vmatpush1.msra.mxu0 0.0
    %742 = vmatprep.subr.mxu0 0.0
    %743 = vmatpush1.msra.mxu0 0.0
    %v744 = vand.u32 %v83, 4294901760
    %v745 = vsub.f32 %v83, %v744
    %746 = vmatprep.subr.mxu0 %v745
    %v747 = vand.u32 %v81, 4294901760
    %v748 = vsub.f32 %v81, %v747
    %749 = vmatpush1.msra.mxu0 %v748
    %750 = vmatprep.subr.mxu0 0.0
    %751 = vmatpush2.msra.mxu0 0.0
    %752 = vmatprep.subr.mxu0 0.0
    %753 = vmatpush2.msra.mxu0 0.0
    %754 = vmatprep.subr.mxu0 0.0
    %755 = vmatpush2.msra.mxu0 0.0
    %756 = vmatprep.subr.mxu0 0.0
    %757 = vmatpush2.msra.mxu0 0.0
    %758 = vmatprep.subr.mxu0 0.0
    %759 = vmatpush2.msra.mxu0 0.0
    %760 = vmatprep.subr.mxu0 0.0
    %761 = vmatpush2.msra.mxu0 0.0
    %762 = vmatprep.subr.mxu0 0.0
    %763 = vmatpush2.msra.mxu0 0.0
    %764 = vmatprep.subr.mxu0 0.0
    %765 = vmatpush2.msra.mxu0 0.0
    %766 = vmatprep.subr.mxu0 0.0
    %767 = vmatpush2.msra.mxu0 0.0
    %768 = vmatprep.subr.mxu0 0.0
    %769 = vmatpush2.msra.mxu0 0.0
    %770 = vmatprep.subr.mxu0 0.0
    %771 = vmatpush2.msra.mxu0 0.0
    %772 = vmatprep.subr.mxu0 0.0
    %773 = vmatpush2.msra.mxu0 0.0
    %774 = vmatprep.subr.mxu0 0.0
    %775 = vmatpush2.msra.mxu0 0.0
    %776 = vmatprep.subr.mxu0 0.0
    %777 = vmatpush2.msra.mxu0 0.0
    %778 = vmatprep.subr.mxu0 0.0
    %779 = vmatpush2.msra.mxu0 0.0
    %780 = vmatprep.subr.mxu0 0.0
    %781 = vmatpush2.msra.mxu0 0.0
    %782 = vmatprep.mubr.f32.mxu0 0.0
    %v783 = vand.u32 %v74, 4294901760
    %v784 = vsub.f32 %v74, %v783
    %785 = vmatmul.mubr.f32.gmra.mxu0 %v784
    %v786 = vpop.f32.mrf.mxu0
    %v787 = vadd.f32 %v710, %v786
    %v788 = vpop.f32.mrf.mxu0
    %v789 = vadd.f32 %v712, %v788
    %790 = vdwg.mxu0
    %791 = vmatprep.subr.mxu0 0.0
    %792 = vmatpush1.msra.mxu0 0.0
    %793 = vmatprep.subr.mxu0 0.0
    %794 = vmatpush1.msra.mxu0 0.0
    %795 = vmatprep.subr.mxu0 0.0
    %796 = vmatpush1.msra.mxu0 0.0
    %797 = vmatprep.subr.mxu0 0.0
    %798 = vmatpush1.msra.mxu0 0.0
    %799 = vmatprep.subr.mxu0 0.0
    %800 = vmatpush1.msra.mxu0 0.0
    %801 = vmatprep.subr.mxu0 0.0
    %802 = vmatpush1.msra.mxu0 0.0
    %803 = vmatprep.subr.mxu0 0.0
    %804 = vmatpush1.msra.mxu0 0.0
    %805 = vmatprep.subr.mxu0 0.0
    %806 = vmatpush1.msra.mxu0 0.0
    %807 = vmatprep.subr.mxu0 0.0
    %808 = vmatpush1.msra.mxu0 0.0
    %809 = vmatprep.subr.mxu0 0.0
    %810 = vmatpush1.msra.mxu0 0.0
    %811 = vmatprep.subr.mxu0 0.0
    %812 = vmatpush1.msra.mxu0 0.0
    %813 = vmatprep.subr.mxu0 0.0
    %814 = vmatpush1.msra.mxu0 0.0
    %815 = vmatprep.subr.mxu0 0.0
    %816 = vmatpush1.msra.mxu0 0.0
    %817 = vmatprep.subr.mxu0 0.0
    %818 = vmatpush1.msra.mxu0 0.0
    %819 = vmatprep.subr.mxu0 0.0
    %820 = vmatpush1.msra.mxu0 0.0
    %v821 = vand.u32 %v83, 4294901760
    %822 = vmatprep.subr.mxu0 %v821
    %v823 = vand.u32 %v81, 4294901760
    %824 = vmatpush1.msra.mxu0 %v823
    %825 = vmatprep.subr.mxu0 0.0
    %826 = vmatpush2.msra.mxu0 0.0
    %827 = vmatprep.subr.mxu0 0.0
    %828 = vmatpush2.msra.mxu0 0.0
    %829 = vmatprep.subr.mxu0 0.0
    %830 = vmatpush2.msra.mxu0 0.0
    %831 = vmatprep.subr.mxu0 0.0
    %832 = vmatpush2.msra.mxu0 0.0
    %833 = vmatprep.subr.mxu0 0.0
    %834 = vmatpush2.msra.mxu0 0.0
    %835 = vmatprep.subr.mxu0 0.0
    %836 = vmatpush2.msra.mxu0 0.0
    %837 = vmatprep.subr.mxu0 0.0
    %838 = vmatpush2.msra.mxu0 0.0
    %839 = vmatprep.subr.mxu0 0.0
    %840 = vmatpush2.msra.mxu0 0.0
    %841 = vmatprep.subr.mxu0 0.0
    %842 = vmatpush2.msra.mxu0 0.0
    %843 = vmatprep.subr.mxu0 0.0
    %844 = vmatpush2.msra.mxu0 0.0
    %845 = vmatprep.subr.mxu0 0.0
    %846 = vmatpush2.msra.mxu0 0.0
    %847 = vmatprep.subr.mxu0 0.0
    %848 = vmatpush2.msra.mxu0 0.0
    %849 = vmatprep.subr.mxu0 0.0
    %850 = vmatpush2.msra.mxu0 0.0
    %851 = vmatprep.subr.mxu0 0.0
    %852 = vmatpush2.msra.mxu0 0.0
    %853 = vmatprep.subr.mxu0 0.0
    %854 = vmatpush2.msra.mxu0 0.0
    %855 = vmatprep.subr.mxu0 0.0
    %856 = vmatpush2.msra.mxu0 0.0
    %857 = vmatprep.mubr.f32.mxu0 0.0
    %v858 = vand.u32 %v74, 4294901760
    %v859 = vsub.f32 %v74, %v858
    %v860 = vand.u32 %v859, 4294901760
    %861 = vmatmul.mubr.f32.gmra.mxu0 %v860
    %v862 = vpop.f32.mrf.mxu0
    %v863 = vadd.f32 %v787, %v862
    %v864 = vpop.f32.mrf.mxu0
    %v865 = vadd.f32 %v789, %v864
    %866 = vdwg.mxu0
    %867 = vmatprep.subr.mxu0 0.0
    %868 = vmatpush1.msra.mxu0 0.0
    %869 = vmatprep.subr.mxu0 0.0
    %870 = vmatpush1.msra.mxu0 0.0
    %871 = vmatprep.subr.mxu0 0.0
    %872 = vmatpush1.msra.mxu0 0.0
    %873 = vmatprep.subr.mxu0 0.0
    %874 = vmatpush1.msra.mxu0 0.0
    %875 = vmatprep.subr.mxu0 0.0
    %876 = vmatpush1.msra.mxu0 0.0
    %877 = vmatprep.subr.mxu0 0.0
    %878 = vmatpush1.msra.mxu0 0.0
    %879 = vmatprep.subr.mxu0 0.0
    %880 = vmatpush1.msra.mxu0 0.0
    %881 = vmatprep.subr.mxu0 0.0
    %882 = vmatpush1.msra.mxu0 0.0
    %883 = vmatprep.subr.mxu0 0.0
    %884 = vmatpush1.msra.mxu0 0.0
    %885 = vmatprep.subr.mxu0 0.0
    %886 = vmatpush1.msra.mxu0 0.0
    %887 = vmatprep.subr.mxu0 0.0
    %888 = vmatpush1.msra.mxu0 0.0
    %889 = vmatprep.subr.mxu0 0.0
    %890 = vmatpush1.msra.mxu0 0.0
    %891 = vmatprep.subr.mxu0 0.0
    %892 = vmatpush1.msra.mxu0 0.0
    %893 = vmatprep.subr.mxu0 0.0
    %894 = vmatpush1.msra.mxu0 0.0
    %895 = vmatprep.subr.mxu0 0.0
    %896 = vmatpush1.msra.mxu0 0.0
    %v897 = vand.u32 %v83, 4294901760
    %v898 = vsub.f32 %v83, %v897
    %v899 = vand.u32 %v898, 4294901760
    %900 = vmatprep.subr.mxu0 %v899
    %v901 = vand.u32 %v81, 4294901760
    %v902 = vsub.f32 %v81, %v901
    %v903 = vand.u32 %v902, 4294901760
    %904 = vmatpush1.msra.mxu0 %v903
    %905 = vmatprep.subr.mxu0 0.0
    %906 = vmatpush2.msra.mxu0 0.0
    %907 = vmatprep.subr.mxu0 0.0
    %908 = vmatpush2.msra.mxu0 0.0
    %909 = vmatprep.subr.mxu0 0.0
    %910 = vmatpush2.msra.mxu0 0.0
    %911 = vmatprep.subr.mxu0 0.0
    %912 = vmatpush2.msra.mxu0 0.0
    %913 = vmatprep.subr.mxu0 0.0
    %914 = vmatpush2.msra.mxu0 0.0
    %915 = vmatprep.subr.mxu0 0.0
    %916 = vmatpush2.msra.mxu0 0.0
    %917 = vmatprep.subr.mxu0 0.0
    %918 = vmatpush2.msra.mxu0 0.0
    %919 = vmatprep.subr.mxu0 0.0
    %920 = vmatpush2.msra.mxu0 0.0
    %921 = vmatprep.subr.mxu0 0.0
    %922 = vmatpush2.msra.mxu0 0.0
    %923 = vmatprep.subr.mxu0 0.0
    %924 = vmatpush2.msra.mxu0 0.0
    %925 = vmatprep.subr.mxu0 0.0
    %926 = vmatpush2.msra.mxu0 0.0
    %927 = vmatprep.subr.mxu0 0.0
    %928 = vmatpush2.msra.mxu0 0.0
    %929 = vmatprep.subr.mxu0 0.0
    %930 = vmatpush2.msra.mxu0 0.0
    %931 = vmatprep.subr.mxu0 0.0
    %932 = vmatpush2.msra.mxu0 0.0
    %933 = vmatprep.subr.mxu0 0.0
    %934 = vmatpush2.msra.mxu0 0.0
    %935 = vmatprep.subr.mxu0 0.0
    %936 = vmatpush2.msra.mxu0 0.0
    %937 = vmatprep.mubr.f32.mxu0 0.0
    %v938 = vand.u32 %v74, 4294901760
    %939 = vmatmul.mubr.f32.gmra.mxu0 %v938
    %v940 = vpop.f32.mrf.mxu0
    %v941 = vadd.f32 %v863, %v940
    %v942 = vpop.f32.mrf.mxu0
    %v943 = vadd.f32 %v865, %v942
    %944 = vdwg.mxu0
    %945 = vmatprep.subr.mxu0 0.0
    %946 = vmatpush1.msra.mxu0 0.0
    %947 = vmatprep.subr.mxu0 0.0
    %948 = vmatpush1.msra.mxu0 0.0
    %949 = vmatprep.subr.mxu0 0.0
    %950 = vmatpush1.msra.mxu0 0.0
    %951 = vmatprep.subr.mxu0 0.0
    %952 = vmatpush1.msra.mxu0 0.0
    %953 = vmatprep.subr.mxu0 0.0
    %954 = vmatpush1.msra.mxu0 0.0
    %955 = vmatprep.subr.mxu0 0.0
    %956 = vmatpush1.msra.mxu0 0.0
    %957 = vmatprep.subr.mxu0 0.0
    %958 = vmatpush1.msra.mxu0 0.0
    %959 = vmatprep.subr.mxu0 0.0
    %960 = vmatpush1.msra.mxu0 0.0
    %961 = vmatprep.subr.mxu0 0.0
    %962 = vmatpush1.msra.mxu0 0.0
    %963 = vmatprep.subr.mxu0 0.0
    %964 = vmatpush1.msra.mxu0 0.0
    %965 = vmatprep.subr.mxu0 0.0
    %966 = vmatpush1.msra.mxu0 0.0
    %967 = vmatprep.subr.mxu0 0.0
    %968 = vmatpush1.msra.mxu0 0.0
    %969 = vmatprep.subr.mxu0 0.0
    %970 = vmatpush1.msra.mxu0 0.0
    %971 = vmatprep.subr.mxu0 0.0
    %972 = vmatpush1.msra.mxu0 0.0
    %973 = vmatprep.subr.mxu0 0.0
    %974 = vmatpush1.msra.mxu0 0.0
    %v975 = vand.u32 %v83, 4294901760
    %976 = vmatprep.subr.mxu0 %v975
    %v977 = vand.u32 %v81, 4294901760
    %978 = vmatpush1.msra.mxu0 %v977
    %979 = vmatprep.subr.mxu0 0.0
    %980 = vmatpush2.msra.mxu0 0.0
    %981 = vmatprep.subr.mxu0 0.0
    %982 = vmatpush2.msra.mxu0 0.0
    %983 = vmatprep.subr.mxu0 0.0
    %984 = vmatpush2.msra.mxu0 0.0
    %985 = vmatprep.subr.mxu0 0.0
    %986 = vmatpush2.msra.mxu0 0.0
    %987 = vmatprep.subr.mxu0 0.0
    %988 = vmatpush2.msra.mxu0 0.0
    %989 = vmatprep.subr.mxu0 0.0
    %990 = vmatpush2.msra.mxu0 0.0
    %991 = vmatprep.subr.mxu0 0.0
    %992 = vmatpush2.msra.mxu0 0.0
    %993 = vmatprep.subr.mxu0 0.0
    %994 = vmatpush2.msra.mxu0 0.0
    %995 = vmatprep.subr.mxu0 0.0
    %996 = vmatpush2.msra.mxu0 0.0
    %997 = vmatprep.subr.mxu0 0.0
    %998 = vmatpush2.msra.mxu0 0.0
    %999 = vmatprep.subr.mxu0 0.0
    %1000 = vmatpush2.msra.mxu0 0.0
    %1001 = vmatprep.subr.mxu0 0.0
    %1002 = vmatpush2.msra.mxu0 0.0
    %1003 = vmatprep.subr.mxu0 0.0
    %1004 = vmatpush2.msra.mxu0 0.0
    %1005 = vmatprep.subr.mxu0 0.0
    %1006 = vmatpush2.msra.mxu0 0.0
    %1007 = vmatprep.subr.mxu0 0.0
    %1008 = vmatpush2.msra.mxu0 0.0
    %1009 = vmatprep.subr.mxu0 0.0
    %1010 = vmatpush2.msra.mxu0 0.0
    %1011 = vmatprep.mubr.f32.mxu0 0.0
    %v1012 = vand.u32 %v74, 4294901760
    %1013 = vmatmul.mubr.f32.gmra.mxu0 %v1012
    %v1014 = vpop.f32.mrf.mxu0
    %v1015 = vadd.f32 %v941, %v1014
    %v1016 = vpop.f32.mrf.mxu0
    %v1017 = vadd.f32 %v943, %v1016
    %1018 = vdwg.mxu0
    %1019 = vmatprep.subr.mxu0 0.0
    %1020 = vmatpush1.msra.mxu0 0.0
    %1021 = vmatprep.subr.mxu0 0.0
    %1022 = vmatpush1.msra.mxu0 0.0
    %1023 = vmatprep.subr.mxu0 0.0
    %1024 = vmatpush1.msra.mxu0 0.0
    %1025 = vmatprep.subr.mxu0 0.0
    %1026 = vmatpush1.msra.mxu0 0.0
    %1027 = vmatprep.subr.mxu0 0.0
    %1028 = vmatpush1.msra.mxu0 0.0
    %1029 = vmatprep.subr.mxu0 0.0
    %1030 = vmatpush1.msra.mxu0 0.0
    %1031 = vmatprep.subr.mxu0 0.0
    %1032 = vmatpush1.msra.mxu0 0.0
    %1033 = vmatprep.subr.mxu0 0.0
    %1034 = vmatpush1.msra.mxu0 0.0
    %1035 = vmatprep.subr.mxu0 0.0
    %1036 = vmatpush1.msra.mxu0 0.0
    %1037 = vmatprep.subr.mxu0 0.0
    %1038 = vmatpush1.msra.mxu0 0.0
    %1039 = vmatprep.subr.mxu0 0.0
    %1040 = vmatpush1.msra.mxu0 0.0
    %1041 = vmatprep.subr.mxu0 0.0
    %1042 = vmatpush1.msra.mxu0 0.0
    %1043 = vmatprep.subr.mxu0 0.0
    %1044 = vmatpush1.msra.mxu0 0.0
    %1045 = vmatprep.subr.mxu0 0.0
    %1046 = vmatpush1.msra.mxu0 0.0
    %1047 = vmatprep.subr.mxu0 0.0
    %1048 = vmatpush1.msra.mxu0 0.0
    %v1049 = vand.u32 %v87, 4294901760
    %1050 = vmatprep.subr.mxu0 %v1049
    %v1051 = vand.u32 %v85, 4294901760
    %1052 = vmatpush1.msra.mxu0 %v1051
    %1053 = vmatprep.subr.mxu0 0.0
    %1054 = vmatpush2.msra.mxu0 0.0
    %1055 = vmatprep.subr.mxu0 0.0
    %1056 = vmatpush2.msra.mxu0 0.0
    %1057 = vmatprep.subr.mxu0 0.0
    %1058 = vmatpush2.msra.mxu0 0.0
    %1059 = vmatprep.subr.mxu0 0.0
    %1060 = vmatpush2.msra.mxu0 0.0
    %1061 = vmatprep.subr.mxu0 0.0
    %1062 = vmatpush2.msra.mxu0 0.0
    %1063 = vmatprep.subr.mxu0 0.0
    %1064 = vmatpush2.msra.mxu0 0.0
    %1065 = vmatprep.subr.mxu0 0.0
    %1066 = vmatpush2.msra.mxu0 0.0
    %1067 = vmatprep.subr.mxu0 0.0
    %1068 = vmatpush2.msra.mxu0 0.0
    %1069 = vmatprep.subr.mxu0 0.0
    %1070 = vmatpush2.msra.mxu0 0.0
    %1071 = vmatprep.subr.mxu0 0.0
    %1072 = vmatpush2.msra.mxu0 0.0
    %1073 = vmatprep.subr.mxu0 0.0
    %1074 = vmatpush2.msra.mxu0 0.0
    %1075 = vmatprep.subr.mxu0 0.0
    %1076 = vmatpush2.msra.mxu0 0.0
    %1077 = vmatprep.subr.mxu0 0.0
    %1078 = vmatpush2.msra.mxu0 0.0
    %1079 = vmatprep.subr.mxu0 0.0
    %1080 = vmatpush2.msra.mxu0 0.0
    %1081 = vmatprep.subr.mxu0 0.0
    %1082 = vmatpush2.msra.mxu0 0.0
    %1083 = vmatprep.subr.mxu0 0.0
    %1084 = vmatpush2.msra.mxu0 0.0
    %1085 = vmatprep.mubr.f32.mxu0 0.0
    %v1086 = vand.u32 %v74, 4294901760
    %v1087 = vsub.f32 %v74, %v1086
    %v1088 = vand.u32 %v1087, 4294901760
    %v1089 = vsub.f32 %v1087, %v1088
    %v1090 = vand.u32 %v1089, 4294901760
    %1091 = vmatmul.mubr.f32.gmra.mxu0 %v1090
    %v1092 = vpop.f32.mrf.mxu0
    %v1093 = vadd.f32 %v55, %v1092
    %v1094 = vpop.f32.mrf.mxu0
    %v1095 = vadd.f32 %v59, %v1094
    %1096 = vdwg.mxu0
    %1097 = vmatprep.subr.mxu0 0.0
    %1098 = vmatpush1.msra.mxu0 0.0
    %1099 = vmatprep.subr.mxu0 0.0
    %1100 = vmatpush1.msra.mxu0 0.0
    %1101 = vmatprep.subr.mxu0 0.0
    %1102 = vmatpush1.msra.mxu0 0.0
    %1103 = vmatprep.subr.mxu0 0.0
    %1104 = vmatpush1.msra.mxu0 0.0
    %1105 = vmatprep.subr.mxu0 0.0
    %1106 = vmatpush1.msra.mxu0 0.0
    %1107 = vmatprep.subr.mxu0 0.0
    %1108 = vmatpush1.msra.mxu0 0.0
    %1109 = vmatprep.subr.mxu0 0.0
    %1110 = vmatpush1.msra.mxu0 0.0
    %1111 = vmatprep.subr.mxu0 0.0
    %1112 = vmatpush1.msra.mxu0 0.0
    %1113 = vmatprep.subr.mxu0 0.0
    %1114 = vmatpush1.msra.mxu0 0.0
    %1115 = vmatprep.subr.mxu0 0.0
    %1116 = vmatpush1.msra.mxu0 0.0
    %1117 = vmatprep.subr.mxu0 0.0
    %1118 = vmatpush1.msra.mxu0 0.0
    %1119 = vmatprep.subr.mxu0 0.0
    %1120 = vmatpush1.msra.mxu0 0.0
    %1121 = vmatprep.subr.mxu0 0.0
    %1122 = vmatpush1.msra.mxu0 0.0
    %1123 = vmatprep.subr.mxu0 0.0
    %1124 = vmatpush1.msra.mxu0 0.0
    %1125 = vmatprep.subr.mxu0 0.0
    %1126 = vmatpush1.msra.mxu0 0.0
    %v1127 = vand.u32 %v87, 4294901760
    %v1128 = vsub.f32 %v87, %v1127
    %v1129 = vand.u32 %v1128, 4294901760
    %v1130 = vsub.f32 %v1128, %v1129
    %v1131 = vand.u32 %v1130, 4294901760
    %1132 = vmatprep.subr.mxu0 %v1131
    %v1133 = vand.u32 %v85, 4294901760
    %v1134 = vsub.f32 %v85, %v1133
    %v1135 = vand.u32 %v1134, 4294901760
    %v1136 = vsub.f32 %v1134, %v1135
    %v1137 = vand.u32 %v1136, 4294901760
    %1138 = vmatpush1.msra.mxu0 %v1137
    %1139 = vmatprep.subr.mxu0 0.0
    %1140 = vmatpush2.msra.mxu0 0.0
    %1141 = vmatprep.subr.mxu0 0.0
    %1142 = vmatpush2.msra.mxu0 0.0
    %1143 = vmatprep.subr.mxu0 0.0
    %1144 = vmatpush2.msra.mxu0 0.0
    %1145 = vmatprep.subr.mxu0 0.0
    %1146 = vmatpush2.msra.mxu0 0.0
    %1147 = vmatprep.subr.mxu0 0.0
    %1148 = vmatpush2.msra.mxu0 0.0
    %1149 = vmatprep.subr.mxu0 0.0
    %1150 = vmatpush2.msra.mxu0 0.0
    %1151 = vmatprep.subr.mxu0 0.0
    %1152 = vmatpush2.msra.mxu0 0.0
    %1153 = vmatprep.subr.mxu0 0.0
    %1154 = vmatpush2.msra.mxu0 0.0
    %1155 = vmatprep.subr.mxu0 0.0
    %1156 = vmatpush2.msra.mxu0 0.0
    %1157 = vmatprep.subr.mxu0 0.0
    %1158 = vmatpush2.msra.mxu0 0.0
    %1159 = vmatprep.subr.mxu0 0.0
    %1160 = vmatpush2.msra.mxu0 0.0
    %1161 = vmatprep.subr.mxu0 0.0
    %1162 = vmatpush2.msra.mxu0 0.0
    %1163 = vmatprep.subr.mxu0 0.0
    %1164 = vmatpush2.msra.mxu0 0.0
    %1165 = vmatprep.subr.mxu0 0.0
    %1166 = vmatpush2.msra.mxu0 0.0
    %1167 = vmatprep.subr.mxu0 0.0
    %1168 = vmatpush2.msra.mxu0 0.0
    %1169 = vmatprep.subr.mxu0 0.0
    %1170 = vmatpush2.msra.mxu0 0.0
    %1171 = vmatprep.mubr.f32.mxu0 0.0
    %v1172 = vand.u32 %v74, 4294901760
    %1173 = vmatmul.mubr.f32.gmra.mxu0 %v1172
    %v1174 = vpop.f32.mrf.mxu0
    %v1175 = vadd.f32 %v1093, %v1174
    %v1176 = vpop.f32.mrf.mxu0
    %v1177 = vadd.f32 %v1095, %v1176
    %1178 = vdwg.mxu0
    %1179 = vmatprep.subr.mxu0 0.0
    %1180 = vmatpush1.msra.mxu0 0.0
    %1181 = vmatprep.subr.mxu0 0.0
    %1182 = vmatpush1.msra.mxu0 0.0
    %1183 = vmatprep.subr.mxu0 0.0
    %1184 = vmatpush1.msra.mxu0 0.0
    %1185 = vmatprep.subr.mxu0 0.0
    %1186 = vmatpush1.msra.mxu0 0.0
    %1187 = vmatprep.subr.mxu0 0.0
    %1188 = vmatpush1.msra.mxu0 0.0
    %1189 = vmatprep.subr.mxu0 0.0
    %1190 = vmatpush1.msra.mxu0 0.0
    %1191 = vmatprep.subr.mxu0 0.0
    %1192 = vmatpush1.msra.mxu0 0.0
    %1193 = vmatprep.subr.mxu0 0.0
    %1194 = vmatpush1.msra.mxu0 0.0
    %1195 = vmatprep.subr.mxu0 0.0
    %1196 = vmatpush1.msra.mxu0 0.0
    %1197 = vmatprep.subr.mxu0 0.0
    %1198 = vmatpush1.msra.mxu0 0.0
    %1199 = vmatprep.subr.mxu0 0.0
    %1200 = vmatpush1.msra.mxu0 0.0
    %1201 = vmatprep.subr.mxu0 0.0
    %1202 = vmatpush1.msra.mxu0 0.0
    %1203 = vmatprep.subr.mxu0 0.0
    %1204 = vmatpush1.msra.mxu0 0.0
    %1205 = vmatprep.subr.mxu0 0.0
    %1206 = vmatpush1.msra.mxu0 0.0
    %1207 = vmatprep.subr.mxu0 0.0
    %1208 = vmatpush1.msra.mxu0 0.0
    %v1209 = vand.u32 %v87, 4294901760
    %v1210 = vsub.f32 %v87, %v1209
    %1211 = vmatprep.subr.mxu0 %v1210
    %v1212 = vand.u32 %v85, 4294901760
    %v1213 = vsub.f32 %v85, %v1212
    %1214 = vmatpush1.msra.mxu0 %v1213
    %1215 = vmatprep.subr.mxu0 0.0
    %1216 = vmatpush2.msra.mxu0 0.0
    %1217 = vmatprep.subr.mxu0 0.0
    %1218 = vmatpush2.msra.mxu0 0.0
    %1219 = vmatprep.subr.mxu0 0.0
    %1220 = vmatpush2.msra.mxu0 0.0
    %1221 = vmatprep.subr.mxu0 0.0
    %1222 = vmatpush2.msra.mxu0 0.0
    %1223 = vmatprep.subr.mxu0 0.0
    %1224 = vmatpush2.msra.mxu0 0.0
    %1225 = vmatprep.subr.mxu0 0.0
    %1226 = vmatpush2.msra.mxu0 0.0
    %1227 = vmatprep.subr.mxu0 0.0
    %1228 = vmatpush2.msra.mxu0 0.0
    %1229 = vmatprep.subr.mxu0 0.0
    %1230 = vmatpush2.msra.mxu0 0.0
    %1231 = vmatprep.subr.mxu0 0.0
    %1232 = vmatpush2.msra.mxu0 0.0
    %1233 = vmatprep.subr.mxu0 0.0
    %1234 = vmatpush2.msra.mxu0 0.0
    %1235 = vmatprep.subr.mxu0 0.0
    %1236 = vmatpush2.msra.mxu0 0.0
    %1237 = vmatprep.subr.mxu0 0.0
    %1238 = vmatpush2.msra.mxu0 0.0
    %1239 = vmatprep.subr.mxu0 0.0
    %1240 = vmatpush2.msra.mxu0 0.0
    %1241 = vmatprep.subr.mxu0 0.0
    %1242 = vmatpush2.msra.mxu0 0.0
    %1243 = vmatprep.subr.mxu0 0.0
    %1244 = vmatpush2.msra.mxu0 0.0
    %1245 = vmatprep.subr.mxu0 0.0
    %1246 = vmatpush2.msra.mxu0 0.0
    %1247 = vmatprep.mubr.f32.mxu0 0.0
    %v1248 = vand.u32 %v74, 4294901760
    %v1249 = vsub.f32 %v74, %v1248
    %1250 = vmatmul.mubr.f32.gmra.mxu0 %v1249
    %v1251 = vpop.f32.mrf.mxu0
    %v1252 = vadd.f32 %v1175, %v1251
    %v1253 = vpop.f32.mrf.mxu0
    %v1254 = vadd.f32 %v1177, %v1253
    %1255 = vdwg.mxu0
    %1256 = vmatprep.subr.mxu0 0.0
    %1257 = vmatpush1.msra.mxu0 0.0
    %1258 = vmatprep.subr.mxu0 0.0
    %1259 = vmatpush1.msra.mxu0 0.0
    %1260 = vmatprep.subr.mxu0 0.0
    %1261 = vmatpush1.msra.mxu0 0.0
    %1262 = vmatprep.subr.mxu0 0.0
    %1263 = vmatpush1.msra.mxu0 0.0
    %1264 = vmatprep.subr.mxu0 0.0
    %1265 = vmatpush1.msra.mxu0 0.0
    %1266 = vmatprep.subr.mxu0 0.0
    %1267 = vmatpush1.msra.mxu0 0.0
    %1268 = vmatprep.subr.mxu0 0.0
    %1269 = vmatpush1.msra.mxu0 0.0
    %1270 = vmatprep.subr.mxu0 0.0
    %1271 = vmatpush1.msra.mxu0 0.0
    %1272 = vmatprep.subr.mxu0 0.0
    %1273 = vmatpush1.msra.mxu0 0.0
    %1274 = vmatprep.subr.mxu0 0.0
    %1275 = vmatpush1.msra.mxu0 0.0
    %1276 = vmatprep.subr.mxu0 0.0
    %1277 = vmatpush1.msra.mxu0 0.0
    %1278 = vmatprep.subr.mxu0 0.0
    %1279 = vmatpush1.msra.mxu0 0.0
    %1280 = vmatprep.subr.mxu0 0.0
    %1281 = vmatpush1.msra.mxu0 0.0
    %1282 = vmatprep.subr.mxu0 0.0
    %1283 = vmatpush1.msra.mxu0 0.0
    %1284 = vmatprep.subr.mxu0 0.0
    %1285 = vmatpush1.msra.mxu0 0.0
    %v1286 = vand.u32 %v87, 4294901760
    %1287 = vmatprep.subr.mxu0 %v1286
    %v1288 = vand.u32 %v85, 4294901760
    %1289 = vmatpush1.msra.mxu0 %v1288
    %1290 = vmatprep.subr.mxu0 0.0
    %1291 = vmatpush2.msra.mxu0 0.0
    %1292 = vmatprep.subr.mxu0 0.0
    %1293 = vmatpush2.msra.mxu0 0.0
    %1294 = vmatprep.subr.mxu0 0.0
    %1295 = vmatpush2.msra.mxu0 0.0
    %1296 = vmatprep.subr.mxu0 0.0
    %1297 = vmatpush2.msra.mxu0 0.0
    %1298 = vmatprep.subr.mxu0 0.0
    %1299 = vmatpush2.msra.mxu0 0.0
    %1300 = vmatprep.subr.mxu0 0.0
    %1301 = vmatpush2.msra.mxu0 0.0
    %1302 = vmatprep.subr.mxu0 0.0
    %1303 = vmatpush2.msra.mxu0 0.0
    %1304 = vmatprep.subr.mxu0 0.0
    %1305 = vmatpush2.msra.mxu0 0.0
    %1306 = vmatprep.subr.mxu0 0.0
    %1307 = vmatpush2.msra.mxu0 0.0
    %1308 = vmatprep.subr.mxu0 0.0
    %1309 = vmatpush2.msra.mxu0 0.0
    %1310 = vmatprep.subr.mxu0 0.0
    %1311 = vmatpush2.msra.mxu0 0.0
    %1312 = vmatprep.subr.mxu0 0.0
    %1313 = vmatpush2.msra.mxu0 0.0
    %1314 = vmatprep.subr.mxu0 0.0
    %1315 = vmatpush2.msra.mxu0 0.0
    %1316 = vmatprep.subr.mxu0 0.0
    %1317 = vmatpush2.msra.mxu0 0.0
    %1318 = vmatprep.subr.mxu0 0.0
    %1319 = vmatpush2.msra.mxu0 0.0
    %1320 = vmatprep.subr.mxu0 0.0
    %1321 = vmatpush2.msra.mxu0 0.0
    %1322 = vmatprep.mubr.f32.mxu0 0.0
    %v1323 = vand.u32 %v74, 4294901760
    %v1324 = vsub.f32 %v74, %v1323
    %v1325 = vand.u32 %v1324, 4294901760
    %1326 = vmatmul.mubr.f32.gmra.mxu0 %v1325
    %v1327 = vpop.f32.mrf.mxu0
    %v1328 = vadd.f32 %v1252, %v1327
    %v1329 = vpop.f32.mrf.mxu0
    %v1330 = vadd.f32 %v1254, %v1329
    %1331 = vdwg.mxu0
    %1332 = vmatprep.subr.mxu0 0.0
    %1333 = vmatpush1.msra.mxu0 0.0
    %1334 = vmatprep.subr.mxu0 0.0
    %1335 = vmatpush1.msra.mxu0 0.0
    %1336 = vmatprep.subr.mxu0 0.0
    %1337 = vmatpush1.msra.mxu0 0.0
    %1338 = vmatprep.subr.mxu0 0.0
    %1339 = vmatpush1.msra.mxu0 0.0
    %1340 = vmatprep.subr.mxu0 0.0
    %1341 = vmatpush1.msra.mxu0 0.0
    %1342 = vmatprep.subr.mxu0 0.0
    %1343 = vmatpush1.msra.mxu0 0.0
    %1344 = vmatprep.subr.mxu0 0.0
    %1345 = vmatpush1.msra.mxu0 0.0
    %1346 = vmatprep.subr.mxu0 0.0
    %1347 = vmatpush1.msra.mxu0 0.0
    %1348 = vmatprep.subr.mxu0 0.0
    %1349 = vmatpush1.msra.mxu0 0.0
    %1350 = vmatprep.subr.mxu0 0.0
    %1351 = vmatpush1.msra.mxu0 0.0
    %1352 = vmatprep.subr.mxu0 0.0
    %1353 = vmatpush1.msra.mxu0 0.0
    %1354 = vmatprep.subr.mxu0 0.0
    %1355 = vmatpush1.msra.mxu0 0.0
    %1356 = vmatprep.subr.mxu0 0.0
    %1357 = vmatpush1.msra.mxu0 0.0
    %1358 = vmatprep.subr.mxu0 0.0
    %1359 = vmatpush1.msra.mxu0 0.0
    %1360 = vmatprep.subr.mxu0 0.0
    %1361 = vmatpush1.msra.mxu0 0.0
    %v1362 = vand.u32 %v87, 4294901760
    %v1363 = vsub.f32 %v87, %v1362
    %v1364 = vand.u32 %v1363, 4294901760
    %1365 = vmatprep.subr.mxu0 %v1364
    %v1366 = vand.u32 %v85, 4294901760
    %v1367 = vsub.f32 %v85, %v1366
    %v1368 = vand.u32 %v1367, 4294901760
    %1369 = vmatpush1.msra.mxu0 %v1368
    %1370 = vmatprep.subr.mxu0 0.0
    %1371 = vmatpush2.msra.mxu0 0.0
    %1372 = vmatprep.subr.mxu0 0.0
    %1373 = vmatpush2.msra.mxu0 0.0
    %1374 = vmatprep.subr.mxu0 0.0
    %1375 = vmatpush2.msra.mxu0 0.0
    %1376 = vmatprep.subr.mxu0 0.0
    %1377 = vmatpush2.msra.mxu0 0.0
    %1378 = vmatprep.subr.mxu0 0.0
    %1379 = vmatpush2.msra.mxu0 0.0
    %1380 = vmatprep.subr.mxu0 0.0
    %1381 = vmatpush2.msra.mxu0 0.0
    %1382 = vmatprep.subr.mxu0 0.0
    %1383 = vmatpush2.msra.mxu0 0.0
    %1384 = vmatprep.subr.mxu0 0.0
    %1385 = vmatpush2.msra.mxu0 0.0
    %1386 = vmatprep.subr.mxu0 0.0
    %1387 = vmatpush2.msra.mxu0 0.0
    %1388 = vmatprep.subr.mxu0 0.0
    %1389 = vmatpush2.msra.mxu0 0.0
    %1390 = vmatprep.subr.mxu0 0.0
    %1391 = vmatpush2.msra.mxu0 0.0
    %1392 = vmatprep.subr.mxu0 0.0
    %1393 = vmatpush2.msra.mxu0 0.0
    %1394 = vmatprep.subr.mxu0 0.0
    %1395 = vmatpush2.msra.mxu0 0.0
    %1396 = vmatprep.subr.mxu0 0.0
    %1397 = vmatpush2.msra.mxu0 0.0
    %1398 = vmatprep.subr.mxu0 0.0
    %1399 = vmatpush2.msra.mxu0 0.0
    %1400 = vmatprep.subr.mxu0 0.0
    %1401 = vmatpush2.msra.mxu0 0.0
    %1402 = vmatprep.mubr.f32.mxu0 0.0
    %v1403 = vand.u32 %v74, 4294901760
    %1404 = vmatmul.mubr.f32.gmra.mxu0 %v1403
    %v1405 = vpop.f32.mrf.mxu0
    %v1406 = vadd.f32 %v1328, %v1405
    %v1407 = vpop.f32.mrf.mxu0
    %v1408 = vadd.f32 %v1330, %v1407
    %1409 = vdwg.mxu0
    %1410 = vmatprep.subr.mxu0 0.0
    %1411 = vmatpush1.msra.mxu0 0.0
    %1412 = vmatprep.subr.mxu0 0.0
    %1413 = vmatpush1.msra.mxu0 0.0
    %1414 = vmatprep.subr.mxu0 0.0
    %1415 = vmatpush1.msra.mxu0 0.0
    %1416 = vmatprep.subr.mxu0 0.0
    %1417 = vmatpush1.msra.mxu0 0.0
    %1418 = vmatprep.subr.mxu0 0.0
    %1419 = vmatpush1.msra.mxu0 0.0
    %1420 = vmatprep.subr.mxu0 0.0
    %1421 = vmatpush1.msra.mxu0 0.0
    %1422 = vmatprep.subr.mxu0 0.0
    %1423 = vmatpush1.msra.mxu0 0.0
    %1424 = vmatprep.subr.mxu0 0.0
    %1425 = vmatpush1.msra.mxu0 0.0
    %1426 = vmatprep.subr.mxu0 0.0
    %1427 = vmatpush1.msra.mxu0 0.0
    %1428 = vmatprep.subr.mxu0 0.0
    %1429 = vmatpush1.msra.mxu0 0.0
    %1430 = vmatprep.subr.mxu0 0.0
    %1431 = vmatpush1.msra.mxu0 0.0
    %1432 = vmatprep.subr.mxu0 0.0
    %1433 = vmatpush1.msra.mxu0 0.0
    %1434 = vmatprep.subr.mxu0 0.0
    %1435 = vmatpush1.msra.mxu0 0.0
    %1436 = vmatprep.subr.mxu0 0.0
    %1437 = vmatpush1.msra.mxu0 0.0
    %1438 = vmatprep.subr.mxu0 0.0
    %1439 = vmatpush1.msra.mxu0 0.0
    %v1440 = vand.u32 %v87, 4294901760
    %1441 = vmatprep.subr.mxu0 %v1440
    %v1442 = vand.u32 %v85, 4294901760
    %1443 = vmatpush1.msra.mxu0 %v1442
    %1444 = vmatprep.subr.mxu0 0.0
    %1445 = vmatpush2.msra.mxu0 0.0
    %1446 = vmatprep.subr.mxu0 0.0
    %1447 = vmatpush2.msra.mxu0 0.0
    %1448 = vmatprep.subr.mxu0 0.0
    %1449 = vmatpush2.msra.mxu0 0.0
    %1450 = vmatprep.subr.mxu0 0.0
    %1451 = vmatpush2.msra.mxu0 0.0
    %1452 = vmatprep.subr.mxu0 0.0
    %1453 = vmatpush2.msra.mxu0 0.0
    %1454 = vmatprep.subr.mxu0 0.0
    %1455 = vmatpush2.msra.mxu0 0.0
    %1456 = vmatprep.subr.mxu0 0.0
    %1457 = vmatpush2.msra.mxu0 0.0
    %1458 = vmatprep.subr.mxu0 0.0
    %1459 = vmatpush2.msra.mxu0 0.0
    %1460 = vmatprep.subr.mxu0 0.0
    %1461 = vmatpush2.msra.mxu0 0.0
    %1462 = vmatprep.subr.mxu0 0.0
    %1463 = vmatpush2.msra.mxu0 0.0
    %1464 = vmatprep.subr.mxu0 0.0
    %1465 = vmatpush2.msra.mxu0 0.0
    %1466 = vmatprep.subr.mxu0 0.0
    %1467 = vmatpush2.msra.mxu0 0.0
    %1468 = vmatprep.subr.mxu0 0.0
    %1469 = vmatpush2.msra.mxu0 0.0
    %1470 = vmatprep.subr.mxu0 0.0
    %1471 = vmatpush2.msra.mxu0 0.0
    %1472 = vmatprep.subr.mxu0 0.0
    %1473 = vmatpush2.msra.mxu0 0.0
    %1474 = vmatprep.subr.mxu0 0.0
    %1475 = vmatpush2.msra.mxu0 0.0
    %1476 = vmatprep.mubr.f32.mxu0 0.0
    %v1477 = vand.u32 %v74, 4294901760
    %1478 = vmatmul.mubr.f32.gmra.mxu0 %v1477
    %v1479 = vpop.f32.mrf.mxu0
    %v1480 = vadd.f32 %v1406, %v1479
    %v1481 = vpop.f32.mrf.mxu0
    %v1482 = vadd.f32 %v1408, %v1481
    %1483 = vdwg.mxu0
    %v1484 = vld [vmem:[%s1] sm:$0x3]
    %v1485 = vld [vmem:[%s4] sm:$0x77]
    %v1486 = vld [vmem:[%s4 + $0x8] sm:$0x77]
    %v1487 = vld [vmem:[%s4 + $0x10] sm:$0x77]
    %v1488 = vld [vmem:[%s5] sm:$0x3f]
    %v1490 = vlaneseq
    %v1491 = vshrl.u32 %v1490, 7
    %v1492 = vsub.s32 0, %v1491
    %v1493 = vrot.slane %v1488, %v1492
    %v1494 = vlaneseq
    %v1495 = vshrl.u32 %v1494, 7
    %v1496 = vsub.s32 1, %v1495
    %v1497 = vrot.slane %v1488, %v1496
    %v1498 = vlaneseq
    %v1499 = vshrl.u32 %v1498, 7
    %v1500 = vsub.s32 2, %v1499
    %v1501 = vrot.slane %v1488, %v1500
    %v1502 = vlaneseq
    %v1503 = vshrl.u32 %v1502, 7
    %v1504 = vsub.s32 3, %v1503
    %v1505 = vrot.slane %v1488, %v1504
    %v1506 = vlaneseq
    %v1507 = vshrl.u32 %v1506, 7
    %v1508 = vsub.s32 4, %v1507
    %v1509 = vrot.slane %v1488, %v1508
    %v1510 = vlaneseq
    %v1511 = vshrl.u32 %v1510, 7
    %v1512 = vsub.s32 5, %v1511
    %v1513 = vrot.slane %v1488, %v1512
    %v1523 = vcombine.high %v1485, %v1485
    %v1524 = vcombine.high %v1486, %v1486
    %v1525 = vcombine.high %v1487, %v1487
    %v1527 = vsel %vm72, %v1484, 0
    %v1529 = vsel %vm76, %v1485, 0
    %v1531 = vsel %vm76, %v1523, 0
    %v1533 = vsel %vm76, %v1486, 0
    %v1535 = vsel %vm76, %v1524, 0
    %v1537 = vsel %vm76, %v1487, 0
    %v1539 = vsel %vm76, %v1525, 0
    %1541 = vmatprep.subr.mxu0 0.0
    %1542 = vmatpush1.msra.mxu0 0.0
    %1543 = vmatprep.subr.mxu0 0.0
    %1544 = vmatpush1.msra.mxu0 0.0
    %1545 = vmatprep.subr.mxu0 0.0
    %1546 = vmatpush1.msra.mxu0 0.0
    %1547 = vmatprep.subr.mxu0 0.0
    %1548 = vmatpush1.msra.mxu0 0.0
    %1549 = vmatprep.subr.mxu0 0.0
    %1550 = vmatpush1.msra.mxu0 0.0
    %1551 = vmatprep.subr.mxu0 0.0
    %1552 = vmatpush1.msra.mxu0 0.0
    %1553 = vmatprep.subr.mxu0 0.0
    %1554 = vmatpush1.msra.mxu0 0.0
    %1555 = vmatprep.subr.mxu0 0.0
    %1556 = vmatpush1.msra.mxu0 0.0
    %1557 = vmatprep.subr.mxu0 0.0
    %1558 = vmatpush1.msra.mxu0 0.0
    %1559 = vmatprep.subr.mxu0 0.0
    %1560 = vmatpush1.msra.mxu0 0.0
    %1561 = vmatprep.subr.mxu0 0.0
    %1562 = vmatpush1.msra.mxu0 0.0
    %1563 = vmatprep.subr.mxu0 0.0
    %1564 = vmatpush1.msra.mxu0 0.0
    %1565 = vmatprep.subr.mxu0 0.0
    %1566 = vmatpush1.msra.mxu0 0.0
    %1567 = vmatprep.subr.mxu0 0.0
    %1568 = vmatpush1.msra.mxu0 0.0
    %1569 = vmatprep.subr.mxu0 0.0
    %1570 = vmatpush1.msra.mxu0 0.0
    %v1571 = vand.u32 %v1531, 4294901760
    %1572 = vmatprep.subr.mxu0 %v1571
    %v1573 = vand.u32 %v1529, 4294901760
    %1574 = vmatpush1.msra.mxu0 %v1573
    %1575 = vmatprep.subr.mxu0 0.0
    %1576 = vmatpush2.msra.mxu0 0.0
    %1577 = vmatprep.subr.mxu0 0.0
    %1578 = vmatpush2.msra.mxu0 0.0
    %1579 = vmatprep.subr.mxu0 0.0
    %1580 = vmatpush2.msra.mxu0 0.0
    %1581 = vmatprep.subr.mxu0 0.0
    %1582 = vmatpush2.msra.mxu0 0.0
    %1583 = vmatprep.subr.mxu0 0.0
    %1584 = vmatpush2.msra.mxu0 0.0
    %1585 = vmatprep.subr.mxu0 0.0
    %1586 = vmatpush2.msra.mxu0 0.0
    %1587 = vmatprep.subr.mxu0 0.0
    %1588 = vmatpush2.msra.mxu0 0.0
    %1589 = vmatprep.subr.mxu0 0.0
    %1590 = vmatpush2.msra.mxu0 0.0
    %1591 = vmatprep.subr.mxu0 0.0
    %1592 = vmatpush2.msra.mxu0 0.0
    %1593 = vmatprep.subr.mxu0 0.0
    %1594 = vmatpush2.msra.mxu0 0.0
    %1595 = vmatprep.subr.mxu0 0.0
    %1596 = vmatpush2.msra.mxu0 0.0
    %1597 = vmatprep.subr.mxu0 0.0
    %1598 = vmatpush2.msra.mxu0 0.0
    %1599 = vmatprep.subr.mxu0 0.0
    %1600 = vmatpush2.msra.mxu0 0.0
    %1601 = vmatprep.subr.mxu0 0.0
    %1602 = vmatpush2.msra.mxu0 0.0
    %1603 = vmatprep.subr.mxu0 0.0
    %1604 = vmatpush2.msra.mxu0 0.0
    %1605 = vmatprep.subr.mxu0 0.0
    %1606 = vmatpush2.msra.mxu0 0.0
    %1607 = vmatprep.mubr.f32.mxu0 0.0
    %v1608 = vand.u32 %v1527, 4294901760
    %v1609 = vsub.f32 %v1527, %v1608
    %v1610 = vand.u32 %v1609, 4294901760
    %v1611 = vsub.f32 %v1609, %v1610
    %v1612 = vand.u32 %v1611, 4294901760
    %1613 = vmatmul.mubr.f32.gmra.mxu0 %v1612
    %v1614 = vpop.f32.mrf.mxu0
    %v1615 = vadd.f32 %v1493, %v1614
    %v1616 = vpop.f32.mrf.mxu0
    %v1617 = vadd.f32 %v1497, %v1616
    %1618 = vdwg.mxu0
    %1619 = vmatprep.subr.mxu0 0.0
    %1620 = vmatpush1.msra.mxu0 0.0
    %1621 = vmatprep.subr.mxu0 0.0
    %1622 = vmatpush1.msra.mxu0 0.0
    %1623 = vmatprep.subr.mxu0 0.0
    %1624 = vmatpush1.msra.mxu0 0.0
    %1625 = vmatprep.subr.mxu0 0.0
    %1626 = vmatpush1.msra.mxu0 0.0
    %1627 = vmatprep.subr.mxu0 0.0
    %1628 = vmatpush1.msra.mxu0 0.0
    %1629 = vmatprep.subr.mxu0 0.0
    %1630 = vmatpush1.msra.mxu0 0.0
    %1631 = vmatprep.subr.mxu0 0.0
    %1632 = vmatpush1.msra.mxu0 0.0
    %1633 = vmatprep.subr.mxu0 0.0
    %1634 = vmatpush1.msra.mxu0 0.0
    %1635 = vmatprep.subr.mxu0 0.0
    %1636 = vmatpush1.msra.mxu0 0.0
    %1637 = vmatprep.subr.mxu0 0.0
    %1638 = vmatpush1.msra.mxu0 0.0
    %1639 = vmatprep.subr.mxu0 0.0
    %1640 = vmatpush1.msra.mxu0 0.0
    %1641 = vmatprep.subr.mxu0 0.0
    %1642 = vmatpush1.msra.mxu0 0.0
    %1643 = vmatprep.subr.mxu0 0.0
    %1644 = vmatpush1.msra.mxu0 0.0
    %1645 = vmatprep.subr.mxu0 0.0
    %1646 = vmatpush1.msra.mxu0 0.0
    %1647 = vmatprep.subr.mxu0 0.0
    %1648 = vmatpush1.msra.mxu0 0.0
    %v1649 = vand.u32 %v1531, 4294901760
    %v1650 = vsub.f32 %v1531, %v1649
    %v1651 = vand.u32 %v1650, 4294901760
    %v1652 = vsub.f32 %v1650, %v1651
    %v1653 = vand.u32 %v1652, 4294901760
    %1654 = vmatprep.subr.mxu0 %v1653
    %v1655 = vand.u32 %v1529, 4294901760
    %v1656 = vsub.f32 %v1529, %v1655
    %v1657 = vand.u32 %v1656, 4294901760
    %v1658 = vsub.f32 %v1656, %v1657
    %v1659 = vand.u32 %v1658, 4294901760
    %1660 = vmatpush1.msra.mxu0 %v1659
    %1661 = vmatprep.subr.mxu0 0.0
    %1662 = vmatpush2.msra.mxu0 0.0
    %1663 = vmatprep.subr.mxu0 0.0
    %1664 = vmatpush2.msra.mxu0 0.0
    %1665 = vmatprep.subr.mxu0 0.0
    %1666 = vmatpush2.msra.mxu0 0.0
    %1667 = vmatprep.subr.mxu0 0.0
    %1668 = vmatpush2.msra.mxu0 0.0
    %1669 = vmatprep.subr.mxu0 0.0
    %1670 = vmatpush2.msra.mxu0 0.0
    %1671 = vmatprep.subr.mxu0 0.0
    %1672 = vmatpush2.msra.mxu0 0.0
    %1673 = vmatprep.subr.mxu0 0.0
    %1674 = vmatpush2.msra.mxu0 0.0
    %1675 = vmatprep.subr.mxu0 0.0
    %1676 = vmatpush2.msra.mxu0 0.0
    %1677 = vmatprep.subr.mxu0 0.0
    %1678 = vmatpush2.msra.mxu0 0.0
    %1679 = vmatprep.subr.mxu0 0.0
    %1680 = vmatpush2.msra.mxu0 0.0
    %1681 = vmatprep.subr.mxu0 0.0
    %1682 = vmatpush2.msra.mxu0 0.0
    %1683 = vmatprep.subr.mxu0 0.0
    %1684 = vmatpush2.msra.mxu0 0.0
    %1685 = vmatprep.subr.mxu0 0.0
    %1686 = vmatpush2.msra.mxu0 0.0
    %1687 = vmatprep.subr.mxu0 0.0
    %1688 = vmatpush2.msra.mxu0 0.0
    %1689 = vmatprep.subr.mxu0 0.0
    %1690 = vmatpush2.msra.mxu0 0.0
    %1691 = vmatprep.subr.mxu0 0.0
    %1692 = vmatpush2.msra.mxu0 0.0
    %1693 = vmatprep.mubr.f32.mxu0 0.0
    %v1694 = vand.u32 %v1527, 4294901760
    %1695 = vmatmul.mubr.f32.gmra.mxu0 %v1694
    %v1696 = vpop.f32.mrf.mxu0
    %v1697 = vadd.f32 %v1615, %v1696
    %v1698 = vpop.f32.mrf.mxu0
    %v1699 = vadd.f32 %v1617, %v1698
    %1700 = vdwg.mxu0
    %1701 = vmatprep.subr.mxu0 0.0
    %1702 = vmatpush1.msra.mxu0 0.0
    %1703 = vmatprep.subr.mxu0 0.0
    %1704 = vmatpush1.msra.mxu0 0.0
    %1705 = vmatprep.subr.mxu0 0.0
    %1706 = vmatpush1.msra.mxu0 0.0
    %1707 = vmatprep.subr.mxu0 0.0
    %1708 = vmatpush1.msra.mxu0 0.0
    %1709 = vmatprep.subr.mxu0 0.0
    %1710 = vmatpush1.msra.mxu0 0.0
    %1711 = vmatprep.subr.mxu0 0.0
    %1712 = vmatpush1.msra.mxu0 0.0
    %1713 = vmatprep.subr.mxu0 0.0
    %1714 = vmatpush1.msra.mxu0 0.0
    %1715 = vmatprep.subr.mxu0 0.0
    %1716 = vmatpush1.msra.mxu0 0.0
    %1717 = vmatprep.subr.mxu0 0.0
    %1718 = vmatpush1.msra.mxu0 0.0
    %1719 = vmatprep.subr.mxu0 0.0
    %1720 = vmatpush1.msra.mxu0 0.0
    %1721 = vmatprep.subr.mxu0 0.0
    %1722 = vmatpush1.msra.mxu0 0.0
    %1723 = vmatprep.subr.mxu0 0.0
    %1724 = vmatpush1.msra.mxu0 0.0
    %1725 = vmatprep.subr.mxu0 0.0
    %1726 = vmatpush1.msra.mxu0 0.0
    %1727 = vmatprep.subr.mxu0 0.0
    %1728 = vmatpush1.msra.mxu0 0.0
    %1729 = vmatprep.subr.mxu0 0.0
    %1730 = vmatpush1.msra.mxu0 0.0
    %v1731 = vand.u32 %v1531, 4294901760
    %v1732 = vsub.f32 %v1531, %v1731
    %1733 = vmatprep.subr.mxu0 %v1732
    %v1734 = vand.u32 %v1529, 4294901760
    %v1735 = vsub.f32 %v1529, %v1734
    %1736 = vmatpush1.msra.mxu0 %v1735
    %1737 = vmatprep.subr.mxu0 0.0
    %1738 = vmatpush2.msra.mxu0 0.0
    %1739 = vmatprep.subr.mxu0 0.0
    %1740 = vmatpush2.msra.mxu0 0.0
    %1741 = vmatprep.subr.mxu0 0.0
    %1742 = vmatpush2.msra.mxu0 0.0
    %1743 = vmatprep.subr.mxu0 0.0
    %1744 = vmatpush2.msra.mxu0 0.0
    %1745 = vmatprep.subr.mxu0 0.0
    %1746 = vmatpush2.msra.mxu0 0.0
    %1747 = vmatprep.subr.mxu0 0.0
    %1748 = vmatpush2.msra.mxu0 0.0
    %1749 = vmatprep.subr.mxu0 0.0
    %1750 = vmatpush2.msra.mxu0 0.0
    %1751 = vmatprep.subr.mxu0 0.0
    %1752 = vmatpush2.msra.mxu0 0.0
    %1753 = vmatprep.subr.mxu0 0.0
    %1754 = vmatpush2.msra.mxu0 0.0
    %1755 = vmatprep.subr.mxu0 0.0
    %1756 = vmatpush2.msra.mxu0 0.0
    %1757 = vmatprep.subr.mxu0 0.0
    %1758 = vmatpush2.msra.mxu0 0.0
    %1759 = vmatprep.subr.mxu0 0.0
    %1760 = vmatpush2.msra.mxu0 0.0
    %1761 = vmatprep.subr.mxu0 0.0
    %1762 = vmatpush2.msra.mxu0 0.0
    %1763 = vmatprep.subr.mxu0 0.0
    %1764 = vmatpush2.msra.mxu0 0.0
    %1765 = vmatprep.subr.mxu0 0.0
    %1766 = vmatpush2.msra.mxu0 0.0
    %1767 = vmatprep.subr.mxu0 0.0
    %1768 = vmatpush2.msra.mxu0 0.0
    %1769 = vmatprep.mubr.f32.mxu0 0.0
    %v1770 = vand.u32 %v1527, 4294901760
    %v1771 = vsub.f32 %v1527, %v1770
    %1772 = vmatmul.mubr.f32.gmra.mxu0 %v1771
    %v1773 = vpop.f32.mrf.mxu0
    %v1774 = vadd.f32 %v1697, %v1773
    %v1775 = vpop.f32.mrf.mxu0
    %v1776 = vadd.f32 %v1699, %v1775
    %1777 = vdwg.mxu0
    %1778 = vmatprep.subr.mxu0 0.0
    %1779 = vmatpush1.msra.mxu0 0.0
    %1780 = vmatprep.subr.mxu0 0.0
    %1781 = vmatpush1.msra.mxu0 0.0
    %1782 = vmatprep.subr.mxu0 0.0
    %1783 = vmatpush1.msra.mxu0 0.0
    %1784 = vmatprep.subr.mxu0 0.0
    %1785 = vmatpush1.msra.mxu0 0.0
    %1786 = vmatprep.subr.mxu0 0.0
    %1787 = vmatpush1.msra.mxu0 0.0
    %1788 = vmatprep.subr.mxu0 0.0
    %1789 = vmatpush1.msra.mxu0 0.0
    %1790 = vmatprep.subr.mxu0 0.0
    %1791 = vmatpush1.msra.mxu0 0.0
    %1792 = vmatprep.subr.mxu0 0.0
    %1793 = vmatpush1.msra.mxu0 0.0
    %1794 = vmatprep.subr.mxu0 0.0
    %1795 = vmatpush1.msra.mxu0 0.0
    %1796 = vmatprep.subr.mxu0 0.0
    %1797 = vmatpush1.msra.mxu0 0.0
    %1798 = vmatprep.subr.mxu0 0.0
    %1799 = vmatpush1.msra.mxu0 0.0
    %1800 = vmatprep.subr.mxu0 0.0
    %1801 = vmatpush1.msra.mxu0 0.0
    %1802 = vmatprep.subr.mxu0 0.0
    %1803 = vmatpush1.msra.mxu0 0.0
    %1804 = vmatprep.subr.mxu0 0.0
    %1805 = vmatpush1.msra.mxu0 0.0
    %1806 = vmatprep.subr.mxu0 0.0
    %1807 = vmatpush1.msra.mxu0 0.0
    %v1808 = vand.u32 %v1531, 4294901760
    %1809 = vmatprep.subr.mxu0 %v1808
    %v1810 = vand.u32 %v1529, 4294901760
    %1811 = vmatpush1.msra.mxu0 %v1810
    %1812 = vmatprep.subr.mxu0 0.0
    %1813 = vmatpush2.msra.mxu0 0.0
    %1814 = vmatprep.subr.mxu0 0.0
    %1815 = vmatpush2.msra.mxu0 0.0
    %1816 = vmatprep.subr.mxu0 0.0
    %1817 = vmatpush2.msra.mxu0 0.0
    %1818 = vmatprep.subr.mxu0 0.0
    %1819 = vmatpush2.msra.mxu0 0.0
    %1820 = vmatprep.subr.mxu0 0.0
    %1821 = vmatpush2.msra.mxu0 0.0
    %1822 = vmatprep.subr.mxu0 0.0
    %1823 = vmatpush2.msra.mxu0 0.0
    %1824 = vmatprep.subr.mxu0 0.0
    %1825 = vmatpush2.msra.mxu0 0.0
    %1826 = vmatprep.subr.mxu0 0.0
    %1827 = vmatpush2.msra.mxu0 0.0
    %1828 = vmatprep.subr.mxu0 0.0
    %1829 = vmatpush2.msra.mxu0 0.0
    %1830 = vmatprep.subr.mxu0 0.0
    %1831 = vmatpush2.msra.mxu0 0.0
    %1832 = vmatprep.subr.mxu0 0.0
    %1833 = vmatpush2.msra.mxu0 0.0
    %1834 = vmatprep.subr.mxu0 0.0
    %1835 = vmatpush2.msra.mxu0 0.0
    %1836 = vmatprep.subr.mxu0 0.0
    %1837 = vmatpush2.msra.mxu0 0.0
    %1838 = vmatprep.subr.mxu0 0.0
    %1839 = vmatpush2.msra.mxu0 0.0
    %1840 = vmatprep.subr.mxu0 0.0
    %1841 = vmatpush2.msra.mxu0 0.0
    %1842 = vmatprep.subr.mxu0 0.0
    %1843 = vmatpush2.msra.mxu0 0.0
    %1844 = vmatprep.mubr.f32.mxu0 0.0
    %v1845 = vand.u32 %v1527, 4294901760
    %v1846 = vsub.f32 %v1527, %v1845
    %v1847 = vand.u32 %v1846, 4294901760
    %1848 = vmatmul.mubr.f32.gmra.mxu0 %v1847
    %v1849 = vpop.f32.mrf.mxu0
    %v1850 = vadd.f32 %v1774, %v1849
    %v1851 = vpop.f32.mrf.mxu0
    %v1852 = vadd.f32 %v1776, %v1851
    %1853 = vdwg.mxu0
    %1854 = vmatprep.subr.mxu0 0.0
    %1855 = vmatpush1.msra.mxu0 0.0
    %1856 = vmatprep.subr.mxu0 0.0
    %1857 = vmatpush1.msra.mxu0 0.0
    %1858 = vmatprep.subr.mxu0 0.0
    %1859 = vmatpush1.msra.mxu0 0.0
    %1860 = vmatprep.subr.mxu0 0.0
    %1861 = vmatpush1.msra.mxu0 0.0
    %1862 = vmatprep.subr.mxu0 0.0
    %1863 = vmatpush1.msra.mxu0 0.0
    %1864 = vmatprep.subr.mxu0 0.0
    %1865 = vmatpush1.msra.mxu0 0.0
    %1866 = vmatprep.subr.mxu0 0.0
    %1867 = vmatpush1.msra.mxu0 0.0
    %1868 = vmatprep.subr.mxu0 0.0
    %1869 = vmatpush1.msra.mxu0 0.0
    %1870 = vmatprep.subr.mxu0 0.0
    %1871 = vmatpush1.msra.mxu0 0.0
    %1872 = vmatprep.subr.mxu0 0.0
    %1873 = vmatpush1.msra.mxu0 0.0
    %1874 = vmatprep.subr.mxu0 0.0
    %1875 = vmatpush1.msra.mxu0 0.0
    %1876 = vmatprep.subr.mxu0 0.0
    %1877 = vmatpush1.msra.mxu0 0.0
    %1878 = vmatprep.subr.mxu0 0.0
    %1879 = vmatpush1.msra.mxu0 0.0
    %1880 = vmatprep.subr.mxu0 0.0
    %1881 = vmatpush1.msra.mxu0 0.0
    %1882 = vmatprep.subr.mxu0 0.0
    %1883 = vmatpush1.msra.mxu0 0.0
    %v1884 = vand.u32 %v1531, 4294901760
    %v1885 = vsub.f32 %v1531, %v1884
    %v1886 = vand.u32 %v1885, 4294901760
    %1887 = vmatprep.subr.mxu0 %v1886
    %v1888 = vand.u32 %v1529, 4294901760
    %v1889 = vsub.f32 %v1529, %v1888
    %v1890 = vand.u32 %v1889, 4294901760
    %1891 = vmatpush1.msra.mxu0 %v1890
    %1892 = vmatprep.subr.mxu0 0.0
    %1893 = vmatpush2.msra.mxu0 0.0
    %1894 = vmatprep.subr.mxu0 0.0
    %1895 = vmatpush2.msra.mxu0 0.0
    %1896 = vmatprep.subr.mxu0 0.0
    %1897 = vmatpush2.msra.mxu0 0.0
    %1898 = vmatprep.subr.mxu0 0.0
    %1899 = vmatpush2.msra.mxu0 0.0
    %1900 = vmatprep.subr.mxu0 0.0
    %1901 = vmatpush2.msra.mxu0 0.0
    %1902 = vmatprep.subr.mxu0 0.0
    %1903 = vmatpush2.msra.mxu0 0.0
    %1904 = vmatprep.subr.mxu0 0.0
    %1905 = vmatpush2.msra.mxu0 0.0
    %1906 = vmatprep.subr.mxu0 0.0
    %1907 = vmatpush2.msra.mxu0 0.0
    %1908 = vmatprep.subr.mxu0 0.0
    %1909 = vmatpush2.msra.mxu0 0.0
    %1910 = vmatprep.subr.mxu0 0.0
    %1911 = vmatpush2.msra.mxu0 0.0
    %1912 = vmatprep.subr.mxu0 0.0
    %1913 = vmatpush2.msra.mxu0 0.0
    %1914 = vmatprep.subr.mxu0 0.0
    %1915 = vmatpush2.msra.mxu0 0.0
    %1916 = vmatprep.subr.mxu0 0.0
    %1917 = vmatpush2.msra.mxu0 0.0
    %1918 = vmatprep.subr.mxu0 0.0
    %1919 = vmatpush2.msra.mxu0 0.0
    %1920 = vmatprep.subr.mxu0 0.0
    %1921 = vmatpush2.msra.mxu0 0.0
    %1922 = vmatprep.subr.mxu0 0.0
    %1923 = vmatpush2.msra.mxu0 0.0
    %1924 = vmatprep.mubr.f32.mxu0 0.0
    %v1925 = vand.u32 %v1527, 4294901760
    %1926 = vmatmul.mubr.f32.gmra.mxu0 %v1925
    %v1927 = vpop.f32.mrf.mxu0
    %v1928 = vadd.f32 %v1850, %v1927
    %v1929 = vpop.f32.mrf.mxu0
    %v1930 = vadd.f32 %v1852, %v1929
    %1931 = vdwg.mxu0
    %1932 = vmatprep.subr.mxu0 0.0
    %1933 = vmatpush1.msra.mxu0 0.0
    %1934 = vmatprep.subr.mxu0 0.0
    %1935 = vmatpush1.msra.mxu0 0.0
    %1936 = vmatprep.subr.mxu0 0.0
    %1937 = vmatpush1.msra.mxu0 0.0
    %1938 = vmatprep.subr.mxu0 0.0
    %1939 = vmatpush1.msra.mxu0 0.0
    %1940 = vmatprep.subr.mxu0 0.0
    %1941 = vmatpush1.msra.mxu0 0.0
    %1942 = vmatprep.subr.mxu0 0.0
    %1943 = vmatpush1.msra.mxu0 0.0
    %1944 = vmatprep.subr.mxu0 0.0
    %1945 = vmatpush1.msra.mxu0 0.0
    %1946 = vmatprep.subr.mxu0 0.0
    %1947 = vmatpush1.msra.mxu0 0.0
    %1948 = vmatprep.subr.mxu0 0.0
    %1949 = vmatpush1.msra.mxu0 0.0
    %1950 = vmatprep.subr.mxu0 0.0
    %1951 = vmatpush1.msra.mxu0 0.0
    %1952 = vmatprep.subr.mxu0 0.0
    %1953 = vmatpush1.msra.mxu0 0.0
    %1954 = vmatprep.subr.mxu0 0.0
    %1955 = vmatpush1.msra.mxu0 0.0
    %1956 = vmatprep.subr.mxu0 0.0
    %1957 = vmatpush1.msra.mxu0 0.0
    %1958 = vmatprep.subr.mxu0 0.0
    %1959 = vmatpush1.msra.mxu0 0.0
    %1960 = vmatprep.subr.mxu0 0.0
    %1961 = vmatpush1.msra.mxu0 0.0
    %v1962 = vand.u32 %v1531, 4294901760
    %1963 = vmatprep.subr.mxu0 %v1962
    %v1964 = vand.u32 %v1529, 4294901760
    %1965 = vmatpush1.msra.mxu0 %v1964
    %1966 = vmatprep.subr.mxu0 0.0
    %1967 = vmatpush2.msra.mxu0 0.0
    %1968 = vmatprep.subr.mxu0 0.0
    %1969 = vmatpush2.msra.mxu0 0.0
    %1970 = vmatprep.subr.mxu0 0.0
    %1971 = vmatpush2.msra.mxu0 0.0
    %1972 = vmatprep.subr.mxu0 0.0
    %1973 = vmatpush2.msra.mxu0 0.0
    %1974 = vmatprep.subr.mxu0 0.0
    %1975 = vmatpush2.msra.mxu0 0.0
    %1976 = vmatprep.subr.mxu0 0.0
    %1977 = vmatpush2.msra.mxu0 0.0
    %1978 = vmatprep.subr.mxu0 0.0
    %1979 = vmatpush2.msra.mxu0 0.0
    %1980 = vmatprep.subr.mxu0 0.0
    %1981 = vmatpush2.msra.mxu0 0.0
    %1982 = vmatprep.subr.mxu0 0.0
    %1983 = vmatpush2.msra.mxu0 0.0
    %1984 = vmatprep.subr.mxu0 0.0
    %1985 = vmatpush2.msra.mxu0 0.0
    %1986 = vmatprep.subr.mxu0 0.0
    %1987 = vmatpush2.msra.mxu0 0.0
    %1988 = vmatprep.subr.mxu0 0.0
    %1989 = vmatpush2.msra.mxu0 0.0
    %1990 = vmatprep.subr.mxu0 0.0
    %1991 = vmatpush2.msra.mxu0 0.0
    %1992 = vmatprep.subr.mxu0 0.0
    %1993 = vmatpush2.msra.mxu0 0.0
    %1994 = vmatprep.subr.mxu0 0.0
    %1995 = vmatpush2.msra.mxu0 0.0
    %1996 = vmatprep.subr.mxu0 0.0
    %1997 = vmatpush2.msra.mxu0 0.0
    %1998 = vmatprep.mubr.f32.mxu0 0.0
    %v1999 = vand.u32 %v1527, 4294901760
    %2000 = vmatmul.mubr.f32.gmra.mxu0 %v1999
    %v2001 = vpop.f32.mrf.mxu0
    %v2002 = vadd.f32 %v1928, %v2001
    %v2003 = vpop.f32.mrf.mxu0
    %v2004 = vadd.f32 %v1930, %v2003
    %2005 = vdwg.mxu0
    %2006 = vmatprep.subr.mxu0 0.0
    %2007 = vmatpush1.msra.mxu0 0.0
    %2008 = vmatprep.subr.mxu0 0.0
    %2009 = vmatpush1.msra.mxu0 0.0
    %2010 = vmatprep.subr.mxu0 0.0
    %2011 = vmatpush1.msra.mxu0 0.0
    %2012 = vmatprep.subr.mxu0 0.0
    %2013 = vmatpush1.msra.mxu0 0.0
    %2014 = vmatprep.subr.mxu0 0.0
    %2015 = vmatpush1.msra.mxu0 0.0
    %2016 = vmatprep.subr.mxu0 0.0
    %2017 = vmatpush1.msra.mxu0 0.0
    %2018 = vmatprep.subr.mxu0 0.0
    %2019 = vmatpush1.msra.mxu0 0.0
    %2020 = vmatprep.subr.mxu0 0.0
    %2021 = vmatpush1.msra.mxu0 0.0
    %2022 = vmatprep.subr.mxu0 0.0
    %2023 = vmatpush1.msra.mxu0 0.0
    %2024 = vmatprep.subr.mxu0 0.0
    %2025 = vmatpush1.msra.mxu0 0.0
    %2026 = vmatprep.subr.mxu0 0.0
    %2027 = vmatpush1.msra.mxu0 0.0
    %2028 = vmatprep.subr.mxu0 0.0
    %2029 = vmatpush1.msra.mxu0 0.0
    %2030 = vmatprep.subr.mxu0 0.0
    %2031 = vmatpush1.msra.mxu0 0.0
    %2032 = vmatprep.subr.mxu0 0.0
    %2033 = vmatpush1.msra.mxu0 0.0
    %2034 = vmatprep.subr.mxu0 0.0
    %2035 = vmatpush1.msra.mxu0 0.0
    %v2036 = vand.u32 %v1535, 4294901760
    %2037 = vmatprep.subr.mxu0 %v2036
    %v2038 = vand.u32 %v1533, 4294901760
    %2039 = vmatpush1.msra.mxu0 %v2038
    %2040 = vmatprep.subr.mxu0 0.0
    %2041 = vmatpush2.msra.mxu0 0.0
    %2042 = vmatprep.subr.mxu0 0.0
    %2043 = vmatpush2.msra.mxu0 0.0
    %2044 = vmatprep.subr.mxu0 0.0
    %2045 = vmatpush2.msra.mxu0 0.0
    %2046 = vmatprep.subr.mxu0 0.0
    %2047 = vmatpush2.msra.mxu0 0.0
    %2048 = vmatprep.subr.mxu0 0.0
    %2049 = vmatpush2.msra.mxu0 0.0
    %2050 = vmatprep.subr.mxu0 0.0
    %2051 = vmatpush2.msra.mxu0 0.0
    %2052 = vmatprep.subr.mxu0 0.0
    %2053 = vmatpush2.msra.mxu0 0.0
    %2054 = vmatprep.subr.mxu0 0.0
    %2055 = vmatpush2.msra.mxu0 0.0
    %2056 = vmatprep.subr.mxu0 0.0
    %2057 = vmatpush2.msra.mxu0 0.0
    %2058 = vmatprep.subr.mxu0 0.0
    %2059 = vmatpush2.msra.mxu0 0.0
    %2060 = vmatprep.subr.mxu0 0.0
    %2061 = vmatpush2.msra.mxu0 0.0
    %2062 = vmatprep.subr.mxu0 0.0
    %2063 = vmatpush2.msra.mxu0 0.0
    %2064 = vmatprep.subr.mxu0 0.0
    %2065 = vmatpush2.msra.mxu0 0.0
    %2066 = vmatprep.subr.mxu0 0.0
    %2067 = vmatpush2.msra.mxu0 0.0
    %2068 = vmatprep.subr.mxu0 0.0
    %2069 = vmatpush2.msra.mxu0 0.0
    %2070 = vmatprep.subr.mxu0 0.0
    %2071 = vmatpush2.msra.mxu0 0.0
    %2072 = vmatprep.mubr.f32.mxu0 0.0
    %v2073 = vand.u32 %v1527, 4294901760
    %v2074 = vsub.f32 %v1527, %v2073
    %v2075 = vand.u32 %v2074, 4294901760
    %v2076 = vsub.f32 %v2074, %v2075
    %v2077 = vand.u32 %v2076, 4294901760
    %2078 = vmatmul.mubr.f32.gmra.mxu0 %v2077
    %v2079 = vpop.f32.mrf.mxu0
    %v2080 = vadd.f32 %v1501, %v2079
    %v2081 = vpop.f32.mrf.mxu0
    %v2082 = vadd.f32 %v1505, %v2081
    %2083 = vdwg.mxu0
    %2084 = vmatprep.subr.mxu0 0.0
    %2085 = vmatpush1.msra.mxu0 0.0
    %2086 = vmatprep.subr.mxu0 0.0
    %2087 = vmatpush1.msra.mxu0 0.0
    %2088 = vmatprep.subr.mxu0 0.0
    %2089 = vmatpush1.msra.mxu0 0.0
    %2090 = vmatprep.subr.mxu0 0.0
    %2091 = vmatpush1.msra.mxu0 0.0
    %2092 = vmatprep.subr.mxu0 0.0
    %2093 = vmatpush1.msra.mxu0 0.0
    %2094 = vmatprep.subr.mxu0 0.0
    %2095 = vmatpush1.msra.mxu0 0.0
    %2096 = vmatprep.subr.mxu0 0.0
    %2097 = vmatpush1.msra.mxu0 0.0
    %2098 = vmatprep.subr.mxu0 0.0
    %2099 = vmatpush1.msra.mxu0 0.0
    %2100 = vmatprep.subr.mxu0 0.0
    %2101 = vmatpush1.msra.mxu0 0.0
    %2102 = vmatprep.subr.mxu0 0.0
    %2103 = vmatpush1.msra.mxu0 0.0
    %2104 = vmatprep.subr.mxu0 0.0
    %2105 = vmatpush1.msra.mxu0 0.0
    %2106 = vmatprep.subr.mxu0 0.0
    %2107 = vmatpush1.msra.mxu0 0.0
    %2108 = vmatprep.subr.mxu0 0.0
    %2109 = vmatpush1.msra.mxu0 0.0
    %2110 = vmatprep.subr.mxu0 0.0
    %2111 = vmatpush1.msra.mxu0 0.0
    %2112 = vmatprep.subr.mxu0 0.0
    %2113 = vmatpush1.msra.mxu0 0.0
    %v2114 = vand.u32 %v1535, 4294901760
    %v2115 = vsub.f32 %v1535, %v2114
    %v2116 = vand.u32 %v2115, 4294901760
    %v2117 = vsub.f32 %v2115, %v2116
    %v2118 = vand.u32 %v2117, 4294901760
    %2119 = vmatprep.subr.mxu0 %v2118
    %v2120 = vand.u32 %v1533, 4294901760
    %v2121 = vsub.f32 %v1533, %v2120
    %v2122 = vand.u32 %v2121, 4294901760
    %v2123 = vsub.f32 %v2121, %v2122
    %v2124 = vand.u32 %v2123, 4294901760
    %2125 = vmatpush1.msra.mxu0 %v2124
    %2126 = vmatprep.subr.mxu0 0.0
    %2127 = vmatpush2.msra.mxu0 0.0
    %2128 = vmatprep.subr.mxu0 0.0
    %2129 = vmatpush2.msra.mxu0 0.0
    %2130 = vmatprep.subr.mxu0 0.0
    %2131 = vmatpush2.msra.mxu0 0.0
    %2132 = vmatprep.subr.mxu0 0.0
    %2133 = vmatpush2.msra.mxu0 0.0
    %2134 = vmatprep.subr.mxu0 0.0
    %2135 = vmatpush2.msra.mxu0 0.0
    %2136 = vmatprep.subr.mxu0 0.0
    %2137 = vmatpush2.msra.mxu0 0.0
    %2138 = vmatprep.subr.mxu0 0.0
    %2139 = vmatpush2.msra.mxu0 0.0
    %2140 = vmatprep.subr.mxu0 0.0
    %2141 = vmatpush2.msra.mxu0 0.0
    %2142 = vmatprep.subr.mxu0 0.0
    %2143 = vmatpush2.msra.mxu0 0.0
    %2144 = vmatprep.subr.mxu0 0.0
    %2145 = vmatpush2.msra.mxu0 0.0
    %2146 = vmatprep.subr.mxu0 0.0
    %2147 = vmatpush2.msra.mxu0 0.0
    %2148 = vmatprep.subr.mxu0 0.0
    %2149 = vmatpush2.msra.mxu0 0.0
    %2150 = vmatprep.subr.mxu0 0.0
    %2151 = vmatpush2.msra.mxu0 0.0
    %2152 = vmatprep.subr.mxu0 0.0
    %2153 = vmatpush2.msra.mxu0 0.0
    %2154 = vmatprep.subr.mxu0 0.0
    %2155 = vmatpush2.msra.mxu0 0.0
    %2156 = vmatprep.subr.mxu0 0.0
    %2157 = vmatpush2.msra.mxu0 0.0
    %2158 = vmatprep.mubr.f32.mxu0 0.0
    %v2159 = vand.u32 %v1527, 4294901760
    %2160 = vmatmul.mubr.f32.gmra.mxu0 %v2159
    %v2161 = vpop.f32.mrf.mxu0
    %v2162 = vadd.f32 %v2080, %v2161
    %v2163 = vpop.f32.mrf.mxu0
    %v2164 = vadd.f32 %v2082, %v2163
    %2165 = vdwg.mxu0
    %2166 = vmatprep.subr.mxu0 0.0
    %2167 = vmatpush1.msra.mxu0 0.0
    %2168 = vmatprep.subr.mxu0 0.0
    %2169 = vmatpush1.msra.mxu0 0.0
    %2170 = vmatprep.subr.mxu0 0.0
    %2171 = vmatpush1.msra.mxu0 0.0
    %2172 = vmatprep.subr.mxu0 0.0
    %2173 = vmatpush1.msra.mxu0 0.0
    %2174 = vmatprep.subr.mxu0 0.0
    %2175 = vmatpush1.msra.mxu0 0.0
    %2176 = vmatprep.subr.mxu0 0.0
    %2177 = vmatpush1.msra.mxu0 0.0
    %2178 = vmatprep.subr.mxu0 0.0
    %2179 = vmatpush1.msra.mxu0 0.0
    %2180 = vmatprep.subr.mxu0 0.0
    %2181 = vmatpush1.msra.mxu0 0.0
    %2182 = vmatprep.subr.mxu0 0.0
    %2183 = vmatpush1.msra.mxu0 0.0
    %2184 = vmatprep.subr.mxu0 0.0
    %2185 = vmatpush1.msra.mxu0 0.0
    %2186 = vmatprep.subr.mxu0 0.0
    %2187 = vmatpush1.msra.mxu0 0.0
    %2188 = vmatprep.subr.mxu0 0.0
    %2189 = vmatpush1.msra.mxu0 0.0
    %2190 = vmatprep.subr.mxu0 0.0
    %2191 = vmatpush1.msra.mxu0 0.0
    %2192 = vmatprep.subr.mxu0 0.0
    %2193 = vmatpush1.msra.mxu0 0.0
    %2194 = vmatprep.subr.mxu0 0.0
    %2195 = vmatpush1.msra.mxu0 0.0
    %v2196 = vand.u32 %v1535, 4294901760
    %v2197 = vsub.f32 %v1535, %v2196
    %2198 = vmatprep.subr.mxu0 %v2197
    %v2199 = vand.u32 %v1533, 4294901760
    %v2200 = vsub.f32 %v1533, %v2199
    %2201 = vmatpush1.msra.mxu0 %v2200
    %2202 = vmatprep.subr.mxu0 0.0
    %2203 = vmatpush2.msra.mxu0 0.0
    %2204 = vmatprep.subr.mxu0 0.0
    %2205 = vmatpush2.msra.mxu0 0.0
    %2206 = vmatprep.subr.mxu0 0.0
    %2207 = vmatpush2.msra.mxu0 0.0
    %2208 = vmatprep.subr.mxu0 0.0
    %2209 = vmatpush2.msra.mxu0 0.0
    %2210 = vmatprep.subr.mxu0 0.0
    %2211 = vmatpush2.msra.mxu0 0.0
    %2212 = vmatprep.subr.mxu0 0.0
    %2213 = vmatpush2.msra.mxu0 0.0
    %2214 = vmatprep.subr.mxu0 0.0
    %2215 = vmatpush2.msra.mxu0 0.0
    %2216 = vmatprep.subr.mxu0 0.0
    %2217 = vmatpush2.msra.mxu0 0.0
    %2218 = vmatprep.subr.mxu0 0.0
    %2219 = vmatpush2.msra.mxu0 0.0
    %2220 = vmatprep.subr.mxu0 0.0
    %2221 = vmatpush2.msra.mxu0 0.0
    %2222 = vmatprep.subr.mxu0 0.0
    %2223 = vmatpush2.msra.mxu0 0.0
    %2224 = vmatprep.subr.mxu0 0.0
    %2225 = vmatpush2.msra.mxu0 0.0
    %2226 = vmatprep.subr.mxu0 0.0
    %2227 = vmatpush2.msra.mxu0 0.0
    %2228 = vmatprep.subr.mxu0 0.0
    %2229 = vmatpush2.msra.mxu0 0.0
    %2230 = vmatprep.subr.mxu0 0.0
    %2231 = vmatpush2.msra.mxu0 0.0
    %2232 = vmatprep.subr.mxu0 0.0
    %2233 = vmatpush2.msra.mxu0 0.0
    %2234 = vmatprep.mubr.f32.mxu0 0.0
    %v2235 = vand.u32 %v1527, 4294901760
    %v2236 = vsub.f32 %v1527, %v2235
    %2237 = vmatmul.mubr.f32.gmra.mxu0 %v2236
    %v2238 = vpop.f32.mrf.mxu0
    %v2239 = vadd.f32 %v2162, %v2238
    %v2240 = vpop.f32.mrf.mxu0
    %v2241 = vadd.f32 %v2164, %v2240
    %2242 = vdwg.mxu0
    %2243 = vmatprep.subr.mxu0 0.0
    %2244 = vmatpush1.msra.mxu0 0.0
    %2245 = vmatprep.subr.mxu0 0.0
    %2246 = vmatpush1.msra.mxu0 0.0
    %2247 = vmatprep.subr.mxu0 0.0
    %2248 = vmatpush1.msra.mxu0 0.0
    %2249 = vmatprep.subr.mxu0 0.0
    %2250 = vmatpush1.msra.mxu0 0.0
    %2251 = vmatprep.subr.mxu0 0.0
    %2252 = vmatpush1.msra.mxu0 0.0
    %2253 = vmatprep.subr.mxu0 0.0
    %2254 = vmatpush1.msra.mxu0 0.0
    %2255 = vmatprep.subr.mxu0 0.0
    %2256 = vmatpush1.msra.mxu0 0.0
    %2257 = vmatprep.subr.mxu0 0.0
    %2258 = vmatpush1.msra.mxu0 0.0
    %2259 = vmatprep.subr.mxu0 0.0
    %2260 = vmatpush1.msra.mxu0 0.0
    %2261 = vmatprep.subr.mxu0 0.0
    %2262 = vmatpush1.msra.mxu0 0.0
    %2263 = vmatprep.subr.mxu0 0.0
    %2264 = vmatpush1.msra.mxu0 0.0
    %2265 = vmatprep.subr.mxu0 0.0
    %2266 = vmatpush1.msra.mxu0 0.0
    %2267 = vmatprep.subr.mxu0 0.0
    %2268 = vmatpush1.msra.mxu0 0.0
    %2269 = vmatprep.subr.mxu0 0.0
    %2270 = vmatpush1.msra.mxu0 0.0
    %2271 = vmatprep.subr.mxu0 0.0
    %2272 = vmatpush1.msra.mxu0 0.0
    %v2273 = vand.u32 %v1535, 4294901760
    %2274 = vmatprep.subr.mxu0 %v2273
    %v2275 = vand.u32 %v1533, 4294901760
    %2276 = vmatpush1.msra.mxu0 %v2275
    %2277 = vmatprep.subr.mxu0 0.0
    %2278 = vmatpush2.msra.mxu0 0.0
    %2279 = vmatprep.subr.mxu0 0.0
    %2280 = vmatpush2.msra.mxu0 0.0
    %2281 = vmatprep.subr.mxu0 0.0
    %2282 = vmatpush2.msra.mxu0 0.0
    %2283 = vmatprep.subr.mxu0 0.0
    %2284 = vmatpush2.msra.mxu0 0.0
    %2285 = vmatprep.subr.mxu0 0.0
    %2286 = vmatpush2.msra.mxu0 0.0
    %2287 = vmatprep.subr.mxu0 0.0
    %2288 = vmatpush2.msra.mxu0 0.0
    %2289 = vmatprep.subr.mxu0 0.0
    %2290 = vmatpush2.msra.mxu0 0.0
    %2291 = vmatprep.subr.mxu0 0.0
    %2292 = vmatpush2.msra.mxu0 0.0
    %2293 = vmatprep.subr.mxu0 0.0
    %2294 = vmatpush2.msra.mxu0 0.0
    %2295 = vmatprep.subr.mxu0 0.0
    %2296 = vmatpush2.msra.mxu0 0.0
    %2297 = vmatprep.subr.mxu0 0.0
    %2298 = vmatpush2.msra.mxu0 0.0
    %2299 = vmatprep.subr.mxu0 0.0
    %2300 = vmatpush2.msra.mxu0 0.0
    %2301 = vmatprep.subr.mxu0 0.0
    %2302 = vmatpush2.msra.mxu0 0.0
    %2303 = vmatprep.subr.mxu0 0.0
    %2304 = vmatpush2.msra.mxu0 0.0
    %2305 = vmatprep.subr.mxu0 0.0
    %2306 = vmatpush2.msra.mxu0 0.0
    %2307 = vmatprep.subr.mxu0 0.0
    %2308 = vmatpush2.msra.mxu0 0.0
    %2309 = vmatprep.mubr.f32.mxu0 0.0
    %v2310 = vand.u32 %v1527, 4294901760
    %v2311 = vsub.f32 %v1527, %v2310
    %v2312 = vand.u32 %v2311, 4294901760
    %2313 = vmatmul.mubr.f32.gmra.mxu0 %v2312
    %v2314 = vpop.f32.mrf.mxu0
    %v2315 = vadd.f32 %v2239, %v2314
    %v2316 = vpop.f32.mrf.mxu0
    %v2317 = vadd.f32 %v2241, %v2316
    %2318 = vdwg.mxu0
    %2319 = vmatprep.subr.mxu0 0.0
    %2320 = vmatpush1.msra.mxu0 0.0
    %2321 = vmatprep.subr.mxu0 0.0
    %2322 = vmatpush1.msra.mxu0 0.0
    %2323 = vmatprep.subr.mxu0 0.0
    %2324 = vmatpush1.msra.mxu0 0.0
    %2325 = vmatprep.subr.mxu0 0.0
    %2326 = vmatpush1.msra.mxu0 0.0
    %2327 = vmatprep.subr.mxu0 0.0
    %2328 = vmatpush1.msra.mxu0 0.0
    %2329 = vmatprep.subr.mxu0 0.0
    %2330 = vmatpush1.msra.mxu0 0.0
    %2331 = vmatprep.subr.mxu0 0.0
    %2332 = vmatpush1.msra.mxu0 0.0
    %2333 = vmatprep.subr.mxu0 0.0
    %2334 = vmatpush1.msra.mxu0 0.0
    %2335 = vmatprep.subr.mxu0 0.0
    %2336 = vmatpush1.msra.mxu0 0.0
    %2337 = vmatprep.subr.mxu0 0.0
    %2338 = vmatpush1.msra.mxu0 0.0
    %2339 = vmatprep.subr.mxu0 0.0
    %2340 = vmatpush1.msra.mxu0 0.0
    %2341 = vmatprep.subr.mxu0 0.0
    %2342 = vmatpush1.msra.mxu0 0.0
    %2343 = vmatprep.subr.mxu0 0.0
    %2344 = vmatpush1.msra.mxu0 0.0
    %2345 = vmatprep.subr.mxu0 0.0
    %2346 = vmatpush1.msra.mxu0 0.0
    %2347 = vmatprep.subr.mxu0 0.0
    %2348 = vmatpush1.msra.mxu0 0.0
    %v2349 = vand.u32 %v1535, 4294901760
    %v2350 = vsub.f32 %v1535, %v2349
    %v2351 = vand.u32 %v2350, 4294901760
    %2352 = vmatprep.subr.mxu0 %v2351
    %v2353 = vand.u32 %v1533, 4294901760
    %v2354 = vsub.f32 %v1533, %v2353
    %v2355 = vand.u32 %v2354, 4294901760
    %2356 = vmatpush1.msra.mxu0 %v2355
    %2357 = vmatprep.subr.mxu0 0.0
    %2358 = vmatpush2.msra.mxu0 0.0
    %2359 = vmatprep.subr.mxu0 0.0
    %2360 = vmatpush2.msra.mxu0 0.0
    %2361 = vmatprep.subr.mxu0 0.0
    %2362 = vmatpush2.msra.mxu0 0.0
    %2363 = vmatprep.subr.mxu0 0.0
    %2364 = vmatpush2.msra.mxu0 0.0
    %2365 = vmatprep.subr.mxu0 0.0
    %2366 = vmatpush2.msra.mxu0 0.0
    %2367 = vmatprep.subr.mxu0 0.0
    %2368 = vmatpush2.msra.mxu0 0.0
    %2369 = vmatprep.subr.mxu0 0.0
    %2370 = vmatpush2.msra.mxu0 0.0
    %2371 = vmatprep.subr.mxu0 0.0
    %2372 = vmatpush2.msra.mxu0 0.0
    %2373 = vmatprep.subr.mxu0 0.0
    %2374 = vmatpush2.msra.mxu0 0.0
    %2375 = vmatprep.subr.mxu0 0.0
    %2376 = vmatpush2.msra.mxu0 0.0
    %2377 = vmatprep.subr.mxu0 0.0
    %2378 = vmatpush2.msra.mxu0 0.0
    %2379 = vmatprep.subr.mxu0 0.0
    %2380 = vmatpush2.msra.mxu0 0.0
    %2381 = vmatprep.subr.mxu0 0.0
    %2382 = vmatpush2.msra.mxu0 0.0
    %2383 = vmatprep.subr.mxu0 0.0
    %2384 = vmatpush2.msra.mxu0 0.0
    %2385 = vmatprep.subr.mxu0 0.0
    %2386 = vmatpush2.msra.mxu0 0.0
    %2387 = vmatprep.subr.mxu0 0.0
    %2388 = vmatpush2.msra.mxu0 0.0
    %2389 = vmatprep.mubr.f32.mxu0 0.0
    %v2390 = vand.u32 %v1527, 4294901760
    %2391 = vmatmul.mubr.f32.gmra.mxu0 %v2390
    %v2392 = vpop.f32.mrf.mxu0
    %v2393 = vadd.f32 %v2315, %v2392
    %v2394 = vpop.f32.mrf.mxu0
    %v2395 = vadd.f32 %v2317, %v2394
    %2396 = vdwg.mxu0
    %2397 = vmatprep.subr.mxu0 0.0
    %2398 = vmatpush1.msra.mxu0 0.0
    %2399 = vmatprep.subr.mxu0 0.0
    %2400 = vmatpush1.msra.mxu0 0.0
    %2401 = vmatprep.subr.mxu0 0.0
    %2402 = vmatpush1.msra.mxu0 0.0
    %2403 = vmatprep.subr.mxu0 0.0
    %2404 = vmatpush1.msra.mxu0 0.0
    %2405 = vmatprep.subr.mxu0 0.0
    %2406 = vmatpush1.msra.mxu0 0.0
    %2407 = vmatprep.subr.mxu0 0.0
    %2408 = vmatpush1.msra.mxu0 0.0
    %2409 = vmatprep.subr.mxu0 0.0
    %2410 = vmatpush1.msra.mxu0 0.0
    %2411 = vmatprep.subr.mxu0 0.0
    %2412 = vmatpush1.msra.mxu0 0.0
    %2413 = vmatprep.subr.mxu0 0.0
    %2414 = vmatpush1.msra.mxu0 0.0
    %2415 = vmatprep.subr.mxu0 0.0
    %2416 = vmatpush1.msra.mxu0 0.0
    %2417 = vmatprep.subr.mxu0 0.0
    %2418 = vmatpush1.msra.mxu0 0.0
    %2419 = vmatprep.subr.mxu0 0.0
    %2420 = vmatpush1.msra.mxu0 0.0
    %2421 = vmatprep.subr.mxu0 0.0
    %2422 = vmatpush1.msra.mxu0 0.0
    %2423 = vmatprep.subr.mxu0 0.0
    %2424 = vmatpush1.msra.mxu0 0.0
    %2425 = vmatprep.subr.mxu0 0.0
    %2426 = vmatpush1.msra.mxu0 0.0
    %v2427 = vand.u32 %v1535, 4294901760
    %2428 = vmatprep.subr.mxu0 %v2427
    %v2429 = vand.u32 %v1533, 4294901760
    %2430 = vmatpush1.msra.mxu0 %v2429
    %2431 = vmatprep.subr.mxu0 0.0
    %2432 = vmatpush2.msra.mxu0 0.0
    %2433 = vmatprep.subr.mxu0 0.0
    %2434 = vmatpush2.msra.mxu0 0.0
    %2435 = vmatprep.subr.mxu0 0.0
    %2436 = vmatpush2.msra.mxu0 0.0
    %2437 = vmatprep.subr.mxu0 0.0
    %2438 = vmatpush2.msra.mxu0 0.0
    %2439 = vmatprep.subr.mxu0 0.0
    %2440 = vmatpush2.msra.mxu0 0.0
    %2441 = vmatprep.subr.mxu0 0.0
    %2442 = vmatpush2.msra.mxu0 0.0
    %2443 = vmatprep.subr.mxu0 0.0
    %2444 = vmatpush2.msra.mxu0 0.0
    %2445 = vmatprep.subr.mxu0 0.0
    %2446 = vmatpush2.msra.mxu0 0.0
    %2447 = vmatprep.subr.mxu0 0.0
    %2448 = vmatpush2.msra.mxu0 0.0
    %2449 = vmatprep.subr.mxu0 0.0
    %2450 = vmatpush2.msra.mxu0 0.0
    %2451 = vmatprep.subr.mxu0 0.0
    %2452 = vmatpush2.msra.mxu0 0.0
    %2453 = vmatprep.subr.mxu0 0.0
    %2454 = vmatpush2.msra.mxu0 0.0
    %2455 = vmatprep.subr.mxu0 0.0
    %2456 = vmatpush2.msra.mxu0 0.0
    %2457 = vmatprep.subr.mxu0 0.0
    %2458 = vmatpush2.msra.mxu0 0.0
    %2459 = vmatprep.subr.mxu0 0.0
    %2460 = vmatpush2.msra.mxu0 0.0
    %2461 = vmatprep.subr.mxu0 0.0
    %2462 = vmatpush2.msra.mxu0 0.0
    %2463 = vmatprep.mubr.f32.mxu0 0.0
    %v2464 = vand.u32 %v1527, 4294901760
    %2465 = vmatmul.mubr.f32.gmra.mxu0 %v2464
    %v2466 = vpop.f32.mrf.mxu0
    %v2467 = vadd.f32 %v2393, %v2466
    %v2468 = vpop.f32.mrf.mxu0
    %v2469 = vadd.f32 %v2395, %v2468
    %2470 = vdwg.mxu0
    %2471 = vmatprep.subr.mxu0 0.0
    %2472 = vmatpush1.msra.mxu0 0.0
    %2473 = vmatprep.subr.mxu0 0.0
    %2474 = vmatpush1.msra.mxu0 0.0
    %2475 = vmatprep.subr.mxu0 0.0
    %2476 = vmatpush1.msra.mxu0 0.0
    %2477 = vmatprep.subr.mxu0 0.0
    %2478 = vmatpush1.msra.mxu0 0.0
    %2479 = vmatprep.subr.mxu0 0.0
    %2480 = vmatpush1.msra.mxu0 0.0
    %2481 = vmatprep.subr.mxu0 0.0
    %2482 = vmatpush1.msra.mxu0 0.0
    %2483 = vmatprep.subr.mxu0 0.0
    %2484 = vmatpush1.msra.mxu0 0.0
    %2485 = vmatprep.subr.mxu0 0.0
    %2486 = vmatpush1.msra.mxu0 0.0
    %2487 = vmatprep.subr.mxu0 0.0
    %2488 = vmatpush1.msra.mxu0 0.0
    %2489 = vmatprep.subr.mxu0 0.0
    %2490 = vmatpush1.msra.mxu0 0.0
    %2491 = vmatprep.subr.mxu0 0.0
    %2492 = vmatpush1.msra.mxu0 0.0
    %2493 = vmatprep.subr.mxu0 0.0
    %2494 = vmatpush1.msra.mxu0 0.0
    %2495 = vmatprep.subr.mxu0 0.0
    %2496 = vmatpush1.msra.mxu0 0.0
    %2497 = vmatprep.subr.mxu0 0.0
    %2498 = vmatpush1.msra.mxu0 0.0
    %2499 = vmatprep.subr.mxu0 0.0
    %2500 = vmatpush1.msra.mxu0 0.0
    %v2501 = vand.u32 %v1539, 4294901760
    %2502 = vmatprep.subr.mxu0 %v2501
    %v2503 = vand.u32 %v1537, 4294901760
    %2504 = vmatpush1.msra.mxu0 %v2503
    %2505 = vmatprep.subr.mxu0 0.0
    %2506 = vmatpush2.msra.mxu0 0.0
    %2507 = vmatprep.subr.mxu0 0.0
    %2508 = vmatpush2.msra.mxu0 0.0
    %2509 = vmatprep.subr.mxu0 0.0
    %2510 = vmatpush2.msra.mxu0 0.0
    %2511 = vmatprep.subr.mxu0 0.0
    %2512 = vmatpush2.msra.mxu0 0.0
    %2513 = vmatprep.subr.mxu0 0.0
    %2514 = vmatpush2.msra.mxu0 0.0
    %2515 = vmatprep.subr.mxu0 0.0
    %2516 = vmatpush2.msra.mxu0 0.0
    %2517 = vmatprep.subr.mxu0 0.0
    %2518 = vmatpush2.msra.mxu0 0.0
    %2519 = vmatprep.subr.mxu0 0.0
    %2520 = vmatpush2.msra.mxu0 0.0
    %2521 = vmatprep.subr.mxu0 0.0
    %2522 = vmatpush2.msra.mxu0 0.0
    %2523 = vmatprep.subr.mxu0 0.0
    %2524 = vmatpush2.msra.mxu0 0.0
    %2525 = vmatprep.subr.mxu0 0.0
    %2526 = vmatpush2.msra.mxu0 0.0
    %2527 = vmatprep.subr.mxu0 0.0
    %2528 = vmatpush2.msra.mxu0 0.0
    %2529 = vmatprep.subr.mxu0 0.0
    %2530 = vmatpush2.msra.mxu0 0.0
    %2531 = vmatprep.subr.mxu0 0.0
    %2532 = vmatpush2.msra.mxu0 0.0
    %2533 = vmatprep.subr.mxu0 0.0
    %2534 = vmatpush2.msra.mxu0 0.0
    %2535 = vmatprep.subr.mxu0 0.0
    %2536 = vmatpush2.msra.mxu0 0.0
    %2537 = vmatprep.mubr.f32.mxu0 0.0
    %v2538 = vand.u32 %v1527, 4294901760
    %v2539 = vsub.f32 %v1527, %v2538
    %v2540 = vand.u32 %v2539, 4294901760
    %v2541 = vsub.f32 %v2539, %v2540
    %v2542 = vand.u32 %v2541, 4294901760
    %2543 = vmatmul.mubr.f32.gmra.mxu0 %v2542
    %v2544 = vpop.f32.mrf.mxu0
    %v2545 = vadd.f32 %v1509, %v2544
    %v2546 = vpop.f32.mrf.mxu0
    %v2547 = vadd.f32 %v1513, %v2546
    %2548 = vdwg.mxu0
    %2549 = vmatprep.subr.mxu0 0.0
    %2550 = vmatpush1.msra.mxu0 0.0
    %2551 = vmatprep.subr.mxu0 0.0
    %2552 = vmatpush1.msra.mxu0 0.0
    %2553 = vmatprep.subr.mxu0 0.0
    %2554 = vmatpush1.msra.mxu0 0.0
    %2555 = vmatprep.subr.mxu0 0.0
    %2556 = vmatpush1.msra.mxu0 0.0
    %2557 = vmatprep.subr.mxu0 0.0
    %2558 = vmatpush1.msra.mxu0 0.0
    %2559 = vmatprep.subr.mxu0 0.0
    %2560 = vmatpush1.msra.mxu0 0.0
    %2561 = vmatprep.subr.mxu0 0.0
    %2562 = vmatpush1.msra.mxu0 0.0
    %2563 = vmatprep.subr.mxu0 0.0
    %2564 = vmatpush1.msra.mxu0 0.0
    %2565 = vmatprep.subr.mxu0 0.0
    %2566 = vmatpush1.msra.mxu0 0.0
    %2567 = vmatprep.subr.mxu0 0.0
    %2568 = vmatpush1.msra.mxu0 0.0
    %2569 = vmatprep.subr.mxu0 0.0
    %2570 = vmatpush1.msra.mxu0 0.0
    %2571 = vmatprep.subr.mxu0 0.0
    %2572 = vmatpush1.msra.mxu0 0.0
    %2573 = vmatprep.subr.mxu0 0.0
    %2574 = vmatpush1.msra.mxu0 0.0
    %2575 = vmatprep.subr.mxu0 0.0
    %2576 = vmatpush1.msra.mxu0 0.0
    %2577 = vmatprep.subr.mxu0 0.0
    %2578 = vmatpush1.msra.mxu0 0.0
    %v2579 = vand.u32 %v1539, 4294901760
    %v2580 = vsub.f32 %v1539, %v2579
    %v2581 = vand.u32 %v2580, 4294901760
    %v2582 = vsub.f32 %v2580, %v2581
    %v2583 = vand.u32 %v2582, 4294901760
    %2584 = vmatprep.subr.mxu0 %v2583
    %v2585 = vand.u32 %v1537, 4294901760
    %v2586 = vsub.f32 %v1537, %v2585
    %v2587 = vand.u32 %v2586, 4294901760
    %v2588 = vsub.f32 %v2586, %v2587
    %v2589 = vand.u32 %v2588, 4294901760
    %2590 = vmatpush1.msra.mxu0 %v2589
    %2591 = vmatprep.subr.mxu0 0.0
    %2592 = vmatpush2.msra.mxu0 0.0
    %2593 = vmatprep.subr.mxu0 0.0
    %2594 = vmatpush2.msra.mxu0 0.0
    %2595 = vmatprep.subr.mxu0 0.0
    %2596 = vmatpush2.msra.mxu0 0.0
    %2597 = vmatprep.subr.mxu0 0.0
    %2598 = vmatpush2.msra.mxu0 0.0
    %2599 = vmatprep.subr.mxu0 0.0
    %2600 = vmatpush2.msra.mxu0 0.0
    %2601 = vmatprep.subr.mxu0 0.0
    %2602 = vmatpush2.msra.mxu0 0.0
    %2603 = vmatprep.subr.mxu0 0.0
    %2604 = vmatpush2.msra.mxu0 0.0
    %2605 = vmatprep.subr.mxu0 0.0
    %2606 = vmatpush2.msra.mxu0 0.0
    %2607 = vmatprep.subr.mxu0 0.0
    %2608 = vmatpush2.msra.mxu0 0.0
    %2609 = vmatprep.subr.mxu0 0.0
    %2610 = vmatpush2.msra.mxu0 0.0
    %2611 = vmatprep.subr.mxu0 0.0
    %2612 = vmatpush2.msra.mxu0 0.0
    %2613 = vmatprep.subr.mxu0 0.0
    %2614 = vmatpush2.msra.mxu0 0.0
    %2615 = vmatprep.subr.mxu0 0.0
    %2616 = vmatpush2.msra.mxu0 0.0
    %2617 = vmatprep.subr.mxu0 0.0
    %2618 = vmatpush2.msra.mxu0 0.0
    %2619 = vmatprep.subr.mxu0 0.0
    %2620 = vmatpush2.msra.mxu0 0.0
    %2621 = vmatprep.subr.mxu0 0.0
    %2622 = vmatpush2.msra.mxu0 0.0
    %2623 = vmatprep.mubr.f32.mxu0 0.0
    %v2624 = vand.u32 %v1527, 4294901760
    %2625 = vmatmul.mubr.f32.gmra.mxu0 %v2624
    %v2626 = vpop.f32.mrf.mxu0
    %v2627 = vadd.f32 %v2545, %v2626
    %v2628 = vpop.f32.mrf.mxu0
    %v2629 = vadd.f32 %v2547, %v2628
    %2630 = vdwg.mxu0
    %2631 = vmatprep.subr.mxu0 0.0
    %2632 = vmatpush1.msra.mxu0 0.0
    %2633 = vmatprep.subr.mxu0 0.0
    %2634 = vmatpush1.msra.mxu0 0.0
    %2635 = vmatprep.subr.mxu0 0.0
    %2636 = vmatpush1.msra.mxu0 0.0
    %2637 = vmatprep.subr.mxu0 0.0
    %2638 = vmatpush1.msra.mxu0 0.0
    %2639 = vmatprep.subr.mxu0 0.0
    %2640 = vmatpush1.msra.mxu0 0.0
    %2641 = vmatprep.subr.mxu0 0.0
    %2642 = vmatpush1.msra.mxu0 0.0
    %2643 = vmatprep.subr.mxu0 0.0
    %2644 = vmatpush1.msra.mxu0 0.0
    %2645 = vmatprep.subr.mxu0 0.0
    %2646 = vmatpush1.msra.mxu0 0.0
    %2647 = vmatprep.subr.mxu0 0.0
    %2648 = vmatpush1.msra.mxu0 0.0
    %2649 = vmatprep.subr.mxu0 0.0
    %2650 = vmatpush1.msra.mxu0 0.0
    %2651 = vmatprep.subr.mxu0 0.0
    %2652 = vmatpush1.msra.mxu0 0.0
    %2653 = vmatprep.subr.mxu0 0.0
    %2654 = vmatpush1.msra.mxu0 0.0
    %2655 = vmatprep.subr.mxu0 0.0
    %2656 = vmatpush1.msra.mxu0 0.0
    %2657 = vmatprep.subr.mxu0 0.0
    %2658 = vmatpush1.msra.mxu0 0.0
    %2659 = vmatprep.subr.mxu0 0.0
    %2660 = vmatpush1.msra.mxu0 0.0
    %v2661 = vand.u32 %v1539, 4294901760
    %v2662 = vsub.f32 %v1539, %v2661
    %2663 = vmatprep.subr.mxu0 %v2662
    %v2664 = vand.u32 %v1537, 4294901760
    %v2665 = vsub.f32 %v1537, %v2664
    %2666 = vmatpush1.msra.mxu0 %v2665
    %2667 = vmatprep.subr.mxu0 0.0
    %2668 = vmatpush2.msra.mxu0 0.0
    %2669 = vmatprep.subr.mxu0 0.0
    %2670 = vmatpush2.msra.mxu0 0.0
    %2671 = vmatprep.subr.mxu0 0.0
    %2672 = vmatpush2.msra.mxu0 0.0
    %2673 = vmatprep.subr.mxu0 0.0
    %2674 = vmatpush2.msra.mxu0 0.0
    %2675 = vmatprep.subr.mxu0 0.0
    %2676 = vmatpush2.msra.mxu0 0.0
    %2677 = vmatprep.subr.mxu0 0.0
    %2678 = vmatpush2.msra.mxu0 0.0
    %2679 = vmatprep.subr.mxu0 0.0
    %2680 = vmatpush2.msra.mxu0 0.0
    %2681 = vmatprep.subr.mxu0 0.0
    %2682 = vmatpush2.msra.mxu0 0.0
    %2683 = vmatprep.subr.mxu0 0.0
    %2684 = vmatpush2.msra.mxu0 0.0
    %2685 = vmatprep.subr.mxu0 0.0
    %2686 = vmatpush2.msra.mxu0 0.0
    %2687 = vmatprep.subr.mxu0 0.0
    %2688 = vmatpush2.msra.mxu0 0.0
    %2689 = vmatprep.subr.mxu0 0.0
    %2690 = vmatpush2.msra.mxu0 0.0
    %2691 = vmatprep.subr.mxu0 0.0
    %2692 = vmatpush2.msra.mxu0 0.0
    %2693 = vmatprep.subr.mxu0 0.0
    %2694 = vmatpush2.msra.mxu0 0.0
    %2695 = vmatprep.subr.mxu0 0.0
    %2696 = vmatpush2.msra.mxu0 0.0
    %2697 = vmatprep.subr.mxu0 0.0
    %2698 = vmatpush2.msra.mxu0 0.0
    %2699 = vmatprep.mubr.f32.mxu0 0.0
    %v2700 = vand.u32 %v1527, 4294901760
    %v2701 = vsub.f32 %v1527, %v2700
    %2702 = vmatmul.mubr.f32.gmra.mxu0 %v2701
    %v2703 = vpop.f32.mrf.mxu0
    %v2704 = vadd.f32 %v2627, %v2703
    %v2705 = vpop.f32.mrf.mxu0
    %v2706 = vadd.f32 %v2629, %v2705
    %2707 = vdwg.mxu0
    %2708 = vmatprep.subr.mxu0 0.0
    %2709 = vmatpush1.msra.mxu0 0.0
    %2710 = vmatprep.subr.mxu0 0.0
    %2711 = vmatpush1.msra.mxu0 0.0
    %2712 = vmatprep.subr.mxu0 0.0
    %2713 = vmatpush1.msra.mxu0 0.0
    %2714 = vmatprep.subr.mxu0 0.0
    %2715 = vmatpush1.msra.mxu0 0.0
    %2716 = vmatprep.subr.mxu0 0.0
    %2717 = vmatpush1.msra.mxu0 0.0
    %2718 = vmatprep.subr.mxu0 0.0
    %2719 = vmatpush1.msra.mxu0 0.0
    %2720 = vmatprep.subr.mxu0 0.0
    %2721 = vmatpush1.msra.mxu0 0.0
    %2722 = vmatprep.subr.mxu0 0.0
    %2723 = vmatpush1.msra.mxu0 0.0
    %2724 = vmatprep.subr.mxu0 0.0
    %2725 = vmatpush1.msra.mxu0 0.0
    %2726 = vmatprep.subr.mxu0 0.0
    %2727 = vmatpush1.msra.mxu0 0.0
    %2728 = vmatprep.subr.mxu0 0.0
    %2729 = vmatpush1.msra.mxu0 0.0
    %2730 = vmatprep.subr.mxu0 0.0
    %2731 = vmatpush1.msra.mxu0 0.0
    %2732 = vmatprep.subr.mxu0 0.0
    %2733 = vmatpush1.msra.mxu0 0.0
    %2734 = vmatprep.subr.mxu0 0.0
    %2735 = vmatpush1.msra.mxu0 0.0
    %2736 = vmatprep.subr.mxu0 0.0
    %2737 = vmatpush1.msra.mxu0 0.0
    %v2738 = vand.u32 %v1539, 4294901760
    %2739 = vmatprep.subr.mxu0 %v2738
    %v2740 = vand.u32 %v1537, 4294901760
    %2741 = vmatpush1.msra.mxu0 %v2740
    %2742 = vmatprep.subr.mxu0 0.0
    %2743 = vmatpush2.msra.mxu0 0.0
    %2744 = vmatprep.subr.mxu0 0.0
    %2745 = vmatpush2.msra.mxu0 0.0
    %2746 = vmatprep.subr.mxu0 0.0
    %2747 = vmatpush2.msra.mxu0 0.0
    %2748 = vmatprep.subr.mxu0 0.0
    %2749 = vmatpush2.msra.mxu0 0.0
    %2750 = vmatprep.subr.mxu0 0.0
    %2751 = vmatpush2.msra.mxu0 0.0
    %2752 = vmatprep.subr.mxu0 0.0
    %2753 = vmatpush2.msra.mxu0 0.0
    %2754 = vmatprep.subr.mxu0 0.0
    %2755 = vmatpush2.msra.mxu0 0.0
    %2756 = vmatprep.subr.mxu0 0.0
    %2757 = vmatpush2.msra.mxu0 0.0
    %2758 = vmatprep.subr.mxu0 0.0
    %2759 = vmatpush2.msra.mxu0 0.0
    %2760 = vmatprep.subr.mxu0 0.0
    %2761 = vmatpush2.msra.mxu0 0.0
    %2762 = vmatprep.subr.mxu0 0.0
    %2763 = vmatpush2.msra.mxu0 0.0
    %2764 = vmatprep.subr.mxu0 0.0
    %2765 = vmatpush2.msra.mxu0 0.0
    %2766 = vmatprep.subr.mxu0 0.0
    %2767 = vmatpush2.msra.mxu0 0.0
    %2768 = vmatprep.subr.mxu0 0.0
    %2769 = vmatpush2.msra.mxu0 0.0
    %2770 = vmatprep.subr.mxu0 0.0
    %2771 = vmatpush2.msra.mxu0 0.0
    %2772 = vmatprep.subr.mxu0 0.0
    %2773 = vmatpush2.msra.mxu0 0.0
    %2774 = vmatprep.mubr.f32.mxu0 0.0
    %v2775 = vand.u32 %v1527, 4294901760
    %v2776 = vsub.f32 %v1527, %v2775
    %v2777 = vand.u32 %v2776, 4294901760
    %2778 = vmatmul.mubr.f32.gmra.mxu0 %v2777
    %v2779 = vpop.f32.mrf.mxu0
    %v2780 = vadd.f32 %v2704, %v2779
    %v2781 = vpop.f32.mrf.mxu0
    %v2782 = vadd.f32 %v2706, %v2781
    %2783 = vdwg.mxu0
    %2784 = vmatprep.subr.mxu0 0.0
    %2785 = vmatpush1.msra.mxu0 0.0
    %2786 = vmatprep.subr.mxu0 0.0
    %2787 = vmatpush1.msra.mxu0 0.0
    %2788 = vmatprep.subr.mxu0 0.0
    %2789 = vmatpush1.msra.mxu0 0.0
    %2790 = vmatprep.subr.mxu0 0.0
    %2791 = vmatpush1.msra.mxu0 0.0
    %2792 = vmatprep.subr.mxu0 0.0
    %2793 = vmatpush1.msra.mxu0 0.0
    %2794 = vmatprep.subr.mxu0 0.0
    %2795 = vmatpush1.msra.mxu0 0.0
    %2796 = vmatprep.subr.mxu0 0.0
    %2797 = vmatpush1.msra.mxu0 0.0
    %2798 = vmatprep.subr.mxu0 0.0
    %2799 = vmatpush1.msra.mxu0 0.0
    %2800 = vmatprep.subr.mxu0 0.0
    %2801 = vmatpush1.msra.mxu0 0.0
    %2802 = vmatprep.subr.mxu0 0.0
    %2803 = vmatpush1.msra.mxu0 0.0
    %2804 = vmatprep.subr.mxu0 0.0
    %2805 = vmatpush1.msra.mxu0 0.0
    %2806 = vmatprep.subr.mxu0 0.0
    %2807 = vmatpush1.msra.mxu0 0.0
    %2808 = vmatprep.subr.mxu0 0.0
    %2809 = vmatpush1.msra.mxu0 0.0
    %2810 = vmatprep.subr.mxu0 0.0
    %2811 = vmatpush1.msra.mxu0 0.0
    %2812 = vmatprep.subr.mxu0 0.0
    %2813 = vmatpush1.msra.mxu0 0.0
    %v2814 = vand.u32 %v1539, 4294901760
    %v2815 = vsub.f32 %v1539, %v2814
    %v2816 = vand.u32 %v2815, 4294901760
    %2817 = vmatprep.subr.mxu0 %v2816
    %v2818 = vand.u32 %v1537, 4294901760
    %v2819 = vsub.f32 %v1537, %v2818
    %v2820 = vand.u32 %v2819, 4294901760
    %2821 = vmatpush1.msra.mxu0 %v2820
    %2822 = vmatprep.subr.mxu0 0.0
    %2823 = vmatpush2.msra.mxu0 0.0
    %2824 = vmatprep.subr.mxu0 0.0
    %2825 = vmatpush2.msra.mxu0 0.0
    %2826 = vmatprep.subr.mxu0 0.0
    %2827 = vmatpush2.msra.mxu0 0.0
    %2828 = vmatprep.subr.mxu0 0.0
    %2829 = vmatpush2.msra.mxu0 0.0
    %2830 = vmatprep.subr.mxu0 0.0
    %2831 = vmatpush2.msra.mxu0 0.0
    %2832 = vmatprep.subr.mxu0 0.0
    %2833 = vmatpush2.msra.mxu0 0.0
    %2834 = vmatprep.subr.mxu0 0.0
    %2835 = vmatpush2.msra.mxu0 0.0
    %2836 = vmatprep.subr.mxu0 0.0
    %2837 = vmatpush2.msra.mxu0 0.0
    %2838 = vmatprep.subr.mxu0 0.0
    %2839 = vmatpush2.msra.mxu0 0.0
    %2840 = vmatprep.subr.mxu0 0.0
    %2841 = vmatpush2.msra.mxu0 0.0
    %2842 = vmatprep.subr.mxu0 0.0
    %2843 = vmatpush2.msra.mxu0 0.0
    %2844 = vmatprep.subr.mxu0 0.0
    %2845 = vmatpush2.msra.mxu0 0.0
    %2846 = vmatprep.subr.mxu0 0.0
    %2847 = vmatpush2.msra.mxu0 0.0
    %2848 = vmatprep.subr.mxu0 0.0
    %2849 = vmatpush2.msra.mxu0 0.0
    %2850 = vmatprep.subr.mxu0 0.0
    %2851 = vmatpush2.msra.mxu0 0.0
    %2852 = vmatprep.subr.mxu0 0.0
    %2853 = vmatpush2.msra.mxu0 0.0
    %2854 = vmatprep.mubr.f32.mxu0 0.0
    %v2855 = vand.u32 %v1527, 4294901760
    %2856 = vmatmul.mubr.f32.gmra.mxu0 %v2855
    %v2857 = vpop.f32.mrf.mxu0
    %v2858 = vadd.f32 %v2780, %v2857
    %v2859 = vpop.f32.mrf.mxu0
    %v2860 = vadd.f32 %v2782, %v2859
    %2861 = vdwg.mxu0
    %2862 = vmatprep.subr.mxu0 0.0
    %2863 = vmatpush1.msra.mxu0 0.0
    %2864 = vmatprep.subr.mxu0 0.0
    %2865 = vmatpush1.msra.mxu0 0.0
    %2866 = vmatprep.subr.mxu0 0.0
    %2867 = vmatpush1.msra.mxu0 0.0
    %2868 = vmatprep.subr.mxu0 0.0
    %2869 = vmatpush1.msra.mxu0 0.0
    %2870 = vmatprep.subr.mxu0 0.0
    %2871 = vmatpush1.msra.mxu0 0.0
    %2872 = vmatprep.subr.mxu0 0.0
    %2873 = vmatpush1.msra.mxu0 0.0
    %2874 = vmatprep.subr.mxu0 0.0
    %2875 = vmatpush1.msra.mxu0 0.0
    %2876 = vmatprep.subr.mxu0 0.0
    %2877 = vmatpush1.msra.mxu0 0.0
    %2878 = vmatprep.subr.mxu0 0.0
    %2879 = vmatpush1.msra.mxu0 0.0
    %2880 = vmatprep.subr.mxu0 0.0
    %2881 = vmatpush1.msra.mxu0 0.0
    %2882 = vmatprep.subr.mxu0 0.0
    %2883 = vmatpush1.msra.mxu0 0.0
    %2884 = vmatprep.subr.mxu0 0.0
    %2885 = vmatpush1.msra.mxu0 0.0
    %2886 = vmatprep.subr.mxu0 0.0
    %2887 = vmatpush1.msra.mxu0 0.0
    %2888 = vmatprep.subr.mxu0 0.0
    %2889 = vmatpush1.msra.mxu0 0.0
    %2890 = vmatprep.subr.mxu0 0.0
    %2891 = vmatpush1.msra.mxu0 0.0
    %v2892 = vand.u32 %v1539, 4294901760
    %2893 = vmatprep.subr.mxu0 %v2892
    %v2894 = vand.u32 %v1537, 4294901760
    %2895 = vmatpush1.msra.mxu0 %v2894
    %2896 = vmatprep.subr.mxu0 0.0
    %2897 = vmatpush2.msra.mxu0 0.0
    %2898 = vmatprep.subr.mxu0 0.0
    %2899 = vmatpush2.msra.mxu0 0.0
    %2900 = vmatprep.subr.mxu0 0.0
    %2901 = vmatpush2.msra.mxu0 0.0
    %2902 = vmatprep.subr.mxu0 0.0
    %2903 = vmatpush2.msra.mxu0 0.0
    %2904 = vmatprep.subr.mxu0 0.0
    %2905 = vmatpush2.msra.mxu0 0.0
    %2906 = vmatprep.subr.mxu0 0.0
    %2907 = vmatpush2.msra.mxu0 0.0
    %2908 = vmatprep.subr.mxu0 0.0
    %2909 = vmatpush2.msra.mxu0 0.0
    %2910 = vmatprep.subr.mxu0 0.0
    %2911 = vmatpush2.msra.mxu0 0.0
    %2912 = vmatprep.subr.mxu0 0.0
    %2913 = vmatpush2.msra.mxu0 0.0
    %2914 = vmatprep.subr.mxu0 0.0
    %2915 = vmatpush2.msra.mxu0 0.0
    %2916 = vmatprep.subr.mxu0 0.0
    %2917 = vmatpush2.msra.mxu0 0.0
    %2918 = vmatprep.subr.mxu0 0.0
    %2919 = vmatpush2.msra.mxu0 0.0
    %2920 = vmatprep.subr.mxu0 0.0
    %2921 = vmatpush2.msra.mxu0 0.0
    %2922 = vmatprep.subr.mxu0 0.0
    %2923 = vmatpush2.msra.mxu0 0.0
    %2924 = vmatprep.subr.mxu0 0.0
    %2925 = vmatpush2.msra.mxu0 0.0
    %2926 = vmatprep.subr.mxu0 0.0
    %2927 = vmatpush2.msra.mxu0 0.0
    %2928 = vmatprep.mubr.f32.mxu0 0.0
    %v2929 = vand.u32 %v1527, 4294901760
    %2930 = vmatmul.mubr.f32.gmra.mxu0 %v2929
    %v2931 = vpop.f32.mrf.mxu0
    %v2932 = vadd.f32 %v2858, %v2931
    %v2933 = vpop.f32.mrf.mxu0
    %v2934 = vadd.f32 %v2860, %v2933
    %2935 = vdwg.mxu0
    %v2936 = vld [vmem:[%s6] sm:$0xff]
    %v2937 = vld [vmem:[%s6 + $0x8] sm:$0xff]
    %v2938 = vld [vmem:[%s6 + $0x10] sm:$0xff]
    %v2939 = vld [vmem:[%s6 + $0x18] sm:$0xff]
    %v2940 = vld [vmem:[%s6 + $0x20] sm:$0xff]
    %v2941 = vld [vmem:[%s6 + $0x28] sm:$0xff]
    %v2942 = vld [vmem:[%s6 + $0x30] sm:$0xff]
    %v2943 = vld [vmem:[%s6 + $0x38] sm:$0xff]
    %v2944 = vld [vmem:[%s6 + $0x40] sm:$0xff]
    %v2945 = vld [vmem:[%s6 + $0x48] sm:$0xff]
    %v2946 = vld [vmem:[%s6 + $0x50] sm:$0xff]
    %v2947 = vld [vmem:[%s6 + $0x58] sm:$0xff]
    %v2948 = vld [vmem:[%s6 + $0x60] sm:$0xff]
    %v2949 = vld [vmem:[%s6 + $0x68] sm:$0xff]
    %v2950 = vld [vmem:[%s6 + $0x70] sm:$0xff]
    %v2951 = vld [vmem:[%s6 + $0x78] sm:$0xff]
    %v2952 = vld [vmem:[%s6 + $0x80] sm:$0xff]
    %v2953 = vld [vmem:[%s6 + $0x88] sm:$0xff]
    %v2954 = vld [vmem:[%s6 + $0x90] sm:$0xff]
    %v2955 = vld [vmem:[%s6 + $0x98] sm:$0xff]
    %v2956 = vld [vmem:[%s6 + $0xa0] sm:$0xff]
    %v2957 = vld [vmem:[%s6 + $0xa8] sm:$0xff]
    %v2958 = vld [vmem:[%s6 + $0xb0] sm:$0xff]
    %v2959 = vld [vmem:[%s6 + $0xb8] sm:$0xff]
    %v2960 = vld [vmem:[%s6 + $0xc0] sm:$0xff]
    %v2961 = vld [vmem:[%s6 + $0xc8] sm:$0xff]
    %v2962 = vld [vmem:[%s6 + $0xd0] sm:$0xff]
    %v2963 = vld [vmem:[%s6 + $0xd8] sm:$0xff]
    %v2964 = vld [vmem:[%s6 + $0xe0] sm:$0xff]
    %v2965 = vld [vmem:[%s6 + $0xe8] sm:$0xff]
    %v2966 = vld [vmem:[%s6 + $0xf0] sm:$0xff]
    %v2967 = vld [vmem:[%s6 + $0xf8] sm:$0xff]
    %v2968 = vld [vmem:[%s6 + $0x100] sm:$0xff]
    %v2969 = vld [vmem:[%s6 + $0x108] sm:$0xff]
    %v2970 = vld [vmem:[%s6 + $0x110] sm:$0xff]
    %v2971 = vld [vmem:[%s6 + $0x118] sm:$0xff]
    %v2972 = vld [vmem:[%s6 + $0x120] sm:$0xff]
    %v2973 = vld [vmem:[%s6 + $0x128] sm:$0xff]
    %v2974 = vld [vmem:[%s6 + $0x130] sm:$0xff]
    %v2975 = vld [vmem:[%s6 + $0x138] sm:$0xff]
    %v2976 = vld [vmem:[%s6 + $0x140] sm:$0xff]
    %v2977 = vld [vmem:[%s6 + $0x148] sm:$0xff]
    %v2978 = vld [vmem:[%s6 + $0x150] sm:$0xff]
    %v2979 = vld [vmem:[%s6 + $0x158] sm:$0xff]
    %v2980 = vld [vmem:[%s6 + $0x160] sm:$0xff]
    %v2981 = vld [vmem:[%s6 + $0x168] sm:$0xff]
    %v2982 = vld [vmem:[%s6 + $0x170] sm:$0xff]
    %v2983 = vld [vmem:[%s6 + $0x178] sm:$0xff]
    %v2984 = vld [vmem:[%s6 + $0x180] sm:$0xff]
    %v2985 = vld [vmem:[%s6 + $0x188] sm:$0xff]
    %v2986 = vld [vmem:[%s6 + $0x190] sm:$0xff]
    %v2987 = vld [vmem:[%s6 + $0x198] sm:$0xff]
    %v2988 = vld [vmem:[%s6 + $0x1a0] sm:$0xff]
    %v2989 = vld [vmem:[%s6 + $0x1a8] sm:$0xff]
    %v2990 = vld [vmem:[%s6 + $0x1b0] sm:$0xff]
    %v2991 = vld [vmem:[%s6 + $0x1b8] sm:$0xff]
    %v2992 = vld [vmem:[%s6 + $0x1c0] sm:$0xff]
    %v2993 = vld [vmem:[%s6 + $0x1c8] sm:$0xff]
    %v2994 = vld [vmem:[%s6 + $0x1d0] sm:$0xff]
    %v2995 = vld [vmem:[%s6 + $0x1d8] sm:$0xff]
    %v2996 = vld [vmem:[%s6 + $0x1e0] sm:$0xff]
    %v2997 = vld [vmem:[%s6 + $0x1e8] sm:$0xff]
    %v2998 = vld [vmem:[%s6 + $0x1f0] sm:$0xff]
    %v2999 = vld [vmem:[%s6 + $0x1f8] sm:$0xff]
    %v3000 = vld [vmem:[%s6 + $0x200] sm:$0xff]
    %v3001 = vld [vmem:[%s6 + $0x208] sm:$0xff]
    %v3002 = vld [vmem:[%s6 + $0x210] sm:$0xff]
    %v3003 = vld [vmem:[%s6 + $0x218] sm:$0xff]
    %v3004 = vld [vmem:[%s6 + $0x220] sm:$0xff]
    %v3005 = vld [vmem:[%s6 + $0x228] sm:$0xff]
    %v3006 = vld [vmem:[%s6 + $0x230] sm:$0xff]
    %v3007 = vld [vmem:[%s6 + $0x238] sm:$0xff]
    %v3008 = vld [vmem:[%s6 + $0x240] sm:$0xff]
    %v3009 = vld [vmem:[%s6 + $0x248] sm:$0xff]
    %v3010 = vld [vmem:[%s6 + $0x250] sm:$0xff]
    %v3011 = vld [vmem:[%s6 + $0x258] sm:$0xff]
    %v3012 = vld [vmem:[%s6 + $0x260] sm:$0xff]
    %v3013 = vld [vmem:[%s6 + $0x268] sm:$0xff]
    %v3014 = vld [vmem:[%s6 + $0x270] sm:$0xff]
    %v3015 = vld [vmem:[%s6 + $0x278] sm:$0xff]
    %v3016 = vld [vmem:[%s6 + $0x280] sm:$0xff]
    %v3017 = vld [vmem:[%s6 + $0x288] sm:$0xff]
    %v3018 = vld [vmem:[%s6 + $0x290] sm:$0xff]
    %v3019 = vld [vmem:[%s6 + $0x298] sm:$0xff]
    %v3020 = vld [vmem:[%s6 + $0x2a0] sm:$0xff]
    %v3021 = vld [vmem:[%s6 + $0x2a8] sm:$0xff]
    %v3022 = vld [vmem:[%s6 + $0x2b0] sm:$0xff]
    %v3023 = vld [vmem:[%s6 + $0x2b8] sm:$0xff]
    %v3024 = vld [vmem:[%s6 + $0x2c0] sm:$0xff]
    %v3025 = vld [vmem:[%s6 + $0x2c8] sm:$0xff]
    %v3026 = vld [vmem:[%s6 + $0x2d0] sm:$0xff]
    %v3027 = vld [vmem:[%s6 + $0x2d8] sm:$0xff]
    %v3028 = vld [vmem:[%s6 + $0x2e0] sm:$0xff]
    %v3029 = vld [vmem:[%s6 + $0x2e8] sm:$0xff]
    %v3030 = vld [vmem:[%s6 + $0x2f0] sm:$0xff]
    %v3031 = vld [vmem:[%s6 + $0x2f8] sm:$0xff]
    %v3032 = vld [vmem:[%s6 + $0x300] sm:$0xff]
    %v3033 = vld [vmem:[%s6 + $0x308] sm:$0xff]
    %v3034 = vld [vmem:[%s6 + $0x310] sm:$0xff]
    %v3035 = vld [vmem:[%s6 + $0x318] sm:$0xff]
    %v3036 = vld [vmem:[%s6 + $0x320] sm:$0xff]
    %v3037 = vld [vmem:[%s6 + $0x328] sm:$0xff]
    %v3038 = vld [vmem:[%s6 + $0x330] sm:$0xff]
    %v3039 = vld [vmem:[%s6 + $0x338] sm:$0xff]
    %v3040 = vld [vmem:[%s6 + $0x340] sm:$0xff]
    %v3041 = vld [vmem:[%s6 + $0x348] sm:$0xff]
    %v3042 = vld [vmem:[%s6 + $0x350] sm:$0xff]
    %v3043 = vld [vmem:[%s6 + $0x358] sm:$0xff]
    %v3044 = vld [vmem:[%s6 + $0x360] sm:$0xff]
    %v3045 = vld [vmem:[%s6 + $0x368] sm:$0xff]
    %v3046 = vld [vmem:[%s6 + $0x370] sm:$0xff]
    %v3047 = vld [vmem:[%s6 + $0x378] sm:$0xff]
    %v3048 = vld [vmem:[%s6 + $0x380] sm:$0xff]
    %v3049 = vld [vmem:[%s6 + $0x388] sm:$0xff]
    %v3050 = vld [vmem:[%s6 + $0x390] sm:$0xff]
    %v3051 = vld [vmem:[%s6 + $0x398] sm:$0xff]
    %v3052 = vld [vmem:[%s6 + $0x3a0] sm:$0xff]
    %v3053 = vld [vmem:[%s6 + $0x3a8] sm:$0xff]
    %v3054 = vld [vmem:[%s6 + $0x3b0] sm:$0xff]
    %v3055 = vld [vmem:[%s6 + $0x3b8] sm:$0xff]
    %v3056 = vld [vmem:[%s6 + $0x3c0] sm:$0xff]
    %v3057 = vld [vmem:[%s6 + $0x3c8] sm:$0xff]
    %v3058 = vld [vmem:[%s6 + $0x3d0] sm:$0xff]
    %v3059 = vld [vmem:[%s6 + $0x3d8] sm:$0xff]
    %v3060 = vld [vmem:[%s6 + $0x3e0] sm:$0xff]
    %v3061 = vld [vmem:[%s6 + $0x3e8] sm:$0xff]
    %v3062 = vld [vmem:[%s6 + $0x3f0] sm:$0xff]
    %v3063 = vld [vmem:[%s6 + $0x3f8] sm:$0xff]
    %v3064 = vld [vmem:[%s6 + $0x400] sm:$0xff]
    %v3065 = vld [vmem:[%s6 + $0x408] sm:$0xff]
    %v3066 = vld [vmem:[%s6 + $0x410] sm:$0xff]
    %v3067 = vld [vmem:[%s6 + $0x418] sm:$0xff]
    %v3068 = vld [vmem:[%s6 + $0x420] sm:$0xff]
    %v3069 = vld [vmem:[%s6 + $0x428] sm:$0xff]
    %v3070 = vld [vmem:[%s6 + $0x430] sm:$0xff]
    %v3071 = vld [vmem:[%s6 + $0x438] sm:$0xff]
    %v3072 = vld [vmem:[%s6 + $0x440] sm:$0xff]
    %v3073 = vld [vmem:[%s6 + $0x448] sm:$0xff]
    %v3074 = vld [vmem:[%s6 + $0x450] sm:$0xff]
    %v3075 = vld [vmem:[%s6 + $0x458] sm:$0xff]
    %v3076 = vld [vmem:[%s6 + $0x460] sm:$0xff]
    %v3077 = vld [vmem:[%s6 + $0x468] sm:$0xff]
    %v3078 = vld [vmem:[%s6 + $0x470] sm:$0xff]
    %v3079 = vld [vmem:[%s6 + $0x478] sm:$0xff]
    %v3080 = vld [vmem:[%s6 + $0x480] sm:$0xff]
    %v3081 = vld [vmem:[%s6 + $0x488] sm:$0xff]
    %v3082 = vld [vmem:[%s6 + $0x490] sm:$0xff]
    %v3083 = vld [vmem:[%s6 + $0x498] sm:$0xff]
    %v3084 = vld [vmem:[%s6 + $0x4a0] sm:$0xff]
    %v3085 = vld [vmem:[%s6 + $0x4a8] sm:$0xff]
    %v3086 = vld [vmem:[%s6 + $0x4b0] sm:$0xff]
    %v3087 = vld [vmem:[%s6 + $0x4b8] sm:$0xff]
    %v3088 = vld [vmem:[%s6 + $0x4c0] sm:$0xff]
    %v3089 = vld [vmem:[%s6 + $0x4c8] sm:$0xff]
    %v3090 = vld [vmem:[%s6 + $0x4d0] sm:$0xff]
    %v3091 = vld [vmem:[%s6 + $0x4d8] sm:$0xff]
    %v3092 = vld [vmem:[%s6 + $0x4e0] sm:$0xff]
    %v3093 = vld [vmem:[%s6 + $0x4e8] sm:$0xff]
    %v3094 = vld [vmem:[%s6 + $0x4f0] sm:$0xff]
    %v3095 = vld [vmem:[%s6 + $0x4f8] sm:$0xff]
    %v3096 = vld [vmem:[%s6 + $0x500] sm:$0xff]
    %v3097 = vld [vmem:[%s6 + $0x508] sm:$0xff]
    %v3098 = vld [vmem:[%s6 + $0x510] sm:$0xff]
    %v3099 = vld [vmem:[%s6 + $0x518] sm:$0xff]
    %v3100 = vld [vmem:[%s6 + $0x520] sm:$0xff]
    %v3101 = vld [vmem:[%s6 + $0x528] sm:$0xff]
    %v3102 = vld [vmem:[%s6 + $0x530] sm:$0xff]
    %v3103 = vld [vmem:[%s6 + $0x538] sm:$0xff]
    %v3104 = vld [vmem:[%s6 + $0x540] sm:$0xff]
    %v3105 = vld [vmem:[%s6 + $0x548] sm:$0xff]
    %v3106 = vld [vmem:[%s6 + $0x550] sm:$0xff]
    %v3107 = vld [vmem:[%s6 + $0x558] sm:$0xff]
    %v3108 = vld [vmem:[%s6 + $0x560] sm:$0xff]
    %v3109 = vld [vmem:[%s6 + $0x568] sm:$0xff]
    %v3110 = vld [vmem:[%s6 + $0x570] sm:$0xff]
    %v3111 = vld [vmem:[%s6 + $0x578] sm:$0xff]
    %v3112 = vld [vmem:[%s6 + $0x580] sm:$0xff]
    %v3113 = vld [vmem:[%s6 + $0x588] sm:$0xff]
    %v3114 = vld [vmem:[%s6 + $0x590] sm:$0xff]
    %v3115 = vld [vmem:[%s6 + $0x598] sm:$0xff]
    %v3116 = vld [vmem:[%s6 + $0x5a0] sm:$0xff]
    %v3117 = vld [vmem:[%s6 + $0x5a8] sm:$0xff]
    %v3118 = vld [vmem:[%s6 + $0x5b0] sm:$0xff]
    %v3119 = vld [vmem:[%s6 + $0x5b8] sm:$0xff]
    %v3120 = vld [vmem:[%s6 + $0x5c0] sm:$0xff]
    %v3121 = vld [vmem:[%s6 + $0x5c8] sm:$0xff]
    %v3122 = vld [vmem:[%s6 + $0x5d0] sm:$0xff]
    %v3123 = vld [vmem:[%s6 + $0x5d8] sm:$0xff]
    %v3124 = vld [vmem:[%s6 + $0x5e0] sm:$0xff]
    %v3125 = vld [vmem:[%s6 + $0x5e8] sm:$0xff]
    %v3126 = vld [vmem:[%s6 + $0x5f0] sm:$0xff]
    %v3127 = vld [vmem:[%s6 + $0x5f8] sm:$0xff]
    %3128 = vmatprep.subr.mxu0 0.0
    %v3129 = vand.u32 %v3047, 4294901760
    %3130 = vmatpush1.msra.mxu0 %v3129
    %3131 = vmatprep.subr.mxu0 0.0
    %v3132 = vand.u32 %v3046, 4294901760
    %3133 = vmatpush1.msra.mxu0 %v3132
    %3134 = vmatprep.subr.mxu0 0.0
    %v3135 = vand.u32 %v3045, 4294901760
    %3136 = vmatpush1.msra.mxu0 %v3135
    %3137 = vmatprep.subr.mxu0 0.0
    %v3138 = vand.u32 %v3044, 4294901760
    %3139 = vmatpush1.msra.mxu0 %v3138
    %3140 = vmatprep.subr.mxu0 0.0
    %v3141 = vand.u32 %v3043, 4294901760
    %3142 = vmatpush1.msra.mxu0 %v3141
    %3143 = vmatprep.subr.mxu0 0.0
    %v3144 = vand.u32 %v3042, 4294901760
    %3145 = vmatpush1.msra.mxu0 %v3144
    %3146 = vmatprep.subr.mxu0 0.0
    %v3147 = vand.u32 %v3041, 4294901760
    %3148 = vmatpush1.msra.mxu0 %v3147
    %3149 = vmatprep.subr.mxu0 0.0
    %v3150 = vand.u32 %v3040, 4294901760
    %3151 = vmatpush1.msra.mxu0 %v3150
    %3152 = vmatprep.subr.mxu0 0.0
    %v3153 = vand.u32 %v3039, 4294901760
    %3154 = vmatpush1.msra.mxu0 %v3153
    %3155 = vmatprep.subr.mxu0 0.0
    %v3156 = vand.u32 %v3038, 4294901760
    %3157 = vmatpush1.msra.mxu0 %v3156
    %3158 = vmatprep.subr.mxu0 0.0
    %v3159 = vand.u32 %v3037, 4294901760
    %3160 = vmatpush1.msra.mxu0 %v3159
    %3161 = vmatprep.subr.mxu0 0.0
    %v3162 = vand.u32 %v3036, 4294901760
    %3163 = vmatpush1.msra.mxu0 %v3162
    %3164 = vmatprep.subr.mxu0 0.0
    %v3165 = vand.u32 %v3035, 4294901760
    %3166 = vmatpush1.msra.mxu0 %v3165
    %3167 = vmatprep.subr.mxu0 0.0
    %v3168 = vand.u32 %v3034, 4294901760
    %3169 = vmatpush1.msra.mxu0 %v3168
    %3170 = vmatprep.subr.mxu0 0.0
    %v3171 = vand.u32 %v3033, 4294901760
    %3172 = vmatpush1.msra.mxu0 %v3171
    %3173 = vmatprep.subr.mxu0 0.0
    %v3174 = vand.u32 %v3032, 4294901760
    %3175 = vmatpush1.msra.mxu0 %v3174
    %3176 = vmatprep.subr.mxu0 0.0
    %v3177 = vand.u32 %v3063, 4294901760
    %3178 = vmatpush2.msra.mxu0 %v3177
    %3179 = vmatprep.subr.mxu0 0.0
    %v3180 = vand.u32 %v3062, 4294901760
    %3181 = vmatpush2.msra.mxu0 %v3180
    %3182 = vmatprep.subr.mxu0 0.0
    %v3183 = vand.u32 %v3061, 4294901760
    %3184 = vmatpush2.msra.mxu0 %v3183
    %3185 = vmatprep.subr.mxu0 0.0
    %v3186 = vand.u32 %v3060, 4294901760
    %3187 = vmatpush2.msra.mxu0 %v3186
    %3188 = vmatprep.subr.mxu0 0.0
    %v3189 = vand.u32 %v3059, 4294901760
    %3190 = vmatpush2.msra.mxu0 %v3189
    %3191 = vmatprep.subr.mxu0 0.0
    %v3192 = vand.u32 %v3058, 4294901760
    %3193 = vmatpush2.msra.mxu0 %v3192
    %3194 = vmatprep.subr.mxu0 0.0
    %v3195 = vand.u32 %v3057, 4294901760
    %3196 = vmatpush2.msra.mxu0 %v3195
    %3197 = vmatprep.subr.mxu0 0.0
    %v3198 = vand.u32 %v3056, 4294901760
    %3199 = vmatpush2.msra.mxu0 %v3198
    %3200 = vmatprep.subr.mxu0 0.0
    %v3201 = vand.u32 %v3055, 4294901760
    %3202 = vmatpush2.msra.mxu0 %v3201
    %3203 = vmatprep.subr.mxu0 0.0
    %v3204 = vand.u32 %v3054, 4294901760
    %3205 = vmatpush2.msra.mxu0 %v3204
    %3206 = vmatprep.subr.mxu0 0.0
    %v3207 = vand.u32 %v3053, 4294901760
    %3208 = vmatpush2.msra.mxu0 %v3207
    %3209 = vmatprep.subr.mxu0 0.0
    %v3210 = vand.u32 %v3052, 4294901760
    %3211 = vmatpush2.msra.mxu0 %v3210
    %3212 = vmatprep.subr.mxu0 0.0
    %v3213 = vand.u32 %v3051, 4294901760
    %3214 = vmatpush2.msra.mxu0 %v3213
    %3215 = vmatprep.subr.mxu0 0.0
    %v3216 = vand.u32 %v3050, 4294901760
    %3217 = vmatpush2.msra.mxu0 %v3216
    %3218 = vmatprep.subr.mxu0 0.0
    %v3219 = vand.u32 %v3049, 4294901760
    %3220 = vmatpush2.msra.mxu0 %v3219
    %3221 = vmatprep.subr.mxu0 0.0
    %v3222 = vand.u32 %v3048, 4294901760
    %3223 = vmatpush2.msra.mxu0 %v3222
    %v3224 = vand.u32 %v2004, 4294901760
    %v3225 = vsub.f32 %v2004, %v3224
    %v3226 = vand.u32 %v3225, 4294901760
    %v3227 = vsub.f32 %v3225, %v3226
    %v3228 = vand.u32 %v3227, 4294901760
    %3229 = vmatprep.mubr.f32.mxu0 %v3228
    %v3230 = vand.u32 %v2002, 4294901760
    %v3231 = vsub.f32 %v2002, %v3230
    %v3232 = vand.u32 %v3231, 4294901760
    %v3233 = vsub.f32 %v3231, %v3232
    %v3234 = vand.u32 %v3233, 4294901760
    %3235 = vmatmul.mubr.f32.gmra.mxu0 %v3234
    %v3236 = vpop.f32.mrf.mxu0
    %v3237 = vadd.f32 0.0, %v3236
    %v3238 = vpop.f32.mrf.mxu0
    %3239 = vdwg.mxu0
    %3240 = vmatprep.subr.mxu0 0.0
    %v3241 = vand.u32 %v3047, 4294901760
    %v3242 = vsub.f32 %v3047, %v3241
    %v3243 = vand.u32 %v3242, 4294901760
    %v3244 = vsub.f32 %v3242, %v3243
    %v3245 = vand.u32 %v3244, 4294901760
    %3246 = vmatpush1.msra.mxu0 %v3245
    %3247 = vmatprep.subr.mxu0 0.0
    %v3248 = vand.u32 %v3046, 4294901760
    %v3249 = vsub.f32 %v3046, %v3248
    %v3250 = vand.u32 %v3249, 4294901760
    %v3251 = vsub.f32 %v3249, %v3250
    %v3252 = vand.u32 %v3251, 4294901760
    %3253 = vmatpush1.msra.mxu0 %v3252
    %3254 = vmatprep.subr.mxu0 0.0
    %v3255 = vand.u32 %v3045, 4294901760
    %v3256 = vsub.f32 %v3045, %v3255
    %v3257 = vand.u32 %v3256, 4294901760
    %v3258 = vsub.f32 %v3256, %v3257
    %v3259 = vand.u32 %v3258, 4294901760
    %3260 = vmatpush1.msra.mxu0 %v3259
    %3261 = vmatprep.subr.mxu0 0.0
    %v3262 = vand.u32 %v3044, 4294901760
    %v3263 = vsub.f32 %v3044, %v3262
    %v3264 = vand.u32 %v3263, 4294901760
    %v3265 = vsub.f32 %v3263, %v3264
    %v3266 = vand.u32 %v3265, 4294901760
    %3267 = vmatpush1.msra.mxu0 %v3266
    %3268 = vmatprep.subr.mxu0 0.0
    %v3269 = vand.u32 %v3043, 4294901760
    %v3270 = vsub.f32 %v3043, %v3269
    %v3271 = vand.u32 %v3270, 4294901760
    %v3272 = vsub.f32 %v3270, %v3271
    %v3273 = vand.u32 %v3272, 4294901760
    %3274 = vmatpush1.msra.mxu0 %v3273
    %3275 = vmatprep.subr.mxu0 0.0
    %v3276 = vand.u32 %v3042, 4294901760
    %v3277 = vsub.f32 %v3042, %v3276
    %v3278 = vand.u32 %v3277, 4294901760
    %v3279 = vsub.f32 %v3277, %v3278
    %v3280 = vand.u32 %v3279, 4294901760
    %3281 = vmatpush1.msra.mxu0 %v3280
    %3282 = vmatprep.subr.mxu0 0.0
    %v3283 = vand.u32 %v3041, 4294901760
    %v3284 = vsub.f32 %v3041, %v3283
    %v3285 = vand.u32 %v3284, 4294901760
    %v3286 = vsub.f32 %v3284, %v3285
    %v3287 = vand.u32 %v3286, 4294901760
    %3288 = vmatpush1.msra.mxu0 %v3287
    %3289 = vmatprep.subr.mxu0 0.0
    %v3290 = vand.u32 %v3040, 4294901760
    %v3291 = vsub.f32 %v3040, %v3290
    %v3292 = vand.u32 %v3291, 4294901760
    %v3293 = vsub.f32 %v3291, %v3292
    %v3294 = vand.u32 %v3293, 4294901760
    %3295 = vmatpush1.msra.mxu0 %v3294
    %3296 = vmatprep.subr.mxu0 0.0
    %v3297 = vand.u32 %v3039, 4294901760
    %v3298 = vsub.f32 %v3039, %v3297
    %v3299 = vand.u32 %v3298, 4294901760
    %v3300 = vsub.f32 %v3298, %v3299
    %v3301 = vand.u32 %v3300, 4294901760
    %3302 = vmatpush1.msra.mxu0 %v3301
    %3303 = vmatprep.subr.mxu0 0.0
    %v3304 = vand.u32 %v3038, 4294901760
    %v3305 = vsub.f32 %v3038, %v3304
    %v3306 = vand.u32 %v3305, 4294901760
    %v3307 = vsub.f32 %v3305, %v3306
    %v3308 = vand.u32 %v3307, 4294901760
    %3309 = vmatpush1.msra.mxu0 %v3308
    %3310 = vmatprep.subr.mxu0 0.0
    %v3311 = vand.u32 %v3037, 4294901760
    %v3312 = vsub.f32 %v3037, %v3311
    %v3313 = vand.u32 %v3312, 4294901760
    %v3314 = vsub.f32 %v3312, %v3313
    %v3315 = vand.u32 %v3314, 4294901760
    %3316 = vmatpush1.msra.mxu0 %v3315
    %3317 = vmatprep.subr.mxu0 0.0
    %v3318 = vand.u32 %v3036, 4294901760
    %v3319 = vsub.f32 %v3036, %v3318
    %v3320 = vand.u32 %v3319, 4294901760
    %v3321 = vsub.f32 %v3319, %v3320
    %v3322 = vand.u32 %v3321, 4294901760
    %3323 = vmatpush1.msra.mxu0 %v3322
    %3324 = vmatprep.subr.mxu0 0.0
    %v3325 = vand.u32 %v3035, 4294901760
    %v3326 = vsub.f32 %v3035, %v3325
    %v3327 = vand.u32 %v3326, 4294901760
    %v3328 = vsub.f32 %v3326, %v3327
    %v3329 = vand.u32 %v3328, 4294901760
    %3330 = vmatpush1.msra.mxu0 %v3329
    %3331 = vmatprep.subr.mxu0 0.0
    %v3332 = vand.u32 %v3034, 4294901760
    %v3333 = vsub.f32 %v3034, %v3332
    %v3334 = vand.u32 %v3333, 4294901760
    %v3335 = vsub.f32 %v3333, %v3334
    %v3336 = vand.u32 %v3335, 4294901760
    %3337 = vmatpush1.msra.mxu0 %v3336
    %3338 = vmatprep.subr.mxu0 0.0
    %v3339 = vand.u32 %v3033, 4294901760
    %v3340 = vsub.f32 %v3033, %v3339
    %v3341 = vand.u32 %v3340, 4294901760
    %v3342 = vsub.f32 %v3340, %v3341
    %v3343 = vand.u32 %v3342, 4294901760
    %3344 = vmatpush1.msra.mxu0 %v3343
    %3345 = vmatprep.subr.mxu0 0.0
    %v3346 = vand.u32 %v3032, 4294901760
    %v3347 = vsub.f32 %v3032, %v3346
    %v3348 = vand.u32 %v3347, 4294901760
    %v3349 = vsub.f32 %v3347, %v3348
    %v3350 = vand.u32 %v3349, 4294901760
    %3351 = vmatpush1.msra.mxu0 %v3350
    %3352 = vmatprep.subr.mxu0 0.0
    %v3353 = vand.u32 %v3063, 4294901760
    %v3354 = vsub.f32 %v3063, %v3353
    %v3355 = vand.u32 %v3354, 4294901760
    %v3356 = vsub.f32 %v3354, %v3355
    %v3357 = vand.u32 %v3356, 4294901760
    %3358 = vmatpush2.msra.mxu0 %v3357
    %3359 = vmatprep.subr.mxu0 0.0
    %v3360 = vand.u32 %v3062, 4294901760
    %v3361 = vsub.f32 %v3062, %v3360
    %v3362 = vand.u32 %v3361, 4294901760
    %v3363 = vsub.f32 %v3361, %v3362
    %v3364 = vand.u32 %v3363, 4294901760
    %3365 = vmatpush2.msra.mxu0 %v3364
    %3366 = vmatprep.subr.mxu0 0.0
    %v3367 = vand.u32 %v3061, 4294901760
    %v3368 = vsub.f32 %v3061, %v3367
    %v3369 = vand.u32 %v3368, 4294901760
    %v3370 = vsub.f32 %v3368, %v3369
    %v3371 = vand.u32 %v3370, 4294901760
    %3372 = vmatpush2.msra.mxu0 %v3371
    %3373 = vmatprep.subr.mxu0 0.0
    %v3374 = vand.u32 %v3060, 4294901760
    %v3375 = vsub.f32 %v3060, %v3374
    %v3376 = vand.u32 %v3375, 4294901760
    %v3377 = vsub.f32 %v3375, %v3376
    %v3378 = vand.u32 %v3377, 4294901760
    %3379 = vmatpush2.msra.mxu0 %v3378
    %3380 = vmatprep.subr.mxu0 0.0
    %v3381 = vand.u32 %v3059, 4294901760
    %v3382 = vsub.f32 %v3059, %v3381
    %v3383 = vand.u32 %v3382, 4294901760
    %v3384 = vsub.f32 %v3382, %v3383
    %v3385 = vand.u32 %v3384, 4294901760
    %3386 = vmatpush2.msra.mxu0 %v3385
    %3387 = vmatprep.subr.mxu0 0.0
    %v3388 = vand.u32 %v3058, 4294901760
    %v3389 = vsub.f32 %v3058, %v3388
    %v3390 = vand.u32 %v3389, 4294901760
    %v3391 = vsub.f32 %v3389, %v3390
    %v3392 = vand.u32 %v3391, 4294901760
    %3393 = vmatpush2.msra.mxu0 %v3392
    %3394 = vmatprep.subr.mxu0 0.0
    %v3395 = vand.u32 %v3057, 4294901760
    %v3396 = vsub.f32 %v3057, %v3395
    %v3397 = vand.u32 %v3396, 4294901760
    %v3398 = vsub.f32 %v3396, %v3397
    %v3399 = vand.u32 %v3398, 4294901760
    %3400 = vmatpush2.msra.mxu0 %v3399
    %3401 = vmatprep.subr.mxu0 0.0
    %v3402 = vand.u32 %v3056, 4294901760
    %v3403 = vsub.f32 %v3056, %v3402
    %v3404 = vand.u32 %v3403, 4294901760
    %v3405 = vsub.f32 %v3403, %v3404
    %v3406 = vand.u32 %v3405, 4294901760
    %3407 = vmatpush2.msra.mxu0 %v3406
    %3408 = vmatprep.subr.mxu0 0.0
    %v3409 = vand.u32 %v3055, 4294901760
    %v3410 = vsub.f32 %v3055, %v3409
    %v3411 = vand.u32 %v3410, 4294901760
    %v3412 = vsub.f32 %v3410, %v3411
    %v3413 = vand.u32 %v3412, 4294901760
    %3414 = vmatpush2.msra.mxu0 %v3413
    %3415 = vmatprep.subr.mxu0 0.0
    %v3416 = vand.u32 %v3054, 4294901760
    %v3417 = vsub.f32 %v3054, %v3416
    %v3418 = vand.u32 %v3417, 4294901760
    %v3419 = vsub.f32 %v3417, %v3418
    %v3420 = vand.u32 %v3419, 4294901760
    %3421 = vmatpush2.msra.mxu0 %v3420
    %3422 = vmatprep.subr.mxu0 0.0
    %v3423 = vand.u32 %v3053, 4294901760
    %v3424 = vsub.f32 %v3053, %v3423
    %v3425 = vand.u32 %v3424, 4294901760
    %v3426 = vsub.f32 %v3424, %v3425
    %v3427 = vand.u32 %v3426, 4294901760
    %3428 = vmatpush2.msra.mxu0 %v3427
    %3429 = vmatprep.subr.mxu0 0.0
    %v3430 = vand.u32 %v3052, 4294901760
    %v3431 = vsub.f32 %v3052, %v3430
    %v3432 = vand.u32 %v3431, 4294901760
    %v3433 = vsub.f32 %v3431, %v3432
    %v3434 = vand.u32 %v3433, 4294901760
    %3435 = vmatpush2.msra.mxu0 %v3434
    %3436 = vmatprep.subr.mxu0 0.0
    %v3437 = vand.u32 %v3051, 4294901760
    %v3438 = vsub.f32 %v3051, %v3437
    %v3439 = vand.u32 %v3438, 4294901760
    %v3440 = vsub.f32 %v3438, %v3439
    %v3441 = vand.u32 %v3440, 4294901760
    %3442 = vmatpush2.msra.mxu0 %v3441
    %3443 = vmatprep.subr.mxu0 0.0
    %v3444 = vand.u32 %v3050, 4294901760
    %v3445 = vsub.f32 %v3050, %v3444
    %v3446 = vand.u32 %v3445, 4294901760
    %v3447 = vsub.f32 %v3445, %v3446
    %v3448 = vand.u32 %v3447, 4294901760
    %3449 = vmatpush2.msra.mxu0 %v3448
    %3450 = vmatprep.subr.mxu0 0.0
    %v3451 = vand.u32 %v3049, 4294901760
    %v3452 = vsub.f32 %v3049, %v3451
    %v3453 = vand.u32 %v3452, 4294901760
    %v3454 = vsub.f32 %v3452, %v3453
    %v3455 = vand.u32 %v3454, 4294901760
    %3456 = vmatpush2.msra.mxu0 %v3455
    %3457 = vmatprep.subr.mxu0 0.0
    %v3458 = vand.u32 %v3048, 4294901760
    %v3459 = vsub.f32 %v3048, %v3458
    %v3460 = vand.u32 %v3459, 4294901760
    %v3461 = vsub.f32 %v3459, %v3460
    %v3462 = vand.u32 %v3461, 4294901760
    %3463 = vmatpush2.msra.mxu0 %v3462
    %v3464 = vand.u32 %v2004, 4294901760
    %3465 = vmatprep.mubr.f32.mxu0 %v3464
    %v3466 = vand.u32 %v2002, 4294901760
    %3467 = vmatmul.mubr.f32.gmra.mxu0 %v3466
    %v3468 = vpop.f32.mrf.mxu0
    %v3469 = vadd.f32 %v3237, %v3468
    %v3470 = vpop.f32.mrf.mxu0
    %3471 = vdwg.mxu0
    %3472 = vmatprep.subr.mxu0 0.0
    %v3473 = vand.u32 %v3047, 4294901760
    %v3474 = vsub.f32 %v3047, %v3473
    %3475 = vmatpush1.msra.mxu0 %v3474
    %3476 = vmatprep.subr.mxu0 0.0
    %v3477 = vand.u32 %v3046, 4294901760
    %v3478 = vsub.f32 %v3046, %v3477
    %3479 = vmatpush1.msra.mxu0 %v3478
    %3480 = vmatprep.subr.mxu0 0.0
    %v3481 = vand.u32 %v3045, 4294901760
    %v3482 = vsub.f32 %v3045, %v3481
    %3483 = vmatpush1.msra.mxu0 %v3482
    %3484 = vmatprep.subr.mxu0 0.0
    %v3485 = vand.u32 %v3044, 4294901760
    %v3486 = vsub.f32 %v3044, %v3485
    %3487 = vmatpush1.msra.mxu0 %v3486
    %3488 = vmatprep.subr.mxu0 0.0
    %v3489 = vand.u32 %v3043, 4294901760
    %v3490 = vsub.f32 %v3043, %v3489
    %3491 = vmatpush1.msra.mxu0 %v3490
    %3492 = vmatprep.subr.mxu0 0.0
    %v3493 = vand.u32 %v3042, 4294901760
    %v3494 = vsub.f32 %v3042, %v3493
    %3495 = vmatpush1.msra.mxu0 %v3494
    %3496 = vmatprep.subr.mxu0 0.0
    %v3497 = vand.u32 %v3041, 4294901760
    %v3498 = vsub.f32 %v3041, %v3497
    %3499 = vmatpush1.msra.mxu0 %v3498
    %3500 = vmatprep.subr.mxu0 0.0
    %v3501 = vand.u32 %v3040, 4294901760
    %v3502 = vsub.f32 %v3040, %v3501
    %3503 = vmatpush1.msra.mxu0 %v3502
    %3504 = vmatprep.subr.mxu0 0.0
    %v3505 = vand.u32 %v3039, 4294901760
    %v3506 = vsub.f32 %v3039, %v3505
    %3507 = vmatpush1.msra.mxu0 %v3506
    %3508 = vmatprep.subr.mxu0 0.0
    %v3509 = vand.u32 %v3038, 4294901760
    %v3510 = vsub.f32 %v3038, %v3509
    %3511 = vmatpush1.msra.mxu0 %v3510
    %3512 = vmatprep.subr.mxu0 0.0
    %v3513 = vand.u32 %v3037, 4294901760
    %v3514 = vsub.f32 %v3037, %v3513
    %3515 = vmatpush1.msra.mxu0 %v3514
    %3516 = vmatprep.subr.mxu0 0.0
    %v3517 = vand.u32 %v3036, 4294901760
    %v3518 = vsub.f32 %v3036, %v3517
    %3519 = vmatpush1.msra.mxu0 %v3518
    %3520 = vmatprep.subr.mxu0 0.0
    %v3521 = vand.u32 %v3035, 4294901760
    %v3522 = vsub.f32 %v3035, %v3521
    %3523 = vmatpush1.msra.mxu0 %v3522
    %3524 = vmatprep.subr.mxu0 0.0
    %v3525 = vand.u32 %v3034, 4294901760
    %v3526 = vsub.f32 %v3034, %v3525
    %3527 = vmatpush1.msra.mxu0 %v3526
    %3528 = vmatprep.subr.mxu0 0.0
    %v3529 = vand.u32 %v3033, 4294901760
    %v3530 = vsub.f32 %v3033, %v3529
    %3531 = vmatpush1.msra.mxu0 %v3530
    %3532 = vmatprep.subr.mxu0 0.0
    %v3533 = vand.u32 %v3032, 4294901760
    %v3534 = vsub.f32 %v3032, %v3533
    %3535 = vmatpush1.msra.mxu0 %v3534
    %3536 = vmatprep.subr.mxu0 0.0
    %v3537 = vand.u32 %v3063, 4294901760
    %v3538 = vsub.f32 %v3063, %v3537
    %3539 = vmatpush2.msra.mxu0 %v3538
    %3540 = vmatprep.subr.mxu0 0.0
    %v3541 = vand.u32 %v3062, 4294901760
    %v3542 = vsub.f32 %v3062, %v3541
    %3543 = vmatpush2.msra.mxu0 %v3542
    %3544 = vmatprep.subr.mxu0 0.0
    %v3545 = vand.u32 %v3061, 4294901760
    %v3546 = vsub.f32 %v3061, %v3545
    %3547 = vmatpush2.msra.mxu0 %v3546
    %3548 = vmatprep.subr.mxu0 0.0
    %v3549 = vand.u32 %v3060, 4294901760
    %v3550 = vsub.f32 %v3060, %v3549
    %3551 = vmatpush2.msra.mxu0 %v3550
    %3552 = vmatprep.subr.mxu0 0.0
    %v3553 = vand.u32 %v3059, 4294901760
    %v3554 = vsub.f32 %v3059, %v3553
    %3555 = vmatpush2.msra.mxu0 %v3554
    %3556 = vmatprep.subr.mxu0 0.0
    %v3557 = vand.u32 %v3058, 4294901760
    %v3558 = vsub.f32 %v3058, %v3557
    %3559 = vmatpush2.msra.mxu0 %v3558
    %3560 = vmatprep.subr.mxu0 0.0
    %v3561 = vand.u32 %v3057, 4294901760
    %v3562 = vsub.f32 %v3057, %v3561
    %3563 = vmatpush2.msra.mxu0 %v3562
    %3564 = vmatprep.subr.mxu0 0.0
    %v3565 = vand.u32 %v3056, 4294901760
    %v3566 = vsub.f32 %v3056, %v3565
    %3567 = vmatpush2.msra.mxu0 %v3566
    %3568 = vmatprep.subr.mxu0 0.0
    %v3569 = vand.u32 %v3055, 4294901760
    %v3570 = vsub.f32 %v3055, %v3569
    %3571 = vmatpush2.msra.mxu0 %v3570
    %3572 = vmatprep.subr.mxu0 0.0
    %v3573 = vand.u32 %v3054, 4294901760
    %v3574 = vsub.f32 %v3054, %v3573
    %3575 = vmatpush2.msra.mxu0 %v3574
    %3576 = vmatprep.subr.mxu0 0.0
    %v3577 = vand.u32 %v3053, 4294901760
    %v3578 = vsub.f32 %v3053, %v3577
    %3579 = vmatpush2.msra.mxu0 %v3578
    %3580 = vmatprep.subr.mxu0 0.0
    %v3581 = vand.u32 %v3052, 4294901760
    %v3582 = vsub.f32 %v3052, %v3581
    %3583 = vmatpush2.msra.mxu0 %v3582
    %3584 = vmatprep.subr.mxu0 0.0
    %v3585 = vand.u32 %v3051, 4294901760
    %v3586 = vsub.f32 %v3051, %v3585
    %3587 = vmatpush2.msra.mxu0 %v3586
    %3588 = vmatprep.subr.mxu0 0.0
    %v3589 = vand.u32 %v3050, 4294901760
    %v3590 = vsub.f32 %v3050, %v3589
    %3591 = vmatpush2.msra.mxu0 %v3590
    %3592 = vmatprep.subr.mxu0 0.0
    %v3593 = vand.u32 %v3049, 4294901760
    %v3594 = vsub.f32 %v3049, %v3593
    %3595 = vmatpush2.msra.mxu0 %v3594
    %3596 = vmatprep.subr.mxu0 0.0
    %v3597 = vand.u32 %v3048, 4294901760
    %v3598 = vsub.f32 %v3048, %v3597
    %3599 = vmatpush2.msra.mxu0 %v3598
    %v3600 = vand.u32 %v2004, 4294901760
    %v3601 = vsub.f32 %v2004, %v3600
    %3602 = vmatprep.mubr.f32.mxu0 %v3601
    %v3603 = vand.u32 %v2002, 4294901760
    %v3604 = vsub.f32 %v2002, %v3603
    %3605 = vmatmul.mubr.f32.gmra.mxu0 %v3604
    %v3606 = vpop.f32.mrf.mxu0
    %v3607 = vadd.f32 %v3469, %v3606
    %v3608 = vpop.f32.mrf.mxu0
    %3609 = vdwg.mxu0
    %3610 = vmatprep.subr.mxu0 0.0
    %v3611 = vand.u32 %v3047, 4294901760
    %3612 = vmatpush1.msra.mxu0 %v3611
    %3613 = vmatprep.subr.mxu0 0.0
    %v3614 = vand.u32 %v3046, 4294901760
    %3615 = vmatpush1.msra.mxu0 %v3614
    %3616 = vmatprep.subr.mxu0 0.0
    %v3617 = vand.u32 %v3045, 4294901760
    %3618 = vmatpush1.msra.mxu0 %v3617
    %3619 = vmatprep.subr.mxu0 0.0
    %v3620 = vand.u32 %v3044, 4294901760
    %3621 = vmatpush1.msra.mxu0 %v3620
    %3622 = vmatprep.subr.mxu0 0.0
    %v3623 = vand.u32 %v3043, 4294901760
    %3624 = vmatpush1.msra.mxu0 %v3623
    %3625 = vmatprep.subr.mxu0 0.0
    %v3626 = vand.u32 %v3042, 4294901760
    %3627 = vmatpush1.msra.mxu0 %v3626
    %3628 = vmatprep.subr.mxu0 0.0
    %v3629 = vand.u32 %v3041, 4294901760
    %3630 = vmatpush1.msra.mxu0 %v3629
    %3631 = vmatprep.subr.mxu0 0.0
    %v3632 = vand.u32 %v3040, 4294901760
    %3633 = vmatpush1.msra.mxu0 %v3632
    %3634 = vmatprep.subr.mxu0 0.0
    %v3635 = vand.u32 %v3039, 4294901760
    %3636 = vmatpush1.msra.mxu0 %v3635
    %3637 = vmatprep.subr.mxu0 0.0
    %v3638 = vand.u32 %v3038, 4294901760
    %3639 = vmatpush1.msra.mxu0 %v3638
    %3640 = vmatprep.subr.mxu0 0.0
    %v3641 = vand.u32 %v3037, 4294901760
    %3642 = vmatpush1.msra.mxu0 %v3641
    %3643 = vmatprep.subr.mxu0 0.0
    %v3644 = vand.u32 %v3036, 4294901760
    %3645 = vmatpush1.msra.mxu0 %v3644
    %3646 = vmatprep.subr.mxu0 0.0
    %v3647 = vand.u32 %v3035, 4294901760
    %3648 = vmatpush1.msra.mxu0 %v3647
    %3649 = vmatprep.subr.mxu0 0.0
    %v3650 = vand.u32 %v3034, 4294901760
    %3651 = vmatpush1.msra.mxu0 %v3650
    %3652 = vmatprep.subr.mxu0 0.0
    %v3653 = vand.u32 %v3033, 4294901760
    %3654 = vmatpush1.msra.mxu0 %v3653
    %3655 = vmatprep.subr.mxu0 0.0
    %v3656 = vand.u32 %v3032, 4294901760
    %3657 = vmatpush1.msra.mxu0 %v3656
    %3658 = vmatprep.subr.mxu0 0.0
    %v3659 = vand.u32 %v3063, 4294901760
    %3660 = vmatpush2.msra.mxu0 %v3659
    %3661 = vmatprep.subr.mxu0 0.0
    %v3662 = vand.u32 %v3062, 4294901760
    %3663 = vmatpush2.msra.mxu0 %v3662
    %3664 = vmatprep.subr.mxu0 0.0
    %v3665 = vand.u32 %v3061, 4294901760
    %3666 = vmatpush2.msra.mxu0 %v3665
    %3667 = vmatprep.subr.mxu0 0.0
    %v3668 = vand.u32 %v3060, 4294901760
    %3669 = vmatpush2.msra.mxu0 %v3668
    %3670 = vmatprep.subr.mxu0 0.0
    %v3671 = vand.u32 %v3059, 4294901760
    %3672 = vmatpush2.msra.mxu0 %v3671
    %3673 = vmatprep.subr.mxu0 0.0
    %v3674 = vand.u32 %v3058, 4294901760
    %3675 = vmatpush2.msra.mxu0 %v3674
    %3676 = vmatprep.subr.mxu0 0.0
    %v3677 = vand.u32 %v3057, 4294901760
    %3678 = vmatpush2.msra.mxu0 %v3677
    %3679 = vmatprep.subr.mxu0 0.0
    %v3680 = vand.u32 %v3056, 4294901760
    %3681 = vmatpush2.msra.mxu0 %v3680
    %3682 = vmatprep.subr.mxu0 0.0
    %v3683 = vand.u32 %v3055, 4294901760
    %3684 = vmatpush2.msra.mxu0 %v3683
    %3685 = vmatprep.subr.mxu0 0.0
    %v3686 = vand.u32 %v3054, 4294901760
    %3687 = vmatpush2.msra.mxu0 %v3686
    %3688 = vmatprep.subr.mxu0 0.0
    %v3689 = vand.u32 %v3053, 4294901760
    %3690 = vmatpush2.msra.mxu0 %v3689
    %3691 = vmatprep.subr.mxu0 0.0
    %v3692 = vand.u32 %v3052, 4294901760
    %3693 = vmatpush2.msra.mxu0 %v3692
    %3694 = vmatprep.subr.mxu0 0.0
    %v3695 = vand.u32 %v3051, 4294901760
    %3696 = vmatpush2.msra.mxu0 %v3695
    %3697 = vmatprep.subr.mxu0 0.0
    %v3698 = vand.u32 %v3050, 4294901760
    %3699 = vmatpush2.msra.mxu0 %v3698
    %3700 = vmatprep.subr.mxu0 0.0
    %v3701 = vand.u32 %v3049, 4294901760
    %3702 = vmatpush2.msra.mxu0 %v3701
    %3703 = vmatprep.subr.mxu0 0.0
    %v3704 = vand.u32 %v3048, 4294901760
    %3705 = vmatpush2.msra.mxu0 %v3704
    %v3706 = vand.u32 %v2004, 4294901760
    %v3707 = vsub.f32 %v2004, %v3706
    %v3708 = vand.u32 %v3707, 4294901760
    %3709 = vmatprep.mubr.f32.mxu0 %v3708
    %v3710 = vand.u32 %v2002, 4294901760
    %v3711 = vsub.f32 %v2002, %v3710
    %v3712 = vand.u32 %v3711, 4294901760
    %3713 = vmatmul.mubr.f32.gmra.mxu0 %v3712
    %v3714 = vpop.f32.mrf.mxu0
    %v3715 = vadd.f32 %v3607, %v3714
    %v3716 = vpop.f32.mrf.mxu0
    %3717 = vdwg.mxu0
    %3718 = vmatprep.subr.mxu0 0.0
    %v3719 = vand.u32 %v3047, 4294901760
    %v3720 = vsub.f32 %v3047, %v3719
    %v3721 = vand.u32 %v3720, 4294901760
    %3722 = vmatpush1.msra.mxu0 %v3721
    %3723 = vmatprep.subr.mxu0 0.0
    %v3724 = vand.u32 %v3046, 4294901760
    %v3725 = vsub.f32 %v3046, %v3724
    %v3726 = vand.u32 %v3725, 4294901760
    %3727 = vmatpush1.msra.mxu0 %v3726
    %3728 = vmatprep.subr.mxu0 0.0
    %v3729 = vand.u32 %v3045, 4294901760
    %v3730 = vsub.f32 %v3045, %v3729
    %v3731 = vand.u32 %v3730, 4294901760
    %3732 = vmatpush1.msra.mxu0 %v3731
    %3733 = vmatprep.subr.mxu0 0.0
    %v3734 = vand.u32 %v3044, 4294901760
    %v3735 = vsub.f32 %v3044, %v3734
    %v3736 = vand.u32 %v3735, 4294901760
    %3737 = vmatpush1.msra.mxu0 %v3736
    %3738 = vmatprep.subr.mxu0 0.0
    %v3739 = vand.u32 %v3043, 4294901760
    %v3740 = vsub.f32 %v3043, %v3739
    %v3741 = vand.u32 %v3740, 4294901760
    %3742 = vmatpush1.msra.mxu0 %v3741
    %3743 = vmatprep.subr.mxu0 0.0
    %v3744 = vand.u32 %v3042, 4294901760
    %v3745 = vsub.f32 %v3042, %v3744
    %v3746 = vand.u32 %v3745, 4294901760
    %3747 = vmatpush1.msra.mxu0 %v3746
    %3748 = vmatprep.subr.mxu0 0.0
    %v3749 = vand.u32 %v3041, 4294901760
    %v3750 = vsub.f32 %v3041, %v3749
    %v3751 = vand.u32 %v3750, 4294901760
    %3752 = vmatpush1.msra.mxu0 %v3751
    %3753 = vmatprep.subr.mxu0 0.0
    %v3754 = vand.u32 %v3040, 4294901760
    %v3755 = vsub.f32 %v3040, %v3754
    %v3756 = vand.u32 %v3755, 4294901760
    %3757 = vmatpush1.msra.mxu0 %v3756
    %3758 = vmatprep.subr.mxu0 0.0
    %v3759 = vand.u32 %v3039, 4294901760
    %v3760 = vsub.f32 %v3039, %v3759
    %v3761 = vand.u32 %v3760, 4294901760
    %3762 = vmatpush1.msra.mxu0 %v3761
    %3763 = vmatprep.subr.mxu0 0.0
    %v3764 = vand.u32 %v3038, 4294901760
    %v3765 = vsub.f32 %v3038, %v3764
    %v3766 = vand.u32 %v3765, 4294901760
    %3767 = vmatpush1.msra.mxu0 %v3766
    %3768 = vmatprep.subr.mxu0 0.0
    %v3769 = vand.u32 %v3037, 4294901760
    %v3770 = vsub.f32 %v3037, %v3769
    %v3771 = vand.u32 %v3770, 4294901760
    %3772 = vmatpush1.msra.mxu0 %v3771
    %3773 = vmatprep.subr.mxu0 0.0
    %v3774 = vand.u32 %v3036, 4294901760
    %v3775 = vsub.f32 %v3036, %v3774
    %v3776 = vand.u32 %v3775, 4294901760
    %3777 = vmatpush1.msra.mxu0 %v3776
    %3778 = vmatprep.subr.mxu0 0.0
    %v3779 = vand.u32 %v3035, 4294901760
    %v3780 = vsub.f32 %v3035, %v3779
    %v3781 = vand.u32 %v3780, 4294901760
    %3782 = vmatpush1.msra.mxu0 %v3781
    %3783 = vmatprep.subr.mxu0 0.0
    %v3784 = vand.u32 %v3034, 4294901760
    %v3785 = vsub.f32 %v3034, %v3784
    %v3786 = vand.u32 %v3785, 4294901760
    %3787 = vmatpush1.msra.mxu0 %v3786
    %3788 = vmatprep.subr.mxu0 0.0
    %v3789 = vand.u32 %v3033, 4294901760
    %v3790 = vsub.f32 %v3033, %v3789
    %v3791 = vand.u32 %v3790, 4294901760
    %3792 = vmatpush1.msra.mxu0 %v3791
    %3793 = vmatprep.subr.mxu0 0.0
    %v3794 = vand.u32 %v3032, 4294901760
    %v3795 = vsub.f32 %v3032, %v3794
    %v3796 = vand.u32 %v3795, 4294901760
    %3797 = vmatpush1.msra.mxu0 %v3796
    %3798 = vmatprep.subr.mxu0 0.0
    %v3799 = vand.u32 %v3063, 4294901760
    %v3800 = vsub.f32 %v3063, %v3799
    %v3801 = vand.u32 %v3800, 4294901760
    %3802 = vmatpush2.msra.mxu0 %v3801
    %3803 = vmatprep.subr.mxu0 0.0
    %v3804 = vand.u32 %v3062, 4294901760
    %v3805 = vsub.f32 %v3062, %v3804
    %v3806 = vand.u32 %v3805, 4294901760
    %3807 = vmatpush2.msra.mxu0 %v3806
    %3808 = vmatprep.subr.mxu0 0.0
    %v3809 = vand.u32 %v3061, 4294901760
    %v3810 = vsub.f32 %v3061, %v3809
    %v3811 = vand.u32 %v3810, 4294901760
    %3812 = vmatpush2.msra.mxu0 %v3811
    %3813 = vmatprep.subr.mxu0 0.0
    %v3814 = vand.u32 %v3060, 4294901760
    %v3815 = vsub.f32 %v3060, %v3814
    %v3816 = vand.u32 %v3815, 4294901760
    %3817 = vmatpush2.msra.mxu0 %v3816
    %3818 = vmatprep.subr.mxu0 0.0
    %v3819 = vand.u32 %v3059, 4294901760
    %v3820 = vsub.f32 %v3059, %v3819
    %v3821 = vand.u32 %v3820, 4294901760
    %3822 = vmatpush2.msra.mxu0 %v3821
    %3823 = vmatprep.subr.mxu0 0.0
    %v3824 = vand.u32 %v3058, 4294901760
    %v3825 = vsub.f32 %v3058, %v3824
    %v3826 = vand.u32 %v3825, 4294901760
    %3827 = vmatpush2.msra.mxu0 %v3826
    %3828 = vmatprep.subr.mxu0 0.0
    %v3829 = vand.u32 %v3057, 4294901760
    %v3830 = vsub.f32 %v3057, %v3829
    %v3831 = vand.u32 %v3830, 4294901760
    %3832 = vmatpush2.msra.mxu0 %v3831
    %3833 = vmatprep.subr.mxu0 0.0
    %v3834 = vand.u32 %v3056, 4294901760
    %v3835 = vsub.f32 %v3056, %v3834
    %v3836 = vand.u32 %v3835, 4294901760
    %3837 = vmatpush2.msra.mxu0 %v3836
    %3838 = vmatprep.subr.mxu0 0.0
    %v3839 = vand.u32 %v3055, 4294901760
    %v3840 = vsub.f32 %v3055, %v3839
    %v3841 = vand.u32 %v3840, 4294901760
    %3842 = vmatpush2.msra.mxu0 %v3841
    %3843 = vmatprep.subr.mxu0 0.0
    %v3844 = vand.u32 %v3054, 4294901760
    %v3845 = vsub.f32 %v3054, %v3844
    %v3846 = vand.u32 %v3845, 4294901760
    %3847 = vmatpush2.msra.mxu0 %v3846
    %3848 = vmatprep.subr.mxu0 0.0
    %v3849 = vand.u32 %v3053, 4294901760
    %v3850 = vsub.f32 %v3053, %v3849
    %v3851 = vand.u32 %v3850, 4294901760
    %3852 = vmatpush2.msra.mxu0 %v3851
    %3853 = vmatprep.subr.mxu0 0.0
    %v3854 = vand.u32 %v3052, 4294901760
    %v3855 = vsub.f32 %v3052, %v3854
    %v3856 = vand.u32 %v3855, 4294901760
    %3857 = vmatpush2.msra.mxu0 %v3856
    %3858 = vmatprep.subr.mxu0 0.0
    %v3859 = vand.u32 %v3051, 4294901760
    %v3860 = vsub.f32 %v3051, %v3859
    %v3861 = vand.u32 %v3860, 4294901760
    %3862 = vmatpush2.msra.mxu0 %v3861
    %3863 = vmatprep.subr.mxu0 0.0
    %v3864 = vand.u32 %v3050, 4294901760
    %v3865 = vsub.f32 %v3050, %v3864
    %v3866 = vand.u32 %v3865, 4294901760
    %3867 = vmatpush2.msra.mxu0 %v3866
    %3868 = vmatprep.subr.mxu0 0.0
    %v3869 = vand.u32 %v3049, 4294901760
    %v3870 = vsub.f32 %v3049, %v3869
    %v3871 = vand.u32 %v3870, 4294901760
    %3872 = vmatpush2.msra.mxu0 %v3871
    %3873 = vmatprep.subr.mxu0 0.0
    %v3874 = vand.u32 %v3048, 4294901760
    %v3875 = vsub.f32 %v3048, %v3874
    %v3876 = vand.u32 %v3875, 4294901760
    %3877 = vmatpush2.msra.mxu0 %v3876
    %v3878 = vand.u32 %v2004, 4294901760
    %3879 = vmatprep.mubr.f32.mxu0 %v3878
    %v3880 = vand.u32 %v2002, 4294901760
    %3881 = vmatmul.mubr.f32.gmra.mxu0 %v3880
    %v3882 = vpop.f32.mrf.mxu0
    %v3883 = vadd.f32 %v3715, %v3882
    %v3884 = vpop.f32.mrf.mxu0
    %3885 = vdwg.mxu0
    %3886 = vmatprep.subr.mxu0 0.0
    %v3887 = vand.u32 %v3047, 4294901760
    %3888 = vmatpush1.msra.mxu0 %v3887
    %3889 = vmatprep.subr.mxu0 0.0
    %v3890 = vand.u32 %v3046, 4294901760
    %3891 = vmatpush1.msra.mxu0 %v3890
    %3892 = vmatprep.subr.mxu0 0.0
    %v3893 = vand.u32 %v3045, 4294901760
    %3894 = vmatpush1.msra.mxu0 %v3893
    %3895 = vmatprep.subr.mxu0 0.0
    %v3896 = vand.u32 %v3044, 4294901760
    %3897 = vmatpush1.msra.mxu0 %v3896
    %3898 = vmatprep.subr.mxu0 0.0
    %v3899 = vand.u32 %v3043, 4294901760
    %3900 = vmatpush1.msra.mxu0 %v3899
    %3901 = vmatprep.subr.mxu0 0.0
    %v3902 = vand.u32 %v3042, 4294901760
    %3903 = vmatpush1.msra.mxu0 %v3902
    %3904 = vmatprep.subr.mxu0 0.0
    %v3905 = vand.u32 %v3041, 4294901760
    %3906 = vmatpush1.msra.mxu0 %v3905
    %3907 = vmatprep.subr.mxu0 0.0
    %v3908 = vand.u32 %v3040, 4294901760
    %3909 = vmatpush1.msra.mxu0 %v3908
    %3910 = vmatprep.subr.mxu0 0.0
    %v3911 = vand.u32 %v3039, 4294901760
    %3912 = vmatpush1.msra.mxu0 %v3911
    %3913 = vmatprep.subr.mxu0 0.0
    %v3914 = vand.u32 %v3038, 4294901760
    %3915 = vmatpush1.msra.mxu0 %v3914
    %3916 = vmatprep.subr.mxu0 0.0
    %v3917 = vand.u32 %v3037, 4294901760
    %3918 = vmatpush1.msra.mxu0 %v3917
    %3919 = vmatprep.subr.mxu0 0.0
    %v3920 = vand.u32 %v3036, 4294901760
    %3921 = vmatpush1.msra.mxu0 %v3920
    %3922 = vmatprep.subr.mxu0 0.0
    %v3923 = vand.u32 %v3035, 4294901760
    %3924 = vmatpush1.msra.mxu0 %v3923
    %3925 = vmatprep.subr.mxu0 0.0
    %v3926 = vand.u32 %v3034, 4294901760
    %3927 = vmatpush1.msra.mxu0 %v3926
    %3928 = vmatprep.subr.mxu0 0.0
    %v3929 = vand.u32 %v3033, 4294901760
    %3930 = vmatpush1.msra.mxu0 %v3929
    %3931 = vmatprep.subr.mxu0 0.0
    %v3932 = vand.u32 %v3032, 4294901760
    %3933 = vmatpush1.msra.mxu0 %v3932
    %3934 = vmatprep.subr.mxu0 0.0
    %v3935 = vand.u32 %v3063, 4294901760
    %3936 = vmatpush2.msra.mxu0 %v3935
    %3937 = vmatprep.subr.mxu0 0.0
    %v3938 = vand.u32 %v3062, 4294901760
    %3939 = vmatpush2.msra.mxu0 %v3938
    %3940 = vmatprep.subr.mxu0 0.0
    %v3941 = vand.u32 %v3061, 4294901760
    %3942 = vmatpush2.msra.mxu0 %v3941
    %3943 = vmatprep.subr.mxu0 0.0
    %v3944 = vand.u32 %v3060, 4294901760
    %3945 = vmatpush2.msra.mxu0 %v3944
    %3946 = vmatprep.subr.mxu0 0.0
    %v3947 = vand.u32 %v3059, 4294901760
    %3948 = vmatpush2.msra.mxu0 %v3947
    %3949 = vmatprep.subr.mxu0 0.0
    %v3950 = vand.u32 %v3058, 4294901760
    %3951 = vmatpush2.msra.mxu0 %v3950
    %3952 = vmatprep.subr.mxu0 0.0
    %v3953 = vand.u32 %v3057, 4294901760
    %3954 = vmatpush2.msra.mxu0 %v3953
    %3955 = vmatprep.subr.mxu0 0.0
    %v3956 = vand.u32 %v3056, 4294901760
    %3957 = vmatpush2.msra.mxu0 %v3956
    %3958 = vmatprep.subr.mxu0 0.0
    %v3959 = vand.u32 %v3055, 4294901760
    %3960 = vmatpush2.msra.mxu0 %v3959
    %3961 = vmatprep.subr.mxu0 0.0
    %v3962 = vand.u32 %v3054, 4294901760
    %3963 = vmatpush2.msra.mxu0 %v3962
    %3964 = vmatprep.subr.mxu0 0.0
    %v3965 = vand.u32 %v3053, 4294901760
    %3966 = vmatpush2.msra.mxu0 %v3965
    %3967 = vmatprep.subr.mxu0 0.0
    %v3968 = vand.u32 %v3052, 4294901760
    %3969 = vmatpush2.msra.mxu0 %v3968
    %3970 = vmatprep.subr.mxu0 0.0
    %v3971 = vand.u32 %v3051, 4294901760
    %3972 = vmatpush2.msra.mxu0 %v3971
    %3973 = vmatprep.subr.mxu0 0.0
    %v3974 = vand.u32 %v3050, 4294901760
    %3975 = vmatpush2.msra.mxu0 %v3974
    %3976 = vmatprep.subr.mxu0 0.0
    %v3977 = vand.u32 %v3049, 4294901760
    %3978 = vmatpush2.msra.mxu0 %v3977
    %3979 = vmatprep.subr.mxu0 0.0
    %v3980 = vand.u32 %v3048, 4294901760
    %3981 = vmatpush2.msra.mxu0 %v3980
    %v3982 = vand.u32 %v2004, 4294901760
    %3983 = vmatprep.mubr.f32.mxu0 %v3982
    %v3984 = vand.u32 %v2002, 4294901760
    %3985 = vmatmul.mubr.f32.gmra.mxu0 %v3984
    %v3986 = vpop.f32.mrf.mxu0
    %v3987 = vadd.f32 %v3883, %v3986
    %v3988 = vpop.f32.mrf.mxu0
    %3989 = vdwg.mxu0
    %3990 = vmatprep.subr.mxu0 0.0
    %v3991 = vand.u32 %v3079, 4294901760
    %3992 = vmatpush1.msra.mxu0 %v3991
    %3993 = vmatprep.subr.mxu0 0.0
    %v3994 = vand.u32 %v3078, 4294901760
    %3995 = vmatpush1.msra.mxu0 %v3994
    %3996 = vmatprep.subr.mxu0 0.0
    %v3997 = vand.u32 %v3077, 4294901760
    %3998 = vmatpush1.msra.mxu0 %v3997
    %3999 = vmatprep.subr.mxu0 0.0
    %v4000 = vand.u32 %v3076, 4294901760
    %4001 = vmatpush1.msra.mxu0 %v4000
    %4002 = vmatprep.subr.mxu0 0.0
    %v4003 = vand.u32 %v3075, 4294901760
    %4004 = vmatpush1.msra.mxu0 %v4003
    %4005 = vmatprep.subr.mxu0 0.0
    %v4006 = vand.u32 %v3074, 4294901760
    %4007 = vmatpush1.msra.mxu0 %v4006
    %4008 = vmatprep.subr.mxu0 0.0
    %v4009 = vand.u32 %v3073, 4294901760
    %4010 = vmatpush1.msra.mxu0 %v4009
    %4011 = vmatprep.subr.mxu0 0.0
    %v4012 = vand.u32 %v3072, 4294901760
    %4013 = vmatpush1.msra.mxu0 %v4012
    %4014 = vmatprep.subr.mxu0 0.0
    %v4015 = vand.u32 %v3071, 4294901760
    %4016 = vmatpush1.msra.mxu0 %v4015
    %4017 = vmatprep.subr.mxu0 0.0
    %v4018 = vand.u32 %v3070, 4294901760
    %4019 = vmatpush1.msra.mxu0 %v4018
    %4020 = vmatprep.subr.mxu0 0.0
    %v4021 = vand.u32 %v3069, 4294901760
    %4022 = vmatpush1.msra.mxu0 %v4021
    %4023 = vmatprep.subr.mxu0 0.0
    %v4024 = vand.u32 %v3068, 4294901760
    %4025 = vmatpush1.msra.mxu0 %v4024
    %4026 = vmatprep.subr.mxu0 0.0
    %v4027 = vand.u32 %v3067, 4294901760
    %4028 = vmatpush1.msra.mxu0 %v4027
    %4029 = vmatprep.subr.mxu0 0.0
    %v4030 = vand.u32 %v3066, 4294901760
    %4031 = vmatpush1.msra.mxu0 %v4030
    %4032 = vmatprep.subr.mxu0 0.0
    %v4033 = vand.u32 %v3065, 4294901760
    %4034 = vmatpush1.msra.mxu0 %v4033
    %4035 = vmatprep.subr.mxu0 0.0
    %v4036 = vand.u32 %v3064, 4294901760
    %4037 = vmatpush1.msra.mxu0 %v4036
    %4038 = vmatprep.subr.mxu0 0.0
    %v4039 = vand.u32 %v3095, 4294901760
    %4040 = vmatpush2.msra.mxu0 %v4039
    %4041 = vmatprep.subr.mxu0 0.0
    %v4042 = vand.u32 %v3094, 4294901760
    %4043 = vmatpush2.msra.mxu0 %v4042
    %4044 = vmatprep.subr.mxu0 0.0
    %v4045 = vand.u32 %v3093, 4294901760
    %4046 = vmatpush2.msra.mxu0 %v4045
    %4047 = vmatprep.subr.mxu0 0.0
    %v4048 = vand.u32 %v3092, 4294901760
    %4049 = vmatpush2.msra.mxu0 %v4048
    %4050 = vmatprep.subr.mxu0 0.0
    %v4051 = vand.u32 %v3091, 4294901760
    %4052 = vmatpush2.msra.mxu0 %v4051
    %4053 = vmatprep.subr.mxu0 0.0
    %v4054 = vand.u32 %v3090, 4294901760
    %4055 = vmatpush2.msra.mxu0 %v4054
    %4056 = vmatprep.subr.mxu0 0.0
    %v4057 = vand.u32 %v3089, 4294901760
    %4058 = vmatpush2.msra.mxu0 %v4057
    %4059 = vmatprep.subr.mxu0 0.0
    %v4060 = vand.u32 %v3088, 4294901760
    %4061 = vmatpush2.msra.mxu0 %v4060
    %4062 = vmatprep.subr.mxu0 0.0
    %v4063 = vand.u32 %v3087, 4294901760
    %4064 = vmatpush2.msra.mxu0 %v4063
    %4065 = vmatprep.subr.mxu0 0.0
    %v4066 = vand.u32 %v3086, 4294901760
    %4067 = vmatpush2.msra.mxu0 %v4066
    %4068 = vmatprep.subr.mxu0 0.0
    %v4069 = vand.u32 %v3085, 4294901760
    %4070 = vmatpush2.msra.mxu0 %v4069
    %4071 = vmatprep.subr.mxu0 0.0
    %v4072 = vand.u32 %v3084, 4294901760
    %4073 = vmatpush2.msra.mxu0 %v4072
    %4074 = vmatprep.subr.mxu0 0.0
    %v4075 = vand.u32 %v3083, 4294901760
    %4076 = vmatpush2.msra.mxu0 %v4075
    %4077 = vmatprep.subr.mxu0 0.0
    %v4078 = vand.u32 %v3082, 4294901760
    %4079 = vmatpush2.msra.mxu0 %v4078
    %4080 = vmatprep.subr.mxu0 0.0
    %v4081 = vand.u32 %v3081, 4294901760
    %4082 = vmatpush2.msra.mxu0 %v4081
    %4083 = vmatprep.subr.mxu0 0.0
    %v4084 = vand.u32 %v3080, 4294901760
    %4085 = vmatpush2.msra.mxu0 %v4084
    %v4086 = vand.u32 %v2469, 4294901760
    %v4087 = vsub.f32 %v2469, %v4086
    %v4088 = vand.u32 %v4087, 4294901760
    %v4089 = vsub.f32 %v4087, %v4088
    %v4090 = vand.u32 %v4089, 4294901760
    %4091 = vmatprep.mubr.f32.mxu0 %v4090
    %v4092 = vand.u32 %v2467, 4294901760
    %v4093 = vsub.f32 %v2467, %v4092
    %v4094 = vand.u32 %v4093, 4294901760
    %v4095 = vsub.f32 %v4093, %v4094
    %v4096 = vand.u32 %v4095, 4294901760
    %4097 = vmatmul.mubr.f32.gmra.mxu0 %v4096
    %v4098 = vpop.f32.mrf.mxu0
    %v4099 = vadd.f32 %v3987, %v4098
    %v4100 = vpop.f32.mrf.mxu0
    %4101 = vdwg.mxu0
    %4102 = vmatprep.subr.mxu0 0.0
    %v4103 = vand.u32 %v3079, 4294901760
    %v4104 = vsub.f32 %v3079, %v4103
    %v4105 = vand.u32 %v4104, 4294901760
    %v4106 = vsub.f32 %v4104, %v4105
    %v4107 = vand.u32 %v4106, 4294901760
    %4108 = vmatpush1.msra.mxu0 %v4107
    %4109 = vmatprep.subr.mxu0 0.0
    %v4110 = vand.u32 %v3078, 4294901760
    %v4111 = vsub.f32 %v3078, %v4110
    %v4112 = vand.u32 %v4111, 4294901760
    %v4113 = vsub.f32 %v4111, %v4112
    %v4114 = vand.u32 %v4113, 4294901760
    %4115 = vmatpush1.msra.mxu0 %v4114
    %4116 = vmatprep.subr.mxu0 0.0
    %v4117 = vand.u32 %v3077, 4294901760
    %v4118 = vsub.f32 %v3077, %v4117
    %v4119 = vand.u32 %v4118, 4294901760
    %v4120 = vsub.f32 %v4118, %v4119
    %v4121 = vand.u32 %v4120, 4294901760
    %4122 = vmatpush1.msra.mxu0 %v4121
    %4123 = vmatprep.subr.mxu0 0.0
    %v4124 = vand.u32 %v3076, 4294901760
    %v4125 = vsub.f32 %v3076, %v4124
    %v4126 = vand.u32 %v4125, 4294901760
    %v4127 = vsub.f32 %v4125, %v4126
    %v4128 = vand.u32 %v4127, 4294901760
    %4129 = vmatpush1.msra.mxu0 %v4128
    %4130 = vmatprep.subr.mxu0 0.0
    %v4131 = vand.u32 %v3075, 4294901760
    %v4132 = vsub.f32 %v3075, %v4131
    %v4133 = vand.u32 %v4132, 4294901760
    %v4134 = vsub.f32 %v4132, %v4133
    %v4135 = vand.u32 %v4134, 4294901760
    %4136 = vmatpush1.msra.mxu0 %v4135
    %4137 = vmatprep.subr.mxu0 0.0
    %v4138 = vand.u32 %v3074, 4294901760
    %v4139 = vsub.f32 %v3074, %v4138
    %v4140 = vand.u32 %v4139, 4294901760
    %v4141 = vsub.f32 %v4139, %v4140
    %v4142 = vand.u32 %v4141, 4294901760
    %4143 = vmatpush1.msra.mxu0 %v4142
    %4144 = vmatprep.subr.mxu0 0.0
    %v4145 = vand.u32 %v3073, 4294901760
    %v4146 = vsub.f32 %v3073, %v4145
    %v4147 = vand.u32 %v4146, 4294901760
    %v4148 = vsub.f32 %v4146, %v4147
    %v4149 = vand.u32 %v4148, 4294901760
    %4150 = vmatpush1.msra.mxu0 %v4149
    %4151 = vmatprep.subr.mxu0 0.0
    %v4152 = vand.u32 %v3072, 4294901760
    %v4153 = vsub.f32 %v3072, %v4152
    %v4154 = vand.u32 %v4153, 4294901760
    %v4155 = vsub.f32 %v4153, %v4154
    %v4156 = vand.u32 %v4155, 4294901760
    %4157 = vmatpush1.msra.mxu0 %v4156
    %4158 = vmatprep.subr.mxu0 0.0
    %v4159 = vand.u32 %v3071, 4294901760
    %v4160 = vsub.f32 %v3071, %v4159
    %v4161 = vand.u32 %v4160, 4294901760
    %v4162 = vsub.f32 %v4160, %v4161
    %v4163 = vand.u32 %v4162, 4294901760
    %4164 = vmatpush1.msra.mxu0 %v4163
    %4165 = vmatprep.subr.mxu0 0.0
    %v4166 = vand.u32 %v3070, 4294901760
    %v4167 = vsub.f32 %v3070, %v4166
    %v4168 = vand.u32 %v4167, 4294901760
    %v4169 = vsub.f32 %v4167, %v4168
    %v4170 = vand.u32 %v4169, 4294901760
    %4171 = vmatpush1.msra.mxu0 %v4170
    %4172 = vmatprep.subr.mxu0 0.0
    %v4173 = vand.u32 %v3069, 4294901760
    %v4174 = vsub.f32 %v3069, %v4173
    %v4175 = vand.u32 %v4174, 4294901760
    %v4176 = vsub.f32 %v4174, %v4175
    %v4177 = vand.u32 %v4176, 4294901760
    %4178 = vmatpush1.msra.mxu0 %v4177
    %4179 = vmatprep.subr.mxu0 0.0
    %v4180 = vand.u32 %v3068, 4294901760
    %v4181 = vsub.f32 %v3068, %v4180
    %v4182 = vand.u32 %v4181, 4294901760
    %v4183 = vsub.f32 %v4181, %v4182
    %v4184 = vand.u32 %v4183, 4294901760
    %4185 = vmatpush1.msra.mxu0 %v4184
    %4186 = vmatprep.subr.mxu0 0.0
    %v4187 = vand.u32 %v3067, 4294901760
    %v4188 = vsub.f32 %v3067, %v4187
    %v4189 = vand.u32 %v4188, 4294901760
    %v4190 = vsub.f32 %v4188, %v4189
    %v4191 = vand.u32 %v4190, 4294901760
    %4192 = vmatpush1.msra.mxu0 %v4191
    %4193 = vmatprep.subr.mxu0 0.0
    %v4194 = vand.u32 %v3066, 4294901760
    %v4195 = vsub.f32 %v3066, %v4194
    %v4196 = vand.u32 %v4195, 4294901760
    %v4197 = vsub.f32 %v4195, %v4196
    %v4198 = vand.u32 %v4197, 4294901760
    %4199 = vmatpush1.msra.mxu0 %v4198
    %4200 = vmatprep.subr.mxu0 0.0
    %v4201 = vand.u32 %v3065, 4294901760
    %v4202 = vsub.f32 %v3065, %v4201
    %v4203 = vand.u32 %v4202, 4294901760
    %v4204 = vsub.f32 %v4202, %v4203
    %v4205 = vand.u32 %v4204, 4294901760
    %4206 = vmatpush1.msra.mxu0 %v4205
    %4207 = vmatprep.subr.mxu0 0.0
    %v4208 = vand.u32 %v3064, 4294901760
    %v4209 = vsub.f32 %v3064, %v4208
    %v4210 = vand.u32 %v4209, 4294901760
    %v4211 = vsub.f32 %v4209, %v4210
    %v4212 = vand.u32 %v4211, 4294901760
    %4213 = vmatpush1.msra.mxu0 %v4212
    %4214 = vmatprep.subr.mxu0 0.0
    %v4215 = vand.u32 %v3095, 4294901760
    %v4216 = vsub.f32 %v3095, %v4215
    %v4217 = vand.u32 %v4216, 4294901760
    %v4218 = vsub.f32 %v4216, %v4217
    %v4219 = vand.u32 %v4218, 4294901760
    %4220 = vmatpush2.msra.mxu0 %v4219
    %4221 = vmatprep.subr.mxu0 0.0
    %v4222 = vand.u32 %v3094, 4294901760
    %v4223 = vsub.f32 %v3094, %v4222
    %v4224 = vand.u32 %v4223, 4294901760
    %v4225 = vsub.f32 %v4223, %v4224
    %v4226 = vand.u32 %v4225, 4294901760
    %4227 = vmatpush2.msra.mxu0 %v4226
    %4228 = vmatprep.subr.mxu0 0.0
    %v4229 = vand.u32 %v3093, 4294901760
    %v4230 = vsub.f32 %v3093, %v4229
    %v4231 = vand.u32 %v4230, 4294901760
    %v4232 = vsub.f32 %v4230, %v4231
    %v4233 = vand.u32 %v4232, 4294901760
    %4234 = vmatpush2.msra.mxu0 %v4233
    %4235 = vmatprep.subr.mxu0 0.0
    %v4236 = vand.u32 %v3092, 4294901760
    %v4237 = vsub.f32 %v3092, %v4236
    %v4238 = vand.u32 %v4237, 4294901760
    %v4239 = vsub.f32 %v4237, %v4238
    %v4240 = vand.u32 %v4239, 4294901760
    %4241 = vmatpush2.msra.mxu0 %v4240
    %4242 = vmatprep.subr.mxu0 0.0
    %v4243 = vand.u32 %v3091, 4294901760
    %v4244 = vsub.f32 %v3091, %v4243
    %v4245 = vand.u32 %v4244, 4294901760
    %v4246 = vsub.f32 %v4244, %v4245
    %v4247 = vand.u32 %v4246, 4294901760
    %4248 = vmatpush2.msra.mxu0 %v4247
    %4249 = vmatprep.subr.mxu0 0.0
    %v4250 = vand.u32 %v3090, 4294901760
    %v4251 = vsub.f32 %v3090, %v4250
    %v4252 = vand.u32 %v4251, 4294901760
    %v4253 = vsub.f32 %v4251, %v4252
    %v4254 = vand.u32 %v4253, 4294901760
    %4255 = vmatpush2.msra.mxu0 %v4254
    %4256 = vmatprep.subr.mxu0 0.0
    %v4257 = vand.u32 %v3089, 4294901760
    %v4258 = vsub.f32 %v3089, %v4257
    %v4259 = vand.u32 %v4258, 4294901760
    %v4260 = vsub.f32 %v4258, %v4259
    %v4261 = vand.u32 %v4260, 4294901760
    %4262 = vmatpush2.msra.mxu0 %v4261
    %4263 = vmatprep.subr.mxu0 0.0
    %v4264 = vand.u32 %v3088, 4294901760
    %v4265 = vsub.f32 %v3088, %v4264
    %v4266 = vand.u32 %v4265, 4294901760
    %v4267 = vsub.f32 %v4265, %v4266
    %v4268 = vand.u32 %v4267, 4294901760
    %4269 = vmatpush2.msra.mxu0 %v4268
    %4270 = vmatprep.subr.mxu0 0.0
    %v4271 = vand.u32 %v3087, 4294901760
    %v4272 = vsub.f32 %v3087, %v4271
    %v4273 = vand.u32 %v4272, 4294901760
    %v4274 = vsub.f32 %v4272, %v4273
    %v4275 = vand.u32 %v4274, 4294901760
    %4276 = vmatpush2.msra.mxu0 %v4275
    %4277 = vmatprep.subr.mxu0 0.0
    %v4278 = vand.u32 %v3086, 4294901760
    %v4279 = vsub.f32 %v3086, %v4278
    %v4280 = vand.u32 %v4279, 4294901760
    %v4281 = vsub.f32 %v4279, %v4280
    %v4282 = vand.u32 %v4281, 4294901760
    %4283 = vmatpush2.msra.mxu0 %v4282
    %4284 = vmatprep.subr.mxu0 0.0
    %v4285 = vand.u32 %v3085, 4294901760
    %v4286 = vsub.f32 %v3085, %v4285
    %v4287 = vand.u32 %v4286, 4294901760
    %v4288 = vsub.f32 %v4286, %v4287
    %v4289 = vand.u32 %v4288, 4294901760
    %4290 = vmatpush2.msra.mxu0 %v4289
    %4291 = vmatprep.subr.mxu0 0.0
    %v4292 = vand.u32 %v3084, 4294901760
    %v4293 = vsub.f32 %v3084, %v4292
    %v4294 = vand.u32 %v4293, 4294901760
    %v4295 = vsub.f32 %v4293, %v4294
    %v4296 = vand.u32 %v4295, 4294901760
    %4297 = vmatpush2.msra.mxu0 %v4296
    %4298 = vmatprep.subr.mxu0 0.0
    %v4299 = vand.u32 %v3083, 4294901760
    %v4300 = vsub.f32 %v3083, %v4299
    %v4301 = vand.u32 %v4300, 4294901760
    %v4302 = vsub.f32 %v4300, %v4301
    %v4303 = vand.u32 %v4302, 4294901760
    %4304 = vmatpush2.msra.mxu0 %v4303
    %4305 = vmatprep.subr.mxu0 0.0
    %v4306 = vand.u32 %v3082, 4294901760
    %v4307 = vsub.f32 %v3082, %v4306
    %v4308 = vand.u32 %v4307, 4294901760
    %v4309 = vsub.f32 %v4307, %v4308
    %v4310 = vand.u32 %v4309, 4294901760
    %4311 = vmatpush2.msra.mxu0 %v4310
    %4312 = vmatprep.subr.mxu0 0.0
    %v4313 = vand.u32 %v3081, 4294901760
    %v4314 = vsub.f32 %v3081, %v4313
    %v4315 = vand.u32 %v4314, 4294901760
    %v4316 = vsub.f32 %v4314, %v4315
    %v4317 = vand.u32 %v4316, 4294901760
    %4318 = vmatpush2.msra.mxu0 %v4317
    %4319 = vmatprep.subr.mxu0 0.0
    %v4320 = vand.u32 %v3080, 4294901760
    %v4321 = vsub.f32 %v3080, %v4320
    %v4322 = vand.u32 %v4321, 4294901760
    %v4323 = vsub.f32 %v4321, %v4322
    %v4324 = vand.u32 %v4323, 4294901760
    %4325 = vmatpush2.msra.mxu0 %v4324
    %v4326 = vand.u32 %v2469, 4294901760
    %4327 = vmatprep.mubr.f32.mxu0 %v4326
    %v4328 = vand.u32 %v2467, 4294901760
    %4329 = vmatmul.mubr.f32.gmra.mxu0 %v4328
    %v4330 = vpop.f32.mrf.mxu0
    %v4331 = vadd.f32 %v4099, %v4330
    %v4332 = vpop.f32.mrf.mxu0
    %4333 = vdwg.mxu0
    %4334 = vmatprep.subr.mxu0 0.0
    %v4335 = vand.u32 %v3079, 4294901760
    %v4336 = vsub.f32 %v3079, %v4335
    %4337 = vmatpush1.msra.mxu0 %v4336
    %4338 = vmatprep.subr.mxu0 0.0
    %v4339 = vand.u32 %v3078, 4294901760
    %v4340 = vsub.f32 %v3078, %v4339
    %4341 = vmatpush1.msra.mxu0 %v4340
    %4342 = vmatprep.subr.mxu0 0.0
    %v4343 = vand.u32 %v3077, 4294901760
    %v4344 = vsub.f32 %v3077, %v4343
    %4345 = vmatpush1.msra.mxu0 %v4344
    %4346 = vmatprep.subr.mxu0 0.0
    %v4347 = vand.u32 %v3076, 4294901760
    %v4348 = vsub.f32 %v3076, %v4347
    %4349 = vmatpush1.msra.mxu0 %v4348
    %4350 = vmatprep.subr.mxu0 0.0
    %v4351 = vand.u32 %v3075, 4294901760
    %v4352 = vsub.f32 %v3075, %v4351
    %4353 = vmatpush1.msra.mxu0 %v4352
    %4354 = vmatprep.subr.mxu0 0.0
    %v4355 = vand.u32 %v3074, 4294901760
    %v4356 = vsub.f32 %v3074, %v4355
    %4357 = vmatpush1.msra.mxu0 %v4356
    %4358 = vmatprep.subr.mxu0 0.0
    %v4359 = vand.u32 %v3073, 4294901760
    %v4360 = vsub.f32 %v3073, %v4359
    %4361 = vmatpush1.msra.mxu0 %v4360
    %4362 = vmatprep.subr.mxu0 0.0
    %v4363 = vand.u32 %v3072, 4294901760
    %v4364 = vsub.f32 %v3072, %v4363
    %4365 = vmatpush1.msra.mxu0 %v4364
    %4366 = vmatprep.subr.mxu0 0.0
    %v4367 = vand.u32 %v3071, 4294901760
    %v4368 = vsub.f32 %v3071, %v4367
    %4369 = vmatpush1.msra.mxu0 %v4368
    %4370 = vmatprep.subr.mxu0 0.0
    %v4371 = vand.u32 %v3070, 4294901760
    %v4372 = vsub.f32 %v3070, %v4371
    %4373 = vmatpush1.msra.mxu0 %v4372
    %4374 = vmatprep.subr.mxu0 0.0
    %v4375 = vand.u32 %v3069, 4294901760
    %v4376 = vsub.f32 %v3069, %v4375
    %4377 = vmatpush1.msra.mxu0 %v4376
    %4378 = vmatprep.subr.mxu0 0.0
    %v4379 = vand.u32 %v3068, 4294901760
    %v4380 = vsub.f32 %v3068, %v4379
    %4381 = vmatpush1.msra.mxu0 %v4380
    %4382 = vmatprep.subr.mxu0 0.0
    %v4383 = vand.u32 %v3067, 4294901760
    %v4384 = vsub.f32 %v3067, %v4383
    %4385 = vmatpush1.msra.mxu0 %v4384
    %4386 = vmatprep.subr.mxu0 0.0
    %v4387 = vand.u32 %v3066, 4294901760
    %v4388 = vsub.f32 %v3066, %v4387
    %4389 = vmatpush1.msra.mxu0 %v4388
    %4390 = vmatprep.subr.mxu0 0.0
    %v4391 = vand.u32 %v3065, 4294901760
    %v4392 = vsub.f32 %v3065, %v4391
    %4393 = vmatpush1.msra.mxu0 %v4392
    %4394 = vmatprep.subr.mxu0 0.0
    %v4395 = vand.u32 %v3064, 4294901760
    %v4396 = vsub.f32 %v3064, %v4395
    %4397 = vmatpush1.msra.mxu0 %v4396
    %4398 = vmatprep.subr.mxu0 0.0
    %v4399 = vand.u32 %v3095, 4294901760
    %v4400 = vsub.f32 %v3095, %v4399
    %4401 = vmatpush2.msra.mxu0 %v4400
    %4402 = vmatprep.subr.mxu0 0.0
    %v4403 = vand.u32 %v3094, 4294901760
    %v4404 = vsub.f32 %v3094, %v4403
    %4405 = vmatpush2.msra.mxu0 %v4404
    %4406 = vmatprep.subr.mxu0 0.0
    %v4407 = vand.u32 %v3093, 4294901760
    %v4408 = vsub.f32 %v3093, %v4407
    %4409 = vmatpush2.msra.mxu0 %v4408
    %4410 = vmatprep.subr.mxu0 0.0
    %v4411 = vand.u32 %v3092, 4294901760
    %v4412 = vsub.f32 %v3092, %v4411
    %4413 = vmatpush2.msra.mxu0 %v4412
    %4414 = vmatprep.subr.mxu0 0.0
    %v4415 = vand.u32 %v3091, 4294901760
    %v4416 = vsub.f32 %v3091, %v4415
    %4417 = vmatpush2.msra.mxu0 %v4416
    %4418 = vmatprep.subr.mxu0 0.0
    %v4419 = vand.u32 %v3090, 4294901760
    %v4420 = vsub.f32 %v3090, %v4419
    %4421 = vmatpush2.msra.mxu0 %v4420
    %4422 = vmatprep.subr.mxu0 0.0
    %v4423 = vand.u32 %v3089, 4294901760
    %v4424 = vsub.f32 %v3089, %v4423
    %4425 = vmatpush2.msra.mxu0 %v4424
    %4426 = vmatprep.subr.mxu0 0.0
    %v4427 = vand.u32 %v3088, 4294901760
    %v4428 = vsub.f32 %v3088, %v4427
    %4429 = vmatpush2.msra.mxu0 %v4428
    %4430 = vmatprep.subr.mxu0 0.0
    %v4431 = vand.u32 %v3087, 4294901760
    %v4432 = vsub.f32 %v3087, %v4431
    %4433 = vmatpush2.msra.mxu0 %v4432
    %4434 = vmatprep.subr.mxu0 0.0
    %v4435 = vand.u32 %v3086, 4294901760
    %v4436 = vsub.f32 %v3086, %v4435
    %4437 = vmatpush2.msra.mxu0 %v4436
    %4438 = vmatprep.subr.mxu0 0.0
    %v4439 = vand.u32 %v3085, 4294901760
    %v4440 = vsub.f32 %v3085, %v4439
    %4441 = vmatpush2.msra.mxu0 %v4440
    %4442 = vmatprep.subr.mxu0 0.0
    %v4443 = vand.u32 %v3084, 4294901760
    %v4444 = vsub.f32 %v3084, %v4443
    %4445 = vmatpush2.msra.mxu0 %v4444
    %4446 = vmatprep.subr.mxu0 0.0
    %v4447 = vand.u32 %v3083, 4294901760
    %v4448 = vsub.f32 %v3083, %v4447
    %4449 = vmatpush2.msra.mxu0 %v4448
    %4450 = vmatprep.subr.mxu0 0.0
    %v4451 = vand.u32 %v3082, 4294901760
    %v4452 = vsub.f32 %v3082, %v4451
    %4453 = vmatpush2.msra.mxu0 %v4452
    %4454 = vmatprep.subr.mxu0 0.0
    %v4455 = vand.u32 %v3081, 4294901760
    %v4456 = vsub.f32 %v3081, %v4455
    %4457 = vmatpush2.msra.mxu0 %v4456
    %4458 = vmatprep.subr.mxu0 0.0
    %v4459 = vand.u32 %v3080, 4294901760
    %v4460 = vsub.f32 %v3080, %v4459
    %4461 = vmatpush2.msra.mxu0 %v4460
    %v4462 = vand.u32 %v2469, 4294901760
    %v4463 = vsub.f32 %v2469, %v4462
    %4464 = vmatprep.mubr.f32.mxu0 %v4463
    %v4465 = vand.u32 %v2467, 4294901760
    %v4466 = vsub.f32 %v2467, %v4465
    %4467 = vmatmul.mubr.f32.gmra.mxu0 %v4466
    %v4468 = vpop.f32.mrf.mxu0
    %v4469 = vadd.f32 %v4331, %v4468
    %v4470 = vpop.f32.mrf.mxu0
    %4471 = vdwg.mxu0
    %4472 = vmatprep.subr.mxu0 0.0
    %v4473 = vand.u32 %v3079, 4294901760
    %4474 = vmatpush1.msra.mxu0 %v4473
    %4475 = vmatprep.subr.mxu0 0.0
    %v4476 = vand.u32 %v3078, 4294901760
    %4477 = vmatpush1.msra.mxu0 %v4476
    %4478 = vmatprep.subr.mxu0 0.0
    %v4479 = vand.u32 %v3077, 4294901760
    %4480 = vmatpush1.msra.mxu0 %v4479
    %4481 = vmatprep.subr.mxu0 0.0
    %v4482 = vand.u32 %v3076, 4294901760
    %4483 = vmatpush1.msra.mxu0 %v4482
    %4484 = vmatprep.subr.mxu0 0.0
    %v4485 = vand.u32 %v3075, 4294901760
    %4486 = vmatpush1.msra.mxu0 %v4485
    %4487 = vmatprep.subr.mxu0 0.0
    %v4488 = vand.u32 %v3074, 4294901760
    %4489 = vmatpush1.msra.mxu0 %v4488
    %4490 = vmatprep.subr.mxu0 0.0
    %v4491 = vand.u32 %v3073, 4294901760
    %4492 = vmatpush1.msra.mxu0 %v4491
    %4493 = vmatprep.subr.mxu0 0.0
    %v4494 = vand.u32 %v3072, 4294901760
    %4495 = vmatpush1.msra.mxu0 %v4494
    %4496 = vmatprep.subr.mxu0 0.0
    %v4497 = vand.u32 %v3071, 4294901760
    %4498 = vmatpush1.msra.mxu0 %v4497
    %4499 = vmatprep.subr.mxu0 0.0
    %v4500 = vand.u32 %v3070, 4294901760
    %4501 = vmatpush1.msra.mxu0 %v4500
    %4502 = vmatprep.subr.mxu0 0.0
    %v4503 = vand.u32 %v3069, 4294901760
    %4504 = vmatpush1.msra.mxu0 %v4503
    %4505 = vmatprep.subr.mxu0 0.0
    %v4506 = vand.u32 %v3068, 4294901760
    %4507 = vmatpush1.msra.mxu0 %v4506
    %4508 = vmatprep.subr.mxu0 0.0
    %v4509 = vand.u32 %v3067, 4294901760
    %4510 = vmatpush1.msra.mxu0 %v4509
    %4511 = vmatprep.subr.mxu0 0.0
    %v4512 = vand.u32 %v3066, 4294901760
    %4513 = vmatpush1.msra.mxu0 %v4512
    %4514 = vmatprep.subr.mxu0 0.0
    %v4515 = vand.u32 %v3065, 4294901760
    %4516 = vmatpush1.msra.mxu0 %v4515
    %4517 = vmatprep.subr.mxu0 0.0
    %v4518 = vand.u32 %v3064, 4294901760
    %4519 = vmatpush1.msra.mxu0 %v4518
    %4520 = vmatprep.subr.mxu0 0.0
    %v4521 = vand.u32 %v3095, 4294901760
    %4522 = vmatpush2.msra.mxu0 %v4521
    %4523 = vmatprep.subr.mxu0 0.0
    %v4524 = vand.u32 %v3094, 4294901760
    %4525 = vmatpush2.msra.mxu0 %v4524
    %4526 = vmatprep.subr.mxu0 0.0
    %v4527 = vand.u32 %v3093, 4294901760
    %4528 = vmatpush2.msra.mxu0 %v4527
    %4529 = vmatprep.subr.mxu0 0.0
    %v4530 = vand.u32 %v3092, 4294901760
    %4531 = vmatpush2.msra.mxu0 %v4530
    %4532 = vmatprep.subr.mxu0 0.0
    %v4533 = vand.u32 %v3091, 4294901760
    %4534 = vmatpush2.msra.mxu0 %v4533
    %4535 = vmatprep.subr.mxu0 0.0
    %v4536 = vand.u32 %v3090, 4294901760
    %4537 = vmatpush2.msra.mxu0 %v4536
    %4538 = vmatprep.subr.mxu0 0.0
    %v4539 = vand.u32 %v3089, 4294901760
    %4540 = vmatpush2.msra.mxu0 %v4539
    %4541 = vmatprep.subr.mxu0 0.0
    %v4542 = vand.u32 %v3088, 4294901760
    %4543 = vmatpush2.msra.mxu0 %v4542
    %4544 = vmatprep.subr.mxu0 0.0
    %v4545 = vand.u32 %v3087, 4294901760
    %4546 = vmatpush2.msra.mxu0 %v4545
    %4547 = vmatprep.subr.mxu0 0.0
    %v4548 = vand.u32 %v3086, 4294901760
    %4549 = vmatpush2.msra.mxu0 %v4548
    %4550 = vmatprep.subr.mxu0 0.0
    %v4551 = vand.u32 %v3085, 4294901760
    %4552 = vmatpush2.msra.mxu0 %v4551
    %4553 = vmatprep.subr.mxu0 0.0
    %v4554 = vand.u32 %v3084, 4294901760
    %4555 = vmatpush2.msra.mxu0 %v4554
    %4556 = vmatprep.subr.mxu0 0.0
    %v4557 = vand.u32 %v3083, 4294901760
    %4558 = vmatpush2.msra.mxu0 %v4557
    %4559 = vmatprep.subr.mxu0 0.0
    %v4560 = vand.u32 %v3082, 4294901760
    %4561 = vmatpush2.msra.mxu0 %v4560
    %4562 = vmatprep.subr.mxu0 0.0
    %v4563 = vand.u32 %v3081, 4294901760
    %4564 = vmatpush2.msra.mxu0 %v4563
    %4565 = vmatprep.subr.mxu0 0.0
    %v4566 = vand.u32 %v3080, 4294901760
    %4567 = vmatpush2.msra.mxu0 %v4566
    %v4568 = vand.u32 %v2469, 4294901760
    %v4569 = vsub.f32 %v2469, %v4568
    %v4570 = vand.u32 %v4569, 4294901760
    %4571 = vmatprep.mubr.f32.mxu0 %v4570
    %v4572 = vand.u32 %v2467, 4294901760
    %v4573 = vsub.f32 %v2467, %v4572
    %v4574 = vand.u32 %v4573, 4294901760
    %4575 = vmatmul.mubr.f32.gmra.mxu0 %v4574
    %v4576 = vpop.f32.mrf.mxu0
    %v4577 = vadd.f32 %v4469, %v4576
    %v4578 = vpop.f32.mrf.mxu0
    %4579 = vdwg.mxu0
    %4580 = vmatprep.subr.mxu0 0.0
    %v4581 = vand.u32 %v3079, 4294901760
    %v4582 = vsub.f32 %v3079, %v4581
    %v4583 = vand.u32 %v4582, 4294901760
    %4584 = vmatpush1.msra.mxu0 %v4583
    %4585 = vmatprep.subr.mxu0 0.0
    %v4586 = vand.u32 %v3078, 4294901760
    %v4587 = vsub.f32 %v3078, %v4586
    %v4588 = vand.u32 %v4587, 4294901760
    %4589 = vmatpush1.msra.mxu0 %v4588
    %4590 = vmatprep.subr.mxu0 0.0
    %v4591 = vand.u32 %v3077, 4294901760
    %v4592 = vsub.f32 %v3077, %v4591
    %v4593 = vand.u32 %v4592, 4294901760
    %4594 = vmatpush1.msra.mxu0 %v4593
    %4595 = vmatprep.subr.mxu0 0.0
    %v4596 = vand.u32 %v3076, 4294901760
    %v4597 = vsub.f32 %v3076, %v4596
    %v4598 = vand.u32 %v4597, 4294901760
    %4599 = vmatpush1.msra.mxu0 %v4598
    %4600 = vmatprep.subr.mxu0 0.0
    %v4601 = vand.u32 %v3075, 4294901760
    %v4602 = vsub.f32 %v3075, %v4601
    %v4603 = vand.u32 %v4602, 4294901760
    %4604 = vmatpush1.msra.mxu0 %v4603
    %4605 = vmatprep.subr.mxu0 0.0
    %v4606 = vand.u32 %v3074, 4294901760
    %v4607 = vsub.f32 %v3074, %v4606
    %v4608 = vand.u32 %v4607, 4294901760
    %4609 = vmatpush1.msra.mxu0 %v4608
    %4610 = vmatprep.subr.mxu0 0.0
    %v4611 = vand.u32 %v3073, 4294901760
    %v4612 = vsub.f32 %v3073, %v4611
    %v4613 = vand.u32 %v4612, 4294901760
    %4614 = vmatpush1.msra.mxu0 %v4613
    %4615 = vmatprep.subr.mxu0 0.0
    %v4616 = vand.u32 %v3072, 4294901760
    %v4617 = vsub.f32 %v3072, %v4616
    %v4618 = vand.u32 %v4617, 4294901760
    %4619 = vmatpush1.msra.mxu0 %v4618
    %4620 = vmatprep.subr.mxu0 0.0
    %v4621 = vand.u32 %v3071, 4294901760
    %v4622 = vsub.f32 %v3071, %v4621
    %v4623 = vand.u32 %v4622, 4294901760
    %4624 = vmatpush1.msra.mxu0 %v4623
    %4625 = vmatprep.subr.mxu0 0.0
    %v4626 = vand.u32 %v3070, 4294901760
    %v4627 = vsub.f32 %v3070, %v4626
    %v4628 = vand.u32 %v4627, 4294901760
    %4629 = vmatpush1.msra.mxu0 %v4628
    %4630 = vmatprep.subr.mxu0 0.0
    %v4631 = vand.u32 %v3069, 4294901760
    %v4632 = vsub.f32 %v3069, %v4631
    %v4633 = vand.u32 %v4632, 4294901760
    %4634 = vmatpush1.msra.mxu0 %v4633
    %4635 = vmatprep.subr.mxu0 0.0
    %v4636 = vand.u32 %v3068, 4294901760
    %v4637 = vsub.f32 %v3068, %v4636
    %v4638 = vand.u32 %v4637, 4294901760
    %4639 = vmatpush1.msra.mxu0 %v4638
    %4640 = vmatprep.subr.mxu0 0.0
    %v4641 = vand.u32 %v3067, 4294901760
    %v4642 = vsub.f32 %v3067, %v4641
    %v4643 = vand.u32 %v4642, 4294901760
    %4644 = vmatpush1.msra.mxu0 %v4643
    %4645 = vmatprep.subr.mxu0 0.0
    %v4646 = vand.u32 %v3066, 4294901760
    %v4647 = vsub.f32 %v3066, %v4646
    %v4648 = vand.u32 %v4647, 4294901760
    %4649 = vmatpush1.msra.mxu0 %v4648
    %4650 = vmatprep.subr.mxu0 0.0
    %v4651 = vand.u32 %v3065, 4294901760
    %v4652 = vsub.f32 %v3065, %v4651
    %v4653 = vand.u32 %v4652, 4294901760
    %4654 = vmatpush1.msra.mxu0 %v4653
    %4655 = vmatprep.subr.mxu0 0.0
    %v4656 = vand.u32 %v3064, 4294901760
    %v4657 = vsub.f32 %v3064, %v4656
    %v4658 = vand.u32 %v4657, 4294901760
    %4659 = vmatpush1.msra.mxu0 %v4658
    %4660 = vmatprep.subr.mxu0 0.0
    %v4661 = vand.u32 %v3095, 4294901760
    %v4662 = vsub.f32 %v3095, %v4661
    %v4663 = vand.u32 %v4662, 4294901760
    %4664 = vmatpush2.msra.mxu0 %v4663
    %4665 = vmatprep.subr.mxu0 0.0
    %v4666 = vand.u32 %v3094, 4294901760
    %v4667 = vsub.f32 %v3094, %v4666
    %v4668 = vand.u32 %v4667, 4294901760
    %4669 = vmatpush2.msra.mxu0 %v4668
    %4670 = vmatprep.subr.mxu0 0.0
    %v4671 = vand.u32 %v3093, 4294901760
    %v4672 = vsub.f32 %v3093, %v4671
    %v4673 = vand.u32 %v4672, 4294901760
    %4674 = vmatpush2.msra.mxu0 %v4673
    %4675 = vmatprep.subr.mxu0 0.0
    %v4676 = vand.u32 %v3092, 4294901760
    %v4677 = vsub.f32 %v3092, %v4676
    %v4678 = vand.u32 %v4677, 4294901760
    %4679 = vmatpush2.msra.mxu0 %v4678
    %4680 = vmatprep.subr.mxu0 0.0
    %v4681 = vand.u32 %v3091, 4294901760
    %v4682 = vsub.f32 %v3091, %v4681
    %v4683 = vand.u32 %v4682, 4294901760
    %4684 = vmatpush2.msra.mxu0 %v4683
    %4685 = vmatprep.subr.mxu0 0.0
    %v4686 = vand.u32 %v3090, 4294901760
    %v4687 = vsub.f32 %v3090, %v4686
    %v4688 = vand.u32 %v4687, 4294901760
    %4689 = vmatpush2.msra.mxu0 %v4688
    %4690 = vmatprep.subr.mxu0 0.0
    %v4691 = vand.u32 %v3089, 4294901760
    %v4692 = vsub.f32 %v3089, %v4691
    %v4693 = vand.u32 %v4692, 4294901760
    %4694 = vmatpush2.msra.mxu0 %v4693
    %4695 = vmatprep.subr.mxu0 0.0
    %v4696 = vand.u32 %v3088, 4294901760
    %v4697 = vsub.f32 %v3088, %v4696
    %v4698 = vand.u32 %v4697, 4294901760
    %4699 = vmatpush2.msra.mxu0 %v4698
    %4700 = vmatprep.subr.mxu0 0.0
    %v4701 = vand.u32 %v3087, 4294901760
    %v4702 = vsub.f32 %v3087, %v4701
    %v4703 = vand.u32 %v4702, 4294901760
    %4704 = vmatpush2.msra.mxu0 %v4703
    %4705 = vmatprep.subr.mxu0 0.0
    %v4706 = vand.u32 %v3086, 4294901760
    %v4707 = vsub.f32 %v3086, %v4706
    %v4708 = vand.u32 %v4707, 4294901760
    %4709 = vmatpush2.msra.mxu0 %v4708
    %4710 = vmatprep.subr.mxu0 0.0
    %v4711 = vand.u32 %v3085, 4294901760
    %v4712 = vsub.f32 %v3085, %v4711
    %v4713 = vand.u32 %v4712, 4294901760
    %4714 = vmatpush2.msra.mxu0 %v4713
    %4715 = vmatprep.subr.mxu0 0.0
    %v4716 = vand.u32 %v3084, 4294901760
    %v4717 = vsub.f32 %v3084, %v4716
    %v4718 = vand.u32 %v4717, 4294901760
    %4719 = vmatpush2.msra.mxu0 %v4718
    %4720 = vmatprep.subr.mxu0 0.0
    %v4721 = vand.u32 %v3083, 4294901760
    %v4722 = vsub.f32 %v3083, %v4721
    %v4723 = vand.u32 %v4722, 4294901760
    %4724 = vmatpush2.msra.mxu0 %v4723
    %4725 = vmatprep.subr.mxu0 0.0
    %v4726 = vand.u32 %v3082, 4294901760
    %v4727 = vsub.f32 %v3082, %v4726
    %v4728 = vand.u32 %v4727, 4294901760
    %4729 = vmatpush2.msra.mxu0 %v4728
    %4730 = vmatprep.subr.mxu0 0.0
    %v4731 = vand.u32 %v3081, 4294901760
    %v4732 = vsub.f32 %v3081, %v4731
    %v4733 = vand.u32 %v4732, 4294901760
    %4734 = vmatpush2.msra.mxu0 %v4733
    %4735 = vmatprep.subr.mxu0 0.0
    %v4736 = vand.u32 %v3080, 4294901760
    %v4737 = vsub.f32 %v3080, %v4736
    %v4738 = vand.u32 %v4737, 4294901760
    %4739 = vmatpush2.msra.mxu0 %v4738
    %v4740 = vand.u32 %v2469, 4294901760
    %4741 = vmatprep.mubr.f32.mxu0 %v4740
    %v4742 = vand.u32 %v2467, 4294901760
    %4743 = vmatmul.mubr.f32.gmra.mxu0 %v4742
    %v4744 = vpop.f32.mrf.mxu0
    %v4745 = vadd.f32 %v4577, %v4744
    %v4746 = vpop.f32.mrf.mxu0
    %4747 = vdwg.mxu0
    %4748 = vmatprep.subr.mxu0 0.0
    %v4749 = vand.u32 %v3079, 4294901760
    %4750 = vmatpush1.msra.mxu0 %v4749
    %4751 = vmatprep.subr.mxu0 0.0
    %v4752 = vand.u32 %v3078, 4294901760
    %4753 = vmatpush1.msra.mxu0 %v4752
    %4754 = vmatprep.subr.mxu0 0.0
    %v4755 = vand.u32 %v3077, 4294901760
    %4756 = vmatpush1.msra.mxu0 %v4755
    %4757 = vmatprep.subr.mxu0 0.0
    %v4758 = vand.u32 %v3076, 4294901760
    %4759 = vmatpush1.msra.mxu0 %v4758
    %4760 = vmatprep.subr.mxu0 0.0
    %v4761 = vand.u32 %v3075, 4294901760
    %4762 = vmatpush1.msra.mxu0 %v4761
    %4763 = vmatprep.subr.mxu0 0.0
    %v4764 = vand.u32 %v3074, 4294901760
    %4765 = vmatpush1.msra.mxu0 %v4764
    %4766 = vmatprep.subr.mxu0 0.0
    %v4767 = vand.u32 %v3073, 4294901760
    %4768 = vmatpush1.msra.mxu0 %v4767
    %4769 = vmatprep.subr.mxu0 0.0
    %v4770 = vand.u32 %v3072, 4294901760
    %4771 = vmatpush1.msra.mxu0 %v4770
    %4772 = vmatprep.subr.mxu0 0.0
    %v4773 = vand.u32 %v3071, 4294901760
    %4774 = vmatpush1.msra.mxu0 %v4773
    %4775 = vmatprep.subr.mxu0 0.0
    %v4776 = vand.u32 %v3070, 4294901760
    %4777 = vmatpush1.msra.mxu0 %v4776
    %4778 = vmatprep.subr.mxu0 0.0
    %v4779 = vand.u32 %v3069, 4294901760
    %4780 = vmatpush1.msra.mxu0 %v4779
    %4781 = vmatprep.subr.mxu0 0.0
    %v4782 = vand.u32 %v3068, 4294901760
    %4783 = vmatpush1.msra.mxu0 %v4782
    %4784 = vmatprep.subr.mxu0 0.0
    %v4785 = vand.u32 %v3067, 4294901760
    %4786 = vmatpush1.msra.mxu0 %v4785
    %4787 = vmatprep.subr.mxu0 0.0
    %v4788 = vand.u32 %v3066, 4294901760
    %4789 = vmatpush1.msra.mxu0 %v4788
    %4790 = vmatprep.subr.mxu0 0.0
    %v4791 = vand.u32 %v3065, 4294901760
    %4792 = vmatpush1.msra.mxu0 %v4791
    %4793 = vmatprep.subr.mxu0 0.0
    %v4794 = vand.u32 %v3064, 4294901760
    %4795 = vmatpush1.msra.mxu0 %v4794
    %4796 = vmatprep.subr.mxu0 0.0
    %v4797 = vand.u32 %v3095, 4294901760
    %4798 = vmatpush2.msra.mxu0 %v4797
    %4799 = vmatprep.subr.mxu0 0.0
    %v4800 = vand.u32 %v3094, 4294901760
    %4801 = vmatpush2.msra.mxu0 %v4800
    %4802 = vmatprep.subr.mxu0 0.0
    %v4803 = vand.u32 %v3093, 4294901760
    %4804 = vmatpush2.msra.mxu0 %v4803
    %4805 = vmatprep.subr.mxu0 0.0
    %v4806 = vand.u32 %v3092, 4294901760
    %4807 = vmatpush2.msra.mxu0 %v4806
    %4808 = vmatprep.subr.mxu0 0.0
    %v4809 = vand.u32 %v3091, 4294901760
    %4810 = vmatpush2.msra.mxu0 %v4809
    %4811 = vmatprep.subr.mxu0 0.0
    %v4812 = vand.u32 %v3090, 4294901760
    %4813 = vmatpush2.msra.mxu0 %v4812
    %4814 = vmatprep.subr.mxu0 0.0
    %v4815 = vand.u32 %v3089, 4294901760
    %4816 = vmatpush2.msra.mxu0 %v4815
    %4817 = vmatprep.subr.mxu0 0.0
    %v4818 = vand.u32 %v3088, 4294901760
    %4819 = vmatpush2.msra.mxu0 %v4818
    %4820 = vmatprep.subr.mxu0 0.0
    %v4821 = vand.u32 %v3087, 4294901760
    %4822 = vmatpush2.msra.mxu0 %v4821
    %4823 = vmatprep.subr.mxu0 0.0
    %v4824 = vand.u32 %v3086, 4294901760
    %4825 = vmatpush2.msra.mxu0 %v4824
    %4826 = vmatprep.subr.mxu0 0.0
    %v4827 = vand.u32 %v3085, 4294901760
    %4828 = vmatpush2.msra.mxu0 %v4827
    %4829 = vmatprep.subr.mxu0 0.0
    %v4830 = vand.u32 %v3084, 4294901760
    %4831 = vmatpush2.msra.mxu0 %v4830
    %4832 = vmatprep.subr.mxu0 0.0
    %v4833 = vand.u32 %v3083, 4294901760
    %4834 = vmatpush2.msra.mxu0 %v4833
    %4835 = vmatprep.subr.mxu0 0.0
    %v4836 = vand.u32 %v3082, 4294901760
    %4837 = vmatpush2.msra.mxu0 %v4836
    %4838 = vmatprep.subr.mxu0 0.0
    %v4839 = vand.u32 %v3081, 4294901760
    %4840 = vmatpush2.msra.mxu0 %v4839
    %4841 = vmatprep.subr.mxu0 0.0
    %v4842 = vand.u32 %v3080, 4294901760
    %4843 = vmatpush2.msra.mxu0 %v4842
    %v4844 = vand.u32 %v2469, 4294901760
    %4845 = vmatprep.mubr.f32.mxu0 %v4844
    %v4846 = vand.u32 %v2467, 4294901760
    %4847 = vmatmul.mubr.f32.gmra.mxu0 %v4846
    %v4848 = vpop.f32.mrf.mxu0
    %v4849 = vadd.f32 %v4745, %v4848
    %v4850 = vpop.f32.mrf.mxu0
    %4851 = vdwg.mxu0
    %4852 = vmatprep.subr.mxu0 0.0
    %v4853 = vand.u32 %v3111, 4294901760
    %4854 = vmatpush1.msra.mxu0 %v4853
    %4855 = vmatprep.subr.mxu0 0.0
    %v4856 = vand.u32 %v3110, 4294901760
    %4857 = vmatpush1.msra.mxu0 %v4856
    %4858 = vmatprep.subr.mxu0 0.0
    %v4859 = vand.u32 %v3109, 4294901760
    %4860 = vmatpush1.msra.mxu0 %v4859
    %4861 = vmatprep.subr.mxu0 0.0
    %v4862 = vand.u32 %v3108, 4294901760
    %4863 = vmatpush1.msra.mxu0 %v4862
    %4864 = vmatprep.subr.mxu0 0.0
    %v4865 = vand.u32 %v3107, 4294901760
    %4866 = vmatpush1.msra.mxu0 %v4865
    %4867 = vmatprep.subr.mxu0 0.0
    %v4868 = vand.u32 %v3106, 4294901760
    %4869 = vmatpush1.msra.mxu0 %v4868
    %4870 = vmatprep.subr.mxu0 0.0
    %v4871 = vand.u32 %v3105, 4294901760
    %4872 = vmatpush1.msra.mxu0 %v4871
    %4873 = vmatprep.subr.mxu0 0.0
    %v4874 = vand.u32 %v3104, 4294901760
    %4875 = vmatpush1.msra.mxu0 %v4874
    %4876 = vmatprep.subr.mxu0 0.0
    %v4877 = vand.u32 %v3103, 4294901760
    %4878 = vmatpush1.msra.mxu0 %v4877
    %4879 = vmatprep.subr.mxu0 0.0
    %v4880 = vand.u32 %v3102, 4294901760
    %4881 = vmatpush1.msra.mxu0 %v4880
    %4882 = vmatprep.subr.mxu0 0.0
    %v4883 = vand.u32 %v3101, 4294901760
    %4884 = vmatpush1.msra.mxu0 %v4883
    %4885 = vmatprep.subr.mxu0 0.0
    %v4886 = vand.u32 %v3100, 4294901760
    %4887 = vmatpush1.msra.mxu0 %v4886
    %4888 = vmatprep.subr.mxu0 0.0
    %v4889 = vand.u32 %v3099, 4294901760
    %4890 = vmatpush1.msra.mxu0 %v4889
    %4891 = vmatprep.subr.mxu0 0.0
    %v4892 = vand.u32 %v3098, 4294901760
    %4893 = vmatpush1.msra.mxu0 %v4892
    %4894 = vmatprep.subr.mxu0 0.0
    %v4895 = vand.u32 %v3097, 4294901760
    %4896 = vmatpush1.msra.mxu0 %v4895
    %4897 = vmatprep.subr.mxu0 0.0
    %v4898 = vand.u32 %v3096, 4294901760
    %4899 = vmatpush1.msra.mxu0 %v4898
    %4900 = vmatprep.subr.mxu0 0.0
    %v4901 = vand.u32 %v3127, 4294901760
    %4902 = vmatpush2.msra.mxu0 %v4901
    %4903 = vmatprep.subr.mxu0 0.0
    %v4904 = vand.u32 %v3126, 4294901760
    %4905 = vmatpush2.msra.mxu0 %v4904
    %4906 = vmatprep.subr.mxu0 0.0
    %v4907 = vand.u32 %v3125, 4294901760
    %4908 = vmatpush2.msra.mxu0 %v4907
    %4909 = vmatprep.subr.mxu0 0.0
    %v4910 = vand.u32 %v3124, 4294901760
    %4911 = vmatpush2.msra.mxu0 %v4910
    %4912 = vmatprep.subr.mxu0 0.0
    %v4913 = vand.u32 %v3123, 4294901760
    %4914 = vmatpush2.msra.mxu0 %v4913
    %4915 = vmatprep.subr.mxu0 0.0
    %v4916 = vand.u32 %v3122, 4294901760
    %4917 = vmatpush2.msra.mxu0 %v4916
    %4918 = vmatprep.subr.mxu0 0.0
    %v4919 = vand.u32 %v3121, 4294901760
    %4920 = vmatpush2.msra.mxu0 %v4919
    %4921 = vmatprep.subr.mxu0 0.0
    %v4922 = vand.u32 %v3120, 4294901760
    %4923 = vmatpush2.msra.mxu0 %v4922
    %4924 = vmatprep.subr.mxu0 0.0
    %v4925 = vand.u32 %v3119, 4294901760
    %4926 = vmatpush2.msra.mxu0 %v4925
    %4927 = vmatprep.subr.mxu0 0.0
    %v4928 = vand.u32 %v3118, 4294901760
    %4929 = vmatpush2.msra.mxu0 %v4928
    %4930 = vmatprep.subr.mxu0 0.0
    %v4931 = vand.u32 %v3117, 4294901760
    %4932 = vmatpush2.msra.mxu0 %v4931
    %4933 = vmatprep.subr.mxu0 0.0
    %v4934 = vand.u32 %v3116, 4294901760
    %4935 = vmatpush2.msra.mxu0 %v4934
    %4936 = vmatprep.subr.mxu0 0.0
    %v4937 = vand.u32 %v3115, 4294901760
    %4938 = vmatpush2.msra.mxu0 %v4937
    %4939 = vmatprep.subr.mxu0 0.0
    %v4940 = vand.u32 %v3114, 4294901760
    %4941 = vmatpush2.msra.mxu0 %v4940
    %4942 = vmatprep.subr.mxu0 0.0
    %v4943 = vand.u32 %v3113, 4294901760
    %4944 = vmatpush2.msra.mxu0 %v4943
    %4945 = vmatprep.subr.mxu0 0.0
    %v4946 = vand.u32 %v3112, 4294901760
    %4947 = vmatpush2.msra.mxu0 %v4946
    %v4948 = vand.u32 %v2934, 4294901760
    %v4949 = vsub.f32 %v2934, %v4948
    %v4950 = vand.u32 %v4949, 4294901760
    %v4951 = vsub.f32 %v4949, %v4950
    %v4952 = vand.u32 %v4951, 4294901760
    %4953 = vmatprep.mubr.f32.mxu0 %v4952
    %v4954 = vand.u32 %v2932, 4294901760
    %v4955 = vsub.f32 %v2932, %v4954
    %v4956 = vand.u32 %v4955, 4294901760
    %v4957 = vsub.f32 %v4955, %v4956
    %v4958 = vand.u32 %v4957, 4294901760
    %4959 = vmatmul.mubr.f32.gmra.mxu0 %v4958
    %v4960 = vpop.f32.mrf.mxu0
    %v4961 = vadd.f32 %v4849, %v4960
    %v4962 = vpop.f32.mrf.mxu0
    %4963 = vdwg.mxu0
    %4964 = vmatprep.subr.mxu0 0.0
    %v4965 = vand.u32 %v3111, 4294901760
    %v4966 = vsub.f32 %v3111, %v4965
    %v4967 = vand.u32 %v4966, 4294901760
    %v4968 = vsub.f32 %v4966, %v4967
    %v4969 = vand.u32 %v4968, 4294901760
    %4970 = vmatpush1.msra.mxu0 %v4969
    %4971 = vmatprep.subr.mxu0 0.0
    %v4972 = vand.u32 %v3110, 4294901760
    %v4973 = vsub.f32 %v3110, %v4972
    %v4974 = vand.u32 %v4973, 4294901760
    %v4975 = vsub.f32 %v4973, %v4974
    %v4976 = vand.u32 %v4975, 4294901760
    %4977 = vmatpush1.msra.mxu0 %v4976
    %4978 = vmatprep.subr.mxu0 0.0
    %v4979 = vand.u32 %v3109, 4294901760
    %v4980 = vsub.f32 %v3109, %v4979
    %v4981 = vand.u32 %v4980, 4294901760
    %v4982 = vsub.f32 %v4980, %v4981
    %v4983 = vand.u32 %v4982, 4294901760
    %4984 = vmatpush1.msra.mxu0 %v4983
    %4985 = vmatprep.subr.mxu0 0.0
    %v4986 = vand.u32 %v3108, 4294901760
    %v4987 = vsub.f32 %v3108, %v4986
    %v4988 = vand.u32 %v4987, 4294901760
    %v4989 = vsub.f32 %v4987, %v4988
    %v4990 = vand.u32 %v4989, 4294901760
    %4991 = vmatpush1.msra.mxu0 %v4990
    %4992 = vmatprep.subr.mxu0 0.0
    %v4993 = vand.u32 %v3107, 4294901760
    %v4994 = vsub.f32 %v3107, %v4993
    %v4995 = vand.u32 %v4994, 4294901760
    %v4996 = vsub.f32 %v4994, %v4995
    %v4997 = vand.u32 %v4996, 4294901760
    %4998 = vmatpush1.msra.mxu0 %v4997
    %4999 = vmatprep.subr.mxu0 0.0
    %v5000 = vand.u32 %v3106, 4294901760
    %v5001 = vsub.f32 %v3106, %v5000
    %v5002 = vand.u32 %v5001, 4294901760
    %v5003 = vsub.f32 %v5001, %v5002
    %v5004 = vand.u32 %v5003, 4294901760
    %5005 = vmatpush1.msra.mxu0 %v5004
    %5006 = vmatprep.subr.mxu0 0.0
    %v5007 = vand.u32 %v3105, 4294901760
    %v5008 = vsub.f32 %v3105, %v5007
    %v5009 = vand.u32 %v5008, 4294901760
    %v5010 = vsub.f32 %v5008, %v5009
    %v5011 = vand.u32 %v5010, 4294901760
    %5012 = vmatpush1.msra.mxu0 %v5011
    %5013 = vmatprep.subr.mxu0 0.0
    %v5014 = vand.u32 %v3104, 4294901760
    %v5015 = vsub.f32 %v3104, %v5014
    %v5016 = vand.u32 %v5015, 4294901760
    %v5017 = vsub.f32 %v5015, %v5016
    %v5018 = vand.u32 %v5017, 4294901760
    %5019 = vmatpush1.msra.mxu0 %v5018
    %5020 = vmatprep.subr.mxu0 0.0
    %v5021 = vand.u32 %v3103, 4294901760
    %v5022 = vsub.f32 %v3103, %v5021
    %v5023 = vand.u32 %v5022, 4294901760
    %v5024 = vsub.f32 %v5022, %v5023
    %v5025 = vand.u32 %v5024, 4294901760
    %5026 = vmatpush1.msra.mxu0 %v5025
    %5027 = vmatprep.subr.mxu0 0.0
    %v5028 = vand.u32 %v3102, 4294901760
    %v5029 = vsub.f32 %v3102, %v5028
    %v5030 = vand.u32 %v5029, 4294901760
    %v5031 = vsub.f32 %v5029, %v5030
    %v5032 = vand.u32 %v5031, 4294901760
    %5033 = vmatpush1.msra.mxu0 %v5032
    %5034 = vmatprep.subr.mxu0 0.0
    %v5035 = vand.u32 %v3101, 4294901760
    %v5036 = vsub.f32 %v3101, %v5035
    %v5037 = vand.u32 %v5036, 4294901760
    %v5038 = vsub.f32 %v5036, %v5037
    %v5039 = vand.u32 %v5038, 4294901760
    %5040 = vmatpush1.msra.mxu0 %v5039
    %5041 = vmatprep.subr.mxu0 0.0
    %v5042 = vand.u32 %v3100, 4294901760
    %v5043 = vsub.f32 %v3100, %v5042
    %v5044 = vand.u32 %v5043, 4294901760
    %v5045 = vsub.f32 %v5043, %v5044
    %v5046 = vand.u32 %v5045, 4294901760
    %5047 = vmatpush1.msra.mxu0 %v5046
    %5048 = vmatprep.subr.mxu0 0.0
    %v5049 = vand.u32 %v3099, 4294901760
    %v5050 = vsub.f32 %v3099, %v5049
    %v5051 = vand.u32 %v5050, 4294901760
    %v5052 = vsub.f32 %v5050, %v5051
    %v5053 = vand.u32 %v5052, 4294901760
    %5054 = vmatpush1.msra.mxu0 %v5053
    %5055 = vmatprep.subr.mxu0 0.0
    %v5056 = vand.u32 %v3098, 4294901760
    %v5057 = vsub.f32 %v3098, %v5056
    %v5058 = vand.u32 %v5057, 4294901760
    %v5059 = vsub.f32 %v5057, %v5058
    %v5060 = vand.u32 %v5059, 4294901760
    %5061 = vmatpush1.msra.mxu0 %v5060
    %5062 = vmatprep.subr.mxu0 0.0
    %v5063 = vand.u32 %v3097, 4294901760
    %v5064 = vsub.f32 %v3097, %v5063
    %v5065 = vand.u32 %v5064, 4294901760
    %v5066 = vsub.f32 %v5064, %v5065
    %v5067 = vand.u32 %v5066, 4294901760
    %5068 = vmatpush1.msra.mxu0 %v5067
    %5069 = vmatprep.subr.mxu0 0.0
    %v5070 = vand.u32 %v3096, 4294901760
    %v5071 = vsub.f32 %v3096, %v5070
    %v5072 = vand.u32 %v5071, 4294901760
    %v5073 = vsub.f32 %v5071, %v5072
    %v5074 = vand.u32 %v5073, 4294901760
    %5075 = vmatpush1.msra.mxu0 %v5074
    %5076 = vmatprep.subr.mxu0 0.0
    %v5077 = vand.u32 %v3127, 4294901760
    %v5078 = vsub.f32 %v3127, %v5077
    %v5079 = vand.u32 %v5078, 4294901760
    %v5080 = vsub.f32 %v5078, %v5079
    %v5081 = vand.u32 %v5080, 4294901760
    %5082 = vmatpush2.msra.mxu0 %v5081
    %5083 = vmatprep.subr.mxu0 0.0
    %v5084 = vand.u32 %v3126, 4294901760
    %v5085 = vsub.f32 %v3126, %v5084
    %v5086 = vand.u32 %v5085, 4294901760
    %v5087 = vsub.f32 %v5085, %v5086
    %v5088 = vand.u32 %v5087, 4294901760
    %5089 = vmatpush2.msra.mxu0 %v5088
    %5090 = vmatprep.subr.mxu0 0.0
    %v5091 = vand.u32 %v3125, 4294901760
    %v5092 = vsub.f32 %v3125, %v5091
    %v5093 = vand.u32 %v5092, 4294901760
    %v5094 = vsub.f32 %v5092, %v5093
    %v5095 = vand.u32 %v5094, 4294901760
    %5096 = vmatpush2.msra.mxu0 %v5095
    %5097 = vmatprep.subr.mxu0 0.0
    %v5098 = vand.u32 %v3124, 4294901760
    %v5099 = vsub.f32 %v3124, %v5098
    %v5100 = vand.u32 %v5099, 4294901760
    %v5101 = vsub.f32 %v5099, %v5100
    %v5102 = vand.u32 %v5101, 4294901760
    %5103 = vmatpush2.msra.mxu0 %v5102
    %5104 = vmatprep.subr.mxu0 0.0
    %v5105 = vand.u32 %v3123, 4294901760
    %v5106 = vsub.f32 %v3123, %v5105
    %v5107 = vand.u32 %v5106, 4294901760
    %v5108 = vsub.f32 %v5106, %v5107
    %v5109 = vand.u32 %v5108, 4294901760
    %5110 = vmatpush2.msra.mxu0 %v5109
    %5111 = vmatprep.subr.mxu0 0.0
    %v5112 = vand.u32 %v3122, 4294901760
    %v5113 = vsub.f32 %v3122, %v5112
    %v5114 = vand.u32 %v5113, 4294901760
    %v5115 = vsub.f32 %v5113, %v5114
    %v5116 = vand.u32 %v5115, 4294901760
    %5117 = vmatpush2.msra.mxu0 %v5116
    %5118 = vmatprep.subr.mxu0 0.0
    %v5119 = vand.u32 %v3121, 4294901760
    %v5120 = vsub.f32 %v3121, %v5119
    %v5121 = vand.u32 %v5120, 4294901760
    %v5122 = vsub.f32 %v5120, %v5121
    %v5123 = vand.u32 %v5122, 4294901760
    %5124 = vmatpush2.msra.mxu0 %v5123
    %5125 = vmatprep.subr.mxu0 0.0
    %v5126 = vand.u32 %v3120, 4294901760
    %v5127 = vsub.f32 %v3120, %v5126
    %v5128 = vand.u32 %v5127, 4294901760
    %v5129 = vsub.f32 %v5127, %v5128
    %v5130 = vand.u32 %v5129, 4294901760
    %5131 = vmatpush2.msra.mxu0 %v5130
    %5132 = vmatprep.subr.mxu0 0.0
    %v5133 = vand.u32 %v3119, 4294901760
    %v5134 = vsub.f32 %v3119, %v5133
    %v5135 = vand.u32 %v5134, 4294901760
    %v5136 = vsub.f32 %v5134, %v5135
    %v5137 = vand.u32 %v5136, 4294901760
    %5138 = vmatpush2.msra.mxu0 %v5137
    %5139 = vmatprep.subr.mxu0 0.0
    %v5140 = vand.u32 %v3118, 4294901760
    %v5141 = vsub.f32 %v3118, %v5140
    %v5142 = vand.u32 %v5141, 4294901760
    %v5143 = vsub.f32 %v5141, %v5142
    %v5144 = vand.u32 %v5143, 4294901760
    %5145 = vmatpush2.msra.mxu0 %v5144
    %5146 = vmatprep.subr.mxu0 0.0
    %v5147 = vand.u32 %v3117, 4294901760
    %v5148 = vsub.f32 %v3117, %v5147
    %v5149 = vand.u32 %v5148, 4294901760
    %v5150 = vsub.f32 %v5148, %v5149
    %v5151 = vand.u32 %v5150, 4294901760
    %5152 = vmatpush2.msra.mxu0 %v5151
    %5153 = vmatprep.subr.mxu0 0.0
    %v5154 = vand.u32 %v3116, 4294901760
    %v5155 = vsub.f32 %v3116, %v5154
    %v5156 = vand.u32 %v5155, 4294901760
    %v5157 = vsub.f32 %v5155, %v5156
    %v5158 = vand.u32 %v5157, 4294901760
    %5159 = vmatpush2.msra.mxu0 %v5158
    %5160 = vmatprep.subr.mxu0 0.0
    %v5161 = vand.u32 %v3115, 4294901760
    %v5162 = vsub.f32 %v3115, %v5161
    %v5163 = vand.u32 %v5162, 4294901760
    %v5164 = vsub.f32 %v5162, %v5163
    %v5165 = vand.u32 %v5164, 4294901760
    %5166 = vmatpush2.msra.mxu0 %v5165
    %5167 = vmatprep.subr.mxu0 0.0
    %v5168 = vand.u32 %v3114, 4294901760
    %v5169 = vsub.f32 %v3114, %v5168
    %v5170 = vand.u32 %v5169, 4294901760
    %v5171 = vsub.f32 %v5169, %v5170
    %v5172 = vand.u32 %v5171, 4294901760
    %5173 = vmatpush2.msra.mxu0 %v5172
    %5174 = vmatprep.subr.mxu0 0.0
    %v5175 = vand.u32 %v3113, 4294901760
    %v5176 = vsub.f32 %v3113, %v5175
    %v5177 = vand.u32 %v5176, 4294901760
    %v5178 = vsub.f32 %v5176, %v5177
    %v5179 = vand.u32 %v5178, 4294901760
    %5180 = vmatpush2.msra.mxu0 %v5179
    %5181 = vmatprep.subr.mxu0 0.0
    %v5182 = vand.u32 %v3112, 4294901760
    %v5183 = vsub.f32 %v3112, %v5182
    %v5184 = vand.u32 %v5183, 4294901760
    %v5185 = vsub.f32 %v5183, %v5184
    %v5186 = vand.u32 %v5185, 4294901760
    %5187 = vmatpush2.msra.mxu0 %v5186
    %v5188 = vand.u32 %v2934, 4294901760
    %5189 = vmatprep.mubr.f32.mxu0 %v5188
    %v5190 = vand.u32 %v2932, 4294901760
    %5191 = vmatmul.mubr.f32.gmra.mxu0 %v5190
    %v5192 = vpop.f32.mrf.mxu0
    %v5193 = vadd.f32 %v4961, %v5192
    %v5194 = vpop.f32.mrf.mxu0
    %5195 = vdwg.mxu0
    %5196 = vmatprep.subr.mxu0 0.0
    %v5197 = vand.u32 %v3111, 4294901760
    %v5198 = vsub.f32 %v3111, %v5197
    %5199 = vmatpush1.msra.mxu0 %v5198
    %5200 = vmatprep.subr.mxu0 0.0
    %v5201 = vand.u32 %v3110, 4294901760
    %v5202 = vsub.f32 %v3110, %v5201
    %5203 = vmatpush1.msra.mxu0 %v5202
    %5204 = vmatprep.subr.mxu0 0.0
    %v5205 = vand.u32 %v3109, 4294901760
    %v5206 = vsub.f32 %v3109, %v5205
    %5207 = vmatpush1.msra.mxu0 %v5206
    %5208 = vmatprep.subr.mxu0 0.0
    %v5209 = vand.u32 %v3108, 4294901760
    %v5210 = vsub.f32 %v3108, %v5209
    %5211 = vmatpush1.msra.mxu0 %v5210
    %5212 = vmatprep.subr.mxu0 0.0
    %v5213 = vand.u32 %v3107, 4294901760
    %v5214 = vsub.f32 %v3107, %v5213
    %5215 = vmatpush1.msra.mxu0 %v5214
    %5216 = vmatprep.subr.mxu0 0.0
    %v5217 = vand.u32 %v3106, 4294901760
    %v5218 = vsub.f32 %v3106, %v5217
    %5219 = vmatpush1.msra.mxu0 %v5218
    %5220 = vmatprep.subr.mxu0 0.0
    %v5221 = vand.u32 %v3105, 4294901760
    %v5222 = vsub.f32 %v3105, %v5221
    %5223 = vmatpush1.msra.mxu0 %v5222
    %5224 = vmatprep.subr.mxu0 0.0
    %v5225 = vand.u32 %v3104, 4294901760
    %v5226 = vsub.f32 %v3104, %v5225
    %5227 = vmatpush1.msra.mxu0 %v5226
    %5228 = vmatprep.subr.mxu0 0.0
    %v5229 = vand.u32 %v3103, 4294901760
    %v5230 = vsub.f32 %v3103, %v5229
    %5231 = vmatpush1.msra.mxu0 %v5230
    %5232 = vmatprep.subr.mxu0 0.0
    %v5233 = vand.u32 %v3102, 4294901760
    %v5234 = vsub.f32 %v3102, %v5233
    %5235 = vmatpush1.msra.mxu0 %v5234
    %5236 = vmatprep.subr.mxu0 0.0
    %v5237 = vand.u32 %v3101, 4294901760
    %v5238 = vsub.f32 %v3101, %v5237
    %5239 = vmatpush1.msra.mxu0 %v5238
    %5240 = vmatprep.subr.mxu0 0.0
    %v5241 = vand.u32 %v3100, 4294901760
    %v5242 = vsub.f32 %v3100, %v5241
    %5243 = vmatpush1.msra.mxu0 %v5242
    %5244 = vmatprep.subr.mxu0 0.0
    %v5245 = vand.u32 %v3099, 4294901760
    %v5246 = vsub.f32 %v3099, %v5245
    %5247 = vmatpush1.msra.mxu0 %v5246
    %5248 = vmatprep.subr.mxu0 0.0
    %v5249 = vand.u32 %v3098, 4294901760
    %v5250 = vsub.f32 %v3098, %v5249
    %5251 = vmatpush1.msra.mxu0 %v5250
    %5252 = vmatprep.subr.mxu0 0.0
    %v5253 = vand.u32 %v3097, 4294901760
    %v5254 = vsub.f32 %v3097, %v5253
    %5255 = vmatpush1.msra.mxu0 %v5254
    %5256 = vmatprep.subr.mxu0 0.0
    %v5257 = vand.u32 %v3096, 4294901760
    %v5258 = vsub.f32 %v3096, %v5257
    %5259 = vmatpush1.msra.mxu0 %v5258
    %5260 = vmatprep.subr.mxu0 0.0
    %v5261 = vand.u32 %v3127, 4294901760
    %v5262 = vsub.f32 %v3127, %v5261
    %5263 = vmatpush2.msra.mxu0 %v5262
    %5264 = vmatprep.subr.mxu0 0.0
    %v5265 = vand.u32 %v3126, 4294901760
    %v5266 = vsub.f32 %v3126, %v5265
    %5267 = vmatpush2.msra.mxu0 %v5266
    %5268 = vmatprep.subr.mxu0 0.0
    %v5269 = vand.u32 %v3125, 4294901760
    %v5270 = vsub.f32 %v3125, %v5269
    %5271 = vmatpush2.msra.mxu0 %v5270
    %5272 = vmatprep.subr.mxu0 0.0
    %v5273 = vand.u32 %v3124, 4294901760
    %v5274 = vsub.f32 %v3124, %v5273
    %5275 = vmatpush2.msra.mxu0 %v5274
    %5276 = vmatprep.subr.mxu0 0.0
    %v5277 = vand.u32 %v3123, 4294901760
    %v5278 = vsub.f32 %v3123, %v5277
    %5279 = vmatpush2.msra.mxu0 %v5278
    %5280 = vmatprep.subr.mxu0 0.0
    %v5281 = vand.u32 %v3122, 4294901760
    %v5282 = vsub.f32 %v3122, %v5281
    %5283 = vmatpush2.msra.mxu0 %v5282
    %5284 = vmatprep.subr.mxu0 0.0
    %v5285 = vand.u32 %v3121, 4294901760
    %v5286 = vsub.f32 %v3121, %v5285
    %5287 = vmatpush2.msra.mxu0 %v5286
    %5288 = vmatprep.subr.mxu0 0.0
    %v5289 = vand.u32 %v3120, 4294901760
    %v5290 = vsub.f32 %v3120, %v5289
    %5291 = vmatpush2.msra.mxu0 %v5290
    %5292 = vmatprep.subr.mxu0 0.0
    %v5293 = vand.u32 %v3119, 4294901760
    %v5294 = vsub.f32 %v3119, %v5293
    %5295 = vmatpush2.msra.mxu0 %v5294
    %5296 = vmatprep.subr.mxu0 0.0
    %v5297 = vand.u32 %v3118, 4294901760
    %v5298 = vsub.f32 %v3118, %v5297
    %5299 = vmatpush2.msra.mxu0 %v5298
    %5300 = vmatprep.subr.mxu0 0.0
    %v5301 = vand.u32 %v3117, 4294901760
    %v5302 = vsub.f32 %v3117, %v5301
    %5303 = vmatpush2.msra.mxu0 %v5302
    %5304 = vmatprep.subr.mxu0 0.0
    %v5305 = vand.u32 %v3116, 4294901760
    %v5306 = vsub.f32 %v3116, %v5305
    %5307 = vmatpush2.msra.mxu0 %v5306
    %5308 = vmatprep.subr.mxu0 0.0
    %v5309 = vand.u32 %v3115, 4294901760
    %v5310 = vsub.f32 %v3115, %v5309
    %5311 = vmatpush2.msra.mxu0 %v5310
    %5312 = vmatprep.subr.mxu0 0.0
    %v5313 = vand.u32 %v3114, 4294901760
    %v5314 = vsub.f32 %v3114, %v5313
    %5315 = vmatpush2.msra.mxu0 %v5314
    %5316 = vmatprep.subr.mxu0 0.0
    %v5317 = vand.u32 %v3113, 4294901760
    %v5318 = vsub.f32 %v3113, %v5317
    %5319 = vmatpush2.msra.mxu0 %v5318
    %5320 = vmatprep.subr.mxu0 0.0
    %v5321 = vand.u32 %v3112, 4294901760
    %v5322 = vsub.f32 %v3112, %v5321
    %5323 = vmatpush2.msra.mxu0 %v5322
    %v5324 = vand.u32 %v2934, 4294901760
    %v5325 = vsub.f32 %v2934, %v5324
    %5326 = vmatprep.mubr.f32.mxu0 %v5325
    %v5327 = vand.u32 %v2932, 4294901760
    %v5328 = vsub.f32 %v2932, %v5327
    %5329 = vmatmul.mubr.f32.gmra.mxu0 %v5328
    %v5330 = vpop.f32.mrf.mxu0
    %v5331 = vadd.f32 %v5193, %v5330
    %v5332 = vpop.f32.mrf.mxu0
    %5333 = vdwg.mxu0
    %5334 = vmatprep.subr.mxu0 0.0
    %v5335 = vand.u32 %v3111, 4294901760
    %5336 = vmatpush1.msra.mxu0 %v5335
    %5337 = vmatprep.subr.mxu0 0.0
    %v5338 = vand.u32 %v3110, 4294901760
    %5339 = vmatpush1.msra.mxu0 %v5338
    %5340 = vmatprep.subr.mxu0 0.0
    %v5341 = vand.u32 %v3109, 4294901760
    %5342 = vmatpush1.msra.mxu0 %v5341
    %5343 = vmatprep.subr.mxu0 0.0
    %v5344 = vand.u32 %v3108, 4294901760
    %5345 = vmatpush1.msra.mxu0 %v5344
    %5346 = vmatprep.subr.mxu0 0.0
    %v5347 = vand.u32 %v3107, 4294901760
    %5348 = vmatpush1.msra.mxu0 %v5347
    %5349 = vmatprep.subr.mxu0 0.0
    %v5350 = vand.u32 %v3106, 4294901760
    %5351 = vmatpush1.msra.mxu0 %v5350
    %5352 = vmatprep.subr.mxu0 0.0
    %v5353 = vand.u32 %v3105, 4294901760
    %5354 = vmatpush1.msra.mxu0 %v5353
    %5355 = vmatprep.subr.mxu0 0.0
    %v5356 = vand.u32 %v3104, 4294901760
    %5357 = vmatpush1.msra.mxu0 %v5356
    %5358 = vmatprep.subr.mxu0 0.0
    %v5359 = vand.u32 %v3103, 4294901760
    %5360 = vmatpush1.msra.mxu0 %v5359
    %5361 = vmatprep.subr.mxu0 0.0
    %v5362 = vand.u32 %v3102, 4294901760
    %5363 = vmatpush1.msra.mxu0 %v5362
    %5364 = vmatprep.subr.mxu0 0.0
    %v5365 = vand.u32 %v3101, 4294901760
    %5366 = vmatpush1.msra.mxu0 %v5365
    %5367 = vmatprep.subr.mxu0 0.0
    %v5368 = vand.u32 %v3100, 4294901760
    %5369 = vmatpush1.msra.mxu0 %v5368
    %5370 = vmatprep.subr.mxu0 0.0
    %v5371 = vand.u32 %v3099, 4294901760
    %5372 = vmatpush1.msra.mxu0 %v5371
    %5373 = vmatprep.subr.mxu0 0.0
    %v5374 = vand.u32 %v3098, 4294901760
    %5375 = vmatpush1.msra.mxu0 %v5374
    %5376 = vmatprep.subr.mxu0 0.0
    %v5377 = vand.u32 %v3097, 4294901760
    %5378 = vmatpush1.msra.mxu0 %v5377
    %5379 = vmatprep.subr.mxu0 0.0
    %v5380 = vand.u32 %v3096, 4294901760
    %5381 = vmatpush1.msra.mxu0 %v5380
    %5382 = vmatprep.subr.mxu0 0.0
    %v5383 = vand.u32 %v3127, 4294901760
    %5384 = vmatpush2.msra.mxu0 %v5383
    %5385 = vmatprep.subr.mxu0 0.0
    %v5386 = vand.u32 %v3126, 4294901760
    %5387 = vmatpush2.msra.mxu0 %v5386
    %5388 = vmatprep.subr.mxu0 0.0
    %v5389 = vand.u32 %v3125, 4294901760
    %5390 = vmatpush2.msra.mxu0 %v5389
    %5391 = vmatprep.subr.mxu0 0.0
    %v5392 = vand.u32 %v3124, 4294901760
    %5393 = vmatpush2.msra.mxu0 %v5392
    %5394 = vmatprep.subr.mxu0 0.0
    %v5395 = vand.u32 %v3123, 4294901760
    %5396 = vmatpush2.msra.mxu0 %v5395
    %5397 = vmatprep.subr.mxu0 0.0
    %v5398 = vand.u32 %v3122, 4294901760
    %5399 = vmatpush2.msra.mxu0 %v5398
    %5400 = vmatprep.subr.mxu0 0.0
    %v5401 = vand.u32 %v3121, 4294901760
    %5402 = vmatpush2.msra.mxu0 %v5401
    %5403 = vmatprep.subr.mxu0 0.0
    %v5404 = vand.u32 %v3120, 4294901760
    %5405 = vmatpush2.msra.mxu0 %v5404
    %5406 = vmatprep.subr.mxu0 0.0
    %v5407 = vand.u32 %v3119, 4294901760
    %5408 = vmatpush2.msra.mxu0 %v5407
    %5409 = vmatprep.subr.mxu0 0.0
    %v5410 = vand.u32 %v3118, 4294901760
    %5411 = vmatpush2.msra.mxu0 %v5410
    %5412 = vmatprep.subr.mxu0 0.0
    %v5413 = vand.u32 %v3117, 4294901760
    %5414 = vmatpush2.msra.mxu0 %v5413
    %5415 = vmatprep.subr.mxu0 0.0
    %v5416 = vand.u32 %v3116, 4294901760
    %5417 = vmatpush2.msra.mxu0 %v5416
    %5418 = vmatprep.subr.mxu0 0.0
    %v5419 = vand.u32 %v3115, 4294901760
    %5420 = vmatpush2.msra.mxu0 %v5419
    %5421 = vmatprep.subr.mxu0 0.0
    %v5422 = vand.u32 %v3114, 4294901760
    %5423 = vmatpush2.msra.mxu0 %v5422
    %5424 = vmatprep.subr.mxu0 0.0
    %v5425 = vand.u32 %v3113, 4294901760
    %5426 = vmatpush2.msra.mxu0 %v5425
    %5427 = vmatprep.subr.mxu0 0.0
    %v5428 = vand.u32 %v3112, 4294901760
    %5429 = vmatpush2.msra.mxu0 %v5428
    %v5430 = vand.u32 %v2934, 4294901760
    %v5431 = vsub.f32 %v2934, %v5430
    %v5432 = vand.u32 %v5431, 4294901760
    %5433 = vmatprep.mubr.f32.mxu0 %v5432
    %v5434 = vand.u32 %v2932, 4294901760
    %v5435 = vsub.f32 %v2932, %v5434
    %v5436 = vand.u32 %v5435, 4294901760
    %5437 = vmatmul.mubr.f32.gmra.mxu0 %v5436
    %v5438 = vpop.f32.mrf.mxu0
    %v5439 = vadd.f32 %v5331, %v5438
    %v5440 = vpop.f32.mrf.mxu0
    %5441 = vdwg.mxu0
    %5442 = vmatprep.subr.mxu0 0.0
    %v5443 = vand.u32 %v3111, 4294901760
    %v5444 = vsub.f32 %v3111, %v5443
    %v5445 = vand.u32 %v5444, 4294901760
    %5446 = vmatpush1.msra.mxu0 %v5445
    %5447 = vmatprep.subr.mxu0 0.0
    %v5448 = vand.u32 %v3110, 4294901760
    %v5449 = vsub.f32 %v3110, %v5448
    %v5450 = vand.u32 %v5449, 4294901760
    %5451 = vmatpush1.msra.mxu0 %v5450
    %5452 = vmatprep.subr.mxu0 0.0
    %v5453 = vand.u32 %v3109, 4294901760
    %v5454 = vsub.f32 %v3109, %v5453
    %v5455 = vand.u32 %v5454, 4294901760
    %5456 = vmatpush1.msra.mxu0 %v5455
    %5457 = vmatprep.subr.mxu0 0.0
    %v5458 = vand.u32 %v3108, 4294901760
    %v5459 = vsub.f32 %v3108, %v5458
    %v5460 = vand.u32 %v5459, 4294901760
    %5461 = vmatpush1.msra.mxu0 %v5460
    %5462 = vmatprep.subr.mxu0 0.0
    %v5463 = vand.u32 %v3107, 4294901760
    %v5464 = vsub.f32 %v3107, %v5463
    %v5465 = vand.u32 %v5464, 4294901760
    %5466 = vmatpush1.msra.mxu0 %v5465
    %5467 = vmatprep.subr.mxu0 0.0
    %v5468 = vand.u32 %v3106, 4294901760
    %v5469 = vsub.f32 %v3106, %v5468
    %v5470 = vand.u32 %v5469, 4294901760
    %5471 = vmatpush1.msra.mxu0 %v5470
    %5472 = vmatprep.subr.mxu0 0.0
    %v5473 = vand.u32 %v3105, 4294901760
    %v5474 = vsub.f32 %v3105, %v5473
    %v5475 = vand.u32 %v5474, 4294901760
    %5476 = vmatpush1.msra.mxu0 %v5475
    %5477 = vmatprep.subr.mxu0 0.0
    %v5478 = vand.u32 %v3104, 4294901760
    %v5479 = vsub.f32 %v3104, %v5478
    %v5480 = vand.u32 %v5479, 4294901760
    %5481 = vmatpush1.msra.mxu0 %v5480
    %5482 = vmatprep.subr.mxu0 0.0
    %v5483 = vand.u32 %v3103, 4294901760
    %v5484 = vsub.f32 %v3103, %v5483
    %v5485 = vand.u32 %v5484, 4294901760
    %5486 = vmatpush1.msra.mxu0 %v5485
    %5487 = vmatprep.subr.mxu0 0.0
    %v5488 = vand.u32 %v3102, 4294901760
    %v5489 = vsub.f32 %v3102, %v5488
    %v5490 = vand.u32 %v5489, 4294901760
    %5491 = vmatpush1.msra.mxu0 %v5490
    %5492 = vmatprep.subr.mxu0 0.0
    %v5493 = vand.u32 %v3101, 4294901760
    %v5494 = vsub.f32 %v3101, %v5493
    %v5495 = vand.u32 %v5494, 4294901760
    %5496 = vmatpush1.msra.mxu0 %v5495
    %5497 = vmatprep.subr.mxu0 0.0
    %v5498 = vand.u32 %v3100, 4294901760
    %v5499 = vsub.f32 %v3100, %v5498
    %v5500 = vand.u32 %v5499, 4294901760
    %5501 = vmatpush1.msra.mxu0 %v5500
    %5502 = vmatprep.subr.mxu0 0.0
    %v5503 = vand.u32 %v3099, 4294901760
    %v5504 = vsub.f32 %v3099, %v5503
    %v5505 = vand.u32 %v5504, 4294901760
    %5506 = vmatpush1.msra.mxu0 %v5505
    %5507 = vmatprep.subr.mxu0 0.0
    %v5508 = vand.u32 %v3098, 4294901760
    %v5509 = vsub.f32 %v3098, %v5508
    %v5510 = vand.u32 %v5509, 4294901760
    %5511 = vmatpush1.msra.mxu0 %v5510
    %5512 = vmatprep.subr.mxu0 0.0
    %v5513 = vand.u32 %v3097, 4294901760
    %v5514 = vsub.f32 %v3097, %v5513
    %v5515 = vand.u32 %v5514, 4294901760
    %5516 = vmatpush1.msra.mxu0 %v5515
    %5517 = vmatprep.subr.mxu0 0.0
    %v5518 = vand.u32 %v3096, 4294901760
    %v5519 = vsub.f32 %v3096, %v5518
    %v5520 = vand.u32 %v5519, 4294901760
    %5521 = vmatpush1.msra.mxu0 %v5520
    %5522 = vmatprep.subr.mxu0 0.0
    %v5523 = vand.u32 %v3127, 4294901760
    %v5524 = vsub.f32 %v3127, %v5523
    %v5525 = vand.u32 %v5524, 4294901760
    %5526 = vmatpush2.msra.mxu0 %v5525
    %5527 = vmatprep.subr.mxu0 0.0
    %v5528 = vand.u32 %v3126, 4294901760
    %v5529 = vsub.f32 %v3126, %v5528
    %v5530 = vand.u32 %v5529, 4294901760
    %5531 = vmatpush2.msra.mxu0 %v5530
    %5532 = vmatprep.subr.mxu0 0.0
    %v5533 = vand.u32 %v3125, 4294901760
    %v5534 = vsub.f32 %v3125, %v5533
    %v5535 = vand.u32 %v5534, 4294901760
    %5536 = vmatpush2.msra.mxu0 %v5535
    %5537 = vmatprep.subr.mxu0 0.0
    %v5538 = vand.u32 %v3124, 4294901760
    %v5539 = vsub.f32 %v3124, %v5538
    %v5540 = vand.u32 %v5539, 4294901760
    %5541 = vmatpush2.msra.mxu0 %v5540
    %5542 = vmatprep.subr.mxu0 0.0
    %v5543 = vand.u32 %v3123, 4294901760
    %v5544 = vsub.f32 %v3123, %v5543
    %v5545 = vand.u32 %v5544, 4294901760
    %5546 = vmatpush2.msra.mxu0 %v5545
    %5547 = vmatprep.subr.mxu0 0.0
    %v5548 = vand.u32 %v3122, 4294901760
    %v5549 = vsub.f32 %v3122, %v5548
    %v5550 = vand.u32 %v5549, 4294901760
    %5551 = vmatpush2.msra.mxu0 %v5550
    %5552 = vmatprep.subr.mxu0 0.0
    %v5553 = vand.u32 %v3121, 4294901760
    %v5554 = vsub.f32 %v3121, %v5553
    %v5555 = vand.u32 %v5554, 4294901760
    %5556 = vmatpush2.msra.mxu0 %v5555
    %5557 = vmatprep.subr.mxu0 0.0
    %v5558 = vand.u32 %v3120, 4294901760
    %v5559 = vsub.f32 %v3120, %v5558
    %v5560 = vand.u32 %v5559, 4294901760
    %5561 = vmatpush2.msra.mxu0 %v5560
    %5562 = vmatprep.subr.mxu0 0.0
    %v5563 = vand.u32 %v3119, 4294901760
    %v5564 = vsub.f32 %v3119, %v5563
    %v5565 = vand.u32 %v5564, 4294901760
    %5566 = vmatpush2.msra.mxu0 %v5565
    %5567 = vmatprep.subr.mxu0 0.0
    %v5568 = vand.u32 %v3118, 4294901760
    %v5569 = vsub.f32 %v3118, %v5568
    %v5570 = vand.u32 %v5569, 4294901760
    %5571 = vmatpush2.msra.mxu0 %v5570
    %5572 = vmatprep.subr.mxu0 0.0
    %v5573 = vand.u32 %v3117, 4294901760
    %v5574 = vsub.f32 %v3117, %v5573
    %v5575 = vand.u32 %v5574, 4294901760
    %5576 = vmatpush2.msra.mxu0 %v5575
    %5577 = vmatprep.subr.mxu0 0.0
    %v5578 = vand.u32 %v3116, 4294901760
    %v5579 = vsub.f32 %v3116, %v5578
    %v5580 = vand.u32 %v5579, 4294901760
    %5581 = vmatpush2.msra.mxu0 %v5580
    %5582 = vmatprep.subr.mxu0 0.0
    %v5583 = vand.u32 %v3115, 4294901760
    %v5584 = vsub.f32 %v3115, %v5583
    %v5585 = vand.u32 %v5584, 4294901760
    %5586 = vmatpush2.msra.mxu0 %v5585
    %5587 = vmatprep.subr.mxu0 0.0
    %v5588 = vand.u32 %v3114, 4294901760
    %v5589 = vsub.f32 %v3114, %v5588
    %v5590 = vand.u32 %v5589, 4294901760
    %5591 = vmatpush2.msra.mxu0 %v5590
    %5592 = vmatprep.subr.mxu0 0.0
    %v5593 = vand.u32 %v3113, 4294901760
    %v5594 = vsub.f32 %v3113, %v5593
    %v5595 = vand.u32 %v5594, 4294901760
    %5596 = vmatpush2.msra.mxu0 %v5595
    %5597 = vmatprep.subr.mxu0 0.0
    %v5598 = vand.u32 %v3112, 4294901760
    %v5599 = vsub.f32 %v3112, %v5598
    %v5600 = vand.u32 %v5599, 4294901760
    %5601 = vmatpush2.msra.mxu0 %v5600
    %v5602 = vand.u32 %v2934, 4294901760
    %5603 = vmatprep.mubr.f32.mxu0 %v5602
    %v5604 = vand.u32 %v2932, 4294901760
    %5605 = vmatmul.mubr.f32.gmra.mxu0 %v5604
    %v5606 = vpop.f32.mrf.mxu0
    %v5607 = vadd.f32 %v5439, %v5606
    %v5608 = vpop.f32.mrf.mxu0
    %5609 = vdwg.mxu0
    %5610 = vmatprep.subr.mxu0 0.0
    %v5611 = vand.u32 %v3111, 4294901760
    %5612 = vmatpush1.msra.mxu0 %v5611
    %5613 = vmatprep.subr.mxu0 0.0
    %v5614 = vand.u32 %v3110, 4294901760
    %5615 = vmatpush1.msra.mxu0 %v5614
    %5616 = vmatprep.subr.mxu0 0.0
    %v5617 = vand.u32 %v3109, 4294901760
    %5618 = vmatpush1.msra.mxu0 %v5617
    %5619 = vmatprep.subr.mxu0 0.0
    %v5620 = vand.u32 %v3108, 4294901760
    %5621 = vmatpush1.msra.mxu0 %v5620
    %5622 = vmatprep.subr.mxu0 0.0
    %v5623 = vand.u32 %v3107, 4294901760
    %5624 = vmatpush1.msra.mxu0 %v5623
    %5625 = vmatprep.subr.mxu0 0.0
    %v5626 = vand.u32 %v3106, 4294901760
    %5627 = vmatpush1.msra.mxu0 %v5626
    %5628 = vmatprep.subr.mxu0 0.0
    %v5629 = vand.u32 %v3105, 4294901760
    %5630 = vmatpush1.msra.mxu0 %v5629
    %5631 = vmatprep.subr.mxu0 0.0
    %v5632 = vand.u32 %v3104, 4294901760
    %5633 = vmatpush1.msra.mxu0 %v5632
    %5634 = vmatprep.subr.mxu0 0.0
    %v5635 = vand.u32 %v3103, 4294901760
    %5636 = vmatpush1.msra.mxu0 %v5635
    %5637 = vmatprep.subr.mxu0 0.0
    %v5638 = vand.u32 %v3102, 4294901760
    %5639 = vmatpush1.msra.mxu0 %v5638
    %5640 = vmatprep.subr.mxu0 0.0
    %v5641 = vand.u32 %v3101, 4294901760
    %5642 = vmatpush1.msra.mxu0 %v5641
    %5643 = vmatprep.subr.mxu0 0.0
    %v5644 = vand.u32 %v3100, 4294901760
    %5645 = vmatpush1.msra.mxu0 %v5644
    %5646 = vmatprep.subr.mxu0 0.0
    %v5647 = vand.u32 %v3099, 4294901760
    %5648 = vmatpush1.msra.mxu0 %v5647
    %5649 = vmatprep.subr.mxu0 0.0
    %v5650 = vand.u32 %v3098, 4294901760
    %5651 = vmatpush1.msra.mxu0 %v5650
    %5652 = vmatprep.subr.mxu0 0.0
    %v5653 = vand.u32 %v3097, 4294901760
    %5654 = vmatpush1.msra.mxu0 %v5653
    %5655 = vmatprep.subr.mxu0 0.0
    %v5656 = vand.u32 %v3096, 4294901760
    %5657 = vmatpush1.msra.mxu0 %v5656
    %5658 = vmatprep.subr.mxu0 0.0
    %v5659 = vand.u32 %v3127, 4294901760
    %5660 = vmatpush2.msra.mxu0 %v5659
    %5661 = vmatprep.subr.mxu0 0.0
    %v5662 = vand.u32 %v3126, 4294901760
    %5663 = vmatpush2.msra.mxu0 %v5662
    %5664 = vmatprep.subr.mxu0 0.0
    %v5665 = vand.u32 %v3125, 4294901760
    %5666 = vmatpush2.msra.mxu0 %v5665
    %5667 = vmatprep.subr.mxu0 0.0
    %v5668 = vand.u32 %v3124, 4294901760
    %5669 = vmatpush2.msra.mxu0 %v5668
    %5670 = vmatprep.subr.mxu0 0.0
    %v5671 = vand.u32 %v3123, 4294901760
    %5672 = vmatpush2.msra.mxu0 %v5671
    %5673 = vmatprep.subr.mxu0 0.0
    %v5674 = vand.u32 %v3122, 4294901760
    %5675 = vmatpush2.msra.mxu0 %v5674
    %5676 = vmatprep.subr.mxu0 0.0
    %v5677 = vand.u32 %v3121, 4294901760
    %5678 = vmatpush2.msra.mxu0 %v5677
    %5679 = vmatprep.subr.mxu0 0.0
    %v5680 = vand.u32 %v3120, 4294901760
    %5681 = vmatpush2.msra.mxu0 %v5680
    %5682 = vmatprep.subr.mxu0 0.0
    %v5683 = vand.u32 %v3119, 4294901760
    %5684 = vmatpush2.msra.mxu0 %v5683
    %5685 = vmatprep.subr.mxu0 0.0
    %v5686 = vand.u32 %v3118, 4294901760
    %5687 = vmatpush2.msra.mxu0 %v5686
    %5688 = vmatprep.subr.mxu0 0.0
    %v5689 = vand.u32 %v3117, 4294901760
    %5690 = vmatpush2.msra.mxu0 %v5689
    %5691 = vmatprep.subr.mxu0 0.0
    %v5692 = vand.u32 %v3116, 4294901760
    %5693 = vmatpush2.msra.mxu0 %v5692
    %5694 = vmatprep.subr.mxu0 0.0
    %v5695 = vand.u32 %v3115, 4294901760
    %5696 = vmatpush2.msra.mxu0 %v5695
    %5697 = vmatprep.subr.mxu0 0.0
    %v5698 = vand.u32 %v3114, 4294901760
    %5699 = vmatpush2.msra.mxu0 %v5698
    %5700 = vmatprep.subr.mxu0 0.0
    %v5701 = vand.u32 %v3113, 4294901760
    %5702 = vmatpush2.msra.mxu0 %v5701
    %5703 = vmatprep.subr.mxu0 0.0
    %v5704 = vand.u32 %v3112, 4294901760
    %5705 = vmatpush2.msra.mxu0 %v5704
    %v5706 = vand.u32 %v2934, 4294901760
    %5707 = vmatprep.mubr.f32.mxu0 %v5706
    %v5708 = vand.u32 %v2932, 4294901760
    %5709 = vmatmul.mubr.f32.gmra.mxu0 %v5708
    %v5710 = vpop.f32.mrf.mxu0
    %v5711 = vadd.f32 %v5607, %v5710
    %v5712 = vpop.f32.mrf.mxu0
    %5713 = vdwg.mxu0
    %5714 = vmatprep.subr.mxu0 0.0
    %v5715 = vand.u32 %v2951, 4294901760
    %5716 = vmatpush1.msra.mxu0 %v5715
    %5717 = vmatprep.subr.mxu0 0.0
    %v5718 = vand.u32 %v2950, 4294901760
    %5719 = vmatpush1.msra.mxu0 %v5718
    %5720 = vmatprep.subr.mxu0 0.0
    %v5721 = vand.u32 %v2949, 4294901760
    %5722 = vmatpush1.msra.mxu0 %v5721
    %5723 = vmatprep.subr.mxu0 0.0
    %v5724 = vand.u32 %v2948, 4294901760
    %5725 = vmatpush1.msra.mxu0 %v5724
    %5726 = vmatprep.subr.mxu0 0.0
    %v5727 = vand.u32 %v2947, 4294901760
    %5728 = vmatpush1.msra.mxu0 %v5727
    %5729 = vmatprep.subr.mxu0 0.0
    %v5730 = vand.u32 %v2946, 4294901760
    %5731 = vmatpush1.msra.mxu0 %v5730
    %5732 = vmatprep.subr.mxu0 0.0
    %v5733 = vand.u32 %v2945, 4294901760
    %5734 = vmatpush1.msra.mxu0 %v5733
    %5735 = vmatprep.subr.mxu0 0.0
    %v5736 = vand.u32 %v2944, 4294901760
    %5737 = vmatpush1.msra.mxu0 %v5736
    %5738 = vmatprep.subr.mxu0 0.0
    %v5739 = vand.u32 %v2943, 4294901760
    %5740 = vmatpush1.msra.mxu0 %v5739
    %5741 = vmatprep.subr.mxu0 0.0
    %v5742 = vand.u32 %v2942, 4294901760
    %5743 = vmatpush1.msra.mxu0 %v5742
    %5744 = vmatprep.subr.mxu0 0.0
    %v5745 = vand.u32 %v2941, 4294901760
    %5746 = vmatpush1.msra.mxu0 %v5745
    %5747 = vmatprep.subr.mxu0 0.0
    %v5748 = vand.u32 %v2940, 4294901760
    %5749 = vmatpush1.msra.mxu0 %v5748
    %5750 = vmatprep.subr.mxu0 0.0
    %v5751 = vand.u32 %v2939, 4294901760
    %5752 = vmatpush1.msra.mxu0 %v5751
    %5753 = vmatprep.subr.mxu0 0.0
    %v5754 = vand.u32 %v2938, 4294901760
    %5755 = vmatpush1.msra.mxu0 %v5754
    %5756 = vmatprep.subr.mxu0 0.0
    %v5757 = vand.u32 %v2937, 4294901760
    %5758 = vmatpush1.msra.mxu0 %v5757
    %5759 = vmatprep.subr.mxu0 0.0
    %v5760 = vand.u32 %v2936, 4294901760
    %5761 = vmatpush1.msra.mxu0 %v5760
    %5762 = vmatprep.subr.mxu0 0.0
    %v5763 = vand.u32 %v2967, 4294901760
    %5764 = vmatpush2.msra.mxu0 %v5763
    %5765 = vmatprep.subr.mxu0 0.0
    %v5766 = vand.u32 %v2966, 4294901760
    %5767 = vmatpush2.msra.mxu0 %v5766
    %5768 = vmatprep.subr.mxu0 0.0
    %v5769 = vand.u32 %v2965, 4294901760
    %5770 = vmatpush2.msra.mxu0 %v5769
    %5771 = vmatprep.subr.mxu0 0.0
    %v5772 = vand.u32 %v2964, 4294901760
    %5773 = vmatpush2.msra.mxu0 %v5772
    %5774 = vmatprep.subr.mxu0 0.0
    %v5775 = vand.u32 %v2963, 4294901760
    %5776 = vmatpush2.msra.mxu0 %v5775
    %5777 = vmatprep.subr.mxu0 0.0
    %v5778 = vand.u32 %v2962, 4294901760
    %5779 = vmatpush2.msra.mxu0 %v5778
    %5780 = vmatprep.subr.mxu0 0.0
    %v5781 = vand.u32 %v2961, 4294901760
    %5782 = vmatpush2.msra.mxu0 %v5781
    %5783 = vmatprep.subr.mxu0 0.0
    %v5784 = vand.u32 %v2960, 4294901760
    %5785 = vmatpush2.msra.mxu0 %v5784
    %5786 = vmatprep.subr.mxu0 0.0
    %v5787 = vand.u32 %v2959, 4294901760
    %5788 = vmatpush2.msra.mxu0 %v5787
    %5789 = vmatprep.subr.mxu0 0.0
    %v5790 = vand.u32 %v2958, 4294901760
    %5791 = vmatpush2.msra.mxu0 %v5790
    %5792 = vmatprep.subr.mxu0 0.0
    %v5793 = vand.u32 %v2957, 4294901760
    %5794 = vmatpush2.msra.mxu0 %v5793
    %5795 = vmatprep.subr.mxu0 0.0
    %v5796 = vand.u32 %v2956, 4294901760
    %5797 = vmatpush2.msra.mxu0 %v5796
    %5798 = vmatprep.subr.mxu0 0.0
    %v5799 = vand.u32 %v2955, 4294901760
    %5800 = vmatpush2.msra.mxu0 %v5799
    %5801 = vmatprep.subr.mxu0 0.0
    %v5802 = vand.u32 %v2954, 4294901760
    %5803 = vmatpush2.msra.mxu0 %v5802
    %5804 = vmatprep.subr.mxu0 0.0
    %v5805 = vand.u32 %v2953, 4294901760
    %5806 = vmatpush2.msra.mxu0 %v5805
    %5807 = vmatprep.subr.mxu0 0.0
    %v5808 = vand.u32 %v2952, 4294901760
    %5809 = vmatpush2.msra.mxu0 %v5808
    %v5810 = vand.u32 %v552, 4294901760
    %v5811 = vsub.f32 %v552, %v5810
    %v5812 = vand.u32 %v5811, 4294901760
    %v5813 = vsub.f32 %v5811, %v5812
    %v5814 = vand.u32 %v5813, 4294901760
    %5815 = vmatprep.mubr.f32.mxu0 %v5814
    %v5816 = vand.u32 %v550, 4294901760
    %v5817 = vsub.f32 %v550, %v5816
    %v5818 = vand.u32 %v5817, 4294901760
    %v5819 = vsub.f32 %v5817, %v5818
    %v5820 = vand.u32 %v5819, 4294901760
    %5821 = vmatmul.mubr.f32.gmra.mxu0 %v5820
    %v5822 = vpop.f32.mrf.mxu0
    %v5823 = vadd.f32 %v5711, %v5822
    %v5824 = vpop.f32.mrf.mxu0
    %5825 = vdwg.mxu0
    %5826 = vmatprep.subr.mxu0 0.0
    %v5827 = vand.u32 %v2951, 4294901760
    %v5828 = vsub.f32 %v2951, %v5827
    %v5829 = vand.u32 %v5828, 4294901760
    %v5830 = vsub.f32 %v5828, %v5829
    %v5831 = vand.u32 %v5830, 4294901760
    %5832 = vmatpush1.msra.mxu0 %v5831
    %5833 = vmatprep.subr.mxu0 0.0
    %v5834 = vand.u32 %v2950, 4294901760
    %v5835 = vsub.f32 %v2950, %v5834
    %v5836 = vand.u32 %v5835, 4294901760
    %v5837 = vsub.f32 %v5835, %v5836
    %v5838 = vand.u32 %v5837, 4294901760
    %5839 = vmatpush1.msra.mxu0 %v5838
    %5840 = vmatprep.subr.mxu0 0.0
    %v5841 = vand.u32 %v2949, 4294901760
    %v5842 = vsub.f32 %v2949, %v5841
    %v5843 = vand.u32 %v5842, 4294901760
    %v5844 = vsub.f32 %v5842, %v5843
    %v5845 = vand.u32 %v5844, 4294901760
    %5846 = vmatpush1.msra.mxu0 %v5845
    %5847 = vmatprep.subr.mxu0 0.0
    %v5848 = vand.u32 %v2948, 4294901760
    %v5849 = vsub.f32 %v2948, %v5848
    %v5850 = vand.u32 %v5849, 4294901760
    %v5851 = vsub.f32 %v5849, %v5850
    %v5852 = vand.u32 %v5851, 4294901760
    %5853 = vmatpush1.msra.mxu0 %v5852
    %5854 = vmatprep.subr.mxu0 0.0
    %v5855 = vand.u32 %v2947, 4294901760
    %v5856 = vsub.f32 %v2947, %v5855
    %v5857 = vand.u32 %v5856, 4294901760
    %v5858 = vsub.f32 %v5856, %v5857
    %v5859 = vand.u32 %v5858, 4294901760
    %5860 = vmatpush1.msra.mxu0 %v5859
    %5861 = vmatprep.subr.mxu0 0.0
    %v5862 = vand.u32 %v2946, 4294901760
    %v5863 = vsub.f32 %v2946, %v5862
    %v5864 = vand.u32 %v5863, 4294901760
    %v5865 = vsub.f32 %v5863, %v5864
    %v5866 = vand.u32 %v5865, 4294901760
    %5867 = vmatpush1.msra.mxu0 %v5866
    %5868 = vmatprep.subr.mxu0 0.0
    %v5869 = vand.u32 %v2945, 4294901760
    %v5870 = vsub.f32 %v2945, %v5869
    %v5871 = vand.u32 %v5870, 4294901760
    %v5872 = vsub.f32 %v5870, %v5871
    %v5873 = vand.u32 %v5872, 4294901760
    %5874 = vmatpush1.msra.mxu0 %v5873
    %5875 = vmatprep.subr.mxu0 0.0
    %v5876 = vand.u32 %v2944, 4294901760
    %v5877 = vsub.f32 %v2944, %v5876
    %v5878 = vand.u32 %v5877, 4294901760
    %v5879 = vsub.f32 %v5877, %v5878
    %v5880 = vand.u32 %v5879, 4294901760
    %5881 = vmatpush1.msra.mxu0 %v5880
    %5882 = vmatprep.subr.mxu0 0.0
    %v5883 = vand.u32 %v2943, 4294901760
    %v5884 = vsub.f32 %v2943, %v5883
    %v5885 = vand.u32 %v5884, 4294901760
    %v5886 = vsub.f32 %v5884, %v5885
    %v5887 = vand.u32 %v5886, 4294901760
    %5888 = vmatpush1.msra.mxu0 %v5887
    %5889 = vmatprep.subr.mxu0 0.0
    %v5890 = vand.u32 %v2942, 4294901760
    %v5891 = vsub.f32 %v2942, %v5890
    %v5892 = vand.u32 %v5891, 4294901760
    %v5893 = vsub.f32 %v5891, %v5892
    %v5894 = vand.u32 %v5893, 4294901760
    %5895 = vmatpush1.msra.mxu0 %v5894
    %5896 = vmatprep.subr.mxu0 0.0
    %v5897 = vand.u32 %v2941, 4294901760
    %v5898 = vsub.f32 %v2941, %v5897
    %v5899 = vand.u32 %v5898, 4294901760
    %v5900 = vsub.f32 %v5898, %v5899
    %v5901 = vand.u32 %v5900, 4294901760
    %5902 = vmatpush1.msra.mxu0 %v5901
    %5903 = vmatprep.subr.mxu0 0.0
    %v5904 = vand.u32 %v2940, 4294901760
    %v5905 = vsub.f32 %v2940, %v5904
    %v5906 = vand.u32 %v5905, 4294901760
    %v5907 = vsub.f32 %v5905, %v5906
    %v5908 = vand.u32 %v5907, 4294901760
    %5909 = vmatpush1.msra.mxu0 %v5908
    %5910 = vmatprep.subr.mxu0 0.0
    %v5911 = vand.u32 %v2939, 4294901760
    %v5912 = vsub.f32 %v2939, %v5911
    %v5913 = vand.u32 %v5912, 4294901760
    %v5914 = vsub.f32 %v5912, %v5913
    %v5915 = vand.u32 %v5914, 4294901760
    %5916 = vmatpush1.msra.mxu0 %v5915
    %5917 = vmatprep.subr.mxu0 0.0
    %v5918 = vand.u32 %v2938, 4294901760
    %v5919 = vsub.f32 %v2938, %v5918
    %v5920 = vand.u32 %v5919, 4294901760
    %v5921 = vsub.f32 %v5919, %v5920
    %v5922 = vand.u32 %v5921, 4294901760
    %5923 = vmatpush1.msra.mxu0 %v5922
    %5924 = vmatprep.subr.mxu0 0.0
    %v5925 = vand.u32 %v2937, 4294901760
    %v5926 = vsub.f32 %v2937, %v5925
    %v5927 = vand.u32 %v5926, 4294901760
    %v5928 = vsub.f32 %v5926, %v5927
    %v5929 = vand.u32 %v5928, 4294901760
    %5930 = vmatpush1.msra.mxu0 %v5929
    %5931 = vmatprep.subr.mxu0 0.0
    %v5932 = vand.u32 %v2936, 4294901760
    %v5933 = vsub.f32 %v2936, %v5932
    %v5934 = vand.u32 %v5933, 4294901760
    %v5935 = vsub.f32 %v5933, %v5934
    %v5936 = vand.u32 %v5935, 4294901760
    %5937 = vmatpush1.msra.mxu0 %v5936
    %5938 = vmatprep.subr.mxu0 0.0
    %v5939 = vand.u32 %v2967, 4294901760
    %v5940 = vsub.f32 %v2967, %v5939
    %v5941 = vand.u32 %v5940, 4294901760
    %v5942 = vsub.f32 %v5940, %v5941
    %v5943 = vand.u32 %v5942, 4294901760
    %5944 = vmatpush2.msra.mxu0 %v5943
    %5945 = vmatprep.subr.mxu0 0.0
    %v5946 = vand.u32 %v2966, 4294901760
    %v5947 = vsub.f32 %v2966, %v5946
    %v5948 = vand.u32 %v5947, 4294901760
    %v5949 = vsub.f32 %v5947, %v5948
    %v5950 = vand.u32 %v5949, 4294901760
    %5951 = vmatpush2.msra.mxu0 %v5950
    %5952 = vmatprep.subr.mxu0 0.0
    %v5953 = vand.u32 %v2965, 4294901760
    %v5954 = vsub.f32 %v2965, %v5953
    %v5955 = vand.u32 %v5954, 4294901760
    %v5956 = vsub.f32 %v5954, %v5955
    %v5957 = vand.u32 %v5956, 4294901760
    %5958 = vmatpush2.msra.mxu0 %v5957
    %5959 = vmatprep.subr.mxu0 0.0
    %v5960 = vand.u32 %v2964, 4294901760
    %v5961 = vsub.f32 %v2964, %v5960
    %v5962 = vand.u32 %v5961, 4294901760
    %v5963 = vsub.f32 %v5961, %v5962
    %v5964 = vand.u32 %v5963, 4294901760
    %5965 = vmatpush2.msra.mxu0 %v5964
    %5966 = vmatprep.subr.mxu0 0.0
    %v5967 = vand.u32 %v2963, 4294901760
    %v5968 = vsub.f32 %v2963, %v5967
    %v5969 = vand.u32 %v5968, 4294901760
    %v5970 = vsub.f32 %v5968, %v5969
    %v5971 = vand.u32 %v5970, 4294901760
    %5972 = vmatpush2.msra.mxu0 %v5971
    %5973 = vmatprep.subr.mxu0 0.0
    %v5974 = vand.u32 %v2962, 4294901760
    %v5975 = vsub.f32 %v2962, %v5974
    %v5976 = vand.u32 %v5975, 4294901760
    %v5977 = vsub.f32 %v5975, %v5976
    %v5978 = vand.u32 %v5977, 4294901760
    %5979 = vmatpush2.msra.mxu0 %v5978
    %5980 = vmatprep.subr.mxu0 0.0
    %v5981 = vand.u32 %v2961, 4294901760
    %v5982 = vsub.f32 %v2961, %v5981
    %v5983 = vand.u32 %v5982, 4294901760
    %v5984 = vsub.f32 %v5982, %v5983
    %v5985 = vand.u32 %v5984, 4294901760
    %5986 = vmatpush2.msra.mxu0 %v5985
    %5987 = vmatprep.subr.mxu0 0.0
    %v5988 = vand.u32 %v2960, 4294901760
    %v5989 = vsub.f32 %v2960, %v5988
    %v5990 = vand.u32 %v5989, 4294901760
    %v5991 = vsub.f32 %v5989, %v5990
    %v5992 = vand.u32 %v5991, 4294901760
    %5993 = vmatpush2.msra.mxu0 %v5992
    %5994 = vmatprep.subr.mxu0 0.0
    %v5995 = vand.u32 %v2959, 4294901760
    %v5996 = vsub.f32 %v2959, %v5995
    %v5997 = vand.u32 %v5996, 4294901760
    %v5998 = vsub.f32 %v5996, %v5997
    %v5999 = vand.u32 %v5998, 4294901760
    %6000 = vmatpush2.msra.mxu0 %v5999
    %6001 = vmatprep.subr.mxu0 0.0
    %v6002 = vand.u32 %v2958, 4294901760
    %v6003 = vsub.f32 %v2958, %v6002
    %v6004 = vand.u32 %v6003, 4294901760
    %v6005 = vsub.f32 %v6003, %v6004
    %v6006 = vand.u32 %v6005, 4294901760
    %6007 = vmatpush2.msra.mxu0 %v6006
    %6008 = vmatprep.subr.mxu0 0.0
    %v6009 = vand.u32 %v2957, 4294901760
    %v6010 = vsub.f32 %v2957, %v6009
    %v6011 = vand.u32 %v6010, 4294901760
    %v6012 = vsub.f32 %v6010, %v6011
    %v6013 = vand.u32 %v6012, 4294901760
    %6014 = vmatpush2.msra.mxu0 %v6013
    %6015 = vmatprep.subr.mxu0 0.0
    %v6016 = vand.u32 %v2956, 4294901760
    %v6017 = vsub.f32 %v2956, %v6016
    %v6018 = vand.u32 %v6017, 4294901760
    %v6019 = vsub.f32 %v6017, %v6018
    %v6020 = vand.u32 %v6019, 4294901760
    %6021 = vmatpush2.msra.mxu0 %v6020
    %6022 = vmatprep.subr.mxu0 0.0
    %v6023 = vand.u32 %v2955, 4294901760
    %v6024 = vsub.f32 %v2955, %v6023
    %v6025 = vand.u32 %v6024, 4294901760
    %v6026 = vsub.f32 %v6024, %v6025
    %v6027 = vand.u32 %v6026, 4294901760
    %6028 = vmatpush2.msra.mxu0 %v6027
    %6029 = vmatprep.subr.mxu0 0.0
    %v6030 = vand.u32 %v2954, 4294901760
    %v6031 = vsub.f32 %v2954, %v6030
    %v6032 = vand.u32 %v6031, 4294901760
    %v6033 = vsub.f32 %v6031, %v6032
    %v6034 = vand.u32 %v6033, 4294901760
    %6035 = vmatpush2.msra.mxu0 %v6034
    %6036 = vmatprep.subr.mxu0 0.0
    %v6037 = vand.u32 %v2953, 4294901760
    %v6038 = vsub.f32 %v2953, %v6037
    %v6039 = vand.u32 %v6038, 4294901760
    %v6040 = vsub.f32 %v6038, %v6039
    %v6041 = vand.u32 %v6040, 4294901760
    %6042 = vmatpush2.msra.mxu0 %v6041
    %6043 = vmatprep.subr.mxu0 0.0
    %v6044 = vand.u32 %v2952, 4294901760
    %v6045 = vsub.f32 %v2952, %v6044
    %v6046 = vand.u32 %v6045, 4294901760
    %v6047 = vsub.f32 %v6045, %v6046
    %v6048 = vand.u32 %v6047, 4294901760
    %6049 = vmatpush2.msra.mxu0 %v6048
    %v6050 = vand.u32 %v552, 4294901760
    %6051 = vmatprep.mubr.f32.mxu0 %v6050
    %v6052 = vand.u32 %v550, 4294901760
    %6053 = vmatmul.mubr.f32.gmra.mxu0 %v6052
    %v6054 = vpop.f32.mrf.mxu0
    %v6055 = vadd.f32 %v5823, %v6054
    %v6056 = vpop.f32.mrf.mxu0
    %6057 = vdwg.mxu0
    %6058 = vmatprep.subr.mxu0 0.0
    %v6059 = vand.u32 %v2951, 4294901760
    %v6060 = vsub.f32 %v2951, %v6059
    %6061 = vmatpush1.msra.mxu0 %v6060
    %6062 = vmatprep.subr.mxu0 0.0
    %v6063 = vand.u32 %v2950, 4294901760
    %v6064 = vsub.f32 %v2950, %v6063
    %6065 = vmatpush1.msra.mxu0 %v6064
    %6066 = vmatprep.subr.mxu0 0.0
    %v6067 = vand.u32 %v2949, 4294901760
    %v6068 = vsub.f32 %v2949, %v6067
    %6069 = vmatpush1.msra.mxu0 %v6068
    %6070 = vmatprep.subr.mxu0 0.0
    %v6071 = vand.u32 %v2948, 4294901760
    %v6072 = vsub.f32 %v2948, %v6071
    %6073 = vmatpush1.msra.mxu0 %v6072
    %6074 = vmatprep.subr.mxu0 0.0
    %v6075 = vand.u32 %v2947, 4294901760
    %v6076 = vsub.f32 %v2947, %v6075
    %6077 = vmatpush1.msra.mxu0 %v6076
    %6078 = vmatprep.subr.mxu0 0.0
    %v6079 = vand.u32 %v2946, 4294901760
    %v6080 = vsub.f32 %v2946, %v6079
    %6081 = vmatpush1.msra.mxu0 %v6080
    %6082 = vmatprep.subr.mxu0 0.0
    %v6083 = vand.u32 %v2945, 4294901760
    %v6084 = vsub.f32 %v2945, %v6083
    %6085 = vmatpush1.msra.mxu0 %v6084
    %6086 = vmatprep.subr.mxu0 0.0
    %v6087 = vand.u32 %v2944, 4294901760
    %v6088 = vsub.f32 %v2944, %v6087
    %6089 = vmatpush1.msra.mxu0 %v6088
    %6090 = vmatprep.subr.mxu0 0.0
    %v6091 = vand.u32 %v2943, 4294901760
    %v6092 = vsub.f32 %v2943, %v6091
    %6093 = vmatpush1.msra.mxu0 %v6092
    %6094 = vmatprep.subr.mxu0 0.0
    %v6095 = vand.u32 %v2942, 4294901760
    %v6096 = vsub.f32 %v2942, %v6095
    %6097 = vmatpush1.msra.mxu0 %v6096
    %6098 = vmatprep.subr.mxu0 0.0
    %v6099 = vand.u32 %v2941, 4294901760
    %v6100 = vsub.f32 %v2941, %v6099
    %6101 = vmatpush1.msra.mxu0 %v6100
    %6102 = vmatprep.subr.mxu0 0.0
    %v6103 = vand.u32 %v2940, 4294901760
    %v6104 = vsub.f32 %v2940, %v6103
    %6105 = vmatpush1.msra.mxu0 %v6104
    %6106 = vmatprep.subr.mxu0 0.0
    %v6107 = vand.u32 %v2939, 4294901760
    %v6108 = vsub.f32 %v2939, %v6107
    %6109 = vmatpush1.msra.mxu0 %v6108
    %6110 = vmatprep.subr.mxu0 0.0
    %v6111 = vand.u32 %v2938, 4294901760
    %v6112 = vsub.f32 %v2938, %v6111
    %6113 = vmatpush1.msra.mxu0 %v6112
    %6114 = vmatprep.subr.mxu0 0.0
    %v6115 = vand.u32 %v2937, 4294901760
    %v6116 = vsub.f32 %v2937, %v6115
    %6117 = vmatpush1.msra.mxu0 %v6116
    %6118 = vmatprep.subr.mxu0 0.0
    %v6119 = vand.u32 %v2936, 4294901760
    %v6120 = vsub.f32 %v2936, %v6119
    %6121 = vmatpush1.msra.mxu0 %v6120
    %6122 = vmatprep.subr.mxu0 0.0
    %v6123 = vand.u32 %v2967, 4294901760
    %v6124 = vsub.f32 %v2967, %v6123
    %6125 = vmatpush2.msra.mxu0 %v6124
    %6126 = vmatprep.subr.mxu0 0.0
    %v6127 = vand.u32 %v2966, 4294901760
    %v6128 = vsub.f32 %v2966, %v6127
    %6129 = vmatpush2.msra.mxu0 %v6128
    %6130 = vmatprep.subr.mxu0 0.0
    %v6131 = vand.u32 %v2965, 4294901760
    %v6132 = vsub.f32 %v2965, %v6131
    %6133 = vmatpush2.msra.mxu0 %v6132
    %6134 = vmatprep.subr.mxu0 0.0
    %v6135 = vand.u32 %v2964, 4294901760
    %v6136 = vsub.f32 %v2964, %v6135
    %6137 = vmatpush2.msra.mxu0 %v6136
    %6138 = vmatprep.subr.mxu0 0.0
    %v6139 = vand.u32 %v2963, 4294901760
    %v6140 = vsub.f32 %v2963, %v6139
    %6141 = vmatpush2.msra.mxu0 %v6140
    %6142 = vmatprep.subr.mxu0 0.0
    %v6143 = vand.u32 %v2962, 4294901760
    %v6144 = vsub.f32 %v2962, %v6143
    %6145 = vmatpush2.msra.mxu0 %v6144
    %6146 = vmatprep.subr.mxu0 0.0
    %v6147 = vand.u32 %v2961, 4294901760
    %v6148 = vsub.f32 %v2961, %v6147
    %6149 = vmatpush2.msra.mxu0 %v6148
    %6150 = vmatprep.subr.mxu0 0.0
    %v6151 = vand.u32 %v2960, 4294901760
    %v6152 = vsub.f32 %v2960, %v6151
    %6153 = vmatpush2.msra.mxu0 %v6152
    %6154 = vmatprep.subr.mxu0 0.0
    %v6155 = vand.u32 %v2959, 4294901760
    %v6156 = vsub.f32 %v2959, %v6155
    %6157 = vmatpush2.msra.mxu0 %v6156
    %6158 = vmatprep.subr.mxu0 0.0
    %v6159 = vand.u32 %v2958, 4294901760
    %v6160 = vsub.f32 %v2958, %v6159
    %6161 = vmatpush2.msra.mxu0 %v6160
    %6162 = vmatprep.subr.mxu0 0.0
    %v6163 = vand.u32 %v2957, 4294901760
    %v6164 = vsub.f32 %v2957, %v6163
    %6165 = vmatpush2.msra.mxu0 %v6164
    %6166 = vmatprep.subr.mxu0 0.0
    %v6167 = vand.u32 %v2956, 4294901760
    %v6168 = vsub.f32 %v2956, %v6167
    %6169 = vmatpush2.msra.mxu0 %v6168
    %6170 = vmatprep.subr.mxu0 0.0
    %v6171 = vand.u32 %v2955, 4294901760
    %v6172 = vsub.f32 %v2955, %v6171
    %6173 = vmatpush2.msra.mxu0 %v6172
    %6174 = vmatprep.subr.mxu0 0.0
    %v6175 = vand.u32 %v2954, 4294901760
    %v6176 = vsub.f32 %v2954, %v6175
    %6177 = vmatpush2.msra.mxu0 %v6176
    %6178 = vmatprep.subr.mxu0 0.0
    %v6179 = vand.u32 %v2953, 4294901760
    %v6180 = vsub.f32 %v2953, %v6179
    %6181 = vmatpush2.msra.mxu0 %v6180
    %6182 = vmatprep.subr.mxu0 0.0
    %v6183 = vand.u32 %v2952, 4294901760
    %v6184 = vsub.f32 %v2952, %v6183
    %6185 = vmatpush2.msra.mxu0 %v6184
    %v6186 = vand.u32 %v552, 4294901760
    %v6187 = vsub.f32 %v552, %v6186
    %6188 = vmatprep.mubr.f32.mxu0 %v6187
    %v6189 = vand.u32 %v550, 4294901760
    %v6190 = vsub.f32 %v550, %v6189
    %6191 = vmatmul.mubr.f32.gmra.mxu0 %v6190
    %v6192 = vpop.f32.mrf.mxu0
    %v6193 = vadd.f32 %v6055, %v6192
    %v6194 = vpop.f32.mrf.mxu0
    %6195 = vdwg.mxu0
    %6196 = vmatprep.subr.mxu0 0.0
    %v6197 = vand.u32 %v2951, 4294901760
    %6198 = vmatpush1.msra.mxu0 %v6197
    %6199 = vmatprep.subr.mxu0 0.0
    %v6200 = vand.u32 %v2950, 4294901760
    %6201 = vmatpush1.msra.mxu0 %v6200
    %6202 = vmatprep.subr.mxu0 0.0
    %v6203 = vand.u32 %v2949, 4294901760
    %6204 = vmatpush1.msra.mxu0 %v6203
    %6205 = vmatprep.subr.mxu0 0.0
    %v6206 = vand.u32 %v2948, 4294901760
    %6207 = vmatpush1.msra.mxu0 %v6206
    %6208 = vmatprep.subr.mxu0 0.0
    %v6209 = vand.u32 %v2947, 4294901760
    %6210 = vmatpush1.msra.mxu0 %v6209
    %6211 = vmatprep.subr.mxu0 0.0
    %v6212 = vand.u32 %v2946, 4294901760
    %6213 = vmatpush1.msra.mxu0 %v6212
    %6214 = vmatprep.subr.mxu0 0.0
    %v6215 = vand.u32 %v2945, 4294901760
    %6216 = vmatpush1.msra.mxu0 %v6215
    %6217 = vmatprep.subr.mxu0 0.0
    %v6218 = vand.u32 %v2944, 4294901760
    %6219 = vmatpush1.msra.mxu0 %v6218
    %6220 = vmatprep.subr.mxu0 0.0
    %v6221 = vand.u32 %v2943, 4294901760
    %6222 = vmatpush1.msra.mxu0 %v6221
    %6223 = vmatprep.subr.mxu0 0.0
    %v6224 = vand.u32 %v2942, 4294901760
    %6225 = vmatpush1.msra.mxu0 %v6224
    %6226 = vmatprep.subr.mxu0 0.0
    %v6227 = vand.u32 %v2941, 4294901760
    %6228 = vmatpush1.msra.mxu0 %v6227
    %6229 = vmatprep.subr.mxu0 0.0
    %v6230 = vand.u32 %v2940, 4294901760
    %6231 = vmatpush1.msra.mxu0 %v6230
    %6232 = vmatprep.subr.mxu0 0.0
    %v6233 = vand.u32 %v2939, 4294901760
    %6234 = vmatpush1.msra.mxu0 %v6233
    %6235 = vmatprep.subr.mxu0 0.0
    %v6236 = vand.u32 %v2938, 4294901760
    %6237 = vmatpush1.msra.mxu0 %v6236
    %6238 = vmatprep.subr.mxu0 0.0
    %v6239 = vand.u32 %v2937, 4294901760
    %6240 = vmatpush1.msra.mxu0 %v6239
    %6241 = vmatprep.subr.mxu0 0.0
    %v6242 = vand.u32 %v2936, 4294901760
    %6243 = vmatpush1.msra.mxu0 %v6242
    %6244 = vmatprep.subr.mxu0 0.0
    %v6245 = vand.u32 %v2967, 4294901760
    %6246 = vmatpush2.msra.mxu0 %v6245
    %6247 = vmatprep.subr.mxu0 0.0
    %v6248 = vand.u32 %v2966, 4294901760
    %6249 = vmatpush2.msra.mxu0 %v6248
    %6250 = vmatprep.subr.mxu0 0.0
    %v6251 = vand.u32 %v2965, 4294901760
    %6252 = vmatpush2.msra.mxu0 %v6251
    %6253 = vmatprep.subr.mxu0 0.0
    %v6254 = vand.u32 %v2964, 4294901760
    %6255 = vmatpush2.msra.mxu0 %v6254
    %6256 = vmatprep.subr.mxu0 0.0
    %v6257 = vand.u32 %v2963, 4294901760
    %6258 = vmatpush2.msra.mxu0 %v6257
    %6259 = vmatprep.subr.mxu0 0.0
    %v6260 = vand.u32 %v2962, 4294901760
    %6261 = vmatpush2.msra.mxu0 %v6260
    %6262 = vmatprep.subr.mxu0 0.0
    %v6263 = vand.u32 %v2961, 4294901760
    %6264 = vmatpush2.msra.mxu0 %v6263
    %6265 = vmatprep.subr.mxu0 0.0
    %v6266 = vand.u32 %v2960, 4294901760
    %6267 = vmatpush2.msra.mxu0 %v6266
    %6268 = vmatprep.subr.mxu0 0.0
    %v6269 = vand.u32 %v2959, 4294901760
    %6270 = vmatpush2.msra.mxu0 %v6269
    %6271 = vmatprep.subr.mxu0 0.0
    %v6272 = vand.u32 %v2958, 4294901760
    %6273 = vmatpush2.msra.mxu0 %v6272
    %6274 = vmatprep.subr.mxu0 0.0
    %v6275 = vand.u32 %v2957, 4294901760
    %6276 = vmatpush2.msra.mxu0 %v6275
    %6277 = vmatprep.subr.mxu0 0.0
    %v6278 = vand.u32 %v2956, 4294901760
    %6279 = vmatpush2.msra.mxu0 %v6278
    %6280 = vmatprep.subr.mxu0 0.0
    %v6281 = vand.u32 %v2955, 4294901760
    %6282 = vmatpush2.msra.mxu0 %v6281
    %6283 = vmatprep.subr.mxu0 0.0
    %v6284 = vand.u32 %v2954, 4294901760
    %6285 = vmatpush2.msra.mxu0 %v6284
    %6286 = vmatprep.subr.mxu0 0.0
    %v6287 = vand.u32 %v2953, 4294901760
    %6288 = vmatpush2.msra.mxu0 %v6287
    %6289 = vmatprep.subr.mxu0 0.0
    %v6290 = vand.u32 %v2952, 4294901760
    %6291 = vmatpush2.msra.mxu0 %v6290
    %v6292 = vand.u32 %v552, 4294901760
    %v6293 = vsub.f32 %v552, %v6292
    %v6294 = vand.u32 %v6293, 4294901760
    %6295 = vmatprep.mubr.f32.mxu0 %v6294
    %v6296 = vand.u32 %v550, 4294901760
    %v6297 = vsub.f32 %v550, %v6296
    %v6298 = vand.u32 %v6297, 4294901760
    %6299 = vmatmul.mubr.f32.gmra.mxu0 %v6298
    %v6300 = vpop.f32.mrf.mxu0
    %v6301 = vadd.f32 %v6193, %v6300
    %v6302 = vpop.f32.mrf.mxu0
    %6303 = vdwg.mxu0
    %6304 = vmatprep.subr.mxu0 0.0
    %v6305 = vand.u32 %v2951, 4294901760
    %v6306 = vsub.f32 %v2951, %v6305
    %v6307 = vand.u32 %v6306, 4294901760
    %6308 = vmatpush1.msra.mxu0 %v6307
    %6309 = vmatprep.subr.mxu0 0.0
    %v6310 = vand.u32 %v2950, 4294901760
    %v6311 = vsub.f32 %v2950, %v6310
    %v6312 = vand.u32 %v6311, 4294901760
    %6313 = vmatpush1.msra.mxu0 %v6312
    %6314 = vmatprep.subr.mxu0 0.0
    %v6315 = vand.u32 %v2949, 4294901760
    %v6316 = vsub.f32 %v2949, %v6315
    %v6317 = vand.u32 %v6316, 4294901760
    %6318 = vmatpush1.msra.mxu0 %v6317
    %6319 = vmatprep.subr.mxu0 0.0
    %v6320 = vand.u32 %v2948, 4294901760
    %v6321 = vsub.f32 %v2948, %v6320
    %v6322 = vand.u32 %v6321, 4294901760
    %6323 = vmatpush1.msra.mxu0 %v6322
    %6324 = vmatprep.subr.mxu0 0.0
    %v6325 = vand.u32 %v2947, 4294901760
    %v6326 = vsub.f32 %v2947, %v6325
    %v6327 = vand.u32 %v6326, 4294901760
    %6328 = vmatpush1.msra.mxu0 %v6327
    %6329 = vmatprep.subr.mxu0 0.0
    %v6330 = vand.u32 %v2946, 4294901760
    %v6331 = vsub.f32 %v2946, %v6330
    %v6332 = vand.u32 %v6331, 4294901760
    %6333 = vmatpush1.msra.mxu0 %v6332
    %6334 = vmatprep.subr.mxu0 0.0
    %v6335 = vand.u32 %v2945, 4294901760
    %v6336 = vsub.f32 %v2945, %v6335
    %v6337 = vand.u32 %v6336, 4294901760
    %6338 = vmatpush1.msra.mxu0 %v6337
    %6339 = vmatprep.subr.mxu0 0.0
    %v6340 = vand.u32 %v2944, 4294901760
    %v6341 = vsub.f32 %v2944, %v6340
    %v6342 = vand.u32 %v6341, 4294901760
    %6343 = vmatpush1.msra.mxu0 %v6342
    %6344 = vmatprep.subr.mxu0 0.0
    %v6345 = vand.u32 %v2943, 4294901760
    %v6346 = vsub.f32 %v2943, %v6345
    %v6347 = vand.u32 %v6346, 4294901760
    %6348 = vmatpush1.msra.mxu0 %v6347
    %6349 = vmatprep.subr.mxu0 0.0
    %v6350 = vand.u32 %v2942, 4294901760
    %v6351 = vsub.f32 %v2942, %v6350
    %v6352 = vand.u32 %v6351, 4294901760
    %6353 = vmatpush1.msra.mxu0 %v6352
    %6354 = vmatprep.subr.mxu0 0.0
    %v6355 = vand.u32 %v2941, 4294901760
    %v6356 = vsub.f32 %v2941, %v6355
    %v6357 = vand.u32 %v6356, 4294901760
    %6358 = vmatpush1.msra.mxu0 %v6357
    %6359 = vmatprep.subr.mxu0 0.0
    %v6360 = vand.u32 %v2940, 4294901760
    %v6361 = vsub.f32 %v2940, %v6360
    %v6362 = vand.u32 %v6361, 4294901760
    %6363 = vmatpush1.msra.mxu0 %v6362
    %6364 = vmatprep.subr.mxu0 0.0
    %v6365 = vand.u32 %v2939, 4294901760
    %v6366 = vsub.f32 %v2939, %v6365
    %v6367 = vand.u32 %v6366, 4294901760
    %6368 = vmatpush1.msra.mxu0 %v6367
    %6369 = vmatprep.subr.mxu0 0.0
    %v6370 = vand.u32 %v2938, 4294901760
    %v6371 = vsub.f32 %v2938, %v6370
    %v6372 = vand.u32 %v6371, 4294901760
    %6373 = vmatpush1.msra.mxu0 %v6372
    %6374 = vmatprep.subr.mxu0 0.0
    %v6375 = vand.u32 %v2937, 4294901760
    %v6376 = vsub.f32 %v2937, %v6375
    %v6377 = vand.u32 %v6376, 4294901760
    %6378 = vmatpush1.msra.mxu0 %v6377
    %6379 = vmatprep.subr.mxu0 0.0
    %v6380 = vand.u32 %v2936, 4294901760
    %v6381 = vsub.f32 %v2936, %v6380
    %v6382 = vand.u32 %v6381, 4294901760
    %6383 = vmatpush1.msra.mxu0 %v6382
    %6384 = vmatprep.subr.mxu0 0.0
    %v6385 = vand.u32 %v2967, 4294901760
    %v6386 = vsub.f32 %v2967, %v6385
    %v6387 = vand.u32 %v6386, 4294901760
    %6388 = vmatpush2.msra.mxu0 %v6387
    %6389 = vmatprep.subr.mxu0 0.0
    %v6390 = vand.u32 %v2966, 4294901760
    %v6391 = vsub.f32 %v2966, %v6390
    %v6392 = vand.u32 %v6391, 4294901760
    %6393 = vmatpush2.msra.mxu0 %v6392
    %6394 = vmatprep.subr.mxu0 0.0
    %v6395 = vand.u32 %v2965, 4294901760
    %v6396 = vsub.f32 %v2965, %v6395
    %v6397 = vand.u32 %v6396, 4294901760
    %6398 = vmatpush2.msra.mxu0 %v6397
    %6399 = vmatprep.subr.mxu0 0.0
    %v6400 = vand.u32 %v2964, 4294901760
    %v6401 = vsub.f32 %v2964, %v6400
    %v6402 = vand.u32 %v6401, 4294901760
    %6403 = vmatpush2.msra.mxu0 %v6402
    %6404 = vmatprep.subr.mxu0 0.0
    %v6405 = vand.u32 %v2963, 4294901760
    %v6406 = vsub.f32 %v2963, %v6405
    %v6407 = vand.u32 %v6406, 4294901760
    %6408 = vmatpush2.msra.mxu0 %v6407
    %6409 = vmatprep.subr.mxu0 0.0
    %v6410 = vand.u32 %v2962, 4294901760
    %v6411 = vsub.f32 %v2962, %v6410
    %v6412 = vand.u32 %v6411, 4294901760
    %6413 = vmatpush2.msra.mxu0 %v6412
    %6414 = vmatprep.subr.mxu0 0.0
    %v6415 = vand.u32 %v2961, 4294901760
    %v6416 = vsub.f32 %v2961, %v6415
    %v6417 = vand.u32 %v6416, 4294901760
    %6418 = vmatpush2.msra.mxu0 %v6417
    %6419 = vmatprep.subr.mxu0 0.0
    %v6420 = vand.u32 %v2960, 4294901760
    %v6421 = vsub.f32 %v2960, %v6420
    %v6422 = vand.u32 %v6421, 4294901760
    %6423 = vmatpush2.msra.mxu0 %v6422
    %6424 = vmatprep.subr.mxu0 0.0
    %v6425 = vand.u32 %v2959, 4294901760
    %v6426 = vsub.f32 %v2959, %v6425
    %v6427 = vand.u32 %v6426, 4294901760
    %6428 = vmatpush2.msra.mxu0 %v6427
    %6429 = vmatprep.subr.mxu0 0.0
    %v6430 = vand.u32 %v2958, 4294901760
    %v6431 = vsub.f32 %v2958, %v6430
    %v6432 = vand.u32 %v6431, 4294901760
    %6433 = vmatpush2.msra.mxu0 %v6432
    %6434 = vmatprep.subr.mxu0 0.0
    %v6435 = vand.u32 %v2957, 4294901760
    %v6436 = vsub.f32 %v2957, %v6435
    %v6437 = vand.u32 %v6436, 4294901760
    %6438 = vmatpush2.msra.mxu0 %v6437
    %6439 = vmatprep.subr.mxu0 0.0
    %v6440 = vand.u32 %v2956, 4294901760
    %v6441 = vsub.f32 %v2956, %v6440
    %v6442 = vand.u32 %v6441, 4294901760
    %6443 = vmatpush2.msra.mxu0 %v6442
    %6444 = vmatprep.subr.mxu0 0.0
    %v6445 = vand.u32 %v2955, 4294901760
    %v6446 = vsub.f32 %v2955, %v6445
    %v6447 = vand.u32 %v6446, 4294901760
    %6448 = vmatpush2.msra.mxu0 %v6447
    %6449 = vmatprep.subr.mxu0 0.0
    %v6450 = vand.u32 %v2954, 4294901760
    %v6451 = vsub.f32 %v2954, %v6450
    %v6452 = vand.u32 %v6451, 4294901760
    %6453 = vmatpush2.msra.mxu0 %v6452
    %6454 = vmatprep.subr.mxu0 0.0
    %v6455 = vand.u32 %v2953, 4294901760
    %v6456 = vsub.f32 %v2953, %v6455
    %v6457 = vand.u32 %v6456, 4294901760
    %6458 = vmatpush2.msra.mxu0 %v6457
    %6459 = vmatprep.subr.mxu0 0.0
    %v6460 = vand.u32 %v2952, 4294901760
    %v6461 = vsub.f32 %v2952, %v6460
    %v6462 = vand.u32 %v6461, 4294901760
    %6463 = vmatpush2.msra.mxu0 %v6462
    %v6464 = vand.u32 %v552, 4294901760
    %6465 = vmatprep.mubr.f32.mxu0 %v6464
    %v6466 = vand.u32 %v550, 4294901760
    %6467 = vmatmul.mubr.f32.gmra.mxu0 %v6466
    %v6468 = vpop.f32.mrf.mxu0
    %v6469 = vadd.f32 %v6301, %v6468
    %v6470 = vpop.f32.mrf.mxu0
    %6471 = vdwg.mxu0
    %6472 = vmatprep.subr.mxu0 0.0
    %v6473 = vand.u32 %v2951, 4294901760
    %6474 = vmatpush1.msra.mxu0 %v6473
    %6475 = vmatprep.subr.mxu0 0.0
    %v6476 = vand.u32 %v2950, 4294901760
    %6477 = vmatpush1.msra.mxu0 %v6476
    %6478 = vmatprep.subr.mxu0 0.0
    %v6479 = vand.u32 %v2949, 4294901760
    %6480 = vmatpush1.msra.mxu0 %v6479
    %6481 = vmatprep.subr.mxu0 0.0
    %v6482 = vand.u32 %v2948, 4294901760
    %6483 = vmatpush1.msra.mxu0 %v6482
    %6484 = vmatprep.subr.mxu0 0.0
    %v6485 = vand.u32 %v2947, 4294901760
    %6486 = vmatpush1.msra.mxu0 %v6485
    %6487 = vmatprep.subr.mxu0 0.0
    %v6488 = vand.u32 %v2946, 4294901760
    %6489 = vmatpush1.msra.mxu0 %v6488
    %6490 = vmatprep.subr.mxu0 0.0
    %v6491 = vand.u32 %v2945, 4294901760
    %6492 = vmatpush1.msra.mxu0 %v6491
    %6493 = vmatprep.subr.mxu0 0.0
    %v6494 = vand.u32 %v2944, 4294901760
    %6495 = vmatpush1.msra.mxu0 %v6494
    %6496 = vmatprep.subr.mxu0 0.0
    %v6497 = vand.u32 %v2943, 4294901760
    %6498 = vmatpush1.msra.mxu0 %v6497
    %6499 = vmatprep.subr.mxu0 0.0
    %v6500 = vand.u32 %v2942, 4294901760
    %6501 = vmatpush1.msra.mxu0 %v6500
    %6502 = vmatprep.subr.mxu0 0.0
    %v6503 = vand.u32 %v2941, 4294901760
    %6504 = vmatpush1.msra.mxu0 %v6503
    %6505 = vmatprep.subr.mxu0 0.0
    %v6506 = vand.u32 %v2940, 4294901760
    %6507 = vmatpush1.msra.mxu0 %v6506
    %6508 = vmatprep.subr.mxu0 0.0
    %v6509 = vand.u32 %v2939, 4294901760
    %6510 = vmatpush1.msra.mxu0 %v6509
    %6511 = vmatprep.subr.mxu0 0.0
    %v6512 = vand.u32 %v2938, 4294901760
    %6513 = vmatpush1.msra.mxu0 %v6512
    %6514 = vmatprep.subr.mxu0 0.0
    %v6515 = vand.u32 %v2937, 4294901760
    %6516 = vmatpush1.msra.mxu0 %v6515
    %6517 = vmatprep.subr.mxu0 0.0
    %v6518 = vand.u32 %v2936, 4294901760
    %6519 = vmatpush1.msra.mxu0 %v6518
    %6520 = vmatprep.subr.mxu0 0.0
    %v6521 = vand.u32 %v2967, 4294901760
    %6522 = vmatpush2.msra.mxu0 %v6521
    %6523 = vmatprep.subr.mxu0 0.0
    %v6524 = vand.u32 %v2966, 4294901760
    %6525 = vmatpush2.msra.mxu0 %v6524
    %6526 = vmatprep.subr.mxu0 0.0
    %v6527 = vand.u32 %v2965, 4294901760
    %6528 = vmatpush2.msra.mxu0 %v6527
    %6529 = vmatprep.subr.mxu0 0.0
    %v6530 = vand.u32 %v2964, 4294901760
    %6531 = vmatpush2.msra.mxu0 %v6530
    %6532 = vmatprep.subr.mxu0 0.0
    %v6533 = vand.u32 %v2963, 4294901760
    %6534 = vmatpush2.msra.mxu0 %v6533
    %6535 = vmatprep.subr.mxu0 0.0
    %v6536 = vand.u32 %v2962, 4294901760
    %6537 = vmatpush2.msra.mxu0 %v6536
    %6538 = vmatprep.subr.mxu0 0.0
    %v6539 = vand.u32 %v2961, 4294901760
    %6540 = vmatpush2.msra.mxu0 %v6539
    %6541 = vmatprep.subr.mxu0 0.0
    %v6542 = vand.u32 %v2960, 4294901760
    %6543 = vmatpush2.msra.mxu0 %v6542
    %6544 = vmatprep.subr.mxu0 0.0
    %v6545 = vand.u32 %v2959, 4294901760
    %6546 = vmatpush2.msra.mxu0 %v6545
    %6547 = vmatprep.subr.mxu0 0.0
    %v6548 = vand.u32 %v2958, 4294901760
    %6549 = vmatpush2.msra.mxu0 %v6548
    %6550 = vmatprep.subr.mxu0 0.0
    %v6551 = vand.u32 %v2957, 4294901760
    %6552 = vmatpush2.msra.mxu0 %v6551
    %6553 = vmatprep.subr.mxu0 0.0
    %v6554 = vand.u32 %v2956, 4294901760
    %6555 = vmatpush2.msra.mxu0 %v6554
    %6556 = vmatprep.subr.mxu0 0.0
    %v6557 = vand.u32 %v2955, 4294901760
    %6558 = vmatpush2.msra.mxu0 %v6557
    %6559 = vmatprep.subr.mxu0 0.0
    %v6560 = vand.u32 %v2954, 4294901760
    %6561 = vmatpush2.msra.mxu0 %v6560
    %6562 = vmatprep.subr.mxu0 0.0
    %v6563 = vand.u32 %v2953, 4294901760
    %6564 = vmatpush2.msra.mxu0 %v6563
    %6565 = vmatprep.subr.mxu0 0.0
    %v6566 = vand.u32 %v2952, 4294901760
    %6567 = vmatpush2.msra.mxu0 %v6566
    %v6568 = vand.u32 %v552, 4294901760
    %6569 = vmatprep.mubr.f32.mxu0 %v6568
    %v6570 = vand.u32 %v550, 4294901760
    %6571 = vmatmul.mubr.f32.gmra.mxu0 %v6570
    %v6572 = vpop.f32.mrf.mxu0
    %v6573 = vadd.f32 %v6469, %v6572
    %v6574 = vpop.f32.mrf.mxu0
    %6575 = vdwg.mxu0
    %6576 = vmatprep.subr.mxu0 0.0
    %v6577 = vand.u32 %v2983, 4294901760
    %6578 = vmatpush1.msra.mxu0 %v6577
    %6579 = vmatprep.subr.mxu0 0.0
    %v6580 = vand.u32 %v2982, 4294901760
    %6581 = vmatpush1.msra.mxu0 %v6580
    %6582 = vmatprep.subr.mxu0 0.0
    %v6583 = vand.u32 %v2981, 4294901760
    %6584 = vmatpush1.msra.mxu0 %v6583
    %6585 = vmatprep.subr.mxu0 0.0
    %v6586 = vand.u32 %v2980, 4294901760
    %6587 = vmatpush1.msra.mxu0 %v6586
    %6588 = vmatprep.subr.mxu0 0.0
    %v6589 = vand.u32 %v2979, 4294901760
    %6590 = vmatpush1.msra.mxu0 %v6589
    %6591 = vmatprep.subr.mxu0 0.0
    %v6592 = vand.u32 %v2978, 4294901760
    %6593 = vmatpush1.msra.mxu0 %v6592
    %6594 = vmatprep.subr.mxu0 0.0
    %v6595 = vand.u32 %v2977, 4294901760
    %6596 = vmatpush1.msra.mxu0 %v6595
    %6597 = vmatprep.subr.mxu0 0.0
    %v6598 = vand.u32 %v2976, 4294901760
    %6599 = vmatpush1.msra.mxu0 %v6598
    %6600 = vmatprep.subr.mxu0 0.0
    %v6601 = vand.u32 %v2975, 4294901760
    %6602 = vmatpush1.msra.mxu0 %v6601
    %6603 = vmatprep.subr.mxu0 0.0
    %v6604 = vand.u32 %v2974, 4294901760
    %6605 = vmatpush1.msra.mxu0 %v6604
    %6606 = vmatprep.subr.mxu0 0.0
    %v6607 = vand.u32 %v2973, 4294901760
    %6608 = vmatpush1.msra.mxu0 %v6607
    %6609 = vmatprep.subr.mxu0 0.0
    %v6610 = vand.u32 %v2972, 4294901760
    %6611 = vmatpush1.msra.mxu0 %v6610
    %6612 = vmatprep.subr.mxu0 0.0
    %v6613 = vand.u32 %v2971, 4294901760
    %6614 = vmatpush1.msra.mxu0 %v6613
    %6615 = vmatprep.subr.mxu0 0.0
    %v6616 = vand.u32 %v2970, 4294901760
    %6617 = vmatpush1.msra.mxu0 %v6616
    %6618 = vmatprep.subr.mxu0 0.0
    %v6619 = vand.u32 %v2969, 4294901760
    %6620 = vmatpush1.msra.mxu0 %v6619
    %6621 = vmatprep.subr.mxu0 0.0
    %v6622 = vand.u32 %v2968, 4294901760
    %6623 = vmatpush1.msra.mxu0 %v6622
    %6624 = vmatprep.subr.mxu0 0.0
    %v6625 = vand.u32 %v2999, 4294901760
    %6626 = vmatpush2.msra.mxu0 %v6625
    %6627 = vmatprep.subr.mxu0 0.0
    %v6628 = vand.u32 %v2998, 4294901760
    %6629 = vmatpush2.msra.mxu0 %v6628
    %6630 = vmatprep.subr.mxu0 0.0
    %v6631 = vand.u32 %v2997, 4294901760
    %6632 = vmatpush2.msra.mxu0 %v6631
    %6633 = vmatprep.subr.mxu0 0.0
    %v6634 = vand.u32 %v2996, 4294901760
    %6635 = vmatpush2.msra.mxu0 %v6634
    %6636 = vmatprep.subr.mxu0 0.0
    %v6637 = vand.u32 %v2995, 4294901760
    %6638 = vmatpush2.msra.mxu0 %v6637
    %6639 = vmatprep.subr.mxu0 0.0
    %v6640 = vand.u32 %v2994, 4294901760
    %6641 = vmatpush2.msra.mxu0 %v6640
    %6642 = vmatprep.subr.mxu0 0.0
    %v6643 = vand.u32 %v2993, 4294901760
    %6644 = vmatpush2.msra.mxu0 %v6643
    %6645 = vmatprep.subr.mxu0 0.0
    %v6646 = vand.u32 %v2992, 4294901760
    %6647 = vmatpush2.msra.mxu0 %v6646
    %6648 = vmatprep.subr.mxu0 0.0
    %v6649 = vand.u32 %v2991, 4294901760
    %6650 = vmatpush2.msra.mxu0 %v6649
    %6651 = vmatprep.subr.mxu0 0.0
    %v6652 = vand.u32 %v2990, 4294901760
    %6653 = vmatpush2.msra.mxu0 %v6652
    %6654 = vmatprep.subr.mxu0 0.0
    %v6655 = vand.u32 %v2989, 4294901760
    %6656 = vmatpush2.msra.mxu0 %v6655
    %6657 = vmatprep.subr.mxu0 0.0
    %v6658 = vand.u32 %v2988, 4294901760
    %6659 = vmatpush2.msra.mxu0 %v6658
    %6660 = vmatprep.subr.mxu0 0.0
    %v6661 = vand.u32 %v2987, 4294901760
    %6662 = vmatpush2.msra.mxu0 %v6661
    %6663 = vmatprep.subr.mxu0 0.0
    %v6664 = vand.u32 %v2986, 4294901760
    %6665 = vmatpush2.msra.mxu0 %v6664
    %6666 = vmatprep.subr.mxu0 0.0
    %v6667 = vand.u32 %v2985, 4294901760
    %6668 = vmatpush2.msra.mxu0 %v6667
    %6669 = vmatprep.subr.mxu0 0.0
    %v6670 = vand.u32 %v2984, 4294901760
    %6671 = vmatpush2.msra.mxu0 %v6670
    %v6672 = vand.u32 %v1017, 4294901760
    %v6673 = vsub.f32 %v1017, %v6672
    %v6674 = vand.u32 %v6673, 4294901760
    %v6675 = vsub.f32 %v6673, %v6674
    %v6676 = vand.u32 %v6675, 4294901760
    %6677 = vmatprep.mubr.f32.mxu0 %v6676
    %v6678 = vand.u32 %v1015, 4294901760
    %v6679 = vsub.f32 %v1015, %v6678
    %v6680 = vand.u32 %v6679, 4294901760
    %v6681 = vsub.f32 %v6679, %v6680
    %v6682 = vand.u32 %v6681, 4294901760
    %6683 = vmatmul.mubr.f32.gmra.mxu0 %v6682
    %v6684 = vpop.f32.mrf.mxu0
    %v6685 = vadd.f32 %v6573, %v6684
    %v6686 = vpop.f32.mrf.mxu0
    %6687 = vdwg.mxu0
    %6688 = vmatprep.subr.mxu0 0.0
    %v6689 = vand.u32 %v2983, 4294901760
    %v6690 = vsub.f32 %v2983, %v6689
    %v6691 = vand.u32 %v6690, 4294901760
    %v6692 = vsub.f32 %v6690, %v6691
    %v6693 = vand.u32 %v6692, 4294901760
    %6694 = vmatpush1.msra.mxu0 %v6693
    %6695 = vmatprep.subr.mxu0 0.0
    %v6696 = vand.u32 %v2982, 4294901760
    %v6697 = vsub.f32 %v2982, %v6696
    %v6698 = vand.u32 %v6697, 4294901760
    %v6699 = vsub.f32 %v6697, %v6698
    %v6700 = vand.u32 %v6699, 4294901760
    %6701 = vmatpush1.msra.mxu0 %v6700
    %6702 = vmatprep.subr.mxu0 0.0
    %v6703 = vand.u32 %v2981, 4294901760
    %v6704 = vsub.f32 %v2981, %v6703
    %v6705 = vand.u32 %v6704, 4294901760
    %v6706 = vsub.f32 %v6704, %v6705
    %v6707 = vand.u32 %v6706, 4294901760
    %6708 = vmatpush1.msra.mxu0 %v6707
    %6709 = vmatprep.subr.mxu0 0.0
    %v6710 = vand.u32 %v2980, 4294901760
    %v6711 = vsub.f32 %v2980, %v6710
    %v6712 = vand.u32 %v6711, 4294901760
    %v6713 = vsub.f32 %v6711, %v6712
    %v6714 = vand.u32 %v6713, 4294901760
    %6715 = vmatpush1.msra.mxu0 %v6714
    %6716 = vmatprep.subr.mxu0 0.0
    %v6717 = vand.u32 %v2979, 4294901760
    %v6718 = vsub.f32 %v2979, %v6717
    %v6719 = vand.u32 %v6718, 4294901760
    %v6720 = vsub.f32 %v6718, %v6719
    %v6721 = vand.u32 %v6720, 4294901760
    %6722 = vmatpush1.msra.mxu0 %v6721
    %6723 = vmatprep.subr.mxu0 0.0
    %v6724 = vand.u32 %v2978, 4294901760
    %v6725 = vsub.f32 %v2978, %v6724
    %v6726 = vand.u32 %v6725, 4294901760
    %v6727 = vsub.f32 %v6725, %v6726
    %v6728 = vand.u32 %v6727, 4294901760
    %6729 = vmatpush1.msra.mxu0 %v6728
    %6730 = vmatprep.subr.mxu0 0.0
    %v6731 = vand.u32 %v2977, 4294901760
    %v6732 = vsub.f32 %v2977, %v6731
    %v6733 = vand.u32 %v6732, 4294901760
    %v6734 = vsub.f32 %v6732, %v6733
    %v6735 = vand.u32 %v6734, 4294901760
    %6736 = vmatpush1.msra.mxu0 %v6735
    %6737 = vmatprep.subr.mxu0 0.0
    %v6738 = vand.u32 %v2976, 4294901760
    %v6739 = vsub.f32 %v2976, %v6738
    %v6740 = vand.u32 %v6739, 4294901760
    %v6741 = vsub.f32 %v6739, %v6740
    %v6742 = vand.u32 %v6741, 4294901760
    %6743 = vmatpush1.msra.mxu0 %v6742
    %6744 = vmatprep.subr.mxu0 0.0
    %v6745 = vand.u32 %v2975, 4294901760
    %v6746 = vsub.f32 %v2975, %v6745
    %v6747 = vand.u32 %v6746, 4294901760
    %v6748 = vsub.f32 %v6746, %v6747
    %v6749 = vand.u32 %v6748, 4294901760
    %6750 = vmatpush1.msra.mxu0 %v6749
    %6751 = vmatprep.subr.mxu0 0.0
    %v6752 = vand.u32 %v2974, 4294901760
    %v6753 = vsub.f32 %v2974, %v6752
    %v6754 = vand.u32 %v6753, 4294901760
    %v6755 = vsub.f32 %v6753, %v6754
    %v6756 = vand.u32 %v6755, 4294901760
    %6757 = vmatpush1.msra.mxu0 %v6756
    %6758 = vmatprep.subr.mxu0 0.0
    %v6759 = vand.u32 %v2973, 4294901760
    %v6760 = vsub.f32 %v2973, %v6759
    %v6761 = vand.u32 %v6760, 4294901760
    %v6762 = vsub.f32 %v6760, %v6761
    %v6763 = vand.u32 %v6762, 4294901760
    %6764 = vmatpush1.msra.mxu0 %v6763
    %6765 = vmatprep.subr.mxu0 0.0
    %v6766 = vand.u32 %v2972, 4294901760
    %v6767 = vsub.f32 %v2972, %v6766
    %v6768 = vand.u32 %v6767, 4294901760
    %v6769 = vsub.f32 %v6767, %v6768
    %v6770 = vand.u32 %v6769, 4294901760
    %6771 = vmatpush1.msra.mxu0 %v6770
    %6772 = vmatprep.subr.mxu0 0.0
    %v6773 = vand.u32 %v2971, 4294901760
    %v6774 = vsub.f32 %v2971, %v6773
    %v6775 = vand.u32 %v6774, 4294901760
    %v6776 = vsub.f32 %v6774, %v6775
    %v6777 = vand.u32 %v6776, 4294901760
    %6778 = vmatpush1.msra.mxu0 %v6777
    %6779 = vmatprep.subr.mxu0 0.0
    %v6780 = vand.u32 %v2970, 4294901760
    %v6781 = vsub.f32 %v2970, %v6780
    %v6782 = vand.u32 %v6781, 4294901760
    %v6783 = vsub.f32 %v6781, %v6782
    %v6784 = vand.u32 %v6783, 4294901760
    %6785 = vmatpush1.msra.mxu0 %v6784
    %6786 = vmatprep.subr.mxu0 0.0
    %v6787 = vand.u32 %v2969, 4294901760
    %v6788 = vsub.f32 %v2969, %v6787
    %v6789 = vand.u32 %v6788, 4294901760
    %v6790 = vsub.f32 %v6788, %v6789
    %v6791 = vand.u32 %v6790, 4294901760
    %6792 = vmatpush1.msra.mxu0 %v6791
    %6793 = vmatprep.subr.mxu0 0.0
    %v6794 = vand.u32 %v2968, 4294901760
    %v6795 = vsub.f32 %v2968, %v6794
    %v6796 = vand.u32 %v6795, 4294901760
    %v6797 = vsub.f32 %v6795, %v6796
    %v6798 = vand.u32 %v6797, 4294901760
    %6799 = vmatpush1.msra.mxu0 %v6798
    %6800 = vmatprep.subr.mxu0 0.0
    %v6801 = vand.u32 %v2999, 4294901760
    %v6802 = vsub.f32 %v2999, %v6801
    %v6803 = vand.u32 %v6802, 4294901760
    %v6804 = vsub.f32 %v6802, %v6803
    %v6805 = vand.u32 %v6804, 4294901760
    %6806 = vmatpush2.msra.mxu0 %v6805
    %6807 = vmatprep.subr.mxu0 0.0
    %v6808 = vand.u32 %v2998, 4294901760
    %v6809 = vsub.f32 %v2998, %v6808
    %v6810 = vand.u32 %v6809, 4294901760
    %v6811 = vsub.f32 %v6809, %v6810
    %v6812 = vand.u32 %v6811, 4294901760
    %6813 = vmatpush2.msra.mxu0 %v6812
    %6814 = vmatprep.subr.mxu0 0.0
    %v6815 = vand.u32 %v2997, 4294901760
    %v6816 = vsub.f32 %v2997, %v6815
    %v6817 = vand.u32 %v6816, 4294901760
    %v6818 = vsub.f32 %v6816, %v6817
    %v6819 = vand.u32 %v6818, 4294901760
    %6820 = vmatpush2.msra.mxu0 %v6819
    %6821 = vmatprep.subr.mxu0 0.0
    %v6822 = vand.u32 %v2996, 4294901760
    %v6823 = vsub.f32 %v2996, %v6822
    %v6824 = vand.u32 %v6823, 4294901760
    %v6825 = vsub.f32 %v6823, %v6824
    %v6826 = vand.u32 %v6825, 4294901760
    %6827 = vmatpush2.msra.mxu0 %v6826
    %6828 = vmatprep.subr.mxu0 0.0
    %v6829 = vand.u32 %v2995, 4294901760
    %v6830 = vsub.f32 %v2995, %v6829
    %v6831 = vand.u32 %v6830, 4294901760
    %v6832 = vsub.f32 %v6830, %v6831
    %v6833 = vand.u32 %v6832, 4294901760
    %6834 = vmatpush2.msra.mxu0 %v6833
    %6835 = vmatprep.subr.mxu0 0.0
    %v6836 = vand.u32 %v2994, 4294901760
    %v6837 = vsub.f32 %v2994, %v6836
    %v6838 = vand.u32 %v6837, 4294901760
    %v6839 = vsub.f32 %v6837, %v6838
    %v6840 = vand.u32 %v6839, 4294901760
    %6841 = vmatpush2.msra.mxu0 %v6840
    %6842 = vmatprep.subr.mxu0 0.0
    %v6843 = vand.u32 %v2993, 4294901760
    %v6844 = vsub.f32 %v2993, %v6843
    %v6845 = vand.u32 %v6844, 4294901760
    %v6846 = vsub.f32 %v6844, %v6845
    %v6847 = vand.u32 %v6846, 4294901760
    %6848 = vmatpush2.msra.mxu0 %v6847
    %6849 = vmatprep.subr.mxu0 0.0
    %v6850 = vand.u32 %v2992, 4294901760
    %v6851 = vsub.f32 %v2992, %v6850
    %v6852 = vand.u32 %v6851, 4294901760
    %v6853 = vsub.f32 %v6851, %v6852
    %v6854 = vand.u32 %v6853, 4294901760
    %6855 = vmatpush2.msra.mxu0 %v6854
    %6856 = vmatprep.subr.mxu0 0.0
    %v6857 = vand.u32 %v2991, 4294901760
    %v6858 = vsub.f32 %v2991, %v6857
    %v6859 = vand.u32 %v6858, 4294901760
    %v6860 = vsub.f32 %v6858, %v6859
    %v6861 = vand.u32 %v6860, 4294901760
    %6862 = vmatpush2.msra.mxu0 %v6861
    %6863 = vmatprep.subr.mxu0 0.0
    %v6864 = vand.u32 %v2990, 4294901760
    %v6865 = vsub.f32 %v2990, %v6864
    %v6866 = vand.u32 %v6865, 4294901760
    %v6867 = vsub.f32 %v6865, %v6866
    %v6868 = vand.u32 %v6867, 4294901760
    %6869 = vmatpush2.msra.mxu0 %v6868
    %6870 = vmatprep.subr.mxu0 0.0
    %v6871 = vand.u32 %v2989, 4294901760
    %v6872 = vsub.f32 %v2989, %v6871
    %v6873 = vand.u32 %v6872, 4294901760
    %v6874 = vsub.f32 %v6872, %v6873
    %v6875 = vand.u32 %v6874, 4294901760
    %6876 = vmatpush2.msra.mxu0 %v6875
    %6877 = vmatprep.subr.mxu0 0.0
    %v6878 = vand.u32 %v2988, 4294901760
    %v6879 = vsub.f32 %v2988, %v6878
    %v6880 = vand.u32 %v6879, 4294901760
    %v6881 = vsub.f32 %v6879, %v6880
    %v6882 = vand.u32 %v6881, 4294901760
    %6883 = vmatpush2.msra.mxu0 %v6882
    %6884 = vmatprep.subr.mxu0 0.0
    %v6885 = vand.u32 %v2987, 4294901760
    %v6886 = vsub.f32 %v2987, %v6885
    %v6887 = vand.u32 %v6886, 4294901760
    %v6888 = vsub.f32 %v6886, %v6887
    %v6889 = vand.u32 %v6888, 4294901760
    %6890 = vmatpush2.msra.mxu0 %v6889
    %6891 = vmatprep.subr.mxu0 0.0
    %v6892 = vand.u32 %v2986, 4294901760
    %v6893 = vsub.f32 %v2986, %v6892
    %v6894 = vand.u32 %v6893, 4294901760
    %v6895 = vsub.f32 %v6893, %v6894
    %v6896 = vand.u32 %v6895, 4294901760
    %6897 = vmatpush2.msra.mxu0 %v6896
    %6898 = vmatprep.subr.mxu0 0.0
    %v6899 = vand.u32 %v2985, 4294901760
    %v6900 = vsub.f32 %v2985, %v6899
    %v6901 = vand.u32 %v6900, 4294901760
    %v6902 = vsub.f32 %v6900, %v6901
    %v6903 = vand.u32 %v6902, 4294901760
    %6904 = vmatpush2.msra.mxu0 %v6903
    %6905 = vmatprep.subr.mxu0 0.0
    %v6906 = vand.u32 %v2984, 4294901760
    %v6907 = vsub.f32 %v2984, %v6906
    %v6908 = vand.u32 %v6907, 4294901760
    %v6909 = vsub.f32 %v6907, %v6908
    %v6910 = vand.u32 %v6909, 4294901760
    %6911 = vmatpush2.msra.mxu0 %v6910
    %v6912 = vand.u32 %v1017, 4294901760
    %6913 = vmatprep.mubr.f32.mxu0 %v6912
    %v6914 = vand.u32 %v1015, 4294901760
    %6915 = vmatmul.mubr.f32.gmra.mxu0 %v6914
    %v6916 = vpop.f32.mrf.mxu0
    %v6917 = vadd.f32 %v6685, %v6916
    %v6918 = vpop.f32.mrf.mxu0
    %6919 = vdwg.mxu0
    %6920 = vmatprep.subr.mxu0 0.0
    %v6921 = vand.u32 %v2983, 4294901760
    %v6922 = vsub.f32 %v2983, %v6921
    %6923 = vmatpush1.msra.mxu0 %v6922
    %6924 = vmatprep.subr.mxu0 0.0
    %v6925 = vand.u32 %v2982, 4294901760
    %v6926 = vsub.f32 %v2982, %v6925
    %6927 = vmatpush1.msra.mxu0 %v6926
    %6928 = vmatprep.subr.mxu0 0.0
    %v6929 = vand.u32 %v2981, 4294901760
    %v6930 = vsub.f32 %v2981, %v6929
    %6931 = vmatpush1.msra.mxu0 %v6930
    %6932 = vmatprep.subr.mxu0 0.0
    %v6933 = vand.u32 %v2980, 4294901760
    %v6934 = vsub.f32 %v2980, %v6933
    %6935 = vmatpush1.msra.mxu0 %v6934
    %6936 = vmatprep.subr.mxu0 0.0
    %v6937 = vand.u32 %v2979, 4294901760
    %v6938 = vsub.f32 %v2979, %v6937
    %6939 = vmatpush1.msra.mxu0 %v6938
    %6940 = vmatprep.subr.mxu0 0.0
    %v6941 = vand.u32 %v2978, 4294901760
    %v6942 = vsub.f32 %v2978, %v6941
    %6943 = vmatpush1.msra.mxu0 %v6942
    %6944 = vmatprep.subr.mxu0 0.0
    %v6945 = vand.u32 %v2977, 4294901760
    %v6946 = vsub.f32 %v2977, %v6945
    %6947 = vmatpush1.msra.mxu0 %v6946
    %6948 = vmatprep.subr.mxu0 0.0
    %v6949 = vand.u32 %v2976, 4294901760
    %v6950 = vsub.f32 %v2976, %v6949
    %6951 = vmatpush1.msra.mxu0 %v6950
    %6952 = vmatprep.subr.mxu0 0.0
    %v6953 = vand.u32 %v2975, 4294901760
    %v6954 = vsub.f32 %v2975, %v6953
    %6955 = vmatpush1.msra.mxu0 %v6954
    %6956 = vmatprep.subr.mxu0 0.0
    %v6957 = vand.u32 %v2974, 4294901760
    %v6958 = vsub.f32 %v2974, %v6957
    %6959 = vmatpush1.msra.mxu0 %v6958
    %6960 = vmatprep.subr.mxu0 0.0
    %v6961 = vand.u32 %v2973, 4294901760
    %v6962 = vsub.f32 %v2973, %v6961
    %6963 = vmatpush1.msra.mxu0 %v6962
    %6964 = vmatprep.subr.mxu0 0.0
    %v6965 = vand.u32 %v2972, 4294901760
    %v6966 = vsub.f32 %v2972, %v6965
    %6967 = vmatpush1.msra.mxu0 %v6966
    %6968 = vmatprep.subr.mxu0 0.0
    %v6969 = vand.u32 %v2971, 4294901760
    %v6970 = vsub.f32 %v2971, %v6969
    %6971 = vmatpush1.msra.mxu0 %v6970
    %6972 = vmatprep.subr.mxu0 0.0
    %v6973 = vand.u32 %v2970, 4294901760
    %v6974 = vsub.f32 %v2970, %v6973
    %6975 = vmatpush1.msra.mxu0 %v6974
    %6976 = vmatprep.subr.mxu0 0.0
    %v6977 = vand.u32 %v2969, 4294901760
    %v6978 = vsub.f32 %v2969, %v6977
    %6979 = vmatpush1.msra.mxu0 %v6978
    %6980 = vmatprep.subr.mxu0 0.0
    %v6981 = vand.u32 %v2968, 4294901760
    %v6982 = vsub.f32 %v2968, %v6981
    %6983 = vmatpush1.msra.mxu0 %v6982
    %6984 = vmatprep.subr.mxu0 0.0
    %v6985 = vand.u32 %v2999, 4294901760
    %v6986 = vsub.f32 %v2999, %v6985
    %6987 = vmatpush2.msra.mxu0 %v6986
    %6988 = vmatprep.subr.mxu0 0.0
    %v6989 = vand.u32 %v2998, 4294901760
    %v6990 = vsub.f32 %v2998, %v6989
    %6991 = vmatpush2.msra.mxu0 %v6990
    %6992 = vmatprep.subr.mxu0 0.0
    %v6993 = vand.u32 %v2997, 4294901760
    %v6994 = vsub.f32 %v2997, %v6993
    %6995 = vmatpush2.msra.mxu0 %v6994
    %6996 = vmatprep.subr.mxu0 0.0
    %v6997 = vand.u32 %v2996, 4294901760
    %v6998 = vsub.f32 %v2996, %v6997
    %6999 = vmatpush2.msra.mxu0 %v6998
    %7000 = vmatprep.subr.mxu0 0.0
    %v7001 = vand.u32 %v2995, 4294901760
    %v7002 = vsub.f32 %v2995, %v7001
    %7003 = vmatpush2.msra.mxu0 %v7002
    %7004 = vmatprep.subr.mxu0 0.0
    %v7005 = vand.u32 %v2994, 4294901760
    %v7006 = vsub.f32 %v2994, %v7005
    %7007 = vmatpush2.msra.mxu0 %v7006
    %7008 = vmatprep.subr.mxu0 0.0
    %v7009 = vand.u32 %v2993, 4294901760
    %v7010 = vsub.f32 %v2993, %v7009
    %7011 = vmatpush2.msra.mxu0 %v7010
    %7012 = vmatprep.subr.mxu0 0.0
    %v7013 = vand.u32 %v2992, 4294901760
    %v7014 = vsub.f32 %v2992, %v7013
    %7015 = vmatpush2.msra.mxu0 %v7014
    %7016 = vmatprep.subr.mxu0 0.0
    %v7017 = vand.u32 %v2991, 4294901760
    %v7018 = vsub.f32 %v2991, %v7017
    %7019 = vmatpush2.msra.mxu0 %v7018
    %7020 = vmatprep.subr.mxu0 0.0
    %v7021 = vand.u32 %v2990, 4294901760
    %v7022 = vsub.f32 %v2990, %v7021
    %7023 = vmatpush2.msra.mxu0 %v7022
    %7024 = vmatprep.subr.mxu0 0.0
    %v7025 = vand.u32 %v2989, 4294901760
    %v7026 = vsub.f32 %v2989, %v7025
    %7027 = vmatpush2.msra.mxu0 %v7026
    %7028 = vmatprep.subr.mxu0 0.0
    %v7029 = vand.u32 %v2988, 4294901760
    %v7030 = vsub.f32 %v2988, %v7029
    %7031 = vmatpush2.msra.mxu0 %v7030
    %7032 = vmatprep.subr.mxu0 0.0
    %v7033 = vand.u32 %v2987, 4294901760
    %v7034 = vsub.f32 %v2987, %v7033
    %7035 = vmatpush2.msra.mxu0 %v7034
    %7036 = vmatprep.subr.mxu0 0.0
    %v7037 = vand.u32 %v2986, 4294901760
    %v7038 = vsub.f32 %v2986, %v7037
    %7039 = vmatpush2.msra.mxu0 %v7038
    %7040 = vmatprep.subr.mxu0 0.0
    %v7041 = vand.u32 %v2985, 4294901760
    %v7042 = vsub.f32 %v2985, %v7041
    %7043 = vmatpush2.msra.mxu0 %v7042
    %7044 = vmatprep.subr.mxu0 0.0
    %v7045 = vand.u32 %v2984, 4294901760
    %v7046 = vsub.f32 %v2984, %v7045
    %7047 = vmatpush2.msra.mxu0 %v7046
    %v7048 = vand.u32 %v1017, 4294901760
    %v7049 = vsub.f32 %v1017, %v7048
    %7050 = vmatprep.mubr.f32.mxu0 %v7049
    %v7051 = vand.u32 %v1015, 4294901760
    %v7052 = vsub.f32 %v1015, %v7051
    %7053 = vmatmul.mubr.f32.gmra.mxu0 %v7052
    %v7054 = vpop.f32.mrf.mxu0
    %v7055 = vadd.f32 %v6917, %v7054
    %v7056 = vpop.f32.mrf.mxu0
    %7057 = vdwg.mxu0
    %7058 = vmatprep.subr.mxu0 0.0
    %v7059 = vand.u32 %v2983, 4294901760
    %7060 = vmatpush1.msra.mxu0 %v7059
    %7061 = vmatprep.subr.mxu0 0.0
    %v7062 = vand.u32 %v2982, 4294901760
    %7063 = vmatpush1.msra.mxu0 %v7062
    %7064 = vmatprep.subr.mxu0 0.0
    %v7065 = vand.u32 %v2981, 4294901760
    %7066 = vmatpush1.msra.mxu0 %v7065
    %7067 = vmatprep.subr.mxu0 0.0
    %v7068 = vand.u32 %v2980, 4294901760
    %7069 = vmatpush1.msra.mxu0 %v7068
    %7070 = vmatprep.subr.mxu0 0.0
    %v7071 = vand.u32 %v2979, 4294901760
    %7072 = vmatpush1.msra.mxu0 %v7071
    %7073 = vmatprep.subr.mxu0 0.0
    %v7074 = vand.u32 %v2978, 4294901760
    %7075 = vmatpush1.msra.mxu0 %v7074
    %7076 = vmatprep.subr.mxu0 0.0
    %v7077 = vand.u32 %v2977, 4294901760
    %7078 = vmatpush1.msra.mxu0 %v7077
    %7079 = vmatprep.subr.mxu0 0.0
    %v7080 = vand.u32 %v2976, 4294901760
    %7081 = vmatpush1.msra.mxu0 %v7080
    %7082 = vmatprep.subr.mxu0 0.0
    %v7083 = vand.u32 %v2975, 4294901760
    %7084 = vmatpush1.msra.mxu0 %v7083
    %7085 = vmatprep.subr.mxu0 0.0
    %v7086 = vand.u32 %v2974, 4294901760
    %7087 = vmatpush1.msra.mxu0 %v7086
    %7088 = vmatprep.subr.mxu0 0.0
    %v7089 = vand.u32 %v2973, 4294901760
    %7090 = vmatpush1.msra.mxu0 %v7089
    %7091 = vmatprep.subr.mxu0 0.0
    %v7092 = vand.u32 %v2972, 4294901760
    %7093 = vmatpush1.msra.mxu0 %v7092
    %7094 = vmatprep.subr.mxu0 0.0
    %v7095 = vand.u32 %v2971, 4294901760
    %7096 = vmatpush1.msra.mxu0 %v7095
    %7097 = vmatprep.subr.mxu0 0.0
    %v7098 = vand.u32 %v2970, 4294901760
    %7099 = vmatpush1.msra.mxu0 %v7098
    %7100 = vmatprep.subr.mxu0 0.0
    %v7101 = vand.u32 %v2969, 4294901760
    %7102 = vmatpush1.msra.mxu0 %v7101
    %7103 = vmatprep.subr.mxu0 0.0
    %v7104 = vand.u32 %v2968, 4294901760
    %7105 = vmatpush1.msra.mxu0 %v7104
    %7106 = vmatprep.subr.mxu0 0.0
    %v7107 = vand.u32 %v2999, 4294901760
    %7108 = vmatpush2.msra.mxu0 %v7107
    %7109 = vmatprep.subr.mxu0 0.0
    %v7110 = vand.u32 %v2998, 4294901760
    %7111 = vmatpush2.msra.mxu0 %v7110
    %7112 = vmatprep.subr.mxu0 0.0
    %v7113 = vand.u32 %v2997, 4294901760
    %7114 = vmatpush2.msra.mxu0 %v7113
    %7115 = vmatprep.subr.mxu0 0.0
    %v7116 = vand.u32 %v2996, 4294901760
    %7117 = vmatpush2.msra.mxu0 %v7116
    %7118 = vmatprep.subr.mxu0 0.0
    %v7119 = vand.u32 %v2995, 4294901760
    %7120 = vmatpush2.msra.mxu0 %v7119
    %7121 = vmatprep.subr.mxu0 0.0
    %v7122 = vand.u32 %v2994, 4294901760
    %7123 = vmatpush2.msra.mxu0 %v7122
    %7124 = vmatprep.subr.mxu0 0.0
    %v7125 = vand.u32 %v2993, 4294901760
    %7126 = vmatpush2.msra.mxu0 %v7125
    %7127 = vmatprep.subr.mxu0 0.0
    %v7128 = vand.u32 %v2992, 4294901760
    %7129 = vmatpush2.msra.mxu0 %v7128
    %7130 = vmatprep.subr.mxu0 0.0
    %v7131 = vand.u32 %v2991, 4294901760
    %7132 = vmatpush2.msra.mxu0 %v7131
    %7133 = vmatprep.subr.mxu0 0.0
    %v7134 = vand.u32 %v2990, 4294901760
    %7135 = vmatpush2.msra.mxu0 %v7134
    %7136 = vmatprep.subr.mxu0 0.0
    %v7137 = vand.u32 %v2989, 4294901760
    %7138 = vmatpush2.msra.mxu0 %v7137
    %7139 = vmatprep.subr.mxu0 0.0
    %v7140 = vand.u32 %v2988, 4294901760
    %7141 = vmatpush2.msra.mxu0 %v7140
    %7142 = vmatprep.subr.mxu0 0.0
    %v7143 = vand.u32 %v2987, 4294901760
    %7144 = vmatpush2.msra.mxu0 %v7143
    %7145 = vmatprep.subr.mxu0 0.0
    %v7146 = vand.u32 %v2986, 4294901760
    %7147 = vmatpush2.msra.mxu0 %v7146
    %7148 = vmatprep.subr.mxu0 0.0
    %v7149 = vand.u32 %v2985, 4294901760
    %7150 = vmatpush2.msra.mxu0 %v7149
    %7151 = vmatprep.subr.mxu0 0.0
    %v7152 = vand.u32 %v2984, 4294901760
    %7153 = vmatpush2.msra.mxu0 %v7152
    %v7154 = vand.u32 %v1017, 4294901760
    %v7155 = vsub.f32 %v1017, %v7154
    %v7156 = vand.u32 %v7155, 4294901760
    %7157 = vmatprep.mubr.f32.mxu0 %v7156
    %v7158 = vand.u32 %v1015, 4294901760
    %v7159 = vsub.f32 %v1015, %v7158
    %v7160 = vand.u32 %v7159, 4294901760
    %7161 = vmatmul.mubr.f32.gmra.mxu0 %v7160
    %v7162 = vpop.f32.mrf.mxu0
    %v7163 = vadd.f32 %v7055, %v7162
    %v7164 = vpop.f32.mrf.mxu0
    %7165 = vdwg.mxu0
    %7166 = vmatprep.subr.mxu0 0.0
    %v7167 = vand.u32 %v2983, 4294901760
    %v7168 = vsub.f32 %v2983, %v7167
    %v7169 = vand.u32 %v7168, 4294901760
    %7170 = vmatpush1.msra.mxu0 %v7169
    %7171 = vmatprep.subr.mxu0 0.0
    %v7172 = vand.u32 %v2982, 4294901760
    %v7173 = vsub.f32 %v2982, %v7172
    %v7174 = vand.u32 %v7173, 4294901760
    %7175 = vmatpush1.msra.mxu0 %v7174
    %7176 = vmatprep.subr.mxu0 0.0
    %v7177 = vand.u32 %v2981, 4294901760
    %v7178 = vsub.f32 %v2981, %v7177
    %v7179 = vand.u32 %v7178, 4294901760
    %7180 = vmatpush1.msra.mxu0 %v7179
    %7181 = vmatprep.subr.mxu0 0.0
    %v7182 = vand.u32 %v2980, 4294901760
    %v7183 = vsub.f32 %v2980, %v7182
    %v7184 = vand.u32 %v7183, 4294901760
    %7185 = vmatpush1.msra.mxu0 %v7184
    %7186 = vmatprep.subr.mxu0 0.0
    %v7187 = vand.u32 %v2979, 4294901760
    %v7188 = vsub.f32 %v2979, %v7187
    %v7189 = vand.u32 %v7188, 4294901760
    %7190 = vmatpush1.msra.mxu0 %v7189
    %7191 = vmatprep.subr.mxu0 0.0
    %v7192 = vand.u32 %v2978, 4294901760
    %v7193 = vsub.f32 %v2978, %v7192
    %v7194 = vand.u32 %v7193, 4294901760
    %7195 = vmatpush1.msra.mxu0 %v7194
    %7196 = vmatprep.subr.mxu0 0.0
    %v7197 = vand.u32 %v2977, 4294901760
    %v7198 = vsub.f32 %v2977, %v7197
    %v7199 = vand.u32 %v7198, 4294901760
    %7200 = vmatpush1.msra.mxu0 %v7199
    %7201 = vmatprep.subr.mxu0 0.0
    %v7202 = vand.u32 %v2976, 4294901760
    %v7203 = vsub.f32 %v2976, %v7202
    %v7204 = vand.u32 %v7203, 4294901760
    %7205 = vmatpush1.msra.mxu0 %v7204
    %7206 = vmatprep.subr.mxu0 0.0
    %v7207 = vand.u32 %v2975, 4294901760
    %v7208 = vsub.f32 %v2975, %v7207
    %v7209 = vand.u32 %v7208, 4294901760
    %7210 = vmatpush1.msra.mxu0 %v7209
    %7211 = vmatprep.subr.mxu0 0.0
    %v7212 = vand.u32 %v2974, 4294901760
    %v7213 = vsub.f32 %v2974, %v7212
    %v7214 = vand.u32 %v7213, 4294901760
    %7215 = vmatpush1.msra.mxu0 %v7214
    %7216 = vmatprep.subr.mxu0 0.0
    %v7217 = vand.u32 %v2973, 4294901760
    %v7218 = vsub.f32 %v2973, %v7217
    %v7219 = vand.u32 %v7218, 4294901760
    %7220 = vmatpush1.msra.mxu0 %v7219
    %7221 = vmatprep.subr.mxu0 0.0
    %v7222 = vand.u32 %v2972, 4294901760
    %v7223 = vsub.f32 %v2972, %v7222
    %v7224 = vand.u32 %v7223, 4294901760
    %7225 = vmatpush1.msra.mxu0 %v7224
    %7226 = vmatprep.subr.mxu0 0.0
    %v7227 = vand.u32 %v2971, 4294901760
    %v7228 = vsub.f32 %v2971, %v7227
    %v7229 = vand.u32 %v7228, 4294901760
    %7230 = vmatpush1.msra.mxu0 %v7229
    %7231 = vmatprep.subr.mxu0 0.0
    %v7232 = vand.u32 %v2970, 4294901760
    %v7233 = vsub.f32 %v2970, %v7232
    %v7234 = vand.u32 %v7233, 4294901760
    %7235 = vmatpush1.msra.mxu0 %v7234
    %7236 = vmatprep.subr.mxu0 0.0
    %v7237 = vand.u32 %v2969, 4294901760
    %v7238 = vsub.f32 %v2969, %v7237
    %v7239 = vand.u32 %v7238, 4294901760
    %7240 = vmatpush1.msra.mxu0 %v7239
    %7241 = vmatprep.subr.mxu0 0.0
    %v7242 = vand.u32 %v2968, 4294901760
    %v7243 = vsub.f32 %v2968, %v7242
    %v7244 = vand.u32 %v7243, 4294901760
    %7245 = vmatpush1.msra.mxu0 %v7244
    %7246 = vmatprep.subr.mxu0 0.0
    %v7247 = vand.u32 %v2999, 4294901760
    %v7248 = vsub.f32 %v2999, %v7247
    %v7249 = vand.u32 %v7248, 4294901760
    %7250 = vmatpush2.msra.mxu0 %v7249
    %7251 = vmatprep.subr.mxu0 0.0
    %v7252 = vand.u32 %v2998, 4294901760
    %v7253 = vsub.f32 %v2998, %v7252
    %v7254 = vand.u32 %v7253, 4294901760
    %7255 = vmatpush2.msra.mxu0 %v7254
    %7256 = vmatprep.subr.mxu0 0.0
    %v7257 = vand.u32 %v2997, 4294901760
    %v7258 = vsub.f32 %v2997, %v7257
    %v7259 = vand.u32 %v7258, 4294901760
    %7260 = vmatpush2.msra.mxu0 %v7259
    %7261 = vmatprep.subr.mxu0 0.0
    %v7262 = vand.u32 %v2996, 4294901760
    %v7263 = vsub.f32 %v2996, %v7262
    %v7264 = vand.u32 %v7263, 4294901760
    %7265 = vmatpush2.msra.mxu0 %v7264
    %7266 = vmatprep.subr.mxu0 0.0
    %v7267 = vand.u32 %v2995, 4294901760
    %v7268 = vsub.f32 %v2995, %v7267
    %v7269 = vand.u32 %v7268, 4294901760
    %7270 = vmatpush2.msra.mxu0 %v7269
    %7271 = vmatprep.subr.mxu0 0.0
    %v7272 = vand.u32 %v2994, 4294901760
    %v7273 = vsub.f32 %v2994, %v7272
    %v7274 = vand.u32 %v7273, 4294901760
    %7275 = vmatpush2.msra.mxu0 %v7274
    %7276 = vmatprep.subr.mxu0 0.0
    %v7277 = vand.u32 %v2993, 4294901760
    %v7278 = vsub.f32 %v2993, %v7277
    %v7279 = vand.u32 %v7278, 4294901760
    %7280 = vmatpush2.msra.mxu0 %v7279
    %7281 = vmatprep.subr.mxu0 0.0
    %v7282 = vand.u32 %v2992, 4294901760
    %v7283 = vsub.f32 %v2992, %v7282
    %v7284 = vand.u32 %v7283, 4294901760
    %7285 = vmatpush2.msra.mxu0 %v7284
    %7286 = vmatprep.subr.mxu0 0.0
    %v7287 = vand.u32 %v2991, 4294901760
    %v7288 = vsub.f32 %v2991, %v7287
    %v7289 = vand.u32 %v7288, 4294901760
    %7290 = vmatpush2.msra.mxu0 %v7289
    %7291 = vmatprep.subr.mxu0 0.0
    %v7292 = vand.u32 %v2990, 4294901760
    %v7293 = vsub.f32 %v2990, %v7292
    %v7294 = vand.u32 %v7293, 4294901760
    %7295 = vmatpush2.msra.mxu0 %v7294
    %7296 = vmatprep.subr.mxu0 0.0
    %v7297 = vand.u32 %v2989, 4294901760
    %v7298 = vsub.f32 %v2989, %v7297
    %v7299 = vand.u32 %v7298, 4294901760
    %7300 = vmatpush2.msra.mxu0 %v7299
    %7301 = vmatprep.subr.mxu0 0.0
    %v7302 = vand.u32 %v2988, 4294901760
    %v7303 = vsub.f32 %v2988, %v7302
    %v7304 = vand.u32 %v7303, 4294901760
    %7305 = vmatpush2.msra.mxu0 %v7304
    %7306 = vmatprep.subr.mxu0 0.0
    %v7307 = vand.u32 %v2987, 4294901760
    %v7308 = vsub.f32 %v2987, %v7307
    %v7309 = vand.u32 %v7308, 4294901760
    %7310 = vmatpush2.msra.mxu0 %v7309
    %7311 = vmatprep.subr.mxu0 0.0
    %v7312 = vand.u32 %v2986, 4294901760
    %v7313 = vsub.f32 %v2986, %v7312
    %v7314 = vand.u32 %v7313, 4294901760
    %7315 = vmatpush2.msra.mxu0 %v7314
    %7316 = vmatprep.subr.mxu0 0.0
    %v7317 = vand.u32 %v2985, 4294901760
    %v7318 = vsub.f32 %v2985, %v7317
    %v7319 = vand.u32 %v7318, 4294901760
    %7320 = vmatpush2.msra.mxu0 %v7319
    %7321 = vmatprep.subr.mxu0 0.0
    %v7322 = vand.u32 %v2984, 4294901760
    %v7323 = vsub.f32 %v2984, %v7322
    %v7324 = vand.u32 %v7323, 4294901760
    %7325 = vmatpush2.msra.mxu0 %v7324
    %v7326 = vand.u32 %v1017, 4294901760
    %7327 = vmatprep.mubr.f32.mxu0 %v7326
    %v7328 = vand.u32 %v1015, 4294901760
    %7329 = vmatmul.mubr.f32.gmra.mxu0 %v7328
    %v7330 = vpop.f32.mrf.mxu0
    %v7331 = vadd.f32 %v7163, %v7330
    %v7332 = vpop.f32.mrf.mxu0
    %7333 = vdwg.mxu0
    %7334 = vmatprep.subr.mxu0 0.0
    %v7335 = vand.u32 %v2983, 4294901760
    %7336 = vmatpush1.msra.mxu0 %v7335
    %7337 = vmatprep.subr.mxu0 0.0
    %v7338 = vand.u32 %v2982, 4294901760
    %7339 = vmatpush1.msra.mxu0 %v7338
    %7340 = vmatprep.subr.mxu0 0.0
    %v7341 = vand.u32 %v2981, 4294901760
    %7342 = vmatpush1.msra.mxu0 %v7341
    %7343 = vmatprep.subr.mxu0 0.0
    %v7344 = vand.u32 %v2980, 4294901760
    %7345 = vmatpush1.msra.mxu0 %v7344
    %7346 = vmatprep.subr.mxu0 0.0
    %v7347 = vand.u32 %v2979, 4294901760
    %7348 = vmatpush1.msra.mxu0 %v7347
    %7349 = vmatprep.subr.mxu0 0.0
    %v7350 = vand.u32 %v2978, 4294901760
    %7351 = vmatpush1.msra.mxu0 %v7350
    %7352 = vmatprep.subr.mxu0 0.0
    %v7353 = vand.u32 %v2977, 4294901760
    %7354 = vmatpush1.msra.mxu0 %v7353
    %7355 = vmatprep.subr.mxu0 0.0
    %v7356 = vand.u32 %v2976, 4294901760
    %7357 = vmatpush1.msra.mxu0 %v7356
    %7358 = vmatprep.subr.mxu0 0.0
    %v7359 = vand.u32 %v2975, 4294901760
    %7360 = vmatpush1.msra.mxu0 %v7359
    %7361 = vmatprep.subr.mxu0 0.0
    %v7362 = vand.u32 %v2974, 4294901760
    %7363 = vmatpush1.msra.mxu0 %v7362
    %7364 = vmatprep.subr.mxu0 0.0
    %v7365 = vand.u32 %v2973, 4294901760
    %7366 = vmatpush1.msra.mxu0 %v7365
    %7367 = vmatprep.subr.mxu0 0.0
    %v7368 = vand.u32 %v2972, 4294901760
    %7369 = vmatpush1.msra.mxu0 %v7368
    %7370 = vmatprep.subr.mxu0 0.0
    %v7371 = vand.u32 %v2971, 4294901760
    %7372 = vmatpush1.msra.mxu0 %v7371
    %7373 = vmatprep.subr.mxu0 0.0
    %v7374 = vand.u32 %v2970, 4294901760
    %7375 = vmatpush1.msra.mxu0 %v7374
    %7376 = vmatprep.subr.mxu0 0.0
    %v7377 = vand.u32 %v2969, 4294901760
    %7378 = vmatpush1.msra.mxu0 %v7377
    %7379 = vmatprep.subr.mxu0 0.0
    %v7380 = vand.u32 %v2968, 4294901760
    %7381 = vmatpush1.msra.mxu0 %v7380
    %7382 = vmatprep.subr.mxu0 0.0
    %v7383 = vand.u32 %v2999, 4294901760
    %7384 = vmatpush2.msra.mxu0 %v7383
    %7385 = vmatprep.subr.mxu0 0.0
    %v7386 = vand.u32 %v2998, 4294901760
    %7387 = vmatpush2.msra.mxu0 %v7386
    %7388 = vmatprep.subr.mxu0 0.0
    %v7389 = vand.u32 %v2997, 4294901760
    %7390 = vmatpush2.msra.mxu0 %v7389
    %7391 = vmatprep.subr.mxu0 0.0
    %v7392 = vand.u32 %v2996, 4294901760
    %7393 = vmatpush2.msra.mxu0 %v7392
    %7394 = vmatprep.subr.mxu0 0.0
    %v7395 = vand.u32 %v2995, 4294901760
    %7396 = vmatpush2.msra.mxu0 %v7395
    %7397 = vmatprep.subr.mxu0 0.0
    %v7398 = vand.u32 %v2994, 4294901760
    %7399 = vmatpush2.msra.mxu0 %v7398
    %7400 = vmatprep.subr.mxu0 0.0
    %v7401 = vand.u32 %v2993, 4294901760
    %7402 = vmatpush2.msra.mxu0 %v7401
    %7403 = vmatprep.subr.mxu0 0.0
    %v7404 = vand.u32 %v2992, 4294901760
    %7405 = vmatpush2.msra.mxu0 %v7404
    %7406 = vmatprep.subr.mxu0 0.0
    %v7407 = vand.u32 %v2991, 4294901760
    %7408 = vmatpush2.msra.mxu0 %v7407
    %7409 = vmatprep.subr.mxu0 0.0
    %v7410 = vand.u32 %v2990, 4294901760
    %7411 = vmatpush2.msra.mxu0 %v7410
    %7412 = vmatprep.subr.mxu0 0.0
    %v7413 = vand.u32 %v2989, 4294901760
    %7414 = vmatpush2.msra.mxu0 %v7413
    %7415 = vmatprep.subr.mxu0 0.0
    %v7416 = vand.u32 %v2988, 4294901760
    %7417 = vmatpush2.msra.mxu0 %v7416
    %7418 = vmatprep.subr.mxu0 0.0
    %v7419 = vand.u32 %v2987, 4294901760
    %7420 = vmatpush2.msra.mxu0 %v7419
    %7421 = vmatprep.subr.mxu0 0.0
    %v7422 = vand.u32 %v2986, 4294901760
    %7423 = vmatpush2.msra.mxu0 %v7422
    %7424 = vmatprep.subr.mxu0 0.0
    %v7425 = vand.u32 %v2985, 4294901760
    %7426 = vmatpush2.msra.mxu0 %v7425
    %7427 = vmatprep.subr.mxu0 0.0
    %v7428 = vand.u32 %v2984, 4294901760
    %7429 = vmatpush2.msra.mxu0 %v7428
    %v7430 = vand.u32 %v1017, 4294901760
    %7431 = vmatprep.mubr.f32.mxu0 %v7430
    %v7432 = vand.u32 %v1015, 4294901760
    %7433 = vmatmul.mubr.f32.gmra.mxu0 %v7432
    %v7434 = vpop.f32.mrf.mxu0
    %v7435 = vadd.f32 %v7331, %v7434
    %v7436 = vpop.f32.mrf.mxu0
    %7437 = vdwg.mxu0
    %7438 = vmatprep.subr.mxu0 0.0
    %v7439 = vand.u32 %v3015, 4294901760
    %7440 = vmatpush1.msra.mxu0 %v7439
    %7441 = vmatprep.subr.mxu0 0.0
    %v7442 = vand.u32 %v3014, 4294901760
    %7443 = vmatpush1.msra.mxu0 %v7442
    %7444 = vmatprep.subr.mxu0 0.0
    %v7445 = vand.u32 %v3013, 4294901760
    %7446 = vmatpush1.msra.mxu0 %v7445
    %7447 = vmatprep.subr.mxu0 0.0
    %v7448 = vand.u32 %v3012, 4294901760
    %7449 = vmatpush1.msra.mxu0 %v7448
    %7450 = vmatprep.subr.mxu0 0.0
    %v7451 = vand.u32 %v3011, 4294901760
    %7452 = vmatpush1.msra.mxu0 %v7451
    %7453 = vmatprep.subr.mxu0 0.0
    %v7454 = vand.u32 %v3010, 4294901760
    %7455 = vmatpush1.msra.mxu0 %v7454
    %7456 = vmatprep.subr.mxu0 0.0
    %v7457 = vand.u32 %v3009, 4294901760
    %7458 = vmatpush1.msra.mxu0 %v7457
    %7459 = vmatprep.subr.mxu0 0.0
    %v7460 = vand.u32 %v3008, 4294901760
    %7461 = vmatpush1.msra.mxu0 %v7460
    %7462 = vmatprep.subr.mxu0 0.0
    %v7463 = vand.u32 %v3007, 4294901760
    %7464 = vmatpush1.msra.mxu0 %v7463
    %7465 = vmatprep.subr.mxu0 0.0
    %v7466 = vand.u32 %v3006, 4294901760
    %7467 = vmatpush1.msra.mxu0 %v7466
    %7468 = vmatprep.subr.mxu0 0.0
    %v7469 = vand.u32 %v3005, 4294901760
    %7470 = vmatpush1.msra.mxu0 %v7469
    %7471 = vmatprep.subr.mxu0 0.0
    %v7472 = vand.u32 %v3004, 4294901760
    %7473 = vmatpush1.msra.mxu0 %v7472
    %7474 = vmatprep.subr.mxu0 0.0
    %v7475 = vand.u32 %v3003, 4294901760
    %7476 = vmatpush1.msra.mxu0 %v7475
    %7477 = vmatprep.subr.mxu0 0.0
    %v7478 = vand.u32 %v3002, 4294901760
    %7479 = vmatpush1.msra.mxu0 %v7478
    %7480 = vmatprep.subr.mxu0 0.0
    %v7481 = vand.u32 %v3001, 4294901760
    %7482 = vmatpush1.msra.mxu0 %v7481
    %7483 = vmatprep.subr.mxu0 0.0
    %v7484 = vand.u32 %v3000, 4294901760
    %7485 = vmatpush1.msra.mxu0 %v7484
    %7486 = vmatprep.subr.mxu0 0.0
    %v7487 = vand.u32 %v3031, 4294901760
    %7488 = vmatpush2.msra.mxu0 %v7487
    %7489 = vmatprep.subr.mxu0 0.0
    %v7490 = vand.u32 %v3030, 4294901760
    %7491 = vmatpush2.msra.mxu0 %v7490
    %7492 = vmatprep.subr.mxu0 0.0
    %v7493 = vand.u32 %v3029, 4294901760
    %7494 = vmatpush2.msra.mxu0 %v7493
    %7495 = vmatprep.subr.mxu0 0.0
    %v7496 = vand.u32 %v3028, 4294901760
    %7497 = vmatpush2.msra.mxu0 %v7496
    %7498 = vmatprep.subr.mxu0 0.0
    %v7499 = vand.u32 %v3027, 4294901760
    %7500 = vmatpush2.msra.mxu0 %v7499
    %7501 = vmatprep.subr.mxu0 0.0
    %v7502 = vand.u32 %v3026, 4294901760
    %7503 = vmatpush2.msra.mxu0 %v7502
    %7504 = vmatprep.subr.mxu0 0.0
    %v7505 = vand.u32 %v3025, 4294901760
    %7506 = vmatpush2.msra.mxu0 %v7505
    %7507 = vmatprep.subr.mxu0 0.0
    %v7508 = vand.u32 %v3024, 4294901760
    %7509 = vmatpush2.msra.mxu0 %v7508
    %7510 = vmatprep.subr.mxu0 0.0
    %v7511 = vand.u32 %v3023, 4294901760
    %7512 = vmatpush2.msra.mxu0 %v7511
    %7513 = vmatprep.subr.mxu0 0.0
    %v7514 = vand.u32 %v3022, 4294901760
    %7515 = vmatpush2.msra.mxu0 %v7514
    %7516 = vmatprep.subr.mxu0 0.0
    %v7517 = vand.u32 %v3021, 4294901760
    %7518 = vmatpush2.msra.mxu0 %v7517
    %7519 = vmatprep.subr.mxu0 0.0
    %v7520 = vand.u32 %v3020, 4294901760
    %7521 = vmatpush2.msra.mxu0 %v7520
    %7522 = vmatprep.subr.mxu0 0.0
    %v7523 = vand.u32 %v3019, 4294901760
    %7524 = vmatpush2.msra.mxu0 %v7523
    %7525 = vmatprep.subr.mxu0 0.0
    %v7526 = vand.u32 %v3018, 4294901760
    %7527 = vmatpush2.msra.mxu0 %v7526
    %7528 = vmatprep.subr.mxu0 0.0
    %v7529 = vand.u32 %v3017, 4294901760
    %7530 = vmatpush2.msra.mxu0 %v7529
    %7531 = vmatprep.subr.mxu0 0.0
    %v7532 = vand.u32 %v3016, 4294901760
    %7533 = vmatpush2.msra.mxu0 %v7532
    %v7534 = vand.u32 %v1482, 4294901760
    %v7535 = vsub.f32 %v1482, %v7534
    %v7536 = vand.u32 %v7535, 4294901760
    %v7537 = vsub.f32 %v7535, %v7536
    %v7538 = vand.u32 %v7537, 4294901760
    %7539 = vmatprep.mubr.f32.mxu0 %v7538
    %v7540 = vand.u32 %v1480, 4294901760
    %v7541 = vsub.f32 %v1480, %v7540
    %v7542 = vand.u32 %v7541, 4294901760
    %v7543 = vsub.f32 %v7541, %v7542
    %v7544 = vand.u32 %v7543, 4294901760
    %7545 = vmatmul.mubr.f32.gmra.mxu0 %v7544
    %v7546 = vpop.f32.mrf.mxu0
    %v7547 = vadd.f32 %v7435, %v7546
    %v7548 = vpop.f32.mrf.mxu0
    %7549 = vdwg.mxu0
    %7550 = vmatprep.subr.mxu0 0.0
    %v7551 = vand.u32 %v3015, 4294901760
    %v7552 = vsub.f32 %v3015, %v7551
    %v7553 = vand.u32 %v7552, 4294901760
    %v7554 = vsub.f32 %v7552, %v7553
    %v7555 = vand.u32 %v7554, 4294901760
    %7556 = vmatpush1.msra.mxu0 %v7555
    %7557 = vmatprep.subr.mxu0 0.0
    %v7558 = vand.u32 %v3014, 4294901760
    %v7559 = vsub.f32 %v3014, %v7558
    %v7560 = vand.u32 %v7559, 4294901760
    %v7561 = vsub.f32 %v7559, %v7560
    %v7562 = vand.u32 %v7561, 4294901760
    %7563 = vmatpush1.msra.mxu0 %v7562
    %7564 = vmatprep.subr.mxu0 0.0
    %v7565 = vand.u32 %v3013, 4294901760
    %v7566 = vsub.f32 %v3013, %v7565
    %v7567 = vand.u32 %v7566, 4294901760
    %v7568 = vsub.f32 %v7566, %v7567
    %v7569 = vand.u32 %v7568, 4294901760
    %7570 = vmatpush1.msra.mxu0 %v7569
    %7571 = vmatprep.subr.mxu0 0.0
    %v7572 = vand.u32 %v3012, 4294901760
    %v7573 = vsub.f32 %v3012, %v7572
    %v7574 = vand.u32 %v7573, 4294901760
    %v7575 = vsub.f32 %v7573, %v7574
    %v7576 = vand.u32 %v7575, 4294901760
    %7577 = vmatpush1.msra.mxu0 %v7576
    %7578 = vmatprep.subr.mxu0 0.0
    %v7579 = vand.u32 %v3011, 4294901760
    %v7580 = vsub.f32 %v3011, %v7579
    %v7581 = vand.u32 %v7580, 4294901760
    %v7582 = vsub.f32 %v7580, %v7581
    %v7583 = vand.u32 %v7582, 4294901760
    %7584 = vmatpush1.msra.mxu0 %v7583
    %7585 = vmatprep.subr.mxu0 0.0
    %v7586 = vand.u32 %v3010, 4294901760
    %v7587 = vsub.f32 %v3010, %v7586
    %v7588 = vand.u32 %v7587, 4294901760
    %v7589 = vsub.f32 %v7587, %v7588
    %v7590 = vand.u32 %v7589, 4294901760
    %7591 = vmatpush1.msra.mxu0 %v7590
    %7592 = vmatprep.subr.mxu0 0.0
    %v7593 = vand.u32 %v3009, 4294901760
    %v7594 = vsub.f32 %v3009, %v7593
    %v7595 = vand.u32 %v7594, 4294901760
    %v7596 = vsub.f32 %v7594, %v7595
    %v7597 = vand.u32 %v7596, 4294901760
    %7598 = vmatpush1.msra.mxu0 %v7597
    %7599 = vmatprep.subr.mxu0 0.0
    %v7600 = vand.u32 %v3008, 4294901760
    %v7601 = vsub.f32 %v3008, %v7600
    %v7602 = vand.u32 %v7601, 4294901760
    %v7603 = vsub.f32 %v7601, %v7602
    %v7604 = vand.u32 %v7603, 4294901760
    %7605 = vmatpush1.msra.mxu0 %v7604
    %7606 = vmatprep.subr.mxu0 0.0
    %v7607 = vand.u32 %v3007, 4294901760
    %v7608 = vsub.f32 %v3007, %v7607
    %v7609 = vand.u32 %v7608, 4294901760
    %v7610 = vsub.f32 %v7608, %v7609
    %v7611 = vand.u32 %v7610, 4294901760
    %7612 = vmatpush1.msra.mxu0 %v7611
    %7613 = vmatprep.subr.mxu0 0.0
    %v7614 = vand.u32 %v3006, 4294901760
    %v7615 = vsub.f32 %v3006, %v7614
    %v7616 = vand.u32 %v7615, 4294901760
    %v7617 = vsub.f32 %v7615, %v7616
    %v7618 = vand.u32 %v7617, 4294901760
    %7619 = vmatpush1.msra.mxu0 %v7618
    %7620 = vmatprep.subr.mxu0 0.0
    %v7621 = vand.u32 %v3005, 4294901760
    %v7622 = vsub.f32 %v3005, %v7621
    %v7623 = vand.u32 %v7622, 4294901760
    %v7624 = vsub.f32 %v7622, %v7623
    %v7625 = vand.u32 %v7624, 4294901760
    %7626 = vmatpush1.msra.mxu0 %v7625
    %7627 = vmatprep.subr.mxu0 0.0
    %v7628 = vand.u32 %v3004, 4294901760
    %v7629 = vsub.f32 %v3004, %v7628
    %v7630 = vand.u32 %v7629, 4294901760
    %v7631 = vsub.f32 %v7629, %v7630
    %v7632 = vand.u32 %v7631, 4294901760
    %7633 = vmatpush1.msra.mxu0 %v7632
    %7634 = vmatprep.subr.mxu0 0.0
    %v7635 = vand.u32 %v3003, 4294901760
    %v7636 = vsub.f32 %v3003, %v7635
    %v7637 = vand.u32 %v7636, 4294901760
    %v7638 = vsub.f32 %v7636, %v7637
    %v7639 = vand.u32 %v7638, 4294901760
    %7640 = vmatpush1.msra.mxu0 %v7639
    %7641 = vmatprep.subr.mxu0 0.0
    %v7642 = vand.u32 %v3002, 4294901760
    %v7643 = vsub.f32 %v3002, %v7642
    %v7644 = vand.u32 %v7643, 4294901760
    %v7645 = vsub.f32 %v7643, %v7644
    %v7646 = vand.u32 %v7645, 4294901760
    %7647 = vmatpush1.msra.mxu0 %v7646
    %7648 = vmatprep.subr.mxu0 0.0
    %v7649 = vand.u32 %v3001, 4294901760
    %v7650 = vsub.f32 %v3001, %v7649
    %v7651 = vand.u32 %v7650, 4294901760
    %v7652 = vsub.f32 %v7650, %v7651
    %v7653 = vand.u32 %v7652, 4294901760
    %7654 = vmatpush1.msra.mxu0 %v7653
    %7655 = vmatprep.subr.mxu0 0.0
    %v7656 = vand.u32 %v3000, 4294901760
    %v7657 = vsub.f32 %v3000, %v7656
    %v7658 = vand.u32 %v7657, 4294901760
    %v7659 = vsub.f32 %v7657, %v7658
    %v7660 = vand.u32 %v7659, 4294901760
    %7661 = vmatpush1.msra.mxu0 %v7660
    %7662 = vmatprep.subr.mxu0 0.0
    %v7663 = vand.u32 %v3031, 4294901760
    %v7664 = vsub.f32 %v3031, %v7663
    %v7665 = vand.u32 %v7664, 4294901760
    %v7666 = vsub.f32 %v7664, %v7665
    %v7667 = vand.u32 %v7666, 4294901760
    %7668 = vmatpush2.msra.mxu0 %v7667
    %7669 = vmatprep.subr.mxu0 0.0
    %v7670 = vand.u32 %v3030, 4294901760
    %v7671 = vsub.f32 %v3030, %v7670
    %v7672 = vand.u32 %v7671, 4294901760
    %v7673 = vsub.f32 %v7671, %v7672
    %v7674 = vand.u32 %v7673, 4294901760
    %7675 = vmatpush2.msra.mxu0 %v7674
    %7676 = vmatprep.subr.mxu0 0.0
    %v7677 = vand.u32 %v3029, 4294901760
    %v7678 = vsub.f32 %v3029, %v7677
    %v7679 = vand.u32 %v7678, 4294901760
    %v7680 = vsub.f32 %v7678, %v7679
    %v7681 = vand.u32 %v7680, 4294901760
    %7682 = vmatpush2.msra.mxu0 %v7681
    %7683 = vmatprep.subr.mxu0 0.0
    %v7684 = vand.u32 %v3028, 4294901760
    %v7685 = vsub.f32 %v3028, %v7684
    %v7686 = vand.u32 %v7685, 4294901760
    %v7687 = vsub.f32 %v7685, %v7686
    %v7688 = vand.u32 %v7687, 4294901760
    %7689 = vmatpush2.msra.mxu0 %v7688
    %7690 = vmatprep.subr.mxu0 0.0
    %v7691 = vand.u32 %v3027, 4294901760
    %v7692 = vsub.f32 %v3027, %v7691
    %v7693 = vand.u32 %v7692, 4294901760
    %v7694 = vsub.f32 %v7692, %v7693
    %v7695 = vand.u32 %v7694, 4294901760
    %7696 = vmatpush2.msra.mxu0 %v7695
    %7697 = vmatprep.subr.mxu0 0.0
    %v7698 = vand.u32 %v3026, 4294901760
    %v7699 = vsub.f32 %v3026, %v7698
    %v7700 = vand.u32 %v7699, 4294901760
    %v7701 = vsub.f32 %v7699, %v7700
    %v7702 = vand.u32 %v7701, 4294901760
    %7703 = vmatpush2.msra.mxu0 %v7702
    %7704 = vmatprep.subr.mxu0 0.0
    %v7705 = vand.u32 %v3025, 4294901760
    %v7706 = vsub.f32 %v3025, %v7705
    %v7707 = vand.u32 %v7706, 4294901760
    %v7708 = vsub.f32 %v7706, %v7707
    %v7709 = vand.u32 %v7708, 4294901760
    %7710 = vmatpush2.msra.mxu0 %v7709
    %7711 = vmatprep.subr.mxu0 0.0
    %v7712 = vand.u32 %v3024, 4294901760
    %v7713 = vsub.f32 %v3024, %v7712
    %v7714 = vand.u32 %v7713, 4294901760
    %v7715 = vsub.f32 %v7713, %v7714
    %v7716 = vand.u32 %v7715, 4294901760
    %7717 = vmatpush2.msra.mxu0 %v7716
    %7718 = vmatprep.subr.mxu0 0.0
    %v7719 = vand.u32 %v3023, 4294901760
    %v7720 = vsub.f32 %v3023, %v7719
    %v7721 = vand.u32 %v7720, 4294901760
    %v7722 = vsub.f32 %v7720, %v7721
    %v7723 = vand.u32 %v7722, 4294901760
    %7724 = vmatpush2.msra.mxu0 %v7723
    %7725 = vmatprep.subr.mxu0 0.0
    %v7726 = vand.u32 %v3022, 4294901760
    %v7727 = vsub.f32 %v3022, %v7726
    %v7728 = vand.u32 %v7727, 4294901760
    %v7729 = vsub.f32 %v7727, %v7728
    %v7730 = vand.u32 %v7729, 4294901760
    %7731 = vmatpush2.msra.mxu0 %v7730
    %7732 = vmatprep.subr.mxu0 0.0
    %v7733 = vand.u32 %v3021, 4294901760
    %v7734 = vsub.f32 %v3021, %v7733
    %v7735 = vand.u32 %v7734, 4294901760
    %v7736 = vsub.f32 %v7734, %v7735
    %v7737 = vand.u32 %v7736, 4294901760
    %7738 = vmatpush2.msra.mxu0 %v7737
    %7739 = vmatprep.subr.mxu0 0.0
    %v7740 = vand.u32 %v3020, 4294901760
    %v7741 = vsub.f32 %v3020, %v7740
    %v7742 = vand.u32 %v7741, 4294901760
    %v7743 = vsub.f32 %v7741, %v7742
    %v7744 = vand.u32 %v7743, 4294901760
    %7745 = vmatpush2.msra.mxu0 %v7744
    %7746 = vmatprep.subr.mxu0 0.0
    %v7747 = vand.u32 %v3019, 4294901760
    %v7748 = vsub.f32 %v3019, %v7747
    %v7749 = vand.u32 %v7748, 4294901760
    %v7750 = vsub.f32 %v7748, %v7749
    %v7751 = vand.u32 %v7750, 4294901760
    %7752 = vmatpush2.msra.mxu0 %v7751
    %7753 = vmatprep.subr.mxu0 0.0
    %v7754 = vand.u32 %v3018, 4294901760
    %v7755 = vsub.f32 %v3018, %v7754
    %v7756 = vand.u32 %v7755, 4294901760
    %v7757 = vsub.f32 %v7755, %v7756
    %v7758 = vand.u32 %v7757, 4294901760
    %7759 = vmatpush2.msra.mxu0 %v7758
    %7760 = vmatprep.subr.mxu0 0.0
    %v7761 = vand.u32 %v3017, 4294901760
    %v7762 = vsub.f32 %v3017, %v7761
    %v7763 = vand.u32 %v7762, 4294901760
    %v7764 = vsub.f32 %v7762, %v7763
    %v7765 = vand.u32 %v7764, 4294901760
    %7766 = vmatpush2.msra.mxu0 %v7765
    %7767 = vmatprep.subr.mxu0 0.0
    %v7768 = vand.u32 %v3016, 4294901760
    %v7769 = vsub.f32 %v3016, %v7768
    %v7770 = vand.u32 %v7769, 4294901760
    %v7771 = vsub.f32 %v7769, %v7770
    %v7772 = vand.u32 %v7771, 4294901760
    %7773 = vmatpush2.msra.mxu0 %v7772
    %v7774 = vand.u32 %v1482, 4294901760
    %7775 = vmatprep.mubr.f32.mxu0 %v7774
    %v7776 = vand.u32 %v1480, 4294901760
    %7777 = vmatmul.mubr.f32.gmra.mxu0 %v7776
    %v7778 = vpop.f32.mrf.mxu0
    %v7779 = vadd.f32 %v7547, %v7778
    %v7780 = vpop.f32.mrf.mxu0
    %7781 = vdwg.mxu0
    %7782 = vmatprep.subr.mxu0 0.0
    %v7783 = vand.u32 %v3015, 4294901760
    %v7784 = vsub.f32 %v3015, %v7783
    %7785 = vmatpush1.msra.mxu0 %v7784
    %7786 = vmatprep.subr.mxu0 0.0
    %v7787 = vand.u32 %v3014, 4294901760
    %v7788 = vsub.f32 %v3014, %v7787
    %7789 = vmatpush1.msra.mxu0 %v7788
    %7790 = vmatprep.subr.mxu0 0.0
    %v7791 = vand.u32 %v3013, 4294901760
    %v7792 = vsub.f32 %v3013, %v7791
    %7793 = vmatpush1.msra.mxu0 %v7792
    %7794 = vmatprep.subr.mxu0 0.0
    %v7795 = vand.u32 %v3012, 4294901760
    %v7796 = vsub.f32 %v3012, %v7795
    %7797 = vmatpush1.msra.mxu0 %v7796
    %7798 = vmatprep.subr.mxu0 0.0
    %v7799 = vand.u32 %v3011, 4294901760
    %v7800 = vsub.f32 %v3011, %v7799
    %7801 = vmatpush1.msra.mxu0 %v7800
    %7802 = vmatprep.subr.mxu0 0.0
    %v7803 = vand.u32 %v3010, 4294901760
    %v7804 = vsub.f32 %v3010, %v7803
    %7805 = vmatpush1.msra.mxu0 %v7804
    %7806 = vmatprep.subr.mxu0 0.0
    %v7807 = vand.u32 %v3009, 4294901760
    %v7808 = vsub.f32 %v3009, %v7807
    %7809 = vmatpush1.msra.mxu0 %v7808
    %7810 = vmatprep.subr.mxu0 0.0
    %v7811 = vand.u32 %v3008, 4294901760
    %v7812 = vsub.f32 %v3008, %v7811
    %7813 = vmatpush1.msra.mxu0 %v7812
    %7814 = vmatprep.subr.mxu0 0.0
    %v7815 = vand.u32 %v3007, 4294901760
    %v7816 = vsub.f32 %v3007, %v7815
    %7817 = vmatpush1.msra.mxu0 %v7816
    %7818 = vmatprep.subr.mxu0 0.0
    %v7819 = vand.u32 %v3006, 4294901760
    %v7820 = vsub.f32 %v3006, %v7819
    %7821 = vmatpush1.msra.mxu0 %v7820
    %7822 = vmatprep.subr.mxu0 0.0
    %v7823 = vand.u32 %v3005, 4294901760
    %v7824 = vsub.f32 %v3005, %v7823
    %7825 = vmatpush1.msra.mxu0 %v7824
    %7826 = vmatprep.subr.mxu0 0.0
    %v7827 = vand.u32 %v3004, 4294901760
    %v7828 = vsub.f32 %v3004, %v7827
    %7829 = vmatpush1.msra.mxu0 %v7828
    %7830 = vmatprep.subr.mxu0 0.0
    %v7831 = vand.u32 %v3003, 4294901760
    %v7832 = vsub.f32 %v3003, %v7831
    %7833 = vmatpush1.msra.mxu0 %v7832
    %7834 = vmatprep.subr.mxu0 0.0
    %v7835 = vand.u32 %v3002, 4294901760
    %v7836 = vsub.f32 %v3002, %v7835
    %7837 = vmatpush1.msra.mxu0 %v7836
    %7838 = vmatprep.subr.mxu0 0.0
    %v7839 = vand.u32 %v3001, 4294901760
    %v7840 = vsub.f32 %v3001, %v7839
    %7841 = vmatpush1.msra.mxu0 %v7840
    %7842 = vmatprep.subr.mxu0 0.0
    %v7843 = vand.u32 %v3000, 4294901760
    %v7844 = vsub.f32 %v3000, %v7843
    %7845 = vmatpush1.msra.mxu0 %v7844
    %7846 = vmatprep.subr.mxu0 0.0
    %v7847 = vand.u32 %v3031, 4294901760
    %v7848 = vsub.f32 %v3031, %v7847
    %7849 = vmatpush2.msra.mxu0 %v7848
    %7850 = vmatprep.subr.mxu0 0.0
    %v7851 = vand.u32 %v3030, 4294901760
    %v7852 = vsub.f32 %v3030, %v7851
    %7853 = vmatpush2.msra.mxu0 %v7852
    %7854 = vmatprep.subr.mxu0 0.0
    %v7855 = vand.u32 %v3029, 4294901760
    %v7856 = vsub.f32 %v3029, %v7855
    %7857 = vmatpush2.msra.mxu0 %v7856
    %7858 = vmatprep.subr.mxu0 0.0
    %v7859 = vand.u32 %v3028, 4294901760
    %v7860 = vsub.f32 %v3028, %v7859
    %7861 = vmatpush2.msra.mxu0 %v7860
    %7862 = vmatprep.subr.mxu0 0.0
    %v7863 = vand.u32 %v3027, 4294901760
    %v7864 = vsub.f32 %v3027, %v7863
    %7865 = vmatpush2.msra.mxu0 %v7864
    %7866 = vmatprep.subr.mxu0 0.0
    %v7867 = vand.u32 %v3026, 4294901760
    %v7868 = vsub.f32 %v3026, %v7867
    %7869 = vmatpush2.msra.mxu0 %v7868
    %7870 = vmatprep.subr.mxu0 0.0
    %v7871 = vand.u32 %v3025, 4294901760
    %v7872 = vsub.f32 %v3025, %v7871
    %7873 = vmatpush2.msra.mxu0 %v7872
    %7874 = vmatprep.subr.mxu0 0.0
    %v7875 = vand.u32 %v3024, 4294901760
    %v7876 = vsub.f32 %v3024, %v7875
    %7877 = vmatpush2.msra.mxu0 %v7876
    %7878 = vmatprep.subr.mxu0 0.0
    %v7879 = vand.u32 %v3023, 4294901760
    %v7880 = vsub.f32 %v3023, %v7879
    %7881 = vmatpush2.msra.mxu0 %v7880
    %7882 = vmatprep.subr.mxu0 0.0
    %v7883 = vand.u32 %v3022, 4294901760
    %v7884 = vsub.f32 %v3022, %v7883
    %7885 = vmatpush2.msra.mxu0 %v7884
    %7886 = vmatprep.subr.mxu0 0.0
    %v7887 = vand.u32 %v3021, 4294901760
    %v7888 = vsub.f32 %v3021, %v7887
    %7889 = vmatpush2.msra.mxu0 %v7888
    %7890 = vmatprep.subr.mxu0 0.0
    %v7891 = vand.u32 %v3020, 4294901760
    %v7892 = vsub.f32 %v3020, %v7891
    %7893 = vmatpush2.msra.mxu0 %v7892
    %7894 = vmatprep.subr.mxu0 0.0
    %v7895 = vand.u32 %v3019, 4294901760
    %v7896 = vsub.f32 %v3019, %v7895
    %7897 = vmatpush2.msra.mxu0 %v7896
    %7898 = vmatprep.subr.mxu0 0.0
    %v7899 = vand.u32 %v3018, 4294901760
    %v7900 = vsub.f32 %v3018, %v7899
    %7901 = vmatpush2.msra.mxu0 %v7900
    %7902 = vmatprep.subr.mxu0 0.0
    %v7903 = vand.u32 %v3017, 4294901760
    %v7904 = vsub.f32 %v3017, %v7903
    %7905 = vmatpush2.msra.mxu0 %v7904
    %7906 = vmatprep.subr.mxu0 0.0
    %v7907 = vand.u32 %v3016, 4294901760
    %v7908 = vsub.f32 %v3016, %v7907
    %7909 = vmatpush2.msra.mxu0 %v7908
    %v7910 = vand.u32 %v1482, 4294901760
    %v7911 = vsub.f32 %v1482, %v7910
    %7912 = vmatprep.mubr.f32.mxu0 %v7911
    %v7913 = vand.u32 %v1480, 4294901760
    %v7914 = vsub.f32 %v1480, %v7913
    %7915 = vmatmul.mubr.f32.gmra.mxu0 %v7914
    %v7916 = vpop.f32.mrf.mxu0
    %v7917 = vadd.f32 %v7779, %v7916
    %v7918 = vpop.f32.mrf.mxu0
    %7919 = vdwg.mxu0
    %7920 = vmatprep.subr.mxu0 0.0
    %v7921 = vand.u32 %v3015, 4294901760
    %7922 = vmatpush1.msra.mxu0 %v7921
    %7923 = vmatprep.subr.mxu0 0.0
    %v7924 = vand.u32 %v3014, 4294901760
    %7925 = vmatpush1.msra.mxu0 %v7924
    %7926 = vmatprep.subr.mxu0 0.0
    %v7927 = vand.u32 %v3013, 4294901760
    %7928 = vmatpush1.msra.mxu0 %v7927
    %7929 = vmatprep.subr.mxu0 0.0
    %v7930 = vand.u32 %v3012, 4294901760
    %7931 = vmatpush1.msra.mxu0 %v7930
    %7932 = vmatprep.subr.mxu0 0.0
    %v7933 = vand.u32 %v3011, 4294901760
    %7934 = vmatpush1.msra.mxu0 %v7933
    %7935 = vmatprep.subr.mxu0 0.0
    %v7936 = vand.u32 %v3010, 4294901760
    %7937 = vmatpush1.msra.mxu0 %v7936
    %7938 = vmatprep.subr.mxu0 0.0
    %v7939 = vand.u32 %v3009, 4294901760
    %7940 = vmatpush1.msra.mxu0 %v7939
    %7941 = vmatprep.subr.mxu0 0.0
    %v7942 = vand.u32 %v3008, 4294901760
    %7943 = vmatpush1.msra.mxu0 %v7942
    %7944 = vmatprep.subr.mxu0 0.0
    %v7945 = vand.u32 %v3007, 4294901760
    %7946 = vmatpush1.msra.mxu0 %v7945
    %7947 = vmatprep.subr.mxu0 0.0
    %v7948 = vand.u32 %v3006, 4294901760
    %7949 = vmatpush1.msra.mxu0 %v7948
    %7950 = vmatprep.subr.mxu0 0.0
    %v7951 = vand.u32 %v3005, 4294901760
    %7952 = vmatpush1.msra.mxu0 %v7951
    %7953 = vmatprep.subr.mxu0 0.0
    %v7954 = vand.u32 %v3004, 4294901760
    %7955 = vmatpush1.msra.mxu0 %v7954
    %7956 = vmatprep.subr.mxu0 0.0
    %v7957 = vand.u32 %v3003, 4294901760
    %7958 = vmatpush1.msra.mxu0 %v7957
    %7959 = vmatprep.subr.mxu0 0.0
    %v7960 = vand.u32 %v3002, 4294901760
    %7961 = vmatpush1.msra.mxu0 %v7960
    %7962 = vmatprep.subr.mxu0 0.0
    %v7963 = vand.u32 %v3001, 4294901760
    %7964 = vmatpush1.msra.mxu0 %v7963
    %7965 = vmatprep.subr.mxu0 0.0
    %v7966 = vand.u32 %v3000, 4294901760
    %7967 = vmatpush1.msra.mxu0 %v7966
    %7968 = vmatprep.subr.mxu0 0.0
    %v7969 = vand.u32 %v3031, 4294901760
    %7970 = vmatpush2.msra.mxu0 %v7969
    %7971 = vmatprep.subr.mxu0 0.0
    %v7972 = vand.u32 %v3030, 4294901760
    %7973 = vmatpush2.msra.mxu0 %v7972
    %7974 = vmatprep.subr.mxu0 0.0
    %v7975 = vand.u32 %v3029, 4294901760
    %7976 = vmatpush2.msra.mxu0 %v7975
    %7977 = vmatprep.subr.mxu0 0.0
    %v7978 = vand.u32 %v3028, 4294901760
    %7979 = vmatpush2.msra.mxu0 %v7978
    %7980 = vmatprep.subr.mxu0 0.0
    %v7981 = vand.u32 %v3027, 4294901760
    %7982 = vmatpush2.msra.mxu0 %v7981
    %7983 = vmatprep.subr.mxu0 0.0
    %v7984 = vand.u32 %v3026, 4294901760
    %7985 = vmatpush2.msra.mxu0 %v7984
    %7986 = vmatprep.subr.mxu0 0.0
    %v7987 = vand.u32 %v3025, 4294901760
    %7988 = vmatpush2.msra.mxu0 %v7987
    %7989 = vmatprep.subr.mxu0 0.0
    %v7990 = vand.u32 %v3024, 4294901760
    %7991 = vmatpush2.msra.mxu0 %v7990
    %7992 = vmatprep.subr.mxu0 0.0
    %v7993 = vand.u32 %v3023, 4294901760
    %7994 = vmatpush2.msra.mxu0 %v7993
    %7995 = vmatprep.subr.mxu0 0.0
    %v7996 = vand.u32 %v3022, 4294901760
    %7997 = vmatpush2.msra.mxu0 %v7996
    %7998 = vmatprep.subr.mxu0 0.0
    %v7999 = vand.u32 %v3021, 4294901760
    %8000 = vmatpush2.msra.mxu0 %v7999
    %8001 = vmatprep.subr.mxu0 0.0
    %v8002 = vand.u32 %v3020, 4294901760
    %8003 = vmatpush2.msra.mxu0 %v8002
    %8004 = vmatprep.subr.mxu0 0.0
    %v8005 = vand.u32 %v3019, 4294901760
    %8006 = vmatpush2.msra.mxu0 %v8005
    %8007 = vmatprep.subr.mxu0 0.0
    %v8008 = vand.u32 %v3018, 4294901760
    %8009 = vmatpush2.msra.mxu0 %v8008
    %8010 = vmatprep.subr.mxu0 0.0
    %v8011 = vand.u32 %v3017, 4294901760
    %8012 = vmatpush2.msra.mxu0 %v8011
    %8013 = vmatprep.subr.mxu0 0.0
    %v8014 = vand.u32 %v3016, 4294901760
    %8015 = vmatpush2.msra.mxu0 %v8014
    %v8016 = vand.u32 %v1482, 4294901760
    %v8017 = vsub.f32 %v1482, %v8016
    %v8018 = vand.u32 %v8017, 4294901760
    %8019 = vmatprep.mubr.f32.mxu0 %v8018
    %v8020 = vand.u32 %v1480, 4294901760
    %v8021 = vsub.f32 %v1480, %v8020
    %v8022 = vand.u32 %v8021, 4294901760
    %8023 = vmatmul.mubr.f32.gmra.mxu0 %v8022
    %v8024 = vpop.f32.mrf.mxu0
    %v8025 = vadd.f32 %v7917, %v8024
    %v8026 = vpop.f32.mrf.mxu0
    %8027 = vdwg.mxu0
    %8028 = vmatprep.subr.mxu0 0.0
    %v8029 = vand.u32 %v3015, 4294901760
    %v8030 = vsub.f32 %v3015, %v8029
    %v8031 = vand.u32 %v8030, 4294901760
    %8032 = vmatpush1.msra.mxu0 %v8031
    %8033 = vmatprep.subr.mxu0 0.0
    %v8034 = vand.u32 %v3014, 4294901760
    %v8035 = vsub.f32 %v3014, %v8034
    %v8036 = vand.u32 %v8035, 4294901760
    %8037 = vmatpush1.msra.mxu0 %v8036
    %8038 = vmatprep.subr.mxu0 0.0
    %v8039 = vand.u32 %v3013, 4294901760
    %v8040 = vsub.f32 %v3013, %v8039
    %v8041 = vand.u32 %v8040, 4294901760
    %8042 = vmatpush1.msra.mxu0 %v8041
    %8043 = vmatprep.subr.mxu0 0.0
    %v8044 = vand.u32 %v3012, 4294901760
    %v8045 = vsub.f32 %v3012, %v8044
    %v8046 = vand.u32 %v8045, 4294901760
    %8047 = vmatpush1.msra.mxu0 %v8046
    %8048 = vmatprep.subr.mxu0 0.0
    %v8049 = vand.u32 %v3011, 4294901760
    %v8050 = vsub.f32 %v3011, %v8049
    %v8051 = vand.u32 %v8050, 4294901760
    %8052 = vmatpush1.msra.mxu0 %v8051
    %8053 = vmatprep.subr.mxu0 0.0
    %v8054 = vand.u32 %v3010, 4294901760
    %v8055 = vsub.f32 %v3010, %v8054
    %v8056 = vand.u32 %v8055, 4294901760
    %8057 = vmatpush1.msra.mxu0 %v8056
    %8058 = vmatprep.subr.mxu0 0.0
    %v8059 = vand.u32 %v3009, 4294901760
    %v8060 = vsub.f32 %v3009, %v8059
    %v8061 = vand.u32 %v8060, 4294901760
    %8062 = vmatpush1.msra.mxu0 %v8061
    %8063 = vmatprep.subr.mxu0 0.0
    %v8064 = vand.u32 %v3008, 4294901760
    %v8065 = vsub.f32 %v3008, %v8064
    %v8066 = vand.u32 %v8065, 4294901760
    %8067 = vmatpush1.msra.mxu0 %v8066
    %8068 = vmatprep.subr.mxu0 0.0
    %v8069 = vand.u32 %v3007, 4294901760
    %v8070 = vsub.f32 %v3007, %v8069
    %v8071 = vand.u32 %v8070, 4294901760
    %8072 = vmatpush1.msra.mxu0 %v8071
    %8073 = vmatprep.subr.mxu0 0.0
    %v8074 = vand.u32 %v3006, 4294901760
    %v8075 = vsub.f32 %v3006, %v8074
    %v8076 = vand.u32 %v8075, 4294901760
    %8077 = vmatpush1.msra.mxu0 %v8076
    %8078 = vmatprep.subr.mxu0 0.0
    %v8079 = vand.u32 %v3005, 4294901760
    %v8080 = vsub.f32 %v3005, %v8079
    %v8081 = vand.u32 %v8080, 4294901760
    %8082 = vmatpush1.msra.mxu0 %v8081
    %8083 = vmatprep.subr.mxu0 0.0
    %v8084 = vand.u32 %v3004, 4294901760
    %v8085 = vsub.f32 %v3004, %v8084
    %v8086 = vand.u32 %v8085, 4294901760
    %8087 = vmatpush1.msra.mxu0 %v8086
    %8088 = vmatprep.subr.mxu0 0.0
    %v8089 = vand.u32 %v3003, 4294901760
    %v8090 = vsub.f32 %v3003, %v8089
    %v8091 = vand.u32 %v8090, 4294901760
    %8092 = vmatpush1.msra.mxu0 %v8091
    %8093 = vmatprep.subr.mxu0 0.0
    %v8094 = vand.u32 %v3002, 4294901760
    %v8095 = vsub.f32 %v3002, %v8094
    %v8096 = vand.u32 %v8095, 4294901760
    %8097 = vmatpush1.msra.mxu0 %v8096
    %8098 = vmatprep.subr.mxu0 0.0
    %v8099 = vand.u32 %v3001, 4294901760
    %v8100 = vsub.f32 %v3001, %v8099
    %v8101 = vand.u32 %v8100, 4294901760
    %8102 = vmatpush1.msra.mxu0 %v8101
    %8103 = vmatprep.subr.mxu0 0.0
    %v8104 = vand.u32 %v3000, 4294901760
    %v8105 = vsub.f32 %v3000, %v8104
    %v8106 = vand.u32 %v8105, 4294901760
    %8107 = vmatpush1.msra.mxu0 %v8106
    %8108 = vmatprep.subr.mxu0 0.0
    %v8109 = vand.u32 %v3031, 4294901760
    %v8110 = vsub.f32 %v3031, %v8109
    %v8111 = vand.u32 %v8110, 4294901760
    %8112 = vmatpush2.msra.mxu0 %v8111
    %8113 = vmatprep.subr.mxu0 0.0
    %v8114 = vand.u32 %v3030, 4294901760
    %v8115 = vsub.f32 %v3030, %v8114
    %v8116 = vand.u32 %v8115, 4294901760
    %8117 = vmatpush2.msra.mxu0 %v8116
    %8118 = vmatprep.subr.mxu0 0.0
    %v8119 = vand.u32 %v3029, 4294901760
    %v8120 = vsub.f32 %v3029, %v8119
    %v8121 = vand.u32 %v8120, 4294901760
    %8122 = vmatpush2.msra.mxu0 %v8121
    %8123 = vmatprep.subr.mxu0 0.0
    %v8124 = vand.u32 %v3028, 4294901760
    %v8125 = vsub.f32 %v3028, %v8124
    %v8126 = vand.u32 %v8125, 4294901760
    %8127 = vmatpush2.msra.mxu0 %v8126
    %8128 = vmatprep.subr.mxu0 0.0
    %v8129 = vand.u32 %v3027, 4294901760
    %v8130 = vsub.f32 %v3027, %v8129
    %v8131 = vand.u32 %v8130, 4294901760
    %8132 = vmatpush2.msra.mxu0 %v8131
    %8133 = vmatprep.subr.mxu0 0.0
    %v8134 = vand.u32 %v3026, 4294901760
    %v8135 = vsub.f32 %v3026, %v8134
    %v8136 = vand.u32 %v8135, 4294901760
    %8137 = vmatpush2.msra.mxu0 %v8136
    %8138 = vmatprep.subr.mxu0 0.0
    %v8139 = vand.u32 %v3025, 4294901760
    %v8140 = vsub.f32 %v3025, %v8139
    %v8141 = vand.u32 %v8140, 4294901760
    %8142 = vmatpush2.msra.mxu0 %v8141
    %8143 = vmatprep.subr.mxu0 0.0
    %v8144 = vand.u32 %v3024, 4294901760
    %v8145 = vsub.f32 %v3024, %v8144
    %v8146 = vand.u32 %v8145, 4294901760
    %8147 = vmatpush2.msra.mxu0 %v8146
    %8148 = vmatprep.subr.mxu0 0.0
    %v8149 = vand.u32 %v3023, 4294901760
    %v8150 = vsub.f32 %v3023, %v8149
    %v8151 = vand.u32 %v8150, 4294901760
    %8152 = vmatpush2.msra.mxu0 %v8151
    %8153 = vmatprep.subr.mxu0 0.0
    %v8154 = vand.u32 %v3022, 4294901760
    %v8155 = vsub.f32 %v3022, %v8154
    %v8156 = vand.u32 %v8155, 4294901760
    %8157 = vmatpush2.msra.mxu0 %v8156
    %8158 = vmatprep.subr.mxu0 0.0
    %v8159 = vand.u32 %v3021, 4294901760
    %v8160 = vsub.f32 %v3021, %v8159
    %v8161 = vand.u32 %v8160, 4294901760
    %8162 = vmatpush2.msra.mxu0 %v8161
    %8163 = vmatprep.subr.mxu0 0.0
    %v8164 = vand.u32 %v3020, 4294901760
    %v8165 = vsub.f32 %v3020, %v8164
    %v8166 = vand.u32 %v8165, 4294901760
    %8167 = vmatpush2.msra.mxu0 %v8166
    %8168 = vmatprep.subr.mxu0 0.0
    %v8169 = vand.u32 %v3019, 4294901760
    %v8170 = vsub.f32 %v3019, %v8169
    %v8171 = vand.u32 %v8170, 4294901760
    %8172 = vmatpush2.msra.mxu0 %v8171
    %8173 = vmatprep.subr.mxu0 0.0
    %v8174 = vand.u32 %v3018, 4294901760
    %v8175 = vsub.f32 %v3018, %v8174
    %v8176 = vand.u32 %v8175, 4294901760
    %8177 = vmatpush2.msra.mxu0 %v8176
    %8178 = vmatprep.subr.mxu0 0.0
    %v8179 = vand.u32 %v3017, 4294901760
    %v8180 = vsub.f32 %v3017, %v8179
    %v8181 = vand.u32 %v8180, 4294901760
    %8182 = vmatpush2.msra.mxu0 %v8181
    %8183 = vmatprep.subr.mxu0 0.0
    %v8184 = vand.u32 %v3016, 4294901760
    %v8185 = vsub.f32 %v3016, %v8184
    %v8186 = vand.u32 %v8185, 4294901760
    %8187 = vmatpush2.msra.mxu0 %v8186
    %v8188 = vand.u32 %v1482, 4294901760
    %8189 = vmatprep.mubr.f32.mxu0 %v8188
    %v8190 = vand.u32 %v1480, 4294901760
    %8191 = vmatmul.mubr.f32.gmra.mxu0 %v8190
    %v8192 = vpop.f32.mrf.mxu0
    %v8193 = vadd.f32 %v8025, %v8192
    %v8194 = vpop.f32.mrf.mxu0
    %8195 = vdwg.mxu0
    %8196 = vmatprep.subr.mxu0 0.0
    %v8197 = vand.u32 %v3015, 4294901760
    %8198 = vmatpush1.msra.mxu0 %v8197
    %8199 = vmatprep.subr.mxu0 0.0
    %v8200 = vand.u32 %v3014, 4294901760
    %8201 = vmatpush1.msra.mxu0 %v8200
    %8202 = vmatprep.subr.mxu0 0.0
    %v8203 = vand.u32 %v3013, 4294901760
    %8204 = vmatpush1.msra.mxu0 %v8203
    %8205 = vmatprep.subr.mxu0 0.0
    %v8206 = vand.u32 %v3012, 4294901760
    %8207 = vmatpush1.msra.mxu0 %v8206
    %8208 = vmatprep.subr.mxu0 0.0
    %v8209 = vand.u32 %v3011, 4294901760
    %8210 = vmatpush1.msra.mxu0 %v8209
    %8211 = vmatprep.subr.mxu0 0.0
    %v8212 = vand.u32 %v3010, 4294901760
    %8213 = vmatpush1.msra.mxu0 %v8212
    %8214 = vmatprep.subr.mxu0 0.0
    %v8215 = vand.u32 %v3009, 4294901760
    %8216 = vmatpush1.msra.mxu0 %v8215
    %8217 = vmatprep.subr.mxu0 0.0
    %v8218 = vand.u32 %v3008, 4294901760
    %8219 = vmatpush1.msra.mxu0 %v8218
    %8220 = vmatprep.subr.mxu0 0.0
    %v8221 = vand.u32 %v3007, 4294901760
    %8222 = vmatpush1.msra.mxu0 %v8221
    %8223 = vmatprep.subr.mxu0 0.0
    %v8224 = vand.u32 %v3006, 4294901760
    %8225 = vmatpush1.msra.mxu0 %v8224
    %8226 = vmatprep.subr.mxu0 0.0
    %v8227 = vand.u32 %v3005, 4294901760
    %8228 = vmatpush1.msra.mxu0 %v8227
    %8229 = vmatprep.subr.mxu0 0.0
    %v8230 = vand.u32 %v3004, 4294901760
    %8231 = vmatpush1.msra.mxu0 %v8230
    %8232 = vmatprep.subr.mxu0 0.0
    %v8233 = vand.u32 %v3003, 4294901760
    %8234 = vmatpush1.msra.mxu0 %v8233
    %8235 = vmatprep.subr.mxu0 0.0
    %v8236 = vand.u32 %v3002, 4294901760
    %8237 = vmatpush1.msra.mxu0 %v8236
    %8238 = vmatprep.subr.mxu0 0.0
    %v8239 = vand.u32 %v3001, 4294901760
    %8240 = vmatpush1.msra.mxu0 %v8239
    %8241 = vmatprep.subr.mxu0 0.0
    %v8242 = vand.u32 %v3000, 4294901760
    %8243 = vmatpush1.msra.mxu0 %v8242
    %8244 = vmatprep.subr.mxu0 0.0
    %v8245 = vand.u32 %v3031, 4294901760
    %8246 = vmatpush2.msra.mxu0 %v8245
    %8247 = vmatprep.subr.mxu0 0.0
    %v8248 = vand.u32 %v3030, 4294901760
    %8249 = vmatpush2.msra.mxu0 %v8248
    %8250 = vmatprep.subr.mxu0 0.0
    %v8251 = vand.u32 %v3029, 4294901760
    %8252 = vmatpush2.msra.mxu0 %v8251
    %8253 = vmatprep.subr.mxu0 0.0
    %v8254 = vand.u32 %v3028, 4294901760
    %8255 = vmatpush2.msra.mxu0 %v8254
    %8256 = vmatprep.subr.mxu0 0.0
    %v8257 = vand.u32 %v3027, 4294901760
    %8258 = vmatpush2.msra.mxu0 %v8257
    %8259 = vmatprep.subr.mxu0 0.0
    %v8260 = vand.u32 %v3026, 4294901760
    %8261 = vmatpush2.msra.mxu0 %v8260
    %8262 = vmatprep.subr.mxu0 0.0
    %v8263 = vand.u32 %v3025, 4294901760
    %8264 = vmatpush2.msra.mxu0 %v8263
    %8265 = vmatprep.subr.mxu0 0.0
    %v8266 = vand.u32 %v3024, 4294901760
    %8267 = vmatpush2.msra.mxu0 %v8266
    %8268 = vmatprep.subr.mxu0 0.0
    %v8269 = vand.u32 %v3023, 4294901760
    %8270 = vmatpush2.msra.mxu0 %v8269
    %8271 = vmatprep.subr.mxu0 0.0
    %v8272 = vand.u32 %v3022, 4294901760
    %8273 = vmatpush2.msra.mxu0 %v8272
    %8274 = vmatprep.subr.mxu0 0.0
    %v8275 = vand.u32 %v3021, 4294901760
    %8276 = vmatpush2.msra.mxu0 %v8275
    %8277 = vmatprep.subr.mxu0 0.0
    %v8278 = vand.u32 %v3020, 4294901760
    %8279 = vmatpush2.msra.mxu0 %v8278
    %8280 = vmatprep.subr.mxu0 0.0
    %v8281 = vand.u32 %v3019, 4294901760
    %8282 = vmatpush2.msra.mxu0 %v8281
    %8283 = vmatprep.subr.mxu0 0.0
    %v8284 = vand.u32 %v3018, 4294901760
    %8285 = vmatpush2.msra.mxu0 %v8284
    %8286 = vmatprep.subr.mxu0 0.0
    %v8287 = vand.u32 %v3017, 4294901760
    %8288 = vmatpush2.msra.mxu0 %v8287
    %8289 = vmatprep.subr.mxu0 0.0
    %v8290 = vand.u32 %v3016, 4294901760
    %8291 = vmatpush2.msra.mxu0 %v8290
    %v8292 = vand.u32 %v1482, 4294901760
    %8293 = vmatprep.mubr.f32.mxu0 %v8292
    %v8294 = vand.u32 %v1480, 4294901760
    %8295 = vmatmul.mubr.f32.gmra.mxu0 %v8294
    %v8296 = vpop.f32.mrf.mxu0
    %v8297 = vadd.f32 %v8193, %v8296
    %v8298 = vpop.f32.mrf.mxu0
    %8299 = vdwg.mxu0
    %v8300 = vld [vmem:[%s7] sm:$0x1]
    %v8302 = vlaneseq
    %v8303 = vshrl.u32 %v8302, 7
    %v8304 = vsub.s32 0, %v8303
    %v8305 = vrot.slane %v8300, %v8304
    %v8307 = vadd.f32 %v8297, %v8305
    %8308 = vst [vmem:[#allocation2] sm:$0x3] %v8307
    // Predicated region
    $region34: #{ds_net_forward.3} parent=1 // pred_check
      _
    $region35: #{ds_net_forward.3} parent=1 // pred_check_branch
      %8310 = sbr.rel (0) target = $region37
    $region36: #{ds_net_forward.3} parent=1 // pred_region
      %s8312 = ssub.s32 32, 32
      %8313 = vsyncadd [#allocation3], %s8312
      %s8315 = sshll.u32 [#allocation2], 4
      %s8316 = int_to_ptr.vmem [resolvable:$true] %s8315
      %8318 = dma.vmem_to_hbm [thread:$0]  %s8316, 32, %s8, [#allocation3]
    $region37: #{ds_net_forward.3} parent=1 // pred_fallthru
      _
    // Predicated region
    $region38: #{ds_net_forward.3} parent=1 // pred_check
      _
    $region39: #{ds_net_forward.3} parent=1 // pred_check_branch
      %8320 = sbr.rel (0) target = $region41
    $region40: #{ds_net_forward.3} parent=1 // pred_region
      %8321 = dma.done [#allocation3], 32
    $region41: #{ds_net_forward.3} parent=1 // pred_fallthru
      _
    %8322 = vsyncpa [#allocation3], 1

</llo_original>
